<compile_context>
chip_gen: v6e
topology: v6e:2x2x1
jax: 0.10.0
libtpu: 0.0.40
codegen_flags: <defaults>
</compile_context>

<pallas_src>
from functools import partial

import numpy as np
import jax
import jax.numpy as jnp
from jax.experimental import pallas as pl
from jax.experimental.pallas import tpu as pltpu

EPS = 1e-5
CP = 128  # channel-lane padding (one full 128-lane vreg width)


# ---------------------------------------------------------------------------
# Fused Pallas kernel: 4x (conv3x3 + bias + ReLU + BatchNorm) + 1x1 projection
# ---------------------------------------------------------------------------
def _fused_stem_kernel(lhs0_ref, w0_ref, b0_ref,
                       g0_ref, be0_ref, s1_ref, wall1_ref, b1_ref,
                       g1_ref, be1_ref, s2_ref, wall2_ref, b2_ref,
                       g2_ref, be2_ref, s3_ref, wall3_ref, b3_ref,
                       g3_ref, be3_ref, w1x1_ref,
                       out_ref, *, m_list):
    """Whole-batch fused stem.  Every matmul has M = N*Ho*Wo rows and 128-padded lanes.

    lhs0_ref : (M0, CP)            layer-0 im2col (9*Cin features, zero-padded lanes)
    w0_ref   : (CP, CP)            layer-0 weights (rows = im2col features, cols = Cout)
    b*_ref   : (1, CP)             conv biases (zero in padded lanes)
    g*/be*   : (1, CP)             BatchNorm gamma / beta of layer * (zero in padded lanes)
    s{l}_ref : (9, M_l, M_{l-1})   0/1 tap-selection matrices (all-zero rows = spatial pad)
    wall{l}  : (CP, 9*CP)          per-tap dense weights, tap t in lane block [t*CP,(t+1)*CP)
    w1x1_ref : (CP, CP)            final 1x1 projection (bias-free)
    out_ref  : (M3, CP)            hidden_size channels in lanes [0, hidden)
    """

    def batchnorm(y, g_ref, be_ref, count):
        # Training-mode BatchNorm over all rows (N*H*W), biased variance, f32.
        inv_n = 1.0 / float(count)
        mean = jnp.sum(y, axis=0, keepdims=True) * inv_n
        var = jnp.sum(y * y, axis=0, keepdims=True) * inv_n - mean * mean
        scale = g_ref[...] * jax.lax.rsqrt(var + EPS)
        shift = be_ref[...] - mean * scale
        return y * scale + shift

    def conv3x3(z, s_ref, wall_ref, b_ref, m_out):
        # One dense matmul does the channel mixing of all 9 taps at once; 9 selection
        # matmuls (on 128-aligned lane slices of zw) realize pad + stride tap gathering.
        zw = jnp.dot(z, wall_ref[...], preferred_element_type=jnp.float32)
        acc = jnp.zeros((m_out, CP), jnp.float32)
        for t in range(9):
            acc = acc + jnp.dot(s_ref[t], zw[:, t * CP:(t + 1) * CP],
                                preferred_element_type=jnp.float32)
        return jnp.maximum(acc + b_ref[...], 0.0)

    # Layer 0: im2col'd input -> single matmul + bias + ReLU.
    y = jnp.maximum(
        jnp.dot(lhs0_ref[...], w0_ref[...], preferred_element_type=jnp.float32)
        + b0_ref[...], 0.0)

    # Layers 1..3: previous layer's BatchNorm fused into this layer's input.
    y = conv3x3(batchnorm(y, g0_ref, be0_ref, m_list[0]),
                s1_ref, wall1_ref, b1_ref, m_list[1])
    y = conv3x3(batchnorm(y, g1_ref, be1_ref, m_list[1]),
                s2_ref, wall2_ref, b2_ref, m_list[2])
    y = conv3x3(batchnorm(y, g2_ref, be2_ref, m_list[2]),
                s3_ref, wall3_ref, b3_ref, m_list[3])

    # Final: last BatchNorm + bias-free 1x1 projection.
    z = batchnorm(y, g3_ref, be3_ref, m_list[3])
    out_ref[...] = jnp.dot(z, w1x1_ref[...], preferred_element_type=jnp.float32)


# ---------------------------------------------------------------------------
# Forward wrapper (jitted): tiny layer-0 im2col + one pallas_call
# ---------------------------------------------------------------------------
def stem_forward(x_nchw, packed, *, dims):
    cin0, stride0, ho0, wo0, m_list, hidden = dims
    n = x_nchw.shape[0]
    assert x_nchw.shape[1] == cin0
    assert n * ho0 * wo0 == m_list[0]

    # Layer-0 im2col in the wrapper (single tiny XLA copy; layer 0 has no BN dependency).
    x = jnp.transpose(x_nchw, (0, 2, 3, 1)).astype(jnp.float32)          # NHWC
    xp = jnp.pad(x, ((0, 0), (1, 1), (1, 1), (0, 0)))
    taps = [xp[:, kh:kh + stride0 * ho0:stride0, kw:kw + stride0 * wo0:stride0, :]
            for kh in range(3) for kw in range(3)]
    lhs0 = jnp.concatenate(taps, axis=-1).reshape(n * ho0 * wo0, 9 * cin0)
    lhs0 = jnp.pad(lhs0, ((0, 0), (0, CP - 9 * cin0)))                   # (M0, 128)

    vmem = pl.BlockSpec(memory_space=pltpu.MemorySpace.VMEM)
    args = [
        lhs0, packed["w0"], packed["b"][0],
        packed["g"][0], packed["be"][0], packed["s"][0], packed["wall"][0], packed["b"][1],
        packed["g"][1], packed["be"][1], packed["s"][1], packed["wall"][1], packed["b"][2],
        packed["g"][2], packed["be"][2], packed["s"][2], packed["wall"][2], packed["b"][3],
        packed["g"][3], packed["be"][3], packed["w1x1"],
    ]
    out = pl.pallas_call(
        partial(_fused_stem_kernel, m_list=m_list),
        out_shape=jax.ShapeDtypeStruct((m_list[3], CP), jnp.float32),
        in_specs=[vmem] * len(args),
        out_specs=vmem,
        compiler_params=pltpu.CompilerParams(vmem_limit_bytes=32 * 1024 * 1024),
    )(*args)

    # Rows are ordered (b, fh, fw): drop channel padding, rearrange 'b d fh fw -> b (fh fw) d'.
    num_patches = m_list[3] // n
    return out[:, :hidden].reshape(n, num_patches, hidden)


# ---------------------------------------------------------------------------
# One-time (outside the jitted forward) parameter packing
# ---------------------------------------------------------------------------
def _pad2(a, rows, cols):
    out = np.zeros((rows, cols), np.float32)
    out[:a.shape[0], :a.shape[1]] = a
    return out


def _pad_row(v, cols):
    out = np.zeros((1, cols), np.float32)
    out[0, :v.shape[0]] = v
    return out


def _selection_mats(n, hin, win, stride):
    """0/1 matrices S[t]: S[t] @ flat(Z) = tap (kh, kw) = t of a 3x3 / stride / pad-1 conv.
    All-zero rows encode the spatial zero padding."""
    ho = hin if stride == 1 else hin // 2
    wo = win if stride == 1 else win // 2
    s = np.zeros((9, n * ho * wo, n * hin * win), np.float32)
    for kh in range(3):
        for kw in range(3):
            t = kh * 3 + kw
            for b in range(n):
                for oh in range(ho):
                    ih = stride * oh + kh - 1
                    if not (0 <= ih < hin):
                        continue
                    for ow in range(wo):
                        iw = stride * ow + kw - 1
                        if not (0 <= iw < win):
                            continue
                        s[t, (b * ho + oh) * wo + ow, (b * hin + ih) * win + iw] = 1.0
    return s


def pack_stem_params(params, img_size, batch, hidden_size):
    """Pack PyTorch-layout params into 128-lane-padded, MXU-friendly operands plus the
    constant tap-selection matrices.  Called once, outside the per-forward trace."""
    convs = params["conv3x3"]
    assert len(convs) == 4, "fused kernel is specialized to the 4-layer stem config"
    w_np = [np.asarray(p["w"], np.float32) for p in convs]
    b_np = [np.asarray(p["b"], np.float32) for p in convs]
    g_np = [np.asarray(p["gamma"], np.float32) for p in convs]
    e_np = [np.asarray(p["beta"], np.float32) for p in convs]

    # Layer geometry (ConvLayer rule: stride 1 iff Cin == Cout, else 2; pad 1).
    strides, spatial = [], [img_size]
    for w in w_np:
        cout, cin = w.shape[0], w.shape[1]
        s = 1 if cin == cout else 2
        strides.append(s)
        spatial.append(spatial[-1] if s == 1 else spatial[-1] // 2)
    m_list = tuple(batch * sp * sp for sp in spatial[1:])      # output rows per layer

    cout0, cin0 = w_np[0].shape[0], w_np[0].shape[1]
    assert 9 * cin0 <= CP and max(w.shape[0] for w in w_np) <= CP and hidden_size <= CP

    packed = {"b": [], "g": [], "be": [], "s": [], "wall": []}

    # Layer 0: im2col weight matrix, rows ordered (kh, kw, cin) to match the wrapper im2col.
    w0 = w_np[0].transpose(2, 3, 1, 0).reshape(9 * cin0, cout0)
    packed["w0"] = jnp.asarray(_pad2(w0, CP, CP))

    for l, w in enumerate(w_np):
        cout, cin = w.shape[0], w.shape[1]
        packed["b"].append(jnp.asarray(_pad_row(b_np[l], CP)))
        packed["g"].append(jnp.asarray(_pad_row(g_np[l], CP)))
        packed["be"].append(jnp.asarray(_pad_row(e_np[l], CP)))
        if l >= 1:
            wall = np.zeros((CP, 9 * CP), np.float32)
            for kh in range(3):
                for kw in range(3):
                    t = kh * 3 + kw
                    wall[:cin, t * CP:t * CP + cout] = w[:, :, kh, kw].T   # (cin, cout)
            packed["wall"].append(jnp.asarray(wall))
            packed["s"].append(
                jnp.asarray(_selection_mats(batch, spatial[l], spatial[l], strides[l])))

    w1 = np.asarray(params["conv1x1_w"], np.float32)[:, :, 0, 0]           # (hidden, c_last)
    packed["w1x1"] = jnp.asarray(_pad2(w1.T, CP, CP))

    dims = (cin0, strides[0], spatial[1], spatial[1], m_list, hidden_size)
    return packed, dims


# ---------------------------------------------------------------------------
# Parameter init (PyTorch layouts, deterministic)
# ---------------------------------------------------------------------------
def stem_channel_lists(input_channels, hidden_size, patch_size):
    assert patch_size == 16 and hidden_size == 96, "demo covers the small ViT-FS config"
    return [input_channels, 12, 24, 48], [12, 24, 48, 96]


def init_params(key, input_channels, hidden_size, patch_size):
    cin_list, cout_list = stem_channel_lists(input_channels, hidden_size, patch_size)
    params = {"conv3x3": []}
    for idx, (cin, cout) in enumerate(zip(cin_list, cout_list)):
        kw_key = jax.random.fold_in(key, 4 * idx + 0)
        kb_key = jax.random.fold_in(key, 4 * idx + 1)
        kg_key = jax.random.fold_in(key, 4 * idx + 2)
        ke_key = jax.random.fold_in(key, 4 * idx + 3)
        params["conv3x3"].append({
            # PyTorch Conv2d weight layout: (Cout, Cin, kH, kW)
            "w": 0.05 * jax.random.normal(kw_key, (cout, cin, 3, 3), jnp.float32),
            "b": 0.01 * jax.random.normal(kb_key, (cout,), jnp.float32),
            "gamma": 1.0 + 0.01 * jax.random.normal(kg_key, (cout,), jnp.float32),
            "beta": 0.01 * jax.random.normal(ke_key, (cout,), jnp.float32),
        })
    k1 = jax.random.fold_in(key, 1000)
    params["conv1x1_w"] = 0.05 * jax.random.normal(
        k1, (hidden_size, cout_list[-1], 1, 1), jnp.float32)
    return params


# ---------------------------------------------------------------------------
# Pure-JAX reference (fp32) for correctness checking
# ---------------------------------------------------------------------------
def _reference_stem(x_nchw, params, hidden_size, eps=EPS):
    x = x_nchw.astype(jnp.float32)
    for p in params["conv3x3"]:
        cout, cin = int(p["w"].shape[0]), int(p["w"].shape[1])
        stride = 1 if cin == cout else 2
        x = jax.lax.conv_general_dilated(
            x, p["w"], window_strides=(stride, stride), padding=((1, 1), (1, 1)),
            dimension_numbers=("NCHW", "OIHW", "NCHW"),
            precision=jax.lax.Precision.HIGHEST)
        x = x + p["b"][None, :, None, None]
        x = jnp.maximum(x, 0.0)
        mean = jnp.mean(x, axis=(0, 2, 3), keepdims=True)
        var = jnp.mean((x - mean) ** 2, axis=(0, 2, 3), keepdims=True)
        x = (x - mean) * jax.lax.rsqrt(var + eps)
        x = x * p["gamma"][None, :, None, None] + p["beta"][None, :, None, None]
    w1 = params["conv1x1_w"][:, :, 0, 0]
    x = jnp.einsum("nchw,dc->ndhw", x, w1, precision=jax.lax.Precision.HIGHEST)
    n, d, fh, fw = x.shape
    return jnp.transpose(x, (0, 2, 3, 1)).reshape(n, fh * fw, d)


# ---------------------------------------------------------------------------
if __name__ == "__main__":
    img_size = 32
    input_channels = 3
    hidden_size = 96
    patch_size = 16
    batch = 2

    key = jax.random.PRNGKey(0)
    x = jax.random.normal(jax.random.fold_in(key, 7),
                          (batch, input_channels, img_size, img_size), jnp.float32)
    params = init_params(jax.random.fold_in(key, 13),
                         input_channels, hidden_size, patch_size)

    packed, dims = pack_stem_params(params, img_size, batch, hidden_size)
    fwd = jax.jit(partial(stem_forward, dims=dims))
    out = jax.block_until_ready(fwd(x, packed))

    num_patches = (img_size // patch_size) ** 2
    assert out.shape == (batch, num_patches, hidden_size), out.shape
    assert bool(jnp.all(jnp.isfinite(out)))

    ref = _reference_stem(x, params, hidden_size)
    max_err = float(jnp.max(jnp.abs(out - ref)))
    assert jnp.allclose(out, ref, atol=5e-2, rtol=5e-2), f"max abs err {max_err}"

    print("KERNEL_OK")
</pallas_src>

<mosaic_0001>
module attributes {stable_mosaic.version = 11 : i64} {
  func.func @_fused_stem_kernel(%arg0: memref<512x128xf32, #tpu.memory_space<vmem>>, %arg1: memref<128x128xf32, #tpu.memory_space<vmem>>, %arg2: memref<1x128xf32, #tpu.memory_space<vmem>>, %arg3: memref<1x128xf32, #tpu.memory_space<vmem>>, %arg4: memref<1x128xf32, #tpu.memory_space<vmem>>, %arg5: memref<9x128x512xf32, #tpu.memory_space<vmem>>, %arg6: memref<128x1152xf32, #tpu.memory_space<vmem>>, %arg7: memref<1x128xf32, #tpu.memory_space<vmem>>, %arg8: memref<1x128xf32, #tpu.memory_space<vmem>>, %arg9: memref<1x128xf32, #tpu.memory_space<vmem>>, %arg10: memref<9x32x128xf32, #tpu.memory_space<vmem>>, %arg11: memref<128x1152xf32, #tpu.memory_space<vmem>>, %arg12: memref<1x128xf32, #tpu.memory_space<vmem>>, %arg13: memref<1x128xf32, #tpu.memory_space<vmem>>, %arg14: memref<1x128xf32, #tpu.memory_space<vmem>>, %arg15: memref<9x8x32xf32, #tpu.memory_space<vmem>>, %arg16: memref<128x1152xf32, #tpu.memory_space<vmem>>, %arg17: memref<1x128xf32, #tpu.memory_space<vmem>>, %arg18: memref<1x128xf32, #tpu.memory_space<vmem>>, %arg19: memref<1x128xf32, #tpu.memory_space<vmem>>, %arg20: memref<128x128xf32, #tpu.memory_space<vmem>>, %arg21: memref<8x128xf32, #tpu.memory_space<vmem>>) attributes {dimension_semantics = [], scalar_prefetch = 0 : i64, scratch_operands = 0 : i64, tpu.core_type = #tpu.core_type<tc>} {
    %c0 = arith.constant 0 : index
    %c0_0 = arith.constant 0 : index
    %0 = vector.load %arg0[%c0, %c0_0] : memref<512x128xf32, #tpu.memory_space<vmem>>, vector<512x128xf32>
    %c0_1 = arith.constant 0 : index
    %c0_2 = arith.constant 0 : index
    %1 = vector.load %arg1[%c0_1, %c0_2] : memref<128x128xf32, #tpu.memory_space<vmem>>, vector<128x128xf32>
    %cst = arith.constant dense<0.000000e+00> : vector<512x128xf32>
    %2 = tpu.matmul %0, %1, %cst {dimension_numbers = #tpu.dot_dimension_numbers<[1], [0], [0], [1], [0, 0, 1, 1], [], []>} : vector<512x128xf32>, vector<128x128xf32>, vector<512x128xf32> -> vector<512x128xf32>
    %c0_3 = arith.constant 0 : index
    %c0_4 = arith.constant 0 : index
    %3 = vector.load %arg2[%c0_3, %c0_4] : memref<1x128xf32, #tpu.memory_space<vmem>>, vector<1x128xf32>
    %4 = vector.broadcast %3 : vector<1x128xf32> to vector<512x128xf32>
    %5 = arith.addf %2, %4 : vector<512x128xf32>
    %cst_5 = arith.constant 0.000000e+00 : f32
    %6 = vector.broadcast %cst_5 : f32 to vector<512x128xf32>
    %7 = arith.maximumf %5, %6 : vector<512x128xf32>
    %cst_6 = arith.constant dense<0.000000e+00> : vector<128xf32>
    %8 = vector.multi_reduction <add>, %7, %cst_6 [0] : vector<512x128xf32> to vector<128xf32>
    %9 = vector.shape_cast %8 : vector<128xf32> to vector<1x128xf32>
    %cst_7 = arith.constant 0.001953125 : f32
    %10 = vector.broadcast %cst_7 : f32 to vector<1x128xf32>
    %11 = arith.mulf %9, %10 : vector<1x128xf32>
    %12 = arith.mulf %7, %7 : vector<512x128xf32>
    %cst_8 = arith.constant dense<0.000000e+00> : vector<128xf32>
    %13 = vector.multi_reduction <add>, %12, %cst_8 [0] : vector<512x128xf32> to vector<128xf32>
    %14 = vector.shape_cast %13 : vector<128xf32> to vector<1x128xf32>
    %cst_9 = arith.constant 0.001953125 : f32
    %15 = vector.broadcast %cst_9 : f32 to vector<1x128xf32>
    %16 = arith.mulf %14, %15 : vector<1x128xf32>
    %17 = arith.mulf %11, %11 : vector<1x128xf32>
    %18 = arith.subf %16, %17 : vector<1x128xf32>
    %c0_10 = arith.constant 0 : index
    %c0_11 = arith.constant 0 : index
    %19 = vector.load %arg3[%c0_10, %c0_11] : memref<1x128xf32, #tpu.memory_space<vmem>>, vector<1x128xf32>
    %cst_12 = arith.constant 9.99999974E-6 : f32
    %20 = vector.broadcast %cst_12 : f32 to vector<1x128xf32>
    %21 = arith.addf %18, %20 : vector<1x128xf32>
    %22 = math.rsqrt %21 : vector<1x128xf32>
    %23 = arith.mulf %19, %22 : vector<1x128xf32>
    %c0_13 = arith.constant 0 : index
    %c0_14 = arith.constant 0 : index
    %24 = vector.load %arg4[%c0_13, %c0_14] : memref<1x128xf32, #tpu.memory_space<vmem>>, vector<1x128xf32>
    %25 = arith.mulf %11, %23 : vector<1x128xf32>
    %26 = arith.subf %24, %25 : vector<1x128xf32>
    %27 = vector.broadcast %23 : vector<1x128xf32> to vector<512x128xf32>
    %28 = arith.mulf %7, %27 : vector<512x128xf32>
    %29 = vector.broadcast %26 : vector<1x128xf32> to vector<512x128xf32>
    %30 = arith.addf %28, %29 : vector<512x128xf32>
    %c0_15 = arith.constant 0 : index
    %c0_16 = arith.constant 0 : index
    %31 = vector.load %arg6[%c0_15, %c0_16] : memref<128x1152xf32, #tpu.memory_space<vmem>>, vector<128x1152xf32>
    %cst_17 = arith.constant dense<0.000000e+00> : vector<512x1152xf32>
    %32 = tpu.matmul %30, %31, %cst_17 {dimension_numbers = #tpu.dot_dimension_numbers<[1], [0], [0], [1], [0, 0, 1, 1], [], []>} : vector<512x128xf32>, vector<128x1152xf32>, vector<512x1152xf32> -> vector<512x1152xf32>
    %cst_18 = arith.constant 0.000000e+00 : f32
    %33 = vector.broadcast %cst_18 : f32 to vector<128x128xf32>
    %c0_19 = arith.constant 0 : index
    %c0_20 = arith.constant 0 : index
    %c0_21 = arith.constant 0 : index
    %34 = vector.load %arg5[%c0_19, %c0_20, %c0_21] : memref<9x128x512xf32, #tpu.memory_space<vmem>>, vector<1x128x512xf32>
    %35 = vector.shape_cast %34 : vector<1x128x512xf32> to vector<128x512xf32>
    %36 = vector.extract_strided_slice %32 {offsets = [0, 0], sizes = [512, 128], strides = [1, 1]} : vector<512x1152xf32> to vector<512x128xf32>
    %cst_22 = arith.constant dense<0.000000e+00> : vector<128x128xf32>
    %37 = tpu.matmul %35, %36, %cst_22 {dimension_numbers = #tpu.dot_dimension_numbers<[1], [0], [0], [1], [0, 0, 1, 1], [], []>} : vector<128x512xf32>, vector<512x128xf32>, vector<128x128xf32> -> vector<128x128xf32>
    %38 = arith.addf %33, %37 : vector<128x128xf32>
    %c1 = arith.constant 1 : index
    %c0_23 = arith.constant 0 : index
    %c0_24 = arith.constant 0 : index
    %39 = vector.load %arg5[%c1, %c0_23, %c0_24] : memref<9x128x512xf32, #tpu.memory_space<vmem>>, vector<1x128x512xf32>
    %40 = vector.shape_cast %39 : vector<1x128x512xf32> to vector<128x512xf32>
    %41 = vector.extract_strided_slice %32 {offsets = [0, 128], sizes = [512, 128], strides = [1, 1]} : vector<512x1152xf32> to vector<512x128xf32>
    %cst_25 = arith.constant dense<0.000000e+00> : vector<128x128xf32>
    %42 = tpu.matmul %40, %41, %cst_25 {dimension_numbers = #tpu.dot_dimension_numbers<[1], [0], [0], [1], [0, 0, 1, 1], [], []>} : vector<128x512xf32>, vector<512x128xf32>, vector<128x128xf32> -> vector<128x128xf32>
    %43 = arith.addf %38, %42 : vector<128x128xf32>
    %c2 = arith.constant 2 : index
    %c0_26 = arith.constant 0 : index
    %c0_27 = arith.constant 0 : index
    %44 = vector.load %arg5[%c2, %c0_26, %c0_27] : memref<9x128x512xf32, #tpu.memory_space<vmem>>, vector<1x128x512xf32>
    %45 = vector.shape_cast %44 : vector<1x128x512xf32> to vector<128x512xf32>
    %46 = vector.extract_strided_slice %32 {offsets = [0, 256], sizes = [512, 128], strides = [1, 1]} : vector<512x1152xf32> to vector<512x128xf32>
    %cst_28 = arith.constant dense<0.000000e+00> : vector<128x128xf32>
    %47 = tpu.matmul %45, %46, %cst_28 {dimension_numbers = #tpu.dot_dimension_numbers<[1], [0], [0], [1], [0, 0, 1, 1], [], []>} : vector<128x512xf32>, vector<512x128xf32>, vector<128x128xf32> -> vector<128x128xf32>
    %48 = arith.addf %43, %47 : vector<128x128xf32>
    %c3 = arith.constant 3 : index
    %c0_29 = arith.constant 0 : index
    %c0_30 = arith.constant 0 : index
    %49 = vector.load %arg5[%c3, %c0_29, %c0_30] : memref<9x128x512xf32, #tpu.memory_space<vmem>>, vector<1x128x512xf32>
    %50 = vector.shape_cast %49 : vector<1x128x512xf32> to vector<128x512xf32>
    %51 = vector.extract_strided_slice %32 {offsets = [0, 384], sizes = [512, 128], strides = [1, 1]} : vector<512x1152xf32> to vector<512x128xf32>
    %cst_31 = arith.constant dense<0.000000e+00> : vector<128x128xf32>
    %52 = tpu.matmul %50, %51, %cst_31 {dimension_numbers = #tpu.dot_dimension_numbers<[1], [0], [0], [1], [0, 0, 1, 1], [], []>} : vector<128x512xf32>, vector<512x128xf32>, vector<128x128xf32> -> vector<128x128xf32>
    %53 = arith.addf %48, %52 : vector<128x128xf32>
    %c4 = arith.constant 4 : index
    %c0_32 = arith.constant 0 : index
    %c0_33 = arith.constant 0 : index
    %54 = vector.load %arg5[%c4, %c0_32, %c0_33] : memref<9x128x512xf32, #tpu.memory_space<vmem>>, vector<1x128x512xf32>
    %55 = vector.shape_cast %54 : vector<1x128x512xf32> to vector<128x512xf32>
    %56 = vector.extract_strided_slice %32 {offsets = [0, 512], sizes = [512, 128], strides = [1, 1]} : vector<512x1152xf32> to vector<512x128xf32>
    %cst_34 = arith.constant dense<0.000000e+00> : vector<128x128xf32>
    %57 = tpu.matmul %55, %56, %cst_34 {dimension_numbers = #tpu.dot_dimension_numbers<[1], [0], [0], [1], [0, 0, 1, 1], [], []>} : vector<128x512xf32>, vector<512x128xf32>, vector<128x128xf32> -> vector<128x128xf32>
    %58 = arith.addf %53, %57 : vector<128x128xf32>
    %c5 = arith.constant 5 : index
    %c0_35 = arith.constant 0 : index
    %c0_36 = arith.constant 0 : index
    %59 = vector.load %arg5[%c5, %c0_35, %c0_36] : memref<9x128x512xf32, #tpu.memory_space<vmem>>, vector<1x128x512xf32>
    %60 = vector.shape_cast %59 : vector<1x128x512xf32> to vector<128x512xf32>
    %61 = vector.extract_strided_slice %32 {offsets = [0, 640], sizes = [512, 128], strides = [1, 1]} : vector<512x1152xf32> to vector<512x128xf32>
    %cst_37 = arith.constant dense<0.000000e+00> : vector<128x128xf32>
    %62 = tpu.matmul %60, %61, %cst_37 {dimension_numbers = #tpu.dot_dimension_numbers<[1], [0], [0], [1], [0, 0, 1, 1], [], []>} : vector<128x512xf32>, vector<512x128xf32>, vector<128x128xf32> -> vector<128x128xf32>
    %63 = arith.addf %58, %62 : vector<128x128xf32>
    %c6 = arith.constant 6 : index
    %c0_38 = arith.constant 0 : index
    %c0_39 = arith.constant 0 : index
    %64 = vector.load %arg5[%c6, %c0_38, %c0_39] : memref<9x128x512xf32, #tpu.memory_space<vmem>>, vector<1x128x512xf32>
    %65 = vector.shape_cast %64 : vector<1x128x512xf32> to vector<128x512xf32>
    %66 = vector.extract_strided_slice %32 {offsets = [0, 768], sizes = [512, 128], strides = [1, 1]} : vector<512x1152xf32> to vector<512x128xf32>
    %cst_40 = arith.constant dense<0.000000e+00> : vector<128x128xf32>
    %67 = tpu.matmul %65, %66, %cst_40 {dimension_numbers = #tpu.dot_dimension_numbers<[1], [0], [0], [1], [0, 0, 1, 1], [], []>} : vector<128x512xf32>, vector<512x128xf32>, vector<128x128xf32> -> vector<128x128xf32>
    %68 = arith.addf %63, %67 : vector<128x128xf32>
    %c7 = arith.constant 7 : index
    %c0_41 = arith.constant 0 : index
    %c0_42 = arith.constant 0 : index
    %69 = vector.load %arg5[%c7, %c0_41, %c0_42] : memref<9x128x512xf32, #tpu.memory_space<vmem>>, vector<1x128x512xf32>
    %70 = vector.shape_cast %69 : vector<1x128x512xf32> to vector<128x512xf32>
    %71 = vector.extract_strided_slice %32 {offsets = [0, 896], sizes = [512, 128], strides = [1, 1]} : vector<512x1152xf32> to vector<512x128xf32>
    %cst_43 = arith.constant dense<0.000000e+00> : vector<128x128xf32>
    %72 = tpu.matmul %70, %71, %cst_43 {dimension_numbers = #tpu.dot_dimension_numbers<[1], [0], [0], [1], [0, 0, 1, 1], [], []>} : vector<128x512xf32>, vector<512x128xf32>, vector<128x128xf32> -> vector<128x128xf32>
    %73 = arith.addf %68, %72 : vector<128x128xf32>
    %c8 = arith.constant 8 : index
    %c0_44 = arith.constant 0 : index
    %c0_45 = arith.constant 0 : index
    %74 = vector.load %arg5[%c8, %c0_44, %c0_45] : memref<9x128x512xf32, #tpu.memory_space<vmem>>, vector<1x128x512xf32>
    %75 = vector.shape_cast %74 : vector<1x128x512xf32> to vector<128x512xf32>
    %76 = vector.extract_strided_slice %32 {offsets = [0, 1024], sizes = [512, 128], strides = [1, 1]} : vector<512x1152xf32> to vector<512x128xf32>
    %cst_46 = arith.constant dense<0.000000e+00> : vector<128x128xf32>
    %77 = tpu.matmul %75, %76, %cst_46 {dimension_numbers = #tpu.dot_dimension_numbers<[1], [0], [0], [1], [0, 0, 1, 1], [], []>} : vector<128x512xf32>, vector<512x128xf32>, vector<128x128xf32> -> vector<128x128xf32>
    %78 = arith.addf %73, %77 : vector<128x128xf32>
    %c0_47 = arith.constant 0 : index
    %c0_48 = arith.constant 0 : index
    %79 = vector.load %arg7[%c0_47, %c0_48] : memref<1x128xf32, #tpu.memory_space<vmem>>, vector<1x128xf32>
    %80 = vector.broadcast %79 : vector<1x128xf32> to vector<128x128xf32>
    %81 = arith.addf %78, %80 : vector<128x128xf32>
    %cst_49 = arith.constant 0.000000e+00 : f32
    %82 = vector.broadcast %cst_49 : f32 to vector<128x128xf32>
    %83 = arith.maximumf %81, %82 : vector<128x128xf32>
    %cst_50 = arith.constant dense<0.000000e+00> : vector<128xf32>
    %84 = vector.multi_reduction <add>, %83, %cst_50 [0] : vector<128x128xf32> to vector<128xf32>
    %85 = vector.shape_cast %84 : vector<128xf32> to vector<1x128xf32>
    %cst_51 = arith.constant 7.812500e-03 : f32
    %86 = vector.broadcast %cst_51 : f32 to vector<1x128xf32>
    %87 = arith.mulf %85, %86 : vector<1x128xf32>
    %88 = arith.mulf %83, %83 : vector<128x128xf32>
    %cst_52 = arith.constant dense<0.000000e+00> : vector<128xf32>
    %89 = vector.multi_reduction <add>, %88, %cst_52 [0] : vector<128x128xf32> to vector<128xf32>
    %90 = vector.shape_cast %89 : vector<128xf32> to vector<1x128xf32>
    %cst_53 = arith.constant 7.812500e-03 : f32
    %91 = vector.broadcast %cst_53 : f32 to vector<1x128xf32>
    %92 = arith.mulf %90, %91 : vector<1x128xf32>
    %93 = arith.mulf %87, %87 : vector<1x128xf32>
    %94 = arith.subf %92, %93 : vector<1x128xf32>
    %c0_54 = arith.constant 0 : index
    %c0_55 = arith.constant 0 : index
    %95 = vector.load %arg8[%c0_54, %c0_55] : memref<1x128xf32, #tpu.memory_space<vmem>>, vector<1x128xf32>
    %cst_56 = arith.constant 9.99999974E-6 : f32
    %96 = vector.broadcast %cst_56 : f32 to vector<1x128xf32>
    %97 = arith.addf %94, %96 : vector<1x128xf32>
    %98 = math.rsqrt %97 : vector<1x128xf32>
    %99 = arith.mulf %95, %98 : vector<1x128xf32>
    %c0_57 = arith.constant 0 : index
    %c0_58 = arith.constant 0 : index
    %100 = vector.load %arg9[%c0_57, %c0_58] : memref<1x128xf32, #tpu.memory_space<vmem>>, vector<1x128xf32>
    %101 = arith.mulf %87, %99 : vector<1x128xf32>
    %102 = arith.subf %100, %101 : vector<1x128xf32>
    %103 = vector.broadcast %99 : vector<1x128xf32> to vector<128x128xf32>
    %104 = arith.mulf %83, %103 : vector<128x128xf32>
    %105 = vector.broadcast %102 : vector<1x128xf32> to vector<128x128xf32>
    %106 = arith.addf %104, %105 : vector<128x128xf32>
    %c0_59 = arith.constant 0 : index
    %c0_60 = arith.constant 0 : index
    %107 = vector.load %arg11[%c0_59, %c0_60] : memref<128x1152xf32, #tpu.memory_space<vmem>>, vector<128x1152xf32>
    %cst_61 = arith.constant dense<0.000000e+00> : vector<128x1152xf32>
    %108 = tpu.matmul %106, %107, %cst_61 {dimension_numbers = #tpu.dot_dimension_numbers<[1], [0], [0], [1], [0, 0, 1, 1], [], []>} : vector<128x128xf32>, vector<128x1152xf32>, vector<128x1152xf32> -> vector<128x1152xf32>
    %cst_62 = arith.constant 0.000000e+00 : f32
    %109 = vector.broadcast %cst_62 : f32 to vector<32x128xf32>
    %c0_63 = arith.constant 0 : index
    %c0_64 = arith.constant 0 : index
    %c0_65 = arith.constant 0 : index
    %110 = vector.load %arg10[%c0_63, %c0_64, %c0_65] : memref<9x32x128xf32, #tpu.memory_space<vmem>>, vector<1x32x128xf32>
    %111 = vector.shape_cast %110 : vector<1x32x128xf32> to vector<32x128xf32>
    %112 = vector.extract_strided_slice %108 {offsets = [0, 0], sizes = [128, 128], strides = [1, 1]} : vector<128x1152xf32> to vector<128x128xf32>
    %cst_66 = arith.constant dense<0.000000e+00> : vector<32x128xf32>
    %113 = tpu.matmul %111, %112, %cst_66 {dimension_numbers = #tpu.dot_dimension_numbers<[1], [0], [0], [1], [0, 0, 1, 1], [], []>} : vector<32x128xf32>, vector<128x128xf32>, vector<32x128xf32> -> vector<32x128xf32>
    %114 = arith.addf %109, %113 : vector<32x128xf32>
    %c1_67 = arith.constant 1 : index
    %c0_68 = arith.constant 0 : index
    %c0_69 = arith.constant 0 : index
    %115 = vector.load %arg10[%c1_67, %c0_68, %c0_69] : memref<9x32x128xf32, #tpu.memory_space<vmem>>, vector<1x32x128xf32>
    %116 = vector.shape_cast %115 : vector<1x32x128xf32> to vector<32x128xf32>
    %117 = vector.extract_strided_slice %108 {offsets = [0, 128], sizes = [128, 128], strides = [1, 1]} : vector<128x1152xf32> to vector<128x128xf32>
    %cst_70 = arith.constant dense<0.000000e+00> : vector<32x128xf32>
    %118 = tpu.matmul %116, %117, %cst_70 {dimension_numbers = #tpu.dot_dimension_numbers<[1], [0], [0], [1], [0, 0, 1, 1], [], []>} : vector<32x128xf32>, vector<128x128xf32>, vector<32x128xf32> -> vector<32x128xf32>
    %119 = arith.addf %114, %118 : vector<32x128xf32>
    %c2_71 = arith.constant 2 : index
    %c0_72 = arith.constant 0 : index
    %c0_73 = arith.constant 0 : index
    %120 = vector.load %arg10[%c2_71, %c0_72, %c0_73] : memref<9x32x128xf32, #tpu.memory_space<vmem>>, vector<1x32x128xf32>
    %121 = vector.shape_cast %120 : vector<1x32x128xf32> to vector<32x128xf32>
    %122 = vector.extract_strided_slice %108 {offsets = [0, 256], sizes = [128, 128], strides = [1, 1]} : vector<128x1152xf32> to vector<128x128xf32>
    %cst_74 = arith.constant dense<0.000000e+00> : vector<32x128xf32>
    %123 = tpu.matmul %121, %122, %cst_74 {dimension_numbers = #tpu.dot_dimension_numbers<[1], [0], [0], [1], [0, 0, 1, 1], [], []>} : vector<32x128xf32>, vector<128x128xf32>, vector<32x128xf32> -> vector<32x128xf32>
    %124 = arith.addf %119, %123 : vector<32x128xf32>
    %c3_75 = arith.constant 3 : index
    %c0_76 = arith.constant 0 : index
    %c0_77 = arith.constant 0 : index
    %125 = vector.load %arg10[%c3_75, %c0_76, %c0_77] : memref<9x32x128xf32, #tpu.memory_space<vmem>>, vector<1x32x128xf32>
    %126 = vector.shape_cast %125 : vector<1x32x128xf32> to vector<32x128xf32>
    %127 = vector.extract_strided_slice %108 {offsets = [0, 384], sizes = [128, 128], strides = [1, 1]} : vector<128x1152xf32> to vector<128x128xf32>
    %cst_78 = arith.constant dense<0.000000e+00> : vector<32x128xf32>
    %128 = tpu.matmul %126, %127, %cst_78 {dimension_numbers = #tpu.dot_dimension_numbers<[1], [0], [0], [1], [0, 0, 1, 1], [], []>} : vector<32x128xf32>, vector<128x128xf32>, vector<32x128xf32> -> vector<32x128xf32>
    %129 = arith.addf %124, %128 : vector<32x128xf32>
    %c4_79 = arith.constant 4 : index
    %c0_80 = arith.constant 0 : index
    %c0_81 = arith.constant 0 : index
    %130 = vector.load %arg10[%c4_79, %c0_80, %c0_81] : memref<9x32x128xf32, #tpu.memory_space<vmem>>, vector<1x32x128xf32>
    %131 = vector.shape_cast %130 : vector<1x32x128xf32> to vector<32x128xf32>
    %132 = vector.extract_strided_slice %108 {offsets = [0, 512], sizes = [128, 128], strides = [1, 1]} : vector<128x1152xf32> to vector<128x128xf32>
    %cst_82 = arith.constant dense<0.000000e+00> : vector<32x128xf32>
    %133 = tpu.matmul %131, %132, %cst_82 {dimension_numbers = #tpu.dot_dimension_numbers<[1], [0], [0], [1], [0, 0, 1, 1], [], []>} : vector<32x128xf32>, vector<128x128xf32>, vector<32x128xf32> -> vector<32x128xf32>
    %134 = arith.addf %129, %133 : vector<32x128xf32>
    %c5_83 = arith.constant 5 : index
    %c0_84 = arith.constant 0 : index
    %c0_85 = arith.constant 0 : index
    %135 = vector.load %arg10[%c5_83, %c0_84, %c0_85] : memref<9x32x128xf32, #tpu.memory_space<vmem>>, vector<1x32x128xf32>
    %136 = vector.shape_cast %135 : vector<1x32x128xf32> to vector<32x128xf32>
    %137 = vector.extract_strided_slice %108 {offsets = [0, 640], sizes = [128, 128], strides = [1, 1]} : vector<128x1152xf32> to vector<128x128xf32>
    %cst_86 = arith.constant dense<0.000000e+00> : vector<32x128xf32>
    %138 = tpu.matmul %136, %137, %cst_86 {dimension_numbers = #tpu.dot_dimension_numbers<[1], [0], [0], [1], [0, 0, 1, 1], [], []>} : vector<32x128xf32>, vector<128x128xf32>, vector<32x128xf32> -> vector<32x128xf32>
    %139 = arith.addf %134, %138 : vector<32x128xf32>
    %c6_87 = arith.constant 6 : index
    %c0_88 = arith.constant 0 : index
    %c0_89 = arith.constant 0 : index
    %140 = vector.load %arg10[%c6_87, %c0_88, %c0_89] : memref<9x32x128xf32, #tpu.memory_space<vmem>>, vector<1x32x128xf32>
    %141 = vector.shape_cast %140 : vector<1x32x128xf32> to vector<32x128xf32>
    %142 = vector.extract_strided_slice %108 {offsets = [0, 768], sizes = [128, 128], strides = [1, 1]} : vector<128x1152xf32> to vector<128x128xf32>
    %cst_90 = arith.constant dense<0.000000e+00> : vector<32x128xf32>
    %143 = tpu.matmul %141, %142, %cst_90 {dimension_numbers = #tpu.dot_dimension_numbers<[1], [0], [0], [1], [0, 0, 1, 1], [], []>} : vector<32x128xf32>, vector<128x128xf32>, vector<32x128xf32> -> vector<32x128xf32>
    %144 = arith.addf %139, %143 : vector<32x128xf32>
    %c7_91 = arith.constant 7 : index
    %c0_92 = arith.constant 0 : index
    %c0_93 = arith.constant 0 : index
    %145 = vector.load %arg10[%c7_91, %c0_92, %c0_93] : memref<9x32x128xf32, #tpu.memory_space<vmem>>, vector<1x32x128xf32>
    %146 = vector.shape_cast %145 : vector<1x32x128xf32> to vector<32x128xf32>
    %147 = vector.extract_strided_slice %108 {offsets = [0, 896], sizes = [128, 128], strides = [1, 1]} : vector<128x1152xf32> to vector<128x128xf32>
    %cst_94 = arith.constant dense<0.000000e+00> : vector<32x128xf32>
    %148 = tpu.matmul %146, %147, %cst_94 {dimension_numbers = #tpu.dot_dimension_numbers<[1], [0], [0], [1], [0, 0, 1, 1], [], []>} : vector<32x128xf32>, vector<128x128xf32>, vector<32x128xf32> -> vector<32x128xf32>
    %149 = arith.addf %144, %148 : vector<32x128xf32>
    %c8_95 = arith.constant 8 : index
    %c0_96 = arith.constant 0 : index
    %c0_97 = arith.constant 0 : index
    %150 = vector.load %arg10[%c8_95, %c0_96, %c0_97] : memref<9x32x128xf32, #tpu.memory_space<vmem>>, vector<1x32x128xf32>
    %151 = vector.shape_cast %150 : vector<1x32x128xf32> to vector<32x128xf32>
    %152 = vector.extract_strided_slice %108 {offsets = [0, 1024], sizes = [128, 128], strides = [1, 1]} : vector<128x1152xf32> to vector<128x128xf32>
    %cst_98 = arith.constant dense<0.000000e+00> : vector<32x128xf32>
    %153 = tpu.matmul %151, %152, %cst_98 {dimension_numbers = #tpu.dot_dimension_numbers<[1], [0], [0], [1], [0, 0, 1, 1], [], []>} : vector<32x128xf32>, vector<128x128xf32>, vector<32x128xf32> -> vector<32x128xf32>
    %154 = arith.addf %149, %153 : vector<32x128xf32>
    %c0_99 = arith.constant 0 : index
    %c0_100 = arith.constant 0 : index
    %155 = vector.load %arg12[%c0_99, %c0_100] : memref<1x128xf32, #tpu.memory_space<vmem>>, vector<1x128xf32>
    %156 = vector.broadcast %155 : vector<1x128xf32> to vector<32x128xf32>
    %157 = arith.addf %154, %156 : vector<32x128xf32>
    %cst_101 = arith.constant 0.000000e+00 : f32
    %158 = vector.broadcast %cst_101 : f32 to vector<32x128xf32>
    %159 = arith.maximumf %157, %158 : vector<32x128xf32>
    %cst_102 = arith.constant dense<0.000000e+00> : vector<128xf32>
    %160 = vector.multi_reduction <add>, %159, %cst_102 [0] : vector<32x128xf32> to vector<128xf32>
    %161 = vector.shape_cast %160 : vector<128xf32> to vector<1x128xf32>
    %cst_103 = arith.constant 3.125000e-02 : f32
    %162 = vector.broadcast %cst_103 : f32 to vector<1x128xf32>
    %163 = arith.mulf %161, %162 : vector<1x128xf32>
    %164 = arith.mulf %159, %159 : vector<32x128xf32>
    %cst_104 = arith.constant dense<0.000000e+00> : vector<128xf32>
    %165 = vector.multi_reduction <add>, %164, %cst_104 [0] : vector<32x128xf32> to vector<128xf32>
    %166 = vector.shape_cast %165 : vector<128xf32> to vector<1x128xf32>
    %cst_105 = arith.constant 3.125000e-02 : f32
    %167 = vector.broadcast %cst_105 : f32 to vector<1x128xf32>
    %168 = arith.mulf %166, %167 : vector<1x128xf32>
    %169 = arith.mulf %163, %163 : vector<1x128xf32>
    %170 = arith.subf %168, %169 : vector<1x128xf32>
    %c0_106 = arith.constant 0 : index
    %c0_107 = arith.constant 0 : index
    %171 = vector.load %arg13[%c0_106, %c0_107] : memref<1x128xf32, #tpu.memory_space<vmem>>, vector<1x128xf32>
    %cst_108 = arith.constant 9.99999974E-6 : f32
    %172 = vector.broadcast %cst_108 : f32 to vector<1x128xf32>
    %173 = arith.addf %170, %172 : vector<1x128xf32>
    %174 = math.rsqrt %173 : vector<1x128xf32>
    %175 = arith.mulf %171, %174 : vector<1x128xf32>
    %c0_109 = arith.constant 0 : index
    %c0_110 = arith.constant 0 : index
    %176 = vector.load %arg14[%c0_109, %c0_110] : memref<1x128xf32, #tpu.memory_space<vmem>>, vector<1x128xf32>
    %177 = arith.mulf %163, %175 : vector<1x128xf32>
    %178 = arith.subf %176, %177 : vector<1x128xf32>
    %179 = vector.broadcast %175 : vector<1x128xf32> to vector<32x128xf32>
    %180 = arith.mulf %159, %179 : vector<32x128xf32>
    %181 = vector.broadcast %178 : vector<1x128xf32> to vector<32x128xf32>
    %182 = arith.addf %180, %181 : vector<32x128xf32>
    %c0_111 = arith.constant 0 : index
    %c0_112 = arith.constant 0 : index
    %183 = vector.load %arg16[%c0_111, %c0_112] : memref<128x1152xf32, #tpu.memory_space<vmem>>, vector<128x1152xf32>
    %cst_113 = arith.constant dense<0.000000e+00> : vector<32x1152xf32>
    %184 = tpu.matmul %182, %183, %cst_113 {dimension_numbers = #tpu.dot_dimension_numbers<[1], [0], [0], [1], [0, 0, 1, 1], [], []>} : vector<32x128xf32>, vector<128x1152xf32>, vector<32x1152xf32> -> vector<32x1152xf32>
    %cst_114 = arith.constant 0.000000e+00 : f32
    %185 = vector.broadcast %cst_114 : f32 to vector<8x128xf32>
    %c0_115 = arith.constant 0 : index
    %c0_116 = arith.constant 0 : index
    %c0_117 = arith.constant 0 : index
    %186 = vector.load %arg15[%c0_115, %c0_116, %c0_117] : memref<9x8x32xf32, #tpu.memory_space<vmem>>, vector<1x8x32xf32>
    %187 = vector.shape_cast %186 : vector<1x8x32xf32> to vector<8x32xf32>
    %188 = vector.extract_strided_slice %184 {offsets = [0, 0], sizes = [32, 128], strides = [1, 1]} : vector<32x1152xf32> to vector<32x128xf32>
    %cst_118 = arith.constant dense<0.000000e+00> : vector<8x128xf32>
    %189 = tpu.matmul %187, %188, %cst_118 {dimension_numbers = #tpu.dot_dimension_numbers<[1], [0], [0], [1], [0, 0, 1, 1], [], []>} : vector<8x32xf32>, vector<32x128xf32>, vector<8x128xf32> -> vector<8x128xf32>
    %190 = arith.addf %185, %189 : vector<8x128xf32>
    %c1_119 = arith.constant 1 : index
    %c0_120 = arith.constant 0 : index
    %c0_121 = arith.constant 0 : index
    %191 = vector.load %arg15[%c1_119, %c0_120, %c0_121] : memref<9x8x32xf32, #tpu.memory_space<vmem>>, vector<1x8x32xf32>
    %192 = vector.shape_cast %191 : vector<1x8x32xf32> to vector<8x32xf32>
    %193 = vector.extract_strided_slice %184 {offsets = [0, 128], sizes = [32, 128], strides = [1, 1]} : vector<32x1152xf32> to vector<32x128xf32>
    %cst_122 = arith.constant dense<0.000000e+00> : vector<8x128xf32>
    %194 = tpu.matmul %192, %193, %cst_122 {dimension_numbers = #tpu.dot_dimension_numbers<[1], [0], [0], [1], [0, 0, 1, 1], [], []>} : vector<8x32xf32>, vector<32x128xf32>, vector<8x128xf32> -> vector<8x128xf32>
    %195 = arith.addf %190, %194 : vector<8x128xf32>
    %c2_123 = arith.constant 2 : index
    %c0_124 = arith.constant 0 : index
    %c0_125 = arith.constant 0 : index
    %196 = vector.load %arg15[%c2_123, %c0_124, %c0_125] : memref<9x8x32xf32, #tpu.memory_space<vmem>>, vector<1x8x32xf32>
    %197 = vector.shape_cast %196 : vector<1x8x32xf32> to vector<8x32xf32>
    %198 = vector.extract_strided_slice %184 {offsets = [0, 256], sizes = [32, 128], strides = [1, 1]} : vector<32x1152xf32> to vector<32x128xf32>
    %cst_126 = arith.constant dense<0.000000e+00> : vector<8x128xf32>
    %199 = tpu.matmul %197, %198, %cst_126 {dimension_numbers = #tpu.dot_dimension_numbers<[1], [0], [0], [1], [0, 0, 1, 1], [], []>} : vector<8x32xf32>, vector<32x128xf32>, vector<8x128xf32> -> vector<8x128xf32>
    %200 = arith.addf %195, %199 : vector<8x128xf32>
    %c3_127 = arith.constant 3 : index
    %c0_128 = arith.constant 0 : index
    %c0_129 = arith.constant 0 : index
    %201 = vector.load %arg15[%c3_127, %c0_128, %c0_129] : memref<9x8x32xf32, #tpu.memory_space<vmem>>, vector<1x8x32xf32>
    %202 = vector.shape_cast %201 : vector<1x8x32xf32> to vector<8x32xf32>
    %203 = vector.extract_strided_slice %184 {offsets = [0, 384], sizes = [32, 128], strides = [1, 1]} : vector<32x1152xf32> to vector<32x128xf32>
    %cst_130 = arith.constant dense<0.000000e+00> : vector<8x128xf32>
    %204 = tpu.matmul %202, %203, %cst_130 {dimension_numbers = #tpu.dot_dimension_numbers<[1], [0], [0], [1], [0, 0, 1, 1], [], []>} : vector<8x32xf32>, vector<32x128xf32>, vector<8x128xf32> -> vector<8x128xf32>
    %205 = arith.addf %200, %204 : vector<8x128xf32>
    %c4_131 = arith.constant 4 : index
    %c0_132 = arith.constant 0 : index
    %c0_133 = arith.constant 0 : index
    %206 = vector.load %arg15[%c4_131, %c0_132, %c0_133] : memref<9x8x32xf32, #tpu.memory_space<vmem>>, vector<1x8x32xf32>
    %207 = vector.shape_cast %206 : vector<1x8x32xf32> to vector<8x32xf32>
    %208 = vector.extract_strided_slice %184 {offsets = [0, 512], sizes = [32, 128], strides = [1, 1]} : vector<32x1152xf32> to vector<32x128xf32>
    %cst_134 = arith.constant dense<0.000000e+00> : vector<8x128xf32>
    %209 = tpu.matmul %207, %208, %cst_134 {dimension_numbers = #tpu.dot_dimension_numbers<[1], [0], [0], [1], [0, 0, 1, 1], [], []>} : vector<8x32xf32>, vector<32x128xf32>, vector<8x128xf32> -> vector<8x128xf32>
    %210 = arith.addf %205, %209 : vector<8x128xf32>
    %c5_135 = arith.constant 5 : index
    %c0_136 = arith.constant 0 : index
    %c0_137 = arith.constant 0 : index
    %211 = vector.load %arg15[%c5_135, %c0_136, %c0_137] : memref<9x8x32xf32, #tpu.memory_space<vmem>>, vector<1x8x32xf32>
    %212 = vector.shape_cast %211 : vector<1x8x32xf32> to vector<8x32xf32>
    %213 = vector.extract_strided_slice %184 {offsets = [0, 640], sizes = [32, 128], strides = [1, 1]} : vector<32x1152xf32> to vector<32x128xf32>
    %cst_138 = arith.constant dense<0.000000e+00> : vector<8x128xf32>
    %214 = tpu.matmul %212, %213, %cst_138 {dimension_numbers = #tpu.dot_dimension_numbers<[1], [0], [0], [1], [0, 0, 1, 1], [], []>} : vector<8x32xf32>, vector<32x128xf32>, vector<8x128xf32> -> vector<8x128xf32>
    %215 = arith.addf %210, %214 : vector<8x128xf32>
    %c6_139 = arith.constant 6 : index
    %c0_140 = arith.constant 0 : index
    %c0_141 = arith.constant 0 : index
    %216 = vector.load %arg15[%c6_139, %c0_140, %c0_141] : memref<9x8x32xf32, #tpu.memory_space<vmem>>, vector<1x8x32xf32>
    %217 = vector.shape_cast %216 : vector<1x8x32xf32> to vector<8x32xf32>
    %218 = vector.extract_strided_slice %184 {offsets = [0, 768], sizes = [32, 128], strides = [1, 1]} : vector<32x1152xf32> to vector<32x128xf32>
    %cst_142 = arith.constant dense<0.000000e+00> : vector<8x128xf32>
    %219 = tpu.matmul %217, %218, %cst_142 {dimension_numbers = #tpu.dot_dimension_numbers<[1], [0], [0], [1], [0, 0, 1, 1], [], []>} : vector<8x32xf32>, vector<32x128xf32>, vector<8x128xf32> -> vector<8x128xf32>
    %220 = arith.addf %215, %219 : vector<8x128xf32>
    %c7_143 = arith.constant 7 : index
    %c0_144 = arith.constant 0 : index
    %c0_145 = arith.constant 0 : index
    %221 = vector.load %arg15[%c7_143, %c0_144, %c0_145] : memref<9x8x32xf32, #tpu.memory_space<vmem>>, vector<1x8x32xf32>
    %222 = vector.shape_cast %221 : vector<1x8x32xf32> to vector<8x32xf32>
    %223 = vector.extract_strided_slice %184 {offsets = [0, 896], sizes = [32, 128], strides = [1, 1]} : vector<32x1152xf32> to vector<32x128xf32>
    %cst_146 = arith.constant dense<0.000000e+00> : vector<8x128xf32>
    %224 = tpu.matmul %222, %223, %cst_146 {dimension_numbers = #tpu.dot_dimension_numbers<[1], [0], [0], [1], [0, 0, 1, 1], [], []>} : vector<8x32xf32>, vector<32x128xf32>, vector<8x128xf32> -> vector<8x128xf32>
    %225 = arith.addf %220, %224 : vector<8x128xf32>
    %c8_147 = arith.constant 8 : index
    %c0_148 = arith.constant 0 : index
    %c0_149 = arith.constant 0 : index
    %226 = vector.load %arg15[%c8_147, %c0_148, %c0_149] : memref<9x8x32xf32, #tpu.memory_space<vmem>>, vector<1x8x32xf32>
    %227 = vector.shape_cast %226 : vector<1x8x32xf32> to vector<8x32xf32>
    %228 = vector.extract_strided_slice %184 {offsets = [0, 1024], sizes = [32, 128], strides = [1, 1]} : vector<32x1152xf32> to vector<32x128xf32>
    %cst_150 = arith.constant dense<0.000000e+00> : vector<8x128xf32>
    %229 = tpu.matmul %227, %228, %cst_150 {dimension_numbers = #tpu.dot_dimension_numbers<[1], [0], [0], [1], [0, 0, 1, 1], [], []>} : vector<8x32xf32>, vector<32x128xf32>, vector<8x128xf32> -> vector<8x128xf32>
    %230 = arith.addf %225, %229 : vector<8x128xf32>
    %c0_151 = arith.constant 0 : index
    %c0_152 = arith.constant 0 : index
    %231 = vector.load %arg17[%c0_151, %c0_152] : memref<1x128xf32, #tpu.memory_space<vmem>>, vector<1x128xf32>
    %232 = vector.broadcast %231 : vector<1x128xf32> to vector<8x128xf32>
    %233 = arith.addf %230, %232 : vector<8x128xf32>
    %cst_153 = arith.constant 0.000000e+00 : f32
    %234 = vector.broadcast %cst_153 : f32 to vector<8x128xf32>
    %235 = arith.maximumf %233, %234 : vector<8x128xf32>
    %cst_154 = arith.constant dense<0.000000e+00> : vector<128xf32>
    %236 = vector.multi_reduction <add>, %235, %cst_154 [0] : vector<8x128xf32> to vector<128xf32>
    %237 = vector.shape_cast %236 : vector<128xf32> to vector<1x128xf32>
    %cst_155 = arith.constant 1.250000e-01 : f32
    %238 = vector.broadcast %cst_155 : f32 to vector<1x128xf32>
    %239 = arith.mulf %237, %238 : vector<1x128xf32>
    %240 = arith.mulf %235, %235 : vector<8x128xf32>
    %cst_156 = arith.constant dense<0.000000e+00> : vector<128xf32>
    %241 = vector.multi_reduction <add>, %240, %cst_156 [0] : vector<8x128xf32> to vector<128xf32>
    %242 = vector.shape_cast %241 : vector<128xf32> to vector<1x128xf32>
    %cst_157 = arith.constant 1.250000e-01 : f32
    %243 = vector.broadcast %cst_157 : f32 to vector<1x128xf32>
    %244 = arith.mulf %242, %243 : vector<1x128xf32>
    %245 = arith.mulf %239, %239 : vector<1x128xf32>
    %246 = arith.subf %244, %245 : vector<1x128xf32>
    %c0_158 = arith.constant 0 : index
    %c0_159 = arith.constant 0 : index
    %247 = vector.load %arg18[%c0_158, %c0_159] : memref<1x128xf32, #tpu.memory_space<vmem>>, vector<1x128xf32>
    %cst_160 = arith.constant 9.99999974E-6 : f32
    %248 = vector.broadcast %cst_160 : f32 to vector<1x128xf32>
    %249 = arith.addf %246, %248 : vector<1x128xf32>
    %250 = math.rsqrt %249 : vector<1x128xf32>
    %251 = arith.mulf %247, %250 : vector<1x128xf32>
    %c0_161 = arith.constant 0 : index
    %c0_162 = arith.constant 0 : index
    %252 = vector.load %arg19[%c0_161, %c0_162] : memref<1x128xf32, #tpu.memory_space<vmem>>, vector<1x128xf32>
    %253 = arith.mulf %239, %251 : vector<1x128xf32>
    %254 = arith.subf %252, %253 : vector<1x128xf32>
    %255 = vector.broadcast %251 : vector<1x128xf32> to vector<8x128xf32>
    %256 = arith.mulf %235, %255 : vector<8x128xf32>
    %257 = vector.broadcast %254 : vector<1x128xf32> to vector<8x128xf32>
    %258 = arith.addf %256, %257 : vector<8x128xf32>
    %c0_163 = arith.constant 0 : index
    %c0_164 = arith.constant 0 : index
    %259 = vector.load %arg20[%c0_163, %c0_164] : memref<128x128xf32, #tpu.memory_space<vmem>>, vector<128x128xf32>
    %cst_165 = arith.constant dense<0.000000e+00> : vector<8x128xf32>
    %260 = tpu.matmul %258, %259, %cst_165 {dimension_numbers = #tpu.dot_dimension_numbers<[1], [0], [0], [1], [0, 0, 1, 1], [], []>} : vector<8x128xf32>, vector<128x128xf32>, vector<8x128xf32> -> vector<8x128xf32>
    %c0_166 = arith.constant 0 : index
    %c0_167 = arith.constant 0 : index
    %261 = vector.load %arg21[%c0_166, %c0_167] : memref<8x128xf32, #tpu.memory_space<vmem>>, vector<8x128xf32>
    tpu.vector_store %arg21[%c0_166, %c0_167], %260 {strides = array<i32>} : memref<8x128xf32, #tpu.memory_space<vmem>>, vector<8x128xf32>,
    return
  }
}

</mosaic_0001>

<llo_original>
// kernel: stem_forward.1
$region0: #{stem_forward.1}
  #allocation0 [shape = 'u32[]', space=smem, size = 0x4, offset = 0x4, fixed_abs, tag = 'smem constant byte address 0x4 - core index']
  #allocation1 [shape = 'u32[144,128]{1,0:T(1,128)}', space=vmem, size = 0x12000, scoped, tag = 'internal scratch']
  %s0 = inlined_call_operand.vmem [shape: f32[512,128], index: 0, kind: input, shape index: {}]
  %s1 = inlined_call_operand.vmem [shape: f32[128,128], index: 1, kind: input, shape index: {}]
  %s2 = inlined_call_operand.vmem [shape: f32[1,128], index: 2, kind: input, shape index: {}]
  %s3 = inlined_call_operand.vmem [shape: f32[1,128], index: 3, kind: input, shape index: {}]
  %s4 = inlined_call_operand.vmem [shape: f32[1,128], index: 4, kind: input, shape index: {}]
  %s5 = inlined_call_operand.vmem [shape: f32[9,128,512], index: 5, kind: input, shape index: {}]
  %s6 = inlined_call_operand.vmem [shape: f32[128,1152], index: 6, kind: input, shape index: {}]
  %s7 = inlined_call_operand.vmem [shape: f32[1,128], index: 7, kind: input, shape index: {}]
  %s8 = inlined_call_operand.vmem [shape: f32[1,128], index: 8, kind: input, shape index: {}]
  %s9 = inlined_call_operand.vmem [shape: f32[1,128], index: 9, kind: input, shape index: {}]
  %s10 = inlined_call_operand.vmem [shape: f32[9,32,128], index: 10, kind: input, shape index: {}]
  %s11 = inlined_call_operand.hbm [shape: f32[128,1152], index: 11, kind: input, shape index: {}]
  %s12 = inlined_call_operand.vmem [shape: f32[1,128], index: 12, kind: input, shape index: {}]
  %s13 = inlined_call_operand.vmem [shape: f32[1,128], index: 13, kind: input, shape index: {}]
  %s14 = inlined_call_operand.vmem [shape: f32[1,128], index: 14, kind: input, shape index: {}]
  %s15 = inlined_call_operand.hbm [shape: f32[9,8,32], index: 15, kind: input, shape index: {}]
  %s16 = inlined_call_operand.hbm [shape: f32[128,1152], index: 16, kind: input, shape index: {}]
  %s17 = inlined_call_operand.vmem [shape: f32[1,128], index: 17, kind: input, shape index: {}]
  %s18 = inlined_call_operand.vmem [shape: f32[1,128], index: 18, kind: input, shape index: {}]
  %s19 = inlined_call_operand.vmem [shape: f32[1,128], index: 19, kind: input, shape index: {}]
  %s20 = inlined_call_operand.vmem [shape: f32[128,128], index: 20, kind: input, shape index: {}]
  %s21 = inlined_call_operand.hbm [shape: f32[8,128], index: 21, kind: output, shape index: {}]
  %s22 = sld [smem:[#allocation0]]
  $region106: #{stem_forward.1} parent=0
    _
  %s24 = ssub.s32 1, %s22
  %s25 = scalar_select 0, %s24, %s22
  $region1: #{stem_forward.1} parent=0
    #allocation2 [shape = 'u8[589824]{0}', space=vmem, size = 0x90000, scoped, tag = 'input window, operand 11, single buffered']
    #allocation3 [shape = 's32[1]{0}', space=sflag, size = 0x4, scoped, tag = 'scoped memory for stem_forward.1']
    #allocation4 [shape = 's32[1]{0}', space=sflag, size = 0x4, scoped, tag = 'scoped memory for stem_forward.1']
    #allocation5 [shape = 'u8[36864]{0}', space=vmem, size = 0x9000, scoped, tag = 'input window, operand 15, single buffered']
    #allocation6 [shape = 's32[1]{0}', space=sflag, size = 0x4, scoped, tag = 'scoped memory for stem_forward.1']
    #allocation7 [shape = 'u8[589824]{0}', space=vmem, size = 0x90000, scoped, tag = 'input window, operand 16, single buffered']
    #allocation8 [shape = 'u8[4096]{0}', space=vmem, size = 0x1000, scoped, tag = 'output window, operand 0, single buffered']
    %26 = vsyncpa [#allocation3], 0
    %27 = vsyncpa [#allocation6], 0
    %28 = vsyncpa [#allocation4], 0
    // Predicated region
    $region2: #{stem_forward.1} parent=1 // pred_check
      _
    $region3: #{stem_forward.1} parent=1 // pred_check_branch
      %30 = sbr.rel (0) target = $region5
    $region4: #{stem_forward.1} parent=1 // pred_region
      _
    $region5: #{stem_forward.1} parent=1 // pred_fallthru
      _
    // Predicated region
    $region6: #{stem_forward.1} parent=1 // pred_check
      _
    $region7: #{stem_forward.1} parent=1 // pred_check_branch
      %32 = sbr.rel (0) target = $region9
    $region8: #{stem_forward.1} parent=1 // pred_region
      _
    $region9: #{stem_forward.1} parent=1 // pred_fallthru
      _
    // Predicated region
    $region10: #{stem_forward.1} parent=1 // pred_check
      _
    $region11: #{stem_forward.1} parent=1 // pred_check_branch
      %34 = sbr.rel (0) target = $region13
    $region12: #{stem_forward.1} parent=1 // pred_region
      _
    $region13: #{stem_forward.1} parent=1 // pred_fallthru
      _
    // Predicated region
    $region14: #{stem_forward.1} parent=1 // pred_check
      _
    $region15: #{stem_forward.1} parent=1 // pred_check_branch
      %36 = sbr.rel (0) target = $region17
    $region16: #{stem_forward.1} parent=1 // pred_region
      _
    $region17: #{stem_forward.1} parent=1 // pred_fallthru
      _
    // Predicated region
    $region18: #{stem_forward.1} parent=1 // pred_check
      _
    $region19: #{stem_forward.1} parent=1 // pred_check_branch
      %38 = sbr.rel (0) target = $region21
    $region20: #{stem_forward.1} parent=1 // pred_region
      _
    $region21: #{stem_forward.1} parent=1 // pred_fallthru
      _
    // Predicated region
    $region22: #{stem_forward.1} parent=1 // pred_check
      _
    $region23: #{stem_forward.1} parent=1 // pred_check_branch
      %40 = sbr.rel (0) target = $region25
    $region24: #{stem_forward.1} parent=1 // pred_region
      _
    $region25: #{stem_forward.1} parent=1 // pred_fallthru
      _
    // Predicated region
    $region26: #{stem_forward.1} parent=1 // pred_check
      _
    $region27: #{stem_forward.1} parent=1 // pred_check_branch
      %42 = sbr.rel (0) target = $region29
    $region28: #{stem_forward.1} parent=1 // pred_region
      _
    $region29: #{stem_forward.1} parent=1 // pred_fallthru
      _
    // Predicated region
    $region30: #{stem_forward.1} parent=1 // pred_check
      _
    $region31: #{stem_forward.1} parent=1 // pred_check_branch
      %44 = sbr.rel (0) target = $region33
    $region32: #{stem_forward.1} parent=1 // pred_region
      _
    $region33: #{stem_forward.1} parent=1 // pred_fallthru
      _
    // Predicated region
    $region34: #{stem_forward.1} parent=1 // pred_check
      _
    $region35: #{stem_forward.1} parent=1 // pred_check_branch
      %46 = sbr.rel (0) target = $region37
    $region36: #{stem_forward.1} parent=1 // pred_region
      _
    $region37: #{stem_forward.1} parent=1 // pred_fallthru
      _
    // Predicated region
    $region38: #{stem_forward.1} parent=1 // pred_check
      _
    $region39: #{stem_forward.1} parent=1 // pred_check_branch
      %48 = sbr.rel (0) target = $region41
    $region40: #{stem_forward.1} parent=1 // pred_region
      _
    $region41: #{stem_forward.1} parent=1 // pred_fallthru
      _
    // Predicated region
    $region42: #{stem_forward.1} parent=1 // pred_check
      _
    $region43: #{stem_forward.1} parent=1 // pred_check_branch
      %50 = sbr.rel (0) target = $region45
    $region44: #{stem_forward.1} parent=1 // pred_region
      _
    $region45: #{stem_forward.1} parent=1 // pred_fallthru
      _
    // Predicated region
    $region46: #{stem_forward.1} parent=1 // pred_check
      _
    $region47: #{stem_forward.1} parent=1 // pred_check_branch
      %52 = sbr.rel (0) target = $region49
    $region48: #{stem_forward.1} parent=1 // pred_region
      %s54 = ssub.s32 18432, 18432
      %55 = vsyncadd [#allocation3], %s54
      %s56 = sshll.u32 [#allocation2], 4
      %s57 = int_to_ptr.vmem [resolvable:$true] %s56
      %62 = dma.hbm_to_vmem [thread:$0]  %s11, 18432, %s57, [#allocation3], 1152, 1152, 72
    $region49: #{stem_forward.1} parent=1 // pred_fallthru
      _
    // Predicated region
    $region50: #{stem_forward.1} parent=1 // pred_check
      _
    $region51: #{stem_forward.1} parent=1 // pred_check_branch
      %64 = sbr.rel (0) target = $region53
    $region52: #{stem_forward.1} parent=1 // pred_region
      _
    $region53: #{stem_forward.1} parent=1 // pred_fallthru
      _
    // Predicated region
    $region54: #{stem_forward.1} parent=1 // pred_check
      _
    $region55: #{stem_forward.1} parent=1 // pred_check_branch
      %66 = sbr.rel (0) target = $region57
    $region56: #{stem_forward.1} parent=1 // pred_region
      _
    $region57: #{stem_forward.1} parent=1 // pred_fallthru
      _
    // Predicated region
    $region58: #{stem_forward.1} parent=1 // pred_check
      _
    $region59: #{stem_forward.1} parent=1 // pred_check_branch
      %68 = sbr.rel (0) target = $region61
    $region60: #{stem_forward.1} parent=1 // pred_region
      _
    $region61: #{stem_forward.1} parent=1 // pred_fallthru
      _
    // Predicated region
    $region62: #{stem_forward.1} parent=1 // pred_check
      _
    $region63: #{stem_forward.1} parent=1 // pred_check_branch
      %70 = sbr.rel (0) target = $region65
    $region64: #{stem_forward.1} parent=1 // pred_region
      %s72 = ssub.s32 1152, 1152
      %73 = vsyncadd [#allocation6], %s72
      %s74 = sshll.u32 [#allocation5], 4
      %s75 = int_to_ptr.vmem [resolvable:$true] %s74
      %80 = dma.hbm_to_vmem [thread:$0]  %s15, 1152, %s75, [#allocation6], 128, 128, 8
    $region65: #{stem_forward.1} parent=1 // pred_fallthru
      _
    // Predicated region
    $region66: #{stem_forward.1} parent=1 // pred_check
      _
    $region67: #{stem_forward.1} parent=1 // pred_check_branch
      %82 = sbr.rel (0) target = $region69
    $region68: #{stem_forward.1} parent=1 // pred_region
      %s84 = ssub.s32 18432, 18432
      %85 = vsyncadd [#allocation6], %s84
      %s86 = sshll.u32 [#allocation7], 4
      %s87 = int_to_ptr.vmem [resolvable:$true] %s86
      %92 = dma.hbm_to_vmem [thread:$0]  %s16, 18432, %s87, [#allocation6], 1152, 1152, 72
    $region69: #{stem_forward.1} parent=1 // pred_fallthru
      _
    // Predicated region
    $region70: #{stem_forward.1} parent=1 // pred_check
      _
    $region71: #{stem_forward.1} parent=1 // pred_check_branch
      %94 = sbr.rel (0) target = $region73
    $region72: #{stem_forward.1} parent=1 // pred_region
      _
    $region73: #{stem_forward.1} parent=1 // pred_fallthru
      _
    // Predicated region
    $region74: #{stem_forward.1} parent=1 // pred_check
      _
    $region75: #{stem_forward.1} parent=1 // pred_check_branch
      %96 = sbr.rel (0) target = $region77
    $region76: #{stem_forward.1} parent=1 // pred_region
      _
    $region77: #{stem_forward.1} parent=1 // pred_fallthru
      _
    // Predicated region
    $region78: #{stem_forward.1} parent=1 // pred_check
      _
    $region79: #{stem_forward.1} parent=1 // pred_check_branch
      %98 = sbr.rel (0) target = $region81
    $region80: #{stem_forward.1} parent=1 // pred_region
      _
    $region81: #{stem_forward.1} parent=1 // pred_fallthru
      _
    // Predicated region
    $region82: #{stem_forward.1} parent=1 // pred_check
      _
    $region83: #{stem_forward.1} parent=1 // pred_check_branch
      %100 = sbr.rel (0) target = $region85
    $region84: #{stem_forward.1} parent=1 // pred_region
      _
    $region85: #{stem_forward.1} parent=1 // pred_fallthru
      _
    // Predicated region
    $region86: #{stem_forward.1} parent=1 // pred_check
      _
    $region87: #{stem_forward.1} parent=1 // pred_check_branch
      %102 = sbr.rel (0) target = $region89
    $region88: #{stem_forward.1} parent=1 // pred_region
      %103 = dma.done [#allocation3], 18432
    $region89: #{stem_forward.1} parent=1 // pred_fallthru
      _
    // Predicated region
    $region90: #{stem_forward.1} parent=1 // pred_check
      _
    $region91: #{stem_forward.1} parent=1 // pred_check_branch
      %105 = sbr.rel (0) target = $region93
    $region92: #{stem_forward.1} parent=1 // pred_region
      %106 = dma.done [#allocation6], 1152
    $region93: #{stem_forward.1} parent=1 // pred_fallthru
      _
    // Predicated region
    $region94: #{stem_forward.1} parent=1 // pred_check
      _
    $region95: #{stem_forward.1} parent=1 // pred_check_branch
      %108 = sbr.rel (0) target = $region97
    $region96: #{stem_forward.1} parent=1 // pred_region
      %109 = dma.done [#allocation6], 18432
    $region97: #{stem_forward.1} parent=1 // pred_fallthru
      _
    %v110 = vld [vmem:[%s0] sm:$0xff]
    %v111 = vld [vmem:[%s0 + $0x8] sm:$0xff]
    %v112 = vld [vmem:[%s0 + $0x10] sm:$0xff]
    %v113 = vld [vmem:[%s0 + $0x18] sm:$0xff]
    %v114 = vld [vmem:[%s0 + $0x20] sm:$0xff]
    %v115 = vld [vmem:[%s0 + $0x28] sm:$0xff]
    %v116 = vld [vmem:[%s0 + $0x30] sm:$0xff]
    %v117 = vld [vmem:[%s0 + $0x38] sm:$0xff]
    %v118 = vld [vmem:[%s0 + $0x40] sm:$0xff]
    %v119 = vld [vmem:[%s0 + $0x48] sm:$0xff]
    %v120 = vld [vmem:[%s0 + $0x50] sm:$0xff]
    %v121 = vld [vmem:[%s0 + $0x58] sm:$0xff]
    %v122 = vld [vmem:[%s0 + $0x60] sm:$0xff]
    %v123 = vld [vmem:[%s0 + $0x68] sm:$0xff]
    %v124 = vld [vmem:[%s0 + $0x70] sm:$0xff]
    %v125 = vld [vmem:[%s0 + $0x78] sm:$0xff]
    %v126 = vld [vmem:[%s0 + $0x80] sm:$0xff]
    %v127 = vld [vmem:[%s0 + $0x88] sm:$0xff]
    %v128 = vld [vmem:[%s0 + $0x90] sm:$0xff]
    %v129 = vld [vmem:[%s0 + $0x98] sm:$0xff]
    %v130 = vld [vmem:[%s0 + $0xa0] sm:$0xff]
    %v131 = vld [vmem:[%s0 + $0xa8] sm:$0xff]
    %v132 = vld [vmem:[%s0 + $0xb0] sm:$0xff]
    %v133 = vld [vmem:[%s0 + $0xb8] sm:$0xff]
    %v134 = vld [vmem:[%s0 + $0xc0] sm:$0xff]
    %v135 = vld [vmem:[%s0 + $0xc8] sm:$0xff]
    %v136 = vld [vmem:[%s0 + $0xd0] sm:$0xff]
    %v137 = vld [vmem:[%s0 + $0xd8] sm:$0xff]
    %v138 = vld [vmem:[%s0 + $0xe0] sm:$0xff]
    %v139 = vld [vmem:[%s0 + $0xe8] sm:$0xff]
    %v140 = vld [vmem:[%s0 + $0xf0] sm:$0xff]
    %v141 = vld [vmem:[%s0 + $0xf8] sm:$0xff]
    %v142 = vld [vmem:[%s0 + $0x100] sm:$0xff]
    %v143 = vld [vmem:[%s0 + $0x108] sm:$0xff]
    %v144 = vld [vmem:[%s0 + $0x110] sm:$0xff]
    %v145 = vld [vmem:[%s0 + $0x118] sm:$0xff]
    %v146 = vld [vmem:[%s0 + $0x120] sm:$0xff]
    %v147 = vld [vmem:[%s0 + $0x128] sm:$0xff]
    %v148 = vld [vmem:[%s0 + $0x130] sm:$0xff]
    %v149 = vld [vmem:[%s0 + $0x138] sm:$0xff]
    %v150 = vld [vmem:[%s0 + $0x140] sm:$0xff]
    %v151 = vld [vmem:[%s0 + $0x148] sm:$0xff]
    %v152 = vld [vmem:[%s0 + $0x150] sm:$0xff]
    %v153 = vld [vmem:[%s0 + $0x158] sm:$0xff]
    %v154 = vld [vmem:[%s0 + $0x160] sm:$0xff]
    %v155 = vld [vmem:[%s0 + $0x168] sm:$0xff]
    %v156 = vld [vmem:[%s0 + $0x170] sm:$0xff]
    %v157 = vld [vmem:[%s0 + $0x178] sm:$0xff]
    %v158 = vld [vmem:[%s0 + $0x180] sm:$0xff]
    %v159 = vld [vmem:[%s0 + $0x188] sm:$0xff]
    %v160 = vld [vmem:[%s0 + $0x190] sm:$0xff]
    %v161 = vld [vmem:[%s0 + $0x198] sm:$0xff]
    %v162 = vld [vmem:[%s0 + $0x1a0] sm:$0xff]
    %v163 = vld [vmem:[%s0 + $0x1a8] sm:$0xff]
    %v164 = vld [vmem:[%s0 + $0x1b0] sm:$0xff]
    %v165 = vld [vmem:[%s0 + $0x1b8] sm:$0xff]
    %v166 = vld [vmem:[%s0 + $0x1c0] sm:$0xff]
    %v167 = vld [vmem:[%s0 + $0x1c8] sm:$0xff]
    %v168 = vld [vmem:[%s0 + $0x1d0] sm:$0xff]
    %v169 = vld [vmem:[%s0 + $0x1d8] sm:$0xff]
    %v170 = vld [vmem:[%s0 + $0x1e0] sm:$0xff]
    %v171 = vld [vmem:[%s0 + $0x1e8] sm:$0xff]
    %v172 = vld [vmem:[%s0 + $0x1f0] sm:$0xff]
    %v173 = vld [vmem:[%s0 + $0x1f8] sm:$0xff]
    %v174 = vld [vmem:[%s1] sm:$0xff]
    %v175 = vld [vmem:[%s1 + $0x8] sm:$0xff]
    %v176 = vld [vmem:[%s1 + $0x10] sm:$0xff]
    %v177 = vld [vmem:[%s1 + $0x18] sm:$0xff]
    %v178 = vld [vmem:[%s1 + $0x20] sm:$0xff]
    %v179 = vld [vmem:[%s1 + $0x28] sm:$0xff]
    %v180 = vld [vmem:[%s1 + $0x30] sm:$0xff]
    %v181 = vld [vmem:[%s1 + $0x38] sm:$0xff]
    %v182 = vld [vmem:[%s1 + $0x40] sm:$0xff]
    %v183 = vld [vmem:[%s1 + $0x48] sm:$0xff]
    %v184 = vld [vmem:[%s1 + $0x50] sm:$0xff]
    %v185 = vld [vmem:[%s1 + $0x58] sm:$0xff]
    %v186 = vld [vmem:[%s1 + $0x60] sm:$0xff]
    %v187 = vld [vmem:[%s1 + $0x68] sm:$0xff]
    %v188 = vld [vmem:[%s1 + $0x70] sm:$0xff]
    %v189 = vld [vmem:[%s1 + $0x78] sm:$0xff]
    %v190 = vld [vmem:[%s2] sm:$0x1]
    %v192 = vlaneseq
    %v193 = vshrl.u32 %v192, 7
    %v194 = vsub.s32 0, %v193
    %v195 = vrot.slane %v190, %v194
    %197 = vmatprep.subr.mxu0 0.0
    %198 = vmatpush1.msra.mxu0 %v189
    %199 = vmatprep.subr.mxu0 0.0
    %200 = vmatpush1.msra.mxu0 %v188
    %201 = vmatprep.subr.mxu0 0.0
    %202 = vmatpush1.msra.mxu0 %v187
    %203 = vmatprep.subr.mxu0 0.0
    %204 = vmatpush1.msra.mxu0 %v186
    %205 = vmatprep.subr.mxu0 0.0
    %206 = vmatpush1.msra.mxu0 %v185
    %207 = vmatprep.subr.mxu0 0.0
    %208 = vmatpush1.msra.mxu0 %v184
    %209 = vmatprep.subr.mxu0 0.0
    %210 = vmatpush1.msra.mxu0 %v183
    %211 = vmatprep.subr.mxu0 0.0
    %212 = vmatpush1.msra.mxu0 %v182
    %213 = vmatprep.subr.mxu0 0.0
    %214 = vmatpush1.msra.mxu0 %v181
    %215 = vmatprep.subr.mxu0 0.0
    %216 = vmatpush1.msra.mxu0 %v180
    %217 = vmatprep.subr.mxu0 0.0
    %218 = vmatpush1.msra.mxu0 %v179
    %219 = vmatprep.subr.mxu0 0.0
    %220 = vmatpush1.msra.mxu0 %v178
    %221 = vmatprep.subr.mxu0 0.0
    %222 = vmatpush1.msra.mxu0 %v177
    %223 = vmatprep.subr.mxu0 0.0
    %224 = vmatpush1.msra.mxu0 %v176
    %225 = vmatprep.subr.mxu0 0.0
    %226 = vmatpush1.msra.mxu0 %v175
    %227 = vmatprep.subr.mxu0 0.0
    %228 = vmatpush1.msra.mxu0 %v174
    %229 = vmatprep.subr.mxu0 0.0
    %230 = vmatpush2.msra.mxu0 0.0
    %231 = vmatprep.subr.mxu0 0.0
    %232 = vmatpush2.msra.mxu0 0.0
    %233 = vmatprep.subr.mxu0 0.0
    %234 = vmatpush2.msra.mxu0 0.0
    %235 = vmatprep.subr.mxu0 0.0
    %236 = vmatpush2.msra.mxu0 0.0
    %237 = vmatprep.subr.mxu0 0.0
    %238 = vmatpush2.msra.mxu0 0.0
    %239 = vmatprep.subr.mxu0 0.0
    %240 = vmatpush2.msra.mxu0 0.0
    %241 = vmatprep.subr.mxu0 0.0
    %242 = vmatpush2.msra.mxu0 0.0
    %243 = vmatprep.subr.mxu0 0.0
    %244 = vmatpush2.msra.mxu0 0.0
    %245 = vmatprep.subr.mxu0 0.0
    %246 = vmatpush2.msra.mxu0 0.0
    %247 = vmatprep.subr.mxu0 0.0
    %248 = vmatpush2.msra.mxu0 0.0
    %249 = vmatprep.subr.mxu0 0.0
    %250 = vmatpush2.msra.mxu0 0.0
    %251 = vmatprep.subr.mxu0 0.0
    %252 = vmatpush2.msra.mxu0 0.0
    %253 = vmatprep.subr.mxu0 0.0
    %254 = vmatpush2.msra.mxu0 0.0
    %255 = vmatprep.subr.mxu0 0.0
    %256 = vmatpush2.msra.mxu0 0.0
    %257 = vmatprep.subr.mxu0 0.0
    %258 = vmatpush2.msra.mxu0 0.0
    %259 = vmatprep.subr.mxu0 0.0
    %260 = vmatpush2.msra.mxu0 0.0
    %261 = vmatprep.mubr.f32.mxu0 0.0
    %262 = vmatmul.mubr.f32.gmra.mxu0 %v110
    %v263 = vpop.f32.mrf.mxu0
    %v264 = vadd.f32 %v195, %v263
    %v265 = vpop.f32.mrf.mxu0
    %266 = vmatprep.mubr.f32.mxu0 0.0
    %267 = vmatmul.mubr.f32.gmra.mxu0 %v111
    %v268 = vpop.f32.mrf.mxu0
    %v269 = vadd.f32 %v195, %v268
    %v270 = vpop.f32.mrf.mxu0
    %271 = vmatprep.mubr.f32.mxu0 0.0
    %272 = vmatmul.mubr.f32.gmra.mxu0 %v112
    %v273 = vpop.f32.mrf.mxu0
    %v274 = vadd.f32 %v195, %v273
    %v275 = vpop.f32.mrf.mxu0
    %276 = vmatprep.mubr.f32.mxu0 0.0
    %277 = vmatmul.mubr.f32.gmra.mxu0 %v113
    %v278 = vpop.f32.mrf.mxu0
    %v279 = vadd.f32 %v195, %v278
    %v280 = vpop.f32.mrf.mxu0
    %281 = vmatprep.mubr.f32.mxu0 0.0
    %282 = vmatmul.mubr.f32.gmra.mxu0 %v114
    %v283 = vpop.f32.mrf.mxu0
    %v284 = vadd.f32 %v195, %v283
    %v285 = vpop.f32.mrf.mxu0
    %286 = vmatprep.mubr.f32.mxu0 0.0
    %287 = vmatmul.mubr.f32.gmra.mxu0 %v115
    %v288 = vpop.f32.mrf.mxu0
    %v289 = vadd.f32 %v195, %v288
    %v290 = vpop.f32.mrf.mxu0
    %291 = vmatprep.mubr.f32.mxu0 0.0
    %292 = vmatmul.mubr.f32.gmra.mxu0 %v116
    %v293 = vpop.f32.mrf.mxu0
    %v294 = vadd.f32 %v195, %v293
    %v295 = vpop.f32.mrf.mxu0
    %296 = vmatprep.mubr.f32.mxu0 0.0
    %297 = vmatmul.mubr.f32.gmra.mxu0 %v117
    %v298 = vpop.f32.mrf.mxu0
    %v299 = vadd.f32 %v195, %v298
    %v300 = vpop.f32.mrf.mxu0
    %301 = vmatprep.mubr.f32.mxu0 0.0
    %302 = vmatmul.mubr.f32.gmra.mxu0 %v118
    %v303 = vpop.f32.mrf.mxu0
    %v304 = vadd.f32 %v195, %v303
    %v305 = vpop.f32.mrf.mxu0
    %306 = vmatprep.mubr.f32.mxu0 0.0
    %307 = vmatmul.mubr.f32.gmra.mxu0 %v119
    %v308 = vpop.f32.mrf.mxu0
    %v309 = vadd.f32 %v195, %v308
    %v310 = vpop.f32.mrf.mxu0
    %311 = vmatprep.mubr.f32.mxu0 0.0
    %312 = vmatmul.mubr.f32.gmra.mxu0 %v120
    %v313 = vpop.f32.mrf.mxu0
    %v314 = vadd.f32 %v195, %v313
    %v315 = vpop.f32.mrf.mxu0
    %316 = vmatprep.mubr.f32.mxu0 0.0
    %317 = vmatmul.mubr.f32.gmra.mxu0 %v121
    %v318 = vpop.f32.mrf.mxu0
    %v319 = vadd.f32 %v195, %v318
    %v320 = vpop.f32.mrf.mxu0
    %321 = vmatprep.mubr.f32.mxu0 0.0
    %322 = vmatmul.mubr.f32.gmra.mxu0 %v122
    %v323 = vpop.f32.mrf.mxu0
    %v324 = vadd.f32 %v195, %v323
    %v325 = vpop.f32.mrf.mxu0
    %326 = vmatprep.mubr.f32.mxu0 0.0
    %327 = vmatmul.mubr.f32.gmra.mxu0 %v123
    %v328 = vpop.f32.mrf.mxu0
    %v329 = vadd.f32 %v195, %v328
    %v330 = vpop.f32.mrf.mxu0
    %331 = vmatprep.mubr.f32.mxu0 0.0
    %332 = vmatmul.mubr.f32.gmra.mxu0 %v124
    %v333 = vpop.f32.mrf.mxu0
    %v334 = vadd.f32 %v195, %v333
    %v335 = vpop.f32.mrf.mxu0
    %336 = vmatprep.mubr.f32.mxu0 0.0
    %337 = vmatmul.mubr.f32.gmra.mxu0 %v125
    %v338 = vpop.f32.mrf.mxu0
    %v339 = vadd.f32 %v195, %v338
    %v340 = vpop.f32.mrf.mxu0
    %341 = vmatprep.mubr.f32.mxu0 0.0
    %342 = vmatmul.mubr.f32.gmra.mxu0 %v126
    %v343 = vpop.f32.mrf.mxu0
    %v344 = vadd.f32 %v195, %v343
    %v345 = vpop.f32.mrf.mxu0
    %346 = vmatprep.mubr.f32.mxu0 0.0
    %347 = vmatmul.mubr.f32.gmra.mxu0 %v127
    %v348 = vpop.f32.mrf.mxu0
    %v349 = vadd.f32 %v195, %v348
    %v350 = vpop.f32.mrf.mxu0
    %351 = vmatprep.mubr.f32.mxu0 0.0
    %352 = vmatmul.mubr.f32.gmra.mxu0 %v128
    %v353 = vpop.f32.mrf.mxu0
    %v354 = vadd.f32 %v195, %v353
    %v355 = vpop.f32.mrf.mxu0
    %356 = vmatprep.mubr.f32.mxu0 0.0
    %357 = vmatmul.mubr.f32.gmra.mxu0 %v129
    %v358 = vpop.f32.mrf.mxu0
    %v359 = vadd.f32 %v195, %v358
    %v360 = vpop.f32.mrf.mxu0
    %361 = vmatprep.mubr.f32.mxu0 0.0
    %362 = vmatmul.mubr.f32.gmra.mxu0 %v130
    %v363 = vpop.f32.mrf.mxu0
    %v364 = vadd.f32 %v195, %v363
    %v365 = vpop.f32.mrf.mxu0
    %366 = vmatprep.mubr.f32.mxu0 0.0
    %367 = vmatmul.mubr.f32.gmra.mxu0 %v131
    %v368 = vpop.f32.mrf.mxu0
    %v369 = vadd.f32 %v195, %v368
    %v370 = vpop.f32.mrf.mxu0
    %371 = vmatprep.mubr.f32.mxu0 0.0
    %372 = vmatmul.mubr.f32.gmra.mxu0 %v132
    %v373 = vpop.f32.mrf.mxu0
    %v374 = vadd.f32 %v195, %v373
    %v375 = vpop.f32.mrf.mxu0
    %376 = vmatprep.mubr.f32.mxu0 0.0
    %377 = vmatmul.mubr.f32.gmra.mxu0 %v133
    %v378 = vpop.f32.mrf.mxu0
    %v379 = vadd.f32 %v195, %v378
    %v380 = vpop.f32.mrf.mxu0
    %381 = vmatprep.mubr.f32.mxu0 0.0
    %382 = vmatmul.mubr.f32.gmra.mxu0 %v134
    %v383 = vpop.f32.mrf.mxu0
    %v384 = vadd.f32 %v195, %v383
    %v385 = vpop.f32.mrf.mxu0
    %386 = vmatprep.mubr.f32.mxu0 0.0
    %387 = vmatmul.mubr.f32.gmra.mxu0 %v135
    %v388 = vpop.f32.mrf.mxu0
    %v389 = vadd.f32 %v195, %v388
    %v390 = vpop.f32.mrf.mxu0
    %391 = vmatprep.mubr.f32.mxu0 0.0
    %392 = vmatmul.mubr.f32.gmra.mxu0 %v136
    %v393 = vpop.f32.mrf.mxu0
    %v394 = vadd.f32 %v195, %v393
    %v395 = vpop.f32.mrf.mxu0
    %396 = vmatprep.mubr.f32.mxu0 0.0
    %397 = vmatmul.mubr.f32.gmra.mxu0 %v137
    %v398 = vpop.f32.mrf.mxu0
    %v399 = vadd.f32 %v195, %v398
    %v400 = vpop.f32.mrf.mxu0
    %401 = vmatprep.mubr.f32.mxu0 0.0
    %402 = vmatmul.mubr.f32.gmra.mxu0 %v138
    %v403 = vpop.f32.mrf.mxu0
    %v404 = vadd.f32 %v195, %v403
    %v405 = vpop.f32.mrf.mxu0
    %406 = vmatprep.mubr.f32.mxu0 0.0
    %407 = vmatmul.mubr.f32.gmra.mxu0 %v139
    %v408 = vpop.f32.mrf.mxu0
    %v409 = vadd.f32 %v195, %v408
    %v410 = vpop.f32.mrf.mxu0
    %411 = vmatprep.mubr.f32.mxu0 0.0
    %412 = vmatmul.mubr.f32.gmra.mxu0 %v140
    %v413 = vpop.f32.mrf.mxu0
    %v414 = vadd.f32 %v195, %v413
    %v415 = vpop.f32.mrf.mxu0
    %416 = vmatprep.mubr.f32.mxu0 0.0
    %417 = vmatmul.mubr.f32.gmra.mxu0 %v141
    %v418 = vpop.f32.mrf.mxu0
    %v419 = vadd.f32 %v195, %v418
    %v420 = vpop.f32.mrf.mxu0
    %421 = vmatprep.mubr.f32.mxu0 0.0
    %422 = vmatmul.mubr.f32.gmra.mxu0 %v142
    %v423 = vpop.f32.mrf.mxu0
    %v424 = vadd.f32 %v195, %v423
    %v425 = vpop.f32.mrf.mxu0
    %426 = vmatprep.mubr.f32.mxu0 0.0
    %427 = vmatmul.mubr.f32.gmra.mxu0 %v143
    %v428 = vpop.f32.mrf.mxu0
    %v429 = vadd.f32 %v195, %v428
    %v430 = vpop.f32.mrf.mxu0
    %431 = vmatprep.mubr.f32.mxu0 0.0
    %432 = vmatmul.mubr.f32.gmra.mxu0 %v144
    %v433 = vpop.f32.mrf.mxu0
    %v434 = vadd.f32 %v195, %v433
    %v435 = vpop.f32.mrf.mxu0
    %436 = vmatprep.mubr.f32.mxu0 0.0
    %437 = vmatmul.mubr.f32.gmra.mxu0 %v145
    %v438 = vpop.f32.mrf.mxu0
    %v439 = vadd.f32 %v195, %v438
    %v440 = vpop.f32.mrf.mxu0
    %441 = vmatprep.mubr.f32.mxu0 0.0
    %442 = vmatmul.mubr.f32.gmra.mxu0 %v146
    %v443 = vpop.f32.mrf.mxu0
    %v444 = vadd.f32 %v195, %v443
    %v445 = vpop.f32.mrf.mxu0
    %446 = vmatprep.mubr.f32.mxu0 0.0
    %447 = vmatmul.mubr.f32.gmra.mxu0 %v147
    %v448 = vpop.f32.mrf.mxu0
    %v449 = vadd.f32 %v195, %v448
    %v450 = vpop.f32.mrf.mxu0
    %451 = vmatprep.mubr.f32.mxu0 0.0
    %452 = vmatmul.mubr.f32.gmra.mxu0 %v148
    %v453 = vpop.f32.mrf.mxu0
    %v454 = vadd.f32 %v195, %v453
    %v455 = vpop.f32.mrf.mxu0
    %456 = vmatprep.mubr.f32.mxu0 0.0
    %457 = vmatmul.mubr.f32.gmra.mxu0 %v149
    %v458 = vpop.f32.mrf.mxu0
    %v459 = vadd.f32 %v195, %v458
    %v460 = vpop.f32.mrf.mxu0
    %461 = vmatprep.mubr.f32.mxu0 0.0
    %462 = vmatmul.mubr.f32.gmra.mxu0 %v150
    %v463 = vpop.f32.mrf.mxu0
    %v464 = vadd.f32 %v195, %v463
    %v465 = vpop.f32.mrf.mxu0
    %466 = vmatprep.mubr.f32.mxu0 0.0
    %467 = vmatmul.mubr.f32.gmra.mxu0 %v151
    %v468 = vpop.f32.mrf.mxu0
    %v469 = vadd.f32 %v195, %v468
    %v470 = vpop.f32.mrf.mxu0
    %471 = vmatprep.mubr.f32.mxu0 0.0
    %472 = vmatmul.mubr.f32.gmra.mxu0 %v152
    %v473 = vpop.f32.mrf.mxu0
    %v474 = vadd.f32 %v195, %v473
    %v475 = vpop.f32.mrf.mxu0
    %476 = vmatprep.mubr.f32.mxu0 0.0
    %477 = vmatmul.mubr.f32.gmra.mxu0 %v153
    %v478 = vpop.f32.mrf.mxu0
    %v479 = vadd.f32 %v195, %v478
    %v480 = vpop.f32.mrf.mxu0
    %481 = vmatprep.mubr.f32.mxu0 0.0
    %482 = vmatmul.mubr.f32.gmra.mxu0 %v154
    %v483 = vpop.f32.mrf.mxu0
    %v484 = vadd.f32 %v195, %v483
    %v485 = vpop.f32.mrf.mxu0
    %486 = vmatprep.mubr.f32.mxu0 0.0
    %487 = vmatmul.mubr.f32.gmra.mxu0 %v155
    %v488 = vpop.f32.mrf.mxu0
    %v489 = vadd.f32 %v195, %v488
    %v490 = vpop.f32.mrf.mxu0
    %491 = vmatprep.mubr.f32.mxu0 0.0
    %492 = vmatmul.mubr.f32.gmra.mxu0 %v156
    %v493 = vpop.f32.mrf.mxu0
    %v494 = vadd.f32 %v195, %v493
    %v495 = vpop.f32.mrf.mxu0
    %496 = vmatprep.mubr.f32.mxu0 0.0
    %497 = vmatmul.mubr.f32.gmra.mxu0 %v157
    %v498 = vpop.f32.mrf.mxu0
    %v499 = vadd.f32 %v195, %v498
    %v500 = vpop.f32.mrf.mxu0
    %501 = vmatprep.mubr.f32.mxu0 0.0
    %502 = vmatmul.mubr.f32.gmra.mxu0 %v158
    %v503 = vpop.f32.mrf.mxu0
    %v504 = vadd.f32 %v195, %v503
    %v505 = vpop.f32.mrf.mxu0
    %506 = vmatprep.mubr.f32.mxu0 0.0
    %507 = vmatmul.mubr.f32.gmra.mxu0 %v159
    %v508 = vpop.f32.mrf.mxu0
    %v509 = vadd.f32 %v195, %v508
    %v510 = vpop.f32.mrf.mxu0
    %511 = vmatprep.mubr.f32.mxu0 0.0
    %512 = vmatmul.mubr.f32.gmra.mxu0 %v160
    %v513 = vpop.f32.mrf.mxu0
    %v514 = vadd.f32 %v195, %v513
    %v515 = vpop.f32.mrf.mxu0
    %516 = vmatprep.mubr.f32.mxu0 0.0
    %517 = vmatmul.mubr.f32.gmra.mxu0 %v161
    %v518 = vpop.f32.mrf.mxu0
    %v519 = vadd.f32 %v195, %v518
    %v520 = vpop.f32.mrf.mxu0
    %521 = vmatprep.mubr.f32.mxu0 0.0
    %522 = vmatmul.mubr.f32.gmra.mxu0 %v162
    %v523 = vpop.f32.mrf.mxu0
    %v524 = vadd.f32 %v195, %v523
    %v525 = vpop.f32.mrf.mxu0
    %526 = vmatprep.mubr.f32.mxu0 0.0
    %527 = vmatmul.mubr.f32.gmra.mxu0 %v163
    %v528 = vpop.f32.mrf.mxu0
    %v529 = vadd.f32 %v195, %v528
    %v530 = vpop.f32.mrf.mxu0
    %531 = vmatprep.mubr.f32.mxu0 0.0
    %532 = vmatmul.mubr.f32.gmra.mxu0 %v164
    %v533 = vpop.f32.mrf.mxu0
    %v534 = vadd.f32 %v195, %v533
    %v535 = vpop.f32.mrf.mxu0
    %536 = vmatprep.mubr.f32.mxu0 0.0
    %537 = vmatmul.mubr.f32.gmra.mxu0 %v165
    %v538 = vpop.f32.mrf.mxu0
    %v539 = vadd.f32 %v195, %v538
    %v540 = vpop.f32.mrf.mxu0
    %541 = vmatprep.mubr.f32.mxu0 0.0
    %542 = vmatmul.mubr.f32.gmra.mxu0 %v166
    %v543 = vpop.f32.mrf.mxu0
    %v544 = vadd.f32 %v195, %v543
    %v545 = vpop.f32.mrf.mxu0
    %546 = vmatprep.mubr.f32.mxu0 0.0
    %547 = vmatmul.mubr.f32.gmra.mxu0 %v167
    %v548 = vpop.f32.mrf.mxu0
    %v549 = vadd.f32 %v195, %v548
    %v550 = vpop.f32.mrf.mxu0
    %551 = vmatprep.mubr.f32.mxu0 0.0
    %552 = vmatmul.mubr.f32.gmra.mxu0 %v168
    %v553 = vpop.f32.mrf.mxu0
    %v554 = vadd.f32 %v195, %v553
    %v555 = vpop.f32.mrf.mxu0
    %556 = vmatprep.mubr.f32.mxu0 0.0
    %557 = vmatmul.mubr.f32.gmra.mxu0 %v169
    %v558 = vpop.f32.mrf.mxu0
    %v559 = vadd.f32 %v195, %v558
    %v560 = vpop.f32.mrf.mxu0
    %561 = vmatprep.mubr.f32.mxu0 0.0
    %562 = vmatmul.mubr.f32.gmra.mxu0 %v170
    %v563 = vpop.f32.mrf.mxu0
    %v564 = vadd.f32 %v195, %v563
    %v565 = vpop.f32.mrf.mxu0
    %566 = vmatprep.mubr.f32.mxu0 0.0
    %567 = vmatmul.mubr.f32.gmra.mxu0 %v171
    %v568 = vpop.f32.mrf.mxu0
    %v569 = vadd.f32 %v195, %v568
    %v570 = vpop.f32.mrf.mxu0
    %571 = vmatprep.mubr.f32.mxu0 0.0
    %572 = vmatmul.mubr.f32.gmra.mxu0 %v172
    %v573 = vpop.f32.mrf.mxu0
    %v574 = vadd.f32 %v195, %v573
    %v575 = vpop.f32.mrf.mxu0
    %576 = vmatprep.mubr.f32.mxu0 0.0
    %577 = vmatmul.mubr.f32.gmra.mxu0 %v173
    %v578 = vpop.f32.mrf.mxu0
    %v579 = vadd.f32 %v195, %v578
    %v580 = vpop.f32.mrf.mxu0
    %581 = vdwg.mxu0
    %v582 = vmax.f32 %v264, 0.0
    %v583 = vmax.f32 %v269, 0.0
    %v584 = vmax.f32 %v274, 0.0
    %v585 = vmax.f32 %v279, 0.0
    %v586 = vmax.f32 %v284, 0.0
    %v587 = vmax.f32 %v289, 0.0
    %v588 = vmax.f32 %v294, 0.0
    %v589 = vmax.f32 %v299, 0.0
    %v590 = vmax.f32 %v304, 0.0
    %v591 = vmax.f32 %v309, 0.0
    %v592 = vmax.f32 %v314, 0.0
    %v593 = vmax.f32 %v319, 0.0
    %v594 = vmax.f32 %v324, 0.0
    %v595 = vmax.f32 %v329, 0.0
    %v596 = vmax.f32 %v334, 0.0
    %v597 = vmax.f32 %v339, 0.0
    %v598 = vmax.f32 %v344, 0.0
    %v599 = vmax.f32 %v349, 0.0
    %v600 = vmax.f32 %v354, 0.0
    %v601 = vmax.f32 %v359, 0.0
    %v602 = vmax.f32 %v364, 0.0
    %v603 = vmax.f32 %v369, 0.0
    %v604 = vmax.f32 %v374, 0.0
    %v605 = vmax.f32 %v379, 0.0
    %v606 = vmax.f32 %v384, 0.0
    %v607 = vmax.f32 %v389, 0.0
    %v608 = vmax.f32 %v394, 0.0
    %v609 = vmax.f32 %v399, 0.0
    %v610 = vmax.f32 %v404, 0.0
    %v611 = vmax.f32 %v409, 0.0
    %v612 = vmax.f32 %v414, 0.0
    %v613 = vmax.f32 %v419, 0.0
    %v614 = vmax.f32 %v424, 0.0
    %v615 = vmax.f32 %v429, 0.0
    %v616 = vmax.f32 %v434, 0.0
    %v617 = vmax.f32 %v439, 0.0
    %v618 = vmax.f32 %v444, 0.0
    %v619 = vmax.f32 %v449, 0.0
    %v620 = vmax.f32 %v454, 0.0
    %v621 = vmax.f32 %v459, 0.0
    %v622 = vmax.f32 %v464, 0.0
    %v623 = vmax.f32 %v469, 0.0
    %v624 = vmax.f32 %v474, 0.0
    %v625 = vmax.f32 %v479, 0.0
    %v626 = vmax.f32 %v484, 0.0
    %v627 = vmax.f32 %v489, 0.0
    %v628 = vmax.f32 %v494, 0.0
    %v629 = vmax.f32 %v499, 0.0
    %v630 = vmax.f32 %v504, 0.0
    %v631 = vmax.f32 %v509, 0.0
    %v632 = vmax.f32 %v514, 0.0
    %v633 = vmax.f32 %v519, 0.0
    %v634 = vmax.f32 %v524, 0.0
    %v635 = vmax.f32 %v529, 0.0
    %v636 = vmax.f32 %v534, 0.0
    %v637 = vmax.f32 %v539, 0.0
    %v638 = vmax.f32 %v544, 0.0
    %v639 = vmax.f32 %v549, 0.0
    %v640 = vmax.f32 %v554, 0.0
    %v641 = vmax.f32 %v559, 0.0
    %v642 = vmax.f32 %v564, 0.0
    %v643 = vmax.f32 %v569, 0.0
    %v644 = vmax.f32 %v574, 0.0
    %v645 = vmax.f32 %v579, 0.0
    %v646 = vadd.f32 %v582, %v583
    %v647 = vadd.f32 %v646, %v584
    %v648 = vadd.f32 %v647, %v585
    %v649 = vadd.f32 %v648, %v586
    %v650 = vadd.f32 %v649, %v587
    %v651 = vadd.f32 %v650, %v588
    %v652 = vadd.f32 %v651, %v589
    %v653 = vadd.f32 %v652, %v590
    %v654 = vadd.f32 %v653, %v591
    %v655 = vadd.f32 %v654, %v592
    %v656 = vadd.f32 %v655, %v593
    %v657 = vadd.f32 %v656, %v594
    %v658 = vadd.f32 %v657, %v595
    %v659 = vadd.f32 %v658, %v596
    %v660 = vadd.f32 %v659, %v597
    %v661 = vadd.f32 %v660, %v598
    %v662 = vadd.f32 %v661, %v599
    %v663 = vadd.f32 %v662, %v600
    %v664 = vadd.f32 %v663, %v601
    %v665 = vadd.f32 %v664, %v602
    %v666 = vadd.f32 %v665, %v603
    %v667 = vadd.f32 %v666, %v604
    %v668 = vadd.f32 %v667, %v605
    %v669 = vadd.f32 %v668, %v606
    %v670 = vadd.f32 %v669, %v607
    %v671 = vadd.f32 %v670, %v608
    %v672 = vadd.f32 %v671, %v609
    %v673 = vadd.f32 %v672, %v610
    %v674 = vadd.f32 %v673, %v611
    %v675 = vadd.f32 %v674, %v612
    %v676 = vadd.f32 %v675, %v613
    %v677 = vadd.f32 %v676, %v614
    %v678 = vadd.f32 %v677, %v615
    %v679 = vadd.f32 %v678, %v616
    %v680 = vadd.f32 %v679, %v617
    %v681 = vadd.f32 %v680, %v618
    %v682 = vadd.f32 %v681, %v619
    %v683 = vadd.f32 %v682, %v620
    %v684 = vadd.f32 %v683, %v621
    %v685 = vadd.f32 %v684, %v622
    %v686 = vadd.f32 %v685, %v623
    %v687 = vadd.f32 %v686, %v624
    %v688 = vadd.f32 %v687, %v625
    %v689 = vadd.f32 %v688, %v626
    %v690 = vadd.f32 %v689, %v627
    %v691 = vadd.f32 %v690, %v628
    %v692 = vadd.f32 %v691, %v629
    %v693 = vadd.f32 %v692, %v630
    %v694 = vadd.f32 %v693, %v631
    %v695 = vadd.f32 %v694, %v632
    %v696 = vadd.f32 %v695, %v633
    %v697 = vadd.f32 %v696, %v634
    %v698 = vadd.f32 %v697, %v635
    %v699 = vadd.f32 %v698, %v636
    %v700 = vadd.f32 %v699, %v637
    %v701 = vadd.f32 %v700, %v638
    %v702 = vadd.f32 %v701, %v639
    %v703 = vadd.f32 %v702, %v640
    %v704 = vadd.f32 %v703, %v641
    %v705 = vadd.f32 %v704, %v642
    %v706 = vadd.f32 %v705, %v643
    %v707 = vadd.f32 %v706, %v644
    %v708 = vadd.f32 %v707, %v645
    %v709 = vrot.slane %v708, 4
    %v710 = vadd.f32 %v708, %v709
    %v711 = vrot.slane %v710, 2
    %v712 = vadd.f32 %v710, %v711
    %v713 = vrot.slane %v712, 1
    %v714 = vadd.f32 %v712, %v713
    %v715 = vmul.f32 %v714, 0.001953125
    %v716 = vmul.f32 %v582, %v582
    %v717 = vmul.f32 %v583, %v583
    %v718 = vmul.f32 %v584, %v584
    %v719 = vmul.f32 %v585, %v585
    %v720 = vmul.f32 %v586, %v586
    %v721 = vmul.f32 %v587, %v587
    %v722 = vmul.f32 %v588, %v588
    %v723 = vmul.f32 %v589, %v589
    %v724 = vmul.f32 %v590, %v590
    %v725 = vmul.f32 %v591, %v591
    %v726 = vmul.f32 %v592, %v592
    %v727 = vmul.f32 %v593, %v593
    %v728 = vmul.f32 %v594, %v594
    %v729 = vmul.f32 %v595, %v595
    %v730 = vmul.f32 %v596, %v596
    %v731 = vmul.f32 %v597, %v597
    %v732 = vmul.f32 %v598, %v598
    %v733 = vmul.f32 %v599, %v599
    %v734 = vmul.f32 %v600, %v600
    %v735 = vmul.f32 %v601, %v601
    %v736 = vmul.f32 %v602, %v602
    %v737 = vmul.f32 %v603, %v603
    %v738 = vmul.f32 %v604, %v604
    %v739 = vmul.f32 %v605, %v605
    %v740 = vmul.f32 %v606, %v606
    %v741 = vmul.f32 %v607, %v607
    %v742 = vmul.f32 %v608, %v608
    %v743 = vmul.f32 %v609, %v609
    %v744 = vmul.f32 %v610, %v610
    %v745 = vmul.f32 %v611, %v611
    %v746 = vmul.f32 %v612, %v612
    %v747 = vmul.f32 %v613, %v613
    %v748 = vmul.f32 %v614, %v614
    %v749 = vmul.f32 %v615, %v615
    %v750 = vmul.f32 %v616, %v616
    %v751 = vmul.f32 %v617, %v617
    %v752 = vmul.f32 %v618, %v618
    %v753 = vmul.f32 %v619, %v619
    %v754 = vmul.f32 %v620, %v620
    %v755 = vmul.f32 %v621, %v621
    %v756 = vmul.f32 %v622, %v622
    %v757 = vmul.f32 %v623, %v623
    %v758 = vmul.f32 %v624, %v624
    %v759 = vmul.f32 %v625, %v625
    %v760 = vmul.f32 %v626, %v626
    %v761 = vmul.f32 %v627, %v627
    %v762 = vmul.f32 %v628, %v628
    %v763 = vmul.f32 %v629, %v629
    %v764 = vmul.f32 %v630, %v630
    %v765 = vmul.f32 %v631, %v631
    %v766 = vmul.f32 %v632, %v632
    %v767 = vmul.f32 %v633, %v633
    %v768 = vmul.f32 %v634, %v634
    %v769 = vmul.f32 %v635, %v635
    %v770 = vmul.f32 %v636, %v636
    %v771 = vmul.f32 %v637, %v637
    %v772 = vmul.f32 %v638, %v638
    %v773 = vmul.f32 %v639, %v639
    %v774 = vmul.f32 %v640, %v640
    %v775 = vmul.f32 %v641, %v641
    %v776 = vmul.f32 %v642, %v642
    %v777 = vmul.f32 %v643, %v643
    %v778 = vmul.f32 %v644, %v644
    %v779 = vmul.f32 %v645, %v645
    %v780 = vadd.f32 %v716, %v717
    %v781 = vadd.f32 %v780, %v718
    %v782 = vadd.f32 %v781, %v719
    %v783 = vadd.f32 %v782, %v720
    %v784 = vadd.f32 %v783, %v721
    %v785 = vadd.f32 %v784, %v722
    %v786 = vadd.f32 %v785, %v723
    %v787 = vadd.f32 %v786, %v724
    %v788 = vadd.f32 %v787, %v725
    %v789 = vadd.f32 %v788, %v726
    %v790 = vadd.f32 %v789, %v727
    %v791 = vadd.f32 %v790, %v728
    %v792 = vadd.f32 %v791, %v729
    %v793 = vadd.f32 %v792, %v730
    %v794 = vadd.f32 %v793, %v731
    %v795 = vadd.f32 %v794, %v732
    %v796 = vadd.f32 %v795, %v733
    %v797 = vadd.f32 %v796, %v734
    %v798 = vadd.f32 %v797, %v735
    %v799 = vadd.f32 %v798, %v736
    %v800 = vadd.f32 %v799, %v737
    %v801 = vadd.f32 %v800, %v738
    %v802 = vadd.f32 %v801, %v739
    %v803 = vadd.f32 %v802, %v740
    %v804 = vadd.f32 %v803, %v741
    %v805 = vadd.f32 %v804, %v742
    %v806 = vadd.f32 %v805, %v743
    %v807 = vadd.f32 %v806, %v744
    %v808 = vadd.f32 %v807, %v745
    %v809 = vadd.f32 %v808, %v746
    %v810 = vadd.f32 %v809, %v747
    %v811 = vadd.f32 %v810, %v748
    %v812 = vadd.f32 %v811, %v749
    %v813 = vadd.f32 %v812, %v750
    %v814 = vadd.f32 %v813, %v751
    %v815 = vadd.f32 %v814, %v752
    %v816 = vadd.f32 %v815, %v753
    %v817 = vadd.f32 %v816, %v754
    %v818 = vadd.f32 %v817, %v755
    %v819 = vadd.f32 %v818, %v756
    %v820 = vadd.f32 %v819, %v757
    %v821 = vadd.f32 %v820, %v758
    %v822 = vadd.f32 %v821, %v759
    %v823 = vadd.f32 %v822, %v760
    %v824 = vadd.f32 %v823, %v761
    %v825 = vadd.f32 %v824, %v762
    %v826 = vadd.f32 %v825, %v763
    %v827 = vadd.f32 %v826, %v764
    %v828 = vadd.f32 %v827, %v765
    %v829 = vadd.f32 %v828, %v766
    %v830 = vadd.f32 %v829, %v767
    %v831 = vadd.f32 %v830, %v768
    %v832 = vadd.f32 %v831, %v769
    %v833 = vadd.f32 %v832, %v770
    %v834 = vadd.f32 %v833, %v771
    %v835 = vadd.f32 %v834, %v772
    %v836 = vadd.f32 %v835, %v773
    %v837 = vadd.f32 %v836, %v774
    %v838 = vadd.f32 %v837, %v775
    %v839 = vadd.f32 %v838, %v776
    %v840 = vadd.f32 %v839, %v777
    %v841 = vadd.f32 %v840, %v778
    %v842 = vadd.f32 %v841, %v779
    %v843 = vrot.slane %v842, 4
    %v844 = vadd.f32 %v842, %v843
    %v845 = vrot.slane %v844, 2
    %v846 = vadd.f32 %v844, %v845
    %v847 = vrot.slane %v846, 1
    %v848 = vadd.f32 %v846, %v847
    %v849 = vmul.f32 %v848, 0.001953125
    %v850 = vmul.f32 %v715, %v715
    %v851 = vsub.f32 %v849, %v850
    %v852 = vld [vmem:[%s3] sm:$0x1]
    %v853 = vadd.f32 %v851, 1e-05
    %v854 = vrsqrt.pop %v853
    %v855 = vmul.f32 %v852, %v854
    %v856 = vld [vmem:[%s4] sm:$0x1]
    %v857 = vmul.f32 %v715, %v855
    %v858 = vsub.f32 %v856, %v857
    %v860 = vlaneseq
    %v861 = vshrl.u32 %v860, 7
    %v862 = vsub.s32 0, %v861
    %v863 = vrot.slane %v855, %v862
    %v865 = vmul.f32 %v582, %v863
    %v866 = vmul.f32 %v583, %v863
    %v867 = vmul.f32 %v584, %v863
    %v868 = vmul.f32 %v585, %v863
    %v869 = vmul.f32 %v586, %v863
    %v870 = vmul.f32 %v587, %v863
    %v871 = vmul.f32 %v588, %v863
    %v872 = vmul.f32 %v589, %v863
    %v873 = vmul.f32 %v590, %v863
    %v874 = vmul.f32 %v591, %v863
    %v875 = vmul.f32 %v592, %v863
    %v876 = vmul.f32 %v593, %v863
    %v877 = vmul.f32 %v594, %v863
    %v878 = vmul.f32 %v595, %v863
    %v879 = vmul.f32 %v596, %v863
    %v880 = vmul.f32 %v597, %v863
    %v881 = vmul.f32 %v598, %v863
    %v882 = vmul.f32 %v599, %v863
    %v883 = vmul.f32 %v600, %v863
    %v884 = vmul.f32 %v601, %v863
    %v885 = vmul.f32 %v602, %v863
    %v886 = vmul.f32 %v603, %v863
    %v887 = vmul.f32 %v604, %v863
    %v888 = vmul.f32 %v605, %v863
    %v889 = vmul.f32 %v606, %v863
    %v890 = vmul.f32 %v607, %v863
    %v891 = vmul.f32 %v608, %v863
    %v892 = vmul.f32 %v609, %v863
    %v893 = vmul.f32 %v610, %v863
    %v894 = vmul.f32 %v611, %v863
    %v895 = vmul.f32 %v612, %v863
    %v896 = vmul.f32 %v613, %v863
    %v897 = vmul.f32 %v614, %v863
    %v898 = vmul.f32 %v615, %v863
    %v899 = vmul.f32 %v616, %v863
    %v900 = vmul.f32 %v617, %v863
    %v901 = vmul.f32 %v618, %v863
    %v902 = vmul.f32 %v619, %v863
    %v903 = vmul.f32 %v620, %v863
    %v904 = vmul.f32 %v621, %v863
    %v905 = vmul.f32 %v622, %v863
    %v906 = vmul.f32 %v623, %v863
    %v907 = vmul.f32 %v624, %v863
    %v908 = vmul.f32 %v625, %v863
    %v909 = vmul.f32 %v626, %v863
    %v910 = vmul.f32 %v627, %v863
    %v911 = vmul.f32 %v628, %v863
    %v912 = vmul.f32 %v629, %v863
    %v913 = vmul.f32 %v630, %v863
    %v914 = vmul.f32 %v631, %v863
    %v915 = vmul.f32 %v632, %v863
    %v916 = vmul.f32 %v633, %v863
    %v917 = vmul.f32 %v634, %v863
    %v918 = vmul.f32 %v635, %v863
    %v919 = vmul.f32 %v636, %v863
    %v920 = vmul.f32 %v637, %v863
    %v921 = vmul.f32 %v638, %v863
    %v922 = vmul.f32 %v639, %v863
    %v923 = vmul.f32 %v640, %v863
    %v924 = vmul.f32 %v641, %v863
    %v925 = vmul.f32 %v642, %v863
    %v926 = vmul.f32 %v643, %v863
    %v927 = vmul.f32 %v644, %v863
    %v928 = vmul.f32 %v645, %v863
    %v930 = vlaneseq
    %v931 = vshrl.u32 %v930, 7
    %v932 = vsub.s32 0, %v931
    %v933 = vrot.slane %v858, %v932
    %v935 = vadd.f32 %v865, %v933
    %v936 = vadd.f32 %v866, %v933
    %v937 = vadd.f32 %v867, %v933
    %v938 = vadd.f32 %v868, %v933
    %v939 = vadd.f32 %v869, %v933
    %v940 = vadd.f32 %v870, %v933
    %v941 = vadd.f32 %v871, %v933
    %v942 = vadd.f32 %v872, %v933
    %v943 = vadd.f32 %v873, %v933
    %v944 = vadd.f32 %v874, %v933
    %v945 = vadd.f32 %v875, %v933
    %v946 = vadd.f32 %v876, %v933
    %v947 = vadd.f32 %v877, %v933
    %v948 = vadd.f32 %v878, %v933
    %v949 = vadd.f32 %v879, %v933
    %v950 = vadd.f32 %v880, %v933
    %v951 = vadd.f32 %v881, %v933
    %v952 = vadd.f32 %v882, %v933
    %v953 = vadd.f32 %v883, %v933
    %v954 = vadd.f32 %v884, %v933
    %v955 = vadd.f32 %v885, %v933
    %v956 = vadd.f32 %v886, %v933
    %v957 = vadd.f32 %v887, %v933
    %v958 = vadd.f32 %v888, %v933
    %v959 = vadd.f32 %v889, %v933
    %v960 = vadd.f32 %v890, %v933
    %v961 = vadd.f32 %v891, %v933
    %v962 = vadd.f32 %v892, %v933
    %v963 = vadd.f32 %v893, %v933
    %v964 = vadd.f32 %v894, %v933
    %v965 = vadd.f32 %v895, %v933
    %v966 = vadd.f32 %v896, %v933
    %v967 = vadd.f32 %v897, %v933
    %v968 = vadd.f32 %v898, %v933
    %v969 = vadd.f32 %v899, %v933
    %v970 = vadd.f32 %v900, %v933
    %v971 = vadd.f32 %v901, %v933
    %v972 = vadd.f32 %v902, %v933
    %v973 = vadd.f32 %v903, %v933
    %v974 = vadd.f32 %v904, %v933
    %v975 = vadd.f32 %v905, %v933
    %v976 = vadd.f32 %v906, %v933
    %v977 = vadd.f32 %v907, %v933
    %v978 = vadd.f32 %v908, %v933
    %v979 = vadd.f32 %v909, %v933
    %v980 = vadd.f32 %v910, %v933
    %v981 = vadd.f32 %v911, %v933
    %v982 = vadd.f32 %v912, %v933
    %v983 = vadd.f32 %v913, %v933
    %v984 = vadd.f32 %v914, %v933
    %v985 = vadd.f32 %v915, %v933
    %v986 = vadd.f32 %v916, %v933
    %v987 = vadd.f32 %v917, %v933
    %v988 = vadd.f32 %v918, %v933
    %v989 = vadd.f32 %v919, %v933
    %v990 = vadd.f32 %v920, %v933
    %v991 = vadd.f32 %v921, %v933
    %v992 = vadd.f32 %v922, %v933
    %v993 = vadd.f32 %v923, %v933
    %v994 = vadd.f32 %v924, %v933
    %v995 = vadd.f32 %v925, %v933
    %v996 = vadd.f32 %v926, %v933
    %v997 = vadd.f32 %v927, %v933
    %v998 = vadd.f32 %v928, %v933
    %v999 = vld [vmem:[%s6] sm:$0xff]
    %v1000 = vld [vmem:[%s6 + $0x8] sm:$0xff]
    %v1001 = vld [vmem:[%s6 + $0x10] sm:$0xff]
    %v1002 = vld [vmem:[%s6 + $0x18] sm:$0xff]
    %v1003 = vld [vmem:[%s6 + $0x20] sm:$0xff]
    %v1004 = vld [vmem:[%s6 + $0x28] sm:$0xff]
    %v1005 = vld [vmem:[%s6 + $0x30] sm:$0xff]
    %v1006 = vld [vmem:[%s6 + $0x38] sm:$0xff]
    %v1007 = vld [vmem:[%s6 + $0x40] sm:$0xff]
    %v1008 = vld [vmem:[%s6 + $0x48] sm:$0xff]
    %v1009 = vld [vmem:[%s6 + $0x50] sm:$0xff]
    %v1010 = vld [vmem:[%s6 + $0x58] sm:$0xff]
    %v1011 = vld [vmem:[%s6 + $0x60] sm:$0xff]
    %v1012 = vld [vmem:[%s6 + $0x68] sm:$0xff]
    %v1013 = vld [vmem:[%s6 + $0x70] sm:$0xff]
    %v1014 = vld [vmem:[%s6 + $0x78] sm:$0xff]
    %v1015 = vld [vmem:[%s6 + $0x80] sm:$0xff]
    %v1016 = vld [vmem:[%s6 + $0x88] sm:$0xff]
    %v1017 = vld [vmem:[%s6 + $0x90] sm:$0xff]
    %v1018 = vld [vmem:[%s6 + $0x98] sm:$0xff]
    %v1019 = vld [vmem:[%s6 + $0xa0] sm:$0xff]
    %v1020 = vld [vmem:[%s6 + $0xa8] sm:$0xff]
    %v1021 = vld [vmem:[%s6 + $0xb0] sm:$0xff]
    %v1022 = vld [vmem:[%s6 + $0xb8] sm:$0xff]
    %v1023 = vld [vmem:[%s6 + $0xc0] sm:$0xff]
    %v1024 = vld [vmem:[%s6 + $0xc8] sm:$0xff]
    %v1025 = vld [vmem:[%s6 + $0xd0] sm:$0xff]
    %v1026 = vld [vmem:[%s6 + $0xd8] sm:$0xff]
    %v1027 = vld [vmem:[%s6 + $0xe0] sm:$0xff]
    %v1028 = vld [vmem:[%s6 + $0xe8] sm:$0xff]
    %v1029 = vld [vmem:[%s6 + $0xf0] sm:$0xff]
    %v1030 = vld [vmem:[%s6 + $0xf8] sm:$0xff]
    %v1031 = vld [vmem:[%s6 + $0x100] sm:$0xff]
    %v1032 = vld [vmem:[%s6 + $0x108] sm:$0xff]
    %v1033 = vld [vmem:[%s6 + $0x110] sm:$0xff]
    %v1034 = vld [vmem:[%s6 + $0x118] sm:$0xff]
    %v1035 = vld [vmem:[%s6 + $0x120] sm:$0xff]
    %v1036 = vld [vmem:[%s6 + $0x128] sm:$0xff]
    %v1037 = vld [vmem:[%s6 + $0x130] sm:$0xff]
    %v1038 = vld [vmem:[%s6 + $0x138] sm:$0xff]
    %v1039 = vld [vmem:[%s6 + $0x140] sm:$0xff]
    %v1040 = vld [vmem:[%s6 + $0x148] sm:$0xff]
    %v1041 = vld [vmem:[%s6 + $0x150] sm:$0xff]
    %v1042 = vld [vmem:[%s6 + $0x158] sm:$0xff]
    %v1043 = vld [vmem:[%s6 + $0x160] sm:$0xff]
    %v1044 = vld [vmem:[%s6 + $0x168] sm:$0xff]
    %v1045 = vld [vmem:[%s6 + $0x170] sm:$0xff]
    %v1046 = vld [vmem:[%s6 + $0x178] sm:$0xff]
    %v1047 = vld [vmem:[%s6 + $0x180] sm:$0xff]
    %v1048 = vld [vmem:[%s6 + $0x188] sm:$0xff]
    %v1049 = vld [vmem:[%s6 + $0x190] sm:$0xff]
    %v1050 = vld [vmem:[%s6 + $0x198] sm:$0xff]
    %v1051 = vld [vmem:[%s6 + $0x1a0] sm:$0xff]
    %v1052 = vld [vmem:[%s6 + $0x1a8] sm:$0xff]
    %v1053 = vld [vmem:[%s6 + $0x1b0] sm:$0xff]
    %v1054 = vld [vmem:[%s6 + $0x1b8] sm:$0xff]
    %v1055 = vld [vmem:[%s6 + $0x1c0] sm:$0xff]
    %v1056 = vld [vmem:[%s6 + $0x1c8] sm:$0xff]
    %v1057 = vld [vmem:[%s6 + $0x1d0] sm:$0xff]
    %v1058 = vld [vmem:[%s6 + $0x1d8] sm:$0xff]
    %v1059 = vld [vmem:[%s6 + $0x1e0] sm:$0xff]
    %v1060 = vld [vmem:[%s6 + $0x1e8] sm:$0xff]
    %v1061 = vld [vmem:[%s6 + $0x1f0] sm:$0xff]
    %v1062 = vld [vmem:[%s6 + $0x1f8] sm:$0xff]
    %v1063 = vld [vmem:[%s6 + $0x200] sm:$0xff]
    %v1064 = vld [vmem:[%s6 + $0x208] sm:$0xff]
    %v1065 = vld [vmem:[%s6 + $0x210] sm:$0xff]
    %v1066 = vld [vmem:[%s6 + $0x218] sm:$0xff]
    %v1067 = vld [vmem:[%s6 + $0x220] sm:$0xff]
    %v1068 = vld [vmem:[%s6 + $0x228] sm:$0xff]
    %v1069 = vld [vmem:[%s6 + $0x230] sm:$0xff]
    %v1070 = vld [vmem:[%s6 + $0x238] sm:$0xff]
    %v1071 = vld [vmem:[%s6 + $0x240] sm:$0xff]
    %v1072 = vld [vmem:[%s6 + $0x248] sm:$0xff]
    %v1073 = vld [vmem:[%s6 + $0x250] sm:$0xff]
    %v1074 = vld [vmem:[%s6 + $0x258] sm:$0xff]
    %v1075 = vld [vmem:[%s6 + $0x260] sm:$0xff]
    %v1076 = vld [vmem:[%s6 + $0x268] sm:$0xff]
    %v1077 = vld [vmem:[%s6 + $0x270] sm:$0xff]
    %v1078 = vld [vmem:[%s6 + $0x278] sm:$0xff]
    %v1079 = vld [vmem:[%s6 + $0x280] sm:$0xff]
    %v1080 = vld [vmem:[%s6 + $0x288] sm:$0xff]
    %v1081 = vld [vmem:[%s6 + $0x290] sm:$0xff]
    %v1082 = vld [vmem:[%s6 + $0x298] sm:$0xff]
    %v1083 = vld [vmem:[%s6 + $0x2a0] sm:$0xff]
    %v1084 = vld [vmem:[%s6 + $0x2a8] sm:$0xff]
    %v1085 = vld [vmem:[%s6 + $0x2b0] sm:$0xff]
    %v1086 = vld [vmem:[%s6 + $0x2b8] sm:$0xff]
    %v1087 = vld [vmem:[%s6 + $0x2c0] sm:$0xff]
    %v1088 = vld [vmem:[%s6 + $0x2c8] sm:$0xff]
    %v1089 = vld [vmem:[%s6 + $0x2d0] sm:$0xff]
    %v1090 = vld [vmem:[%s6 + $0x2d8] sm:$0xff]
    %v1091 = vld [vmem:[%s6 + $0x2e0] sm:$0xff]
    %v1092 = vld [vmem:[%s6 + $0x2e8] sm:$0xff]
    %v1093 = vld [vmem:[%s6 + $0x2f0] sm:$0xff]
    %v1094 = vld [vmem:[%s6 + $0x2f8] sm:$0xff]
    %v1095 = vld [vmem:[%s6 + $0x300] sm:$0xff]
    %v1096 = vld [vmem:[%s6 + $0x308] sm:$0xff]
    %v1097 = vld [vmem:[%s6 + $0x310] sm:$0xff]
    %v1098 = vld [vmem:[%s6 + $0x318] sm:$0xff]
    %v1099 = vld [vmem:[%s6 + $0x320] sm:$0xff]
    %v1100 = vld [vmem:[%s6 + $0x328] sm:$0xff]
    %v1101 = vld [vmem:[%s6 + $0x330] sm:$0xff]
    %v1102 = vld [vmem:[%s6 + $0x338] sm:$0xff]
    %v1103 = vld [vmem:[%s6 + $0x340] sm:$0xff]
    %v1104 = vld [vmem:[%s6 + $0x348] sm:$0xff]
    %v1105 = vld [vmem:[%s6 + $0x350] sm:$0xff]
    %v1106 = vld [vmem:[%s6 + $0x358] sm:$0xff]
    %v1107 = vld [vmem:[%s6 + $0x360] sm:$0xff]
    %v1108 = vld [vmem:[%s6 + $0x368] sm:$0xff]
    %v1109 = vld [vmem:[%s6 + $0x370] sm:$0xff]
    %v1110 = vld [vmem:[%s6 + $0x378] sm:$0xff]
    %v1111 = vld [vmem:[%s6 + $0x380] sm:$0xff]
    %v1112 = vld [vmem:[%s6 + $0x388] sm:$0xff]
    %v1113 = vld [vmem:[%s6 + $0x390] sm:$0xff]
    %v1114 = vld [vmem:[%s6 + $0x398] sm:$0xff]
    %v1115 = vld [vmem:[%s6 + $0x3a0] sm:$0xff]
    %v1116 = vld [vmem:[%s6 + $0x3a8] sm:$0xff]
    %v1117 = vld [vmem:[%s6 + $0x3b0] sm:$0xff]
    %v1118 = vld [vmem:[%s6 + $0x3b8] sm:$0xff]
    %v1119 = vld [vmem:[%s6 + $0x3c0] sm:$0xff]
    %v1120 = vld [vmem:[%s6 + $0x3c8] sm:$0xff]
    %v1121 = vld [vmem:[%s6 + $0x3d0] sm:$0xff]
    %v1122 = vld [vmem:[%s6 + $0x3d8] sm:$0xff]
    %v1123 = vld [vmem:[%s6 + $0x3e0] sm:$0xff]
    %v1124 = vld [vmem:[%s6 + $0x3e8] sm:$0xff]
    %v1125 = vld [vmem:[%s6 + $0x3f0] sm:$0xff]
    %v1126 = vld [vmem:[%s6 + $0x3f8] sm:$0xff]
    %v1127 = vld [vmem:[%s6 + $0x400] sm:$0xff]
    %v1128 = vld [vmem:[%s6 + $0x408] sm:$0xff]
    %v1129 = vld [vmem:[%s6 + $0x410] sm:$0xff]
    %v1130 = vld [vmem:[%s6 + $0x418] sm:$0xff]
    %v1131 = vld [vmem:[%s6 + $0x420] sm:$0xff]
    %v1132 = vld [vmem:[%s6 + $0x428] sm:$0xff]
    %v1133 = vld [vmem:[%s6 + $0x430] sm:$0xff]
    %v1134 = vld [vmem:[%s6 + $0x438] sm:$0xff]
    %v1135 = vld [vmem:[%s6 + $0x440] sm:$0xff]
    %v1136 = vld [vmem:[%s6 + $0x448] sm:$0xff]
    %v1137 = vld [vmem:[%s6 + $0x450] sm:$0xff]
    %v1138 = vld [vmem:[%s6 + $0x458] sm:$0xff]
    %v1139 = vld [vmem:[%s6 + $0x460] sm:$0xff]
    %v1140 = vld [vmem:[%s6 + $0x468] sm:$0xff]
    %v1141 = vld [vmem:[%s6 + $0x470] sm:$0xff]
    %v1142 = vld [vmem:[%s6 + $0x478] sm:$0xff]
    %1143 = vmatprep.subr.mxu0 %v1135
    %1144 = vmatpush1.msra.mxu0 %v1134
    %1145 = vmatprep.subr.mxu0 %v1126
    %1146 = vmatpush1.msra.mxu0 %v1125
    %1147 = vmatprep.subr.mxu0 %v1117
    %1148 = vmatpush1.msra.mxu0 %v1116
    %1149 = vmatprep.subr.mxu0 %v1108
    %1150 = vmatpush1.msra.mxu0 %v1107
    %1151 = vmatprep.subr.mxu0 %v1099
    %1152 = vmatpush1.msra.mxu0 %v1098
    %1153 = vmatprep.subr.mxu0 %v1090
    %1154 = vmatpush1.msra.mxu0 %v1089
    %1155 = vmatprep.subr.mxu0 %v1081
    %1156 = vmatpush1.msra.mxu0 %v1080
    %1157 = vmatprep.subr.mxu0 %v1072
    %1158 = vmatpush1.msra.mxu0 %v1071
    %1159 = vmatprep.subr.mxu0 %v1063
    %1160 = vmatpush1.msra.mxu0 %v1062
    %1161 = vmatprep.subr.mxu0 %v1054
    %1162 = vmatpush1.msra.mxu0 %v1053
    %1163 = vmatprep.subr.mxu0 %v1045
    %1164 = vmatpush1.msra.mxu0 %v1044
    %1165 = vmatprep.subr.mxu0 %v1036
    %1166 = vmatpush1.msra.mxu0 %v1035
    %1167 = vmatprep.subr.mxu0 %v1027
    %1168 = vmatpush1.msra.mxu0 %v1026
    %1169 = vmatprep.subr.mxu0 %v1018
    %1170 = vmatpush1.msra.mxu0 %v1017
    %1171 = vmatprep.subr.mxu0 %v1009
    %1172 = vmatpush1.msra.mxu0 %v1008
    %1173 = vmatprep.subr.mxu0 %v1000
    %1174 = vmatpush1.msra.mxu0 %v999
    %1175 = vmatprep.subr.mxu0 0.0
    %1176 = vmatpush2.msra.mxu0 0.0
    %1177 = vmatprep.subr.mxu0 0.0
    %1178 = vmatpush2.msra.mxu0 0.0
    %1179 = vmatprep.subr.mxu0 0.0
    %1180 = vmatpush2.msra.mxu0 0.0
    %1181 = vmatprep.subr.mxu0 0.0
    %1182 = vmatpush2.msra.mxu0 0.0
    %1183 = vmatprep.subr.mxu0 0.0
    %1184 = vmatpush2.msra.mxu0 0.0
    %1185 = vmatprep.subr.mxu0 0.0
    %1186 = vmatpush2.msra.mxu0 0.0
    %1187 = vmatprep.subr.mxu0 0.0
    %1188 = vmatpush2.msra.mxu0 0.0
    %1189 = vmatprep.subr.mxu0 0.0
    %1190 = vmatpush2.msra.mxu0 0.0
    %1191 = vmatprep.subr.mxu0 0.0
    %1192 = vmatpush2.msra.mxu0 0.0
    %1193 = vmatprep.subr.mxu0 0.0
    %1194 = vmatpush2.msra.mxu0 0.0
    %1195 = vmatprep.subr.mxu0 0.0
    %1196 = vmatpush2.msra.mxu0 0.0
    %1197 = vmatprep.subr.mxu0 0.0
    %1198 = vmatpush2.msra.mxu0 0.0
    %1199 = vmatprep.subr.mxu0 0.0
    %1200 = vmatpush2.msra.mxu0 0.0
    %1201 = vmatprep.subr.mxu0 0.0
    %1202 = vmatpush2.msra.mxu0 0.0
    %1203 = vmatprep.subr.mxu0 0.0
    %1204 = vmatpush2.msra.mxu0 0.0
    %1205 = vmatprep.subr.mxu0 0.0
    %1206 = vmatpush2.msra.mxu0 0.0
    %1207 = vmatprep.mubr.f32.mxu0 0.0
    %1208 = vmatmul.mubr.f32.gmra.mxu0 %v935
    %v1209 = vpop.f32.mrf.mxu0
    %v1210 = vadd.f32 0.0, %v1209
    %v1211 = vpop.f32.mrf.mxu0
    %v1212 = vadd.f32 0.0, %v1211
    %1213 = vmatprep.mubr.f32.mxu0 0.0
    %1214 = vmatmul.mubr.f32.gmra.mxu0 %v936
    %v1215 = vpop.f32.mrf.mxu0
    %v1216 = vadd.f32 0.0, %v1215
    %v1217 = vpop.f32.mrf.mxu0
    %v1218 = vadd.f32 0.0, %v1217
    %1219 = vmatprep.mubr.f32.mxu0 0.0
    %1220 = vmatmul.mubr.f32.gmra.mxu0 %v937
    %v1221 = vpop.f32.mrf.mxu0
    %v1222 = vadd.f32 0.0, %v1221
    %v1223 = vpop.f32.mrf.mxu0
    %v1224 = vadd.f32 0.0, %v1223
    %1225 = vmatprep.mubr.f32.mxu0 0.0
    %1226 = vmatmul.mubr.f32.gmra.mxu0 %v938
    %v1227 = vpop.f32.mrf.mxu0
    %v1228 = vadd.f32 0.0, %v1227
    %v1229 = vpop.f32.mrf.mxu0
    %v1230 = vadd.f32 0.0, %v1229
    %1231 = vmatprep.mubr.f32.mxu0 0.0
    %1232 = vmatmul.mubr.f32.gmra.mxu0 %v939
    %v1233 = vpop.f32.mrf.mxu0
    %v1234 = vadd.f32 0.0, %v1233
    %v1235 = vpop.f32.mrf.mxu0
    %v1236 = vadd.f32 0.0, %v1235
    %1237 = vmatprep.mubr.f32.mxu0 0.0
    %1238 = vmatmul.mubr.f32.gmra.mxu0 %v940
    %v1239 = vpop.f32.mrf.mxu0
    %v1240 = vadd.f32 0.0, %v1239
    %v1241 = vpop.f32.mrf.mxu0
    %v1242 = vadd.f32 0.0, %v1241
    %1243 = vmatprep.mubr.f32.mxu0 0.0
    %1244 = vmatmul.mubr.f32.gmra.mxu0 %v941
    %v1245 = vpop.f32.mrf.mxu0
    %v1246 = vadd.f32 0.0, %v1245
    %v1247 = vpop.f32.mrf.mxu0
    %v1248 = vadd.f32 0.0, %v1247
    %1249 = vmatprep.mubr.f32.mxu0 0.0
    %1250 = vmatmul.mubr.f32.gmra.mxu0 %v942
    %v1251 = vpop.f32.mrf.mxu0
    %v1252 = vadd.f32 0.0, %v1251
    %v1253 = vpop.f32.mrf.mxu0
    %v1254 = vadd.f32 0.0, %v1253
    %1255 = vmatprep.mubr.f32.mxu0 0.0
    %1256 = vmatmul.mubr.f32.gmra.mxu0 %v943
    %v1257 = vpop.f32.mrf.mxu0
    %v1258 = vadd.f32 0.0, %v1257
    %v1259 = vpop.f32.mrf.mxu0
    %v1260 = vadd.f32 0.0, %v1259
    %1261 = vmatprep.mubr.f32.mxu0 0.0
    %1262 = vmatmul.mubr.f32.gmra.mxu0 %v944
    %v1263 = vpop.f32.mrf.mxu0
    %v1264 = vadd.f32 0.0, %v1263
    %v1265 = vpop.f32.mrf.mxu0
    %v1266 = vadd.f32 0.0, %v1265
    %1267 = vmatprep.mubr.f32.mxu0 0.0
    %1268 = vmatmul.mubr.f32.gmra.mxu0 %v945
    %v1269 = vpop.f32.mrf.mxu0
    %v1270 = vadd.f32 0.0, %v1269
    %v1271 = vpop.f32.mrf.mxu0
    %v1272 = vadd.f32 0.0, %v1271
    %1273 = vmatprep.mubr.f32.mxu0 0.0
    %1274 = vmatmul.mubr.f32.gmra.mxu0 %v946
    %v1275 = vpop.f32.mrf.mxu0
    %v1276 = vadd.f32 0.0, %v1275
    %v1277 = vpop.f32.mrf.mxu0
    %v1278 = vadd.f32 0.0, %v1277
    %1279 = vmatprep.mubr.f32.mxu0 0.0
    %1280 = vmatmul.mubr.f32.gmra.mxu0 %v947
    %v1281 = vpop.f32.mrf.mxu0
    %v1282 = vadd.f32 0.0, %v1281
    %v1283 = vpop.f32.mrf.mxu0
    %v1284 = vadd.f32 0.0, %v1283
    %1285 = vmatprep.mubr.f32.mxu0 0.0
    %1286 = vmatmul.mubr.f32.gmra.mxu0 %v948
    %v1287 = vpop.f32.mrf.mxu0
    %v1288 = vadd.f32 0.0, %v1287
    %v1289 = vpop.f32.mrf.mxu0
    %v1290 = vadd.f32 0.0, %v1289
    %1291 = vmatprep.mubr.f32.mxu0 0.0
    %1292 = vmatmul.mubr.f32.gmra.mxu0 %v949
    %v1293 = vpop.f32.mrf.mxu0
    %v1294 = vadd.f32 0.0, %v1293
    %v1295 = vpop.f32.mrf.mxu0
    %v1296 = vadd.f32 0.0, %v1295
    %1297 = vmatprep.mubr.f32.mxu0 0.0
    %1298 = vmatmul.mubr.f32.gmra.mxu0 %v950
    %v1299 = vpop.f32.mrf.mxu0
    %v1300 = vadd.f32 0.0, %v1299
    %v1301 = vpop.f32.mrf.mxu0
    %v1302 = vadd.f32 0.0, %v1301
    %1303 = vmatprep.mubr.f32.mxu0 0.0
    %1304 = vmatmul.mubr.f32.gmra.mxu0 %v951
    %v1305 = vpop.f32.mrf.mxu0
    %v1306 = vadd.f32 0.0, %v1305
    %v1307 = vpop.f32.mrf.mxu0
    %v1308 = vadd.f32 0.0, %v1307
    %1309 = vmatprep.mubr.f32.mxu0 0.0
    %1310 = vmatmul.mubr.f32.gmra.mxu0 %v952
    %v1311 = vpop.f32.mrf.mxu0
    %v1312 = vadd.f32 0.0, %v1311
    %v1313 = vpop.f32.mrf.mxu0
    %v1314 = vadd.f32 0.0, %v1313
    %1315 = vmatprep.mubr.f32.mxu0 0.0
    %1316 = vmatmul.mubr.f32.gmra.mxu0 %v953
    %v1317 = vpop.f32.mrf.mxu0
    %v1318 = vadd.f32 0.0, %v1317
    %v1319 = vpop.f32.mrf.mxu0
    %v1320 = vadd.f32 0.0, %v1319
    %1321 = vmatprep.mubr.f32.mxu0 0.0
    %1322 = vmatmul.mubr.f32.gmra.mxu0 %v954
    %v1323 = vpop.f32.mrf.mxu0
    %v1324 = vadd.f32 0.0, %v1323
    %v1325 = vpop.f32.mrf.mxu0
    %v1326 = vadd.f32 0.0, %v1325
    %1327 = vmatprep.mubr.f32.mxu0 0.0
    %1328 = vmatmul.mubr.f32.gmra.mxu0 %v955
    %v1329 = vpop.f32.mrf.mxu0
    %v1330 = vadd.f32 0.0, %v1329
    %v1331 = vpop.f32.mrf.mxu0
    %v1332 = vadd.f32 0.0, %v1331
    %1333 = vmatprep.mubr.f32.mxu0 0.0
    %1334 = vmatmul.mubr.f32.gmra.mxu0 %v956
    %v1335 = vpop.f32.mrf.mxu0
    %v1336 = vadd.f32 0.0, %v1335
    %v1337 = vpop.f32.mrf.mxu0
    %v1338 = vadd.f32 0.0, %v1337
    %1339 = vmatprep.mubr.f32.mxu0 0.0
    %1340 = vmatmul.mubr.f32.gmra.mxu0 %v957
    %v1341 = vpop.f32.mrf.mxu0
    %v1342 = vadd.f32 0.0, %v1341
    %v1343 = vpop.f32.mrf.mxu0
    %v1344 = vadd.f32 0.0, %v1343
    %1345 = vmatprep.mubr.f32.mxu0 0.0
    %1346 = vmatmul.mubr.f32.gmra.mxu0 %v958
    %v1347 = vpop.f32.mrf.mxu0
    %v1348 = vadd.f32 0.0, %v1347
    %v1349 = vpop.f32.mrf.mxu0
    %v1350 = vadd.f32 0.0, %v1349
    %1351 = vmatprep.mubr.f32.mxu0 0.0
    %1352 = vmatmul.mubr.f32.gmra.mxu0 %v959
    %v1353 = vpop.f32.mrf.mxu0
    %v1354 = vadd.f32 0.0, %v1353
    %v1355 = vpop.f32.mrf.mxu0
    %v1356 = vadd.f32 0.0, %v1355
    %1357 = vmatprep.mubr.f32.mxu0 0.0
    %1358 = vmatmul.mubr.f32.gmra.mxu0 %v960
    %v1359 = vpop.f32.mrf.mxu0
    %v1360 = vadd.f32 0.0, %v1359
    %v1361 = vpop.f32.mrf.mxu0
    %v1362 = vadd.f32 0.0, %v1361
    %1363 = vmatprep.mubr.f32.mxu0 0.0
    %1364 = vmatmul.mubr.f32.gmra.mxu0 %v961
    %v1365 = vpop.f32.mrf.mxu0
    %v1366 = vadd.f32 0.0, %v1365
    %v1367 = vpop.f32.mrf.mxu0
    %v1368 = vadd.f32 0.0, %v1367
    %1369 = vmatprep.mubr.f32.mxu0 0.0
    %1370 = vmatmul.mubr.f32.gmra.mxu0 %v962
    %v1371 = vpop.f32.mrf.mxu0
    %v1372 = vadd.f32 0.0, %v1371
    %v1373 = vpop.f32.mrf.mxu0
    %v1374 = vadd.f32 0.0, %v1373
    %1375 = vmatprep.mubr.f32.mxu0 0.0
    %1376 = vmatmul.mubr.f32.gmra.mxu0 %v963
    %v1377 = vpop.f32.mrf.mxu0
    %v1378 = vadd.f32 0.0, %v1377
    %v1379 = vpop.f32.mrf.mxu0
    %v1380 = vadd.f32 0.0, %v1379
    %1381 = vmatprep.mubr.f32.mxu0 0.0
    %1382 = vmatmul.mubr.f32.gmra.mxu0 %v964
    %v1383 = vpop.f32.mrf.mxu0
    %v1384 = vadd.f32 0.0, %v1383
    %v1385 = vpop.f32.mrf.mxu0
    %v1386 = vadd.f32 0.0, %v1385
    %1387 = vmatprep.mubr.f32.mxu0 0.0
    %1388 = vmatmul.mubr.f32.gmra.mxu0 %v965
    %v1389 = vpop.f32.mrf.mxu0
    %v1390 = vadd.f32 0.0, %v1389
    %v1391 = vpop.f32.mrf.mxu0
    %v1392 = vadd.f32 0.0, %v1391
    %1393 = vmatprep.mubr.f32.mxu0 0.0
    %1394 = vmatmul.mubr.f32.gmra.mxu0 %v966
    %v1395 = vpop.f32.mrf.mxu0
    %v1396 = vadd.f32 0.0, %v1395
    %v1397 = vpop.f32.mrf.mxu0
    %v1398 = vadd.f32 0.0, %v1397
    %1399 = vmatprep.mubr.f32.mxu0 0.0
    %1400 = vmatmul.mubr.f32.gmra.mxu0 %v967
    %v1401 = vpop.f32.mrf.mxu0
    %v1402 = vadd.f32 0.0, %v1401
    %v1403 = vpop.f32.mrf.mxu0
    %v1404 = vadd.f32 0.0, %v1403
    %1405 = vmatprep.mubr.f32.mxu0 0.0
    %1406 = vmatmul.mubr.f32.gmra.mxu0 %v968
    %v1407 = vpop.f32.mrf.mxu0
    %v1408 = vadd.f32 0.0, %v1407
    %v1409 = vpop.f32.mrf.mxu0
    %v1410 = vadd.f32 0.0, %v1409
    %1411 = vmatprep.mubr.f32.mxu0 0.0
    %1412 = vmatmul.mubr.f32.gmra.mxu0 %v969
    %v1413 = vpop.f32.mrf.mxu0
    %v1414 = vadd.f32 0.0, %v1413
    %v1415 = vpop.f32.mrf.mxu0
    %v1416 = vadd.f32 0.0, %v1415
    %1417 = vmatprep.mubr.f32.mxu0 0.0
    %1418 = vmatmul.mubr.f32.gmra.mxu0 %v970
    %v1419 = vpop.f32.mrf.mxu0
    %v1420 = vadd.f32 0.0, %v1419
    %v1421 = vpop.f32.mrf.mxu0
    %v1422 = vadd.f32 0.0, %v1421
    %1423 = vmatprep.mubr.f32.mxu0 0.0
    %1424 = vmatmul.mubr.f32.gmra.mxu0 %v971
    %v1425 = vpop.f32.mrf.mxu0
    %v1426 = vadd.f32 0.0, %v1425
    %v1427 = vpop.f32.mrf.mxu0
    %v1428 = vadd.f32 0.0, %v1427
    %1429 = vmatprep.mubr.f32.mxu0 0.0
    %1430 = vmatmul.mubr.f32.gmra.mxu0 %v972
    %v1431 = vpop.f32.mrf.mxu0
    %v1432 = vadd.f32 0.0, %v1431
    %v1433 = vpop.f32.mrf.mxu0
    %v1434 = vadd.f32 0.0, %v1433
    %1435 = vmatprep.mubr.f32.mxu0 0.0
    %1436 = vmatmul.mubr.f32.gmra.mxu0 %v973
    %v1437 = vpop.f32.mrf.mxu0
    %v1438 = vadd.f32 0.0, %v1437
    %v1439 = vpop.f32.mrf.mxu0
    %v1440 = vadd.f32 0.0, %v1439
    %1441 = vmatprep.mubr.f32.mxu0 0.0
    %1442 = vmatmul.mubr.f32.gmra.mxu0 %v974
    %v1443 = vpop.f32.mrf.mxu0
    %v1444 = vadd.f32 0.0, %v1443
    %v1445 = vpop.f32.mrf.mxu0
    %v1446 = vadd.f32 0.0, %v1445
    %1447 = vmatprep.mubr.f32.mxu0 0.0
    %1448 = vmatmul.mubr.f32.gmra.mxu0 %v975
    %v1449 = vpop.f32.mrf.mxu0
    %v1450 = vadd.f32 0.0, %v1449
    %v1451 = vpop.f32.mrf.mxu0
    %v1452 = vadd.f32 0.0, %v1451
    %1453 = vmatprep.mubr.f32.mxu0 0.0
    %1454 = vmatmul.mubr.f32.gmra.mxu0 %v976
    %v1455 = vpop.f32.mrf.mxu0
    %v1456 = vadd.f32 0.0, %v1455
    %v1457 = vpop.f32.mrf.mxu0
    %v1458 = vadd.f32 0.0, %v1457
    %1459 = vmatprep.mubr.f32.mxu0 0.0
    %1460 = vmatmul.mubr.f32.gmra.mxu0 %v977
    %v1461 = vpop.f32.mrf.mxu0
    %v1462 = vadd.f32 0.0, %v1461
    %v1463 = vpop.f32.mrf.mxu0
    %v1464 = vadd.f32 0.0, %v1463
    %1465 = vmatprep.mubr.f32.mxu0 0.0
    %1466 = vmatmul.mubr.f32.gmra.mxu0 %v978
    %v1467 = vpop.f32.mrf.mxu0
    %v1468 = vadd.f32 0.0, %v1467
    %v1469 = vpop.f32.mrf.mxu0
    %v1470 = vadd.f32 0.0, %v1469
    %1471 = vmatprep.mubr.f32.mxu0 0.0
    %1472 = vmatmul.mubr.f32.gmra.mxu0 %v979
    %v1473 = vpop.f32.mrf.mxu0
    %v1474 = vadd.f32 0.0, %v1473
    %v1475 = vpop.f32.mrf.mxu0
    %v1476 = vadd.f32 0.0, %v1475
    %1477 = vmatprep.mubr.f32.mxu0 0.0
    %1478 = vmatmul.mubr.f32.gmra.mxu0 %v980
    %v1479 = vpop.f32.mrf.mxu0
    %v1480 = vadd.f32 0.0, %v1479
    %v1481 = vpop.f32.mrf.mxu0
    %v1482 = vadd.f32 0.0, %v1481
    %1483 = vmatprep.mubr.f32.mxu0 0.0
    %1484 = vmatmul.mubr.f32.gmra.mxu0 %v981
    %v1485 = vpop.f32.mrf.mxu0
    %v1486 = vadd.f32 0.0, %v1485
    %v1487 = vpop.f32.mrf.mxu0
    %v1488 = vadd.f32 0.0, %v1487
    %1489 = vmatprep.mubr.f32.mxu0 0.0
    %1490 = vmatmul.mubr.f32.gmra.mxu0 %v982
    %v1491 = vpop.f32.mrf.mxu0
    %v1492 = vadd.f32 0.0, %v1491
    %v1493 = vpop.f32.mrf.mxu0
    %v1494 = vadd.f32 0.0, %v1493
    %1495 = vmatprep.mubr.f32.mxu0 0.0
    %1496 = vmatmul.mubr.f32.gmra.mxu0 %v983
    %v1497 = vpop.f32.mrf.mxu0
    %v1498 = vadd.f32 0.0, %v1497
    %v1499 = vpop.f32.mrf.mxu0
    %v1500 = vadd.f32 0.0, %v1499
    %1501 = vmatprep.mubr.f32.mxu0 0.0
    %1502 = vmatmul.mubr.f32.gmra.mxu0 %v984
    %v1503 = vpop.f32.mrf.mxu0
    %v1504 = vadd.f32 0.0, %v1503
    %v1505 = vpop.f32.mrf.mxu0
    %v1506 = vadd.f32 0.0, %v1505
    %1507 = vmatprep.mubr.f32.mxu0 0.0
    %1508 = vmatmul.mubr.f32.gmra.mxu0 %v985
    %v1509 = vpop.f32.mrf.mxu0
    %v1510 = vadd.f32 0.0, %v1509
    %v1511 = vpop.f32.mrf.mxu0
    %v1512 = vadd.f32 0.0, %v1511
    %1513 = vmatprep.mubr.f32.mxu0 0.0
    %1514 = vmatmul.mubr.f32.gmra.mxu0 %v986
    %v1515 = vpop.f32.mrf.mxu0
    %v1516 = vadd.f32 0.0, %v1515
    %v1517 = vpop.f32.mrf.mxu0
    %v1518 = vadd.f32 0.0, %v1517
    %1519 = vmatprep.mubr.f32.mxu0 0.0
    %1520 = vmatmul.mubr.f32.gmra.mxu0 %v987
    %v1521 = vpop.f32.mrf.mxu0
    %v1522 = vadd.f32 0.0, %v1521
    %v1523 = vpop.f32.mrf.mxu0
    %v1524 = vadd.f32 0.0, %v1523
    %1525 = vmatprep.mubr.f32.mxu0 0.0
    %1526 = vmatmul.mubr.f32.gmra.mxu0 %v988
    %v1527 = vpop.f32.mrf.mxu0
    %v1528 = vadd.f32 0.0, %v1527
    %v1529 = vpop.f32.mrf.mxu0
    %v1530 = vadd.f32 0.0, %v1529
    %1531 = vmatprep.mubr.f32.mxu0 0.0
    %1532 = vmatmul.mubr.f32.gmra.mxu0 %v989
    %v1533 = vpop.f32.mrf.mxu0
    %v1534 = vadd.f32 0.0, %v1533
    %v1535 = vpop.f32.mrf.mxu0
    %v1536 = vadd.f32 0.0, %v1535
    %1537 = vmatprep.mubr.f32.mxu0 0.0
    %1538 = vmatmul.mubr.f32.gmra.mxu0 %v990
    %v1539 = vpop.f32.mrf.mxu0
    %v1540 = vadd.f32 0.0, %v1539
    %v1541 = vpop.f32.mrf.mxu0
    %v1542 = vadd.f32 0.0, %v1541
    %1543 = vmatprep.mubr.f32.mxu0 0.0
    %1544 = vmatmul.mubr.f32.gmra.mxu0 %v991
    %v1545 = vpop.f32.mrf.mxu0
    %v1546 = vadd.f32 0.0, %v1545
    %v1547 = vpop.f32.mrf.mxu0
    %v1548 = vadd.f32 0.0, %v1547
    %1549 = vmatprep.mubr.f32.mxu0 0.0
    %1550 = vmatmul.mubr.f32.gmra.mxu0 %v992
    %v1551 = vpop.f32.mrf.mxu0
    %v1552 = vadd.f32 0.0, %v1551
    %v1553 = vpop.f32.mrf.mxu0
    %v1554 = vadd.f32 0.0, %v1553
    %1555 = vmatprep.mubr.f32.mxu0 0.0
    %1556 = vmatmul.mubr.f32.gmra.mxu0 %v993
    %v1557 = vpop.f32.mrf.mxu0
    %v1558 = vadd.f32 0.0, %v1557
    %v1559 = vpop.f32.mrf.mxu0
    %v1560 = vadd.f32 0.0, %v1559
    %1561 = vmatprep.mubr.f32.mxu0 0.0
    %1562 = vmatmul.mubr.f32.gmra.mxu0 %v994
    %v1563 = vpop.f32.mrf.mxu0
    %v1564 = vadd.f32 0.0, %v1563
    %v1565 = vpop.f32.mrf.mxu0
    %v1566 = vadd.f32 0.0, %v1565
    %1567 = vmatprep.mubr.f32.mxu0 0.0
    %1568 = vmatmul.mubr.f32.gmra.mxu0 %v995
    %v1569 = vpop.f32.mrf.mxu0
    %v1570 = vadd.f32 0.0, %v1569
    %v1571 = vpop.f32.mrf.mxu0
    %v1572 = vadd.f32 0.0, %v1571
    %1573 = vmatprep.mubr.f32.mxu0 0.0
    %1574 = vmatmul.mubr.f32.gmra.mxu0 %v996
    %v1575 = vpop.f32.mrf.mxu0
    %v1576 = vadd.f32 0.0, %v1575
    %v1577 = vpop.f32.mrf.mxu0
    %v1578 = vadd.f32 0.0, %v1577
    %1579 = vmatprep.mubr.f32.mxu0 0.0
    %1580 = vmatmul.mubr.f32.gmra.mxu0 %v997
    %v1581 = vpop.f32.mrf.mxu0
    %v1582 = vadd.f32 0.0, %v1581
    %v1583 = vpop.f32.mrf.mxu0
    %v1584 = vadd.f32 0.0, %v1583
    %1585 = vmatprep.mubr.f32.mxu0 0.0
    %1586 = vmatmul.mubr.f32.gmra.mxu0 %v998
    %v1587 = vpop.f32.mrf.mxu0
    %v1588 = vadd.f32 0.0, %v1587
    %v1589 = vpop.f32.mrf.mxu0
    %v1590 = vadd.f32 0.0, %v1589
    %1591 = vdwg.mxu0
    %1592 = vmatprep.subr.mxu0 %v1137
    %1593 = vmatpush1.msra.mxu0 %v1136
    %1594 = vmatprep.subr.mxu0 %v1128
    %1595 = vmatpush1.msra.mxu0 %v1127
    %1596 = vmatprep.subr.mxu0 %v1119
    %1597 = vmatpush1.msra.mxu0 %v1118
    %1598 = vmatprep.subr.mxu0 %v1110
    %1599 = vmatpush1.msra.mxu0 %v1109
    %1600 = vmatprep.subr.mxu0 %v1101
    %1601 = vmatpush1.msra.mxu0 %v1100
    %1602 = vmatprep.subr.mxu0 %v1092
    %1603 = vmatpush1.msra.mxu0 %v1091
    %1604 = vmatprep.subr.mxu0 %v1083
    %1605 = vmatpush1.msra.mxu0 %v1082
    %1606 = vmatprep.subr.mxu0 %v1074
    %1607 = vmatpush1.msra.mxu0 %v1073
    %1608 = vmatprep.subr.mxu0 %v1065
    %1609 = vmatpush1.msra.mxu0 %v1064
    %1610 = vmatprep.subr.mxu0 %v1056
    %1611 = vmatpush1.msra.mxu0 %v1055
    %1612 = vmatprep.subr.mxu0 %v1047
    %1613 = vmatpush1.msra.mxu0 %v1046
    %1614 = vmatprep.subr.mxu0 %v1038
    %1615 = vmatpush1.msra.mxu0 %v1037
    %1616 = vmatprep.subr.mxu0 %v1029
    %1617 = vmatpush1.msra.mxu0 %v1028
    %1618 = vmatprep.subr.mxu0 %v1020
    %1619 = vmatpush1.msra.mxu0 %v1019
    %1620 = vmatprep.subr.mxu0 %v1011
    %1621 = vmatpush1.msra.mxu0 %v1010
    %1622 = vmatprep.subr.mxu0 %v1002
    %1623 = vmatpush1.msra.mxu0 %v1001
    %1624 = vmatprep.subr.mxu0 0.0
    %1625 = vmatpush2.msra.mxu0 0.0
    %1626 = vmatprep.subr.mxu0 0.0
    %1627 = vmatpush2.msra.mxu0 0.0
    %1628 = vmatprep.subr.mxu0 0.0
    %1629 = vmatpush2.msra.mxu0 0.0
    %1630 = vmatprep.subr.mxu0 0.0
    %1631 = vmatpush2.msra.mxu0 0.0
    %1632 = vmatprep.subr.mxu0 0.0
    %1633 = vmatpush2.msra.mxu0 0.0
    %1634 = vmatprep.subr.mxu0 0.0
    %1635 = vmatpush2.msra.mxu0 0.0
    %1636 = vmatprep.subr.mxu0 0.0
    %1637 = vmatpush2.msra.mxu0 0.0
    %1638 = vmatprep.subr.mxu0 0.0
    %1639 = vmatpush2.msra.mxu0 0.0
    %1640 = vmatprep.subr.mxu0 0.0
    %1641 = vmatpush2.msra.mxu0 0.0
    %1642 = vmatprep.subr.mxu0 0.0
    %1643 = vmatpush2.msra.mxu0 0.0
    %1644 = vmatprep.subr.mxu0 0.0
    %1645 = vmatpush2.msra.mxu0 0.0
    %1646 = vmatprep.subr.mxu0 0.0
    %1647 = vmatpush2.msra.mxu0 0.0
    %1648 = vmatprep.subr.mxu0 0.0
    %1649 = vmatpush2.msra.mxu0 0.0
    %1650 = vmatprep.subr.mxu0 0.0
    %1651 = vmatpush2.msra.mxu0 0.0
    %1652 = vmatprep.subr.mxu0 0.0
    %1653 = vmatpush2.msra.mxu0 0.0
    %1654 = vmatprep.subr.mxu0 0.0
    %1655 = vmatpush2.msra.mxu0 0.0
    %1656 = vmatprep.mubr.f32.mxu0 0.0
    %1657 = vmatmul.mubr.f32.gmra.mxu0 %v935
    %v1658 = vpop.f32.mrf.mxu0
    %v1659 = vadd.f32 0.0, %v1658
    %v1660 = vpop.f32.mrf.mxu0
    %v1661 = vadd.f32 0.0, %v1660
    %1662 = vmatprep.mubr.f32.mxu0 0.0
    %1663 = vmatmul.mubr.f32.gmra.mxu0 %v936
    %v1664 = vpop.f32.mrf.mxu0
    %v1665 = vadd.f32 0.0, %v1664
    %v1666 = vpop.f32.mrf.mxu0
    %v1667 = vadd.f32 0.0, %v1666
    %1668 = vmatprep.mubr.f32.mxu0 0.0
    %1669 = vmatmul.mubr.f32.gmra.mxu0 %v937
    %v1670 = vpop.f32.mrf.mxu0
    %v1671 = vadd.f32 0.0, %v1670
    %v1672 = vpop.f32.mrf.mxu0
    %v1673 = vadd.f32 0.0, %v1672
    %1674 = vmatprep.mubr.f32.mxu0 0.0
    %1675 = vmatmul.mubr.f32.gmra.mxu0 %v938
    %v1676 = vpop.f32.mrf.mxu0
    %v1677 = vadd.f32 0.0, %v1676
    %v1678 = vpop.f32.mrf.mxu0
    %v1679 = vadd.f32 0.0, %v1678
    %1680 = vmatprep.mubr.f32.mxu0 0.0
    %1681 = vmatmul.mubr.f32.gmra.mxu0 %v939
    %v1682 = vpop.f32.mrf.mxu0
    %v1683 = vadd.f32 0.0, %v1682
    %v1684 = vpop.f32.mrf.mxu0
    %v1685 = vadd.f32 0.0, %v1684
    %1686 = vmatprep.mubr.f32.mxu0 0.0
    %1687 = vmatmul.mubr.f32.gmra.mxu0 %v940
    %v1688 = vpop.f32.mrf.mxu0
    %v1689 = vadd.f32 0.0, %v1688
    %v1690 = vpop.f32.mrf.mxu0
    %v1691 = vadd.f32 0.0, %v1690
    %1692 = vmatprep.mubr.f32.mxu0 0.0
    %1693 = vmatmul.mubr.f32.gmra.mxu0 %v941
    %v1694 = vpop.f32.mrf.mxu0
    %v1695 = vadd.f32 0.0, %v1694
    %v1696 = vpop.f32.mrf.mxu0
    %v1697 = vadd.f32 0.0, %v1696
    %1698 = vmatprep.mubr.f32.mxu0 0.0
    %1699 = vmatmul.mubr.f32.gmra.mxu0 %v942
    %v1700 = vpop.f32.mrf.mxu0
    %v1701 = vadd.f32 0.0, %v1700
    %v1702 = vpop.f32.mrf.mxu0
    %v1703 = vadd.f32 0.0, %v1702
    %1704 = vmatprep.mubr.f32.mxu0 0.0
    %1705 = vmatmul.mubr.f32.gmra.mxu0 %v943
    %v1706 = vpop.f32.mrf.mxu0
    %v1707 = vadd.f32 0.0, %v1706
    %v1708 = vpop.f32.mrf.mxu0
    %v1709 = vadd.f32 0.0, %v1708
    %1710 = vmatprep.mubr.f32.mxu0 0.0
    %1711 = vmatmul.mubr.f32.gmra.mxu0 %v944
    %v1712 = vpop.f32.mrf.mxu0
    %v1713 = vadd.f32 0.0, %v1712
    %v1714 = vpop.f32.mrf.mxu0
    %v1715 = vadd.f32 0.0, %v1714
    %1716 = vmatprep.mubr.f32.mxu0 0.0
    %1717 = vmatmul.mubr.f32.gmra.mxu0 %v945
    %v1718 = vpop.f32.mrf.mxu0
    %v1719 = vadd.f32 0.0, %v1718
    %v1720 = vpop.f32.mrf.mxu0
    %v1721 = vadd.f32 0.0, %v1720
    %1722 = vmatprep.mubr.f32.mxu0 0.0
    %1723 = vmatmul.mubr.f32.gmra.mxu0 %v946
    %v1724 = vpop.f32.mrf.mxu0
    %v1725 = vadd.f32 0.0, %v1724
    %v1726 = vpop.f32.mrf.mxu0
    %v1727 = vadd.f32 0.0, %v1726
    %1728 = vmatprep.mubr.f32.mxu0 0.0
    %1729 = vmatmul.mubr.f32.gmra.mxu0 %v947
    %v1730 = vpop.f32.mrf.mxu0
    %v1731 = vadd.f32 0.0, %v1730
    %v1732 = vpop.f32.mrf.mxu0
    %v1733 = vadd.f32 0.0, %v1732
    %1734 = vmatprep.mubr.f32.mxu0 0.0
    %1735 = vmatmul.mubr.f32.gmra.mxu0 %v948
    %v1736 = vpop.f32.mrf.mxu0
    %v1737 = vadd.f32 0.0, %v1736
    %v1738 = vpop.f32.mrf.mxu0
    %v1739 = vadd.f32 0.0, %v1738
    %1740 = vmatprep.mubr.f32.mxu0 0.0
    %1741 = vmatmul.mubr.f32.gmra.mxu0 %v949
    %v1742 = vpop.f32.mrf.mxu0
    %v1743 = vadd.f32 0.0, %v1742
    %v1744 = vpop.f32.mrf.mxu0
    %v1745 = vadd.f32 0.0, %v1744
    %1746 = vmatprep.mubr.f32.mxu0 0.0
    %1747 = vmatmul.mubr.f32.gmra.mxu0 %v950
    %v1748 = vpop.f32.mrf.mxu0
    %v1749 = vadd.f32 0.0, %v1748
    %v1750 = vpop.f32.mrf.mxu0
    %v1751 = vadd.f32 0.0, %v1750
    %1752 = vmatprep.mubr.f32.mxu0 0.0
    %1753 = vmatmul.mubr.f32.gmra.mxu0 %v951
    %v1754 = vpop.f32.mrf.mxu0
    %v1755 = vadd.f32 0.0, %v1754
    %v1756 = vpop.f32.mrf.mxu0
    %v1757 = vadd.f32 0.0, %v1756
    %1758 = vmatprep.mubr.f32.mxu0 0.0
    %1759 = vmatmul.mubr.f32.gmra.mxu0 %v952
    %v1760 = vpop.f32.mrf.mxu0
    %v1761 = vadd.f32 0.0, %v1760
    %v1762 = vpop.f32.mrf.mxu0
    %v1763 = vadd.f32 0.0, %v1762
    %1764 = vmatprep.mubr.f32.mxu0 0.0
    %1765 = vmatmul.mubr.f32.gmra.mxu0 %v953
    %v1766 = vpop.f32.mrf.mxu0
    %v1767 = vadd.f32 0.0, %v1766
    %v1768 = vpop.f32.mrf.mxu0
    %v1769 = vadd.f32 0.0, %v1768
    %1770 = vmatprep.mubr.f32.mxu0 0.0
    %1771 = vmatmul.mubr.f32.gmra.mxu0 %v954
    %v1772 = vpop.f32.mrf.mxu0
    %v1773 = vadd.f32 0.0, %v1772
    %v1774 = vpop.f32.mrf.mxu0
    %v1775 = vadd.f32 0.0, %v1774
    %1776 = vmatprep.mubr.f32.mxu0 0.0
    %1777 = vmatmul.mubr.f32.gmra.mxu0 %v955
    %v1778 = vpop.f32.mrf.mxu0
    %v1779 = vadd.f32 0.0, %v1778
    %v1780 = vpop.f32.mrf.mxu0
    %v1781 = vadd.f32 0.0, %v1780
    %1782 = vmatprep.mubr.f32.mxu0 0.0
    %1783 = vmatmul.mubr.f32.gmra.mxu0 %v956
    %v1784 = vpop.f32.mrf.mxu0
    %v1785 = vadd.f32 0.0, %v1784
    %v1786 = vpop.f32.mrf.mxu0
    %v1787 = vadd.f32 0.0, %v1786
    %1788 = vmatprep.mubr.f32.mxu0 0.0
    %1789 = vmatmul.mubr.f32.gmra.mxu0 %v957
    %v1790 = vpop.f32.mrf.mxu0
    %v1791 = vadd.f32 0.0, %v1790
    %v1792 = vpop.f32.mrf.mxu0
    %v1793 = vadd.f32 0.0, %v1792
    %1794 = vmatprep.mubr.f32.mxu0 0.0
    %1795 = vmatmul.mubr.f32.gmra.mxu0 %v958
    %v1796 = vpop.f32.mrf.mxu0
    %v1797 = vadd.f32 0.0, %v1796
    %v1798 = vpop.f32.mrf.mxu0
    %v1799 = vadd.f32 0.0, %v1798
    %1800 = vmatprep.mubr.f32.mxu0 0.0
    %1801 = vmatmul.mubr.f32.gmra.mxu0 %v959
    %v1802 = vpop.f32.mrf.mxu0
    %v1803 = vadd.f32 0.0, %v1802
    %v1804 = vpop.f32.mrf.mxu0
    %v1805 = vadd.f32 0.0, %v1804
    %1806 = vmatprep.mubr.f32.mxu0 0.0
    %1807 = vmatmul.mubr.f32.gmra.mxu0 %v960
    %v1808 = vpop.f32.mrf.mxu0
    %v1809 = vadd.f32 0.0, %v1808
    %v1810 = vpop.f32.mrf.mxu0
    %v1811 = vadd.f32 0.0, %v1810
    %1812 = vmatprep.mubr.f32.mxu0 0.0
    %1813 = vmatmul.mubr.f32.gmra.mxu0 %v961
    %v1814 = vpop.f32.mrf.mxu0
    %v1815 = vadd.f32 0.0, %v1814
    %v1816 = vpop.f32.mrf.mxu0
    %v1817 = vadd.f32 0.0, %v1816
    %1818 = vmatprep.mubr.f32.mxu0 0.0
    %1819 = vmatmul.mubr.f32.gmra.mxu0 %v962
    %v1820 = vpop.f32.mrf.mxu0
    %v1821 = vadd.f32 0.0, %v1820
    %v1822 = vpop.f32.mrf.mxu0
    %v1823 = vadd.f32 0.0, %v1822
    %1824 = vmatprep.mubr.f32.mxu0 0.0
    %1825 = vmatmul.mubr.f32.gmra.mxu0 %v963
    %v1826 = vpop.f32.mrf.mxu0
    %v1827 = vadd.f32 0.0, %v1826
    %v1828 = vpop.f32.mrf.mxu0
    %v1829 = vadd.f32 0.0, %v1828
    %1830 = vmatprep.mubr.f32.mxu0 0.0
    %1831 = vmatmul.mubr.f32.gmra.mxu0 %v964
    %v1832 = vpop.f32.mrf.mxu0
    %v1833 = vadd.f32 0.0, %v1832
    %v1834 = vpop.f32.mrf.mxu0
    %v1835 = vadd.f32 0.0, %v1834
    %1836 = vmatprep.mubr.f32.mxu0 0.0
    %1837 = vmatmul.mubr.f32.gmra.mxu0 %v965
    %v1838 = vpop.f32.mrf.mxu0
    %v1839 = vadd.f32 0.0, %v1838
    %v1840 = vpop.f32.mrf.mxu0
    %v1841 = vadd.f32 0.0, %v1840
    %1842 = vmatprep.mubr.f32.mxu0 0.0
    %1843 = vmatmul.mubr.f32.gmra.mxu0 %v966
    %v1844 = vpop.f32.mrf.mxu0
    %v1845 = vadd.f32 0.0, %v1844
    %v1846 = vpop.f32.mrf.mxu0
    %v1847 = vadd.f32 0.0, %v1846
    %1848 = vmatprep.mubr.f32.mxu0 0.0
    %1849 = vmatmul.mubr.f32.gmra.mxu0 %v967
    %v1850 = vpop.f32.mrf.mxu0
    %v1851 = vadd.f32 0.0, %v1850
    %v1852 = vpop.f32.mrf.mxu0
    %v1853 = vadd.f32 0.0, %v1852
    %1854 = vmatprep.mubr.f32.mxu0 0.0
    %1855 = vmatmul.mubr.f32.gmra.mxu0 %v968
    %v1856 = vpop.f32.mrf.mxu0
    %v1857 = vadd.f32 0.0, %v1856
    %v1858 = vpop.f32.mrf.mxu0
    %v1859 = vadd.f32 0.0, %v1858
    %1860 = vmatprep.mubr.f32.mxu0 0.0
    %1861 = vmatmul.mubr.f32.gmra.mxu0 %v969
    %v1862 = vpop.f32.mrf.mxu0
    %v1863 = vadd.f32 0.0, %v1862
    %v1864 = vpop.f32.mrf.mxu0
    %v1865 = vadd.f32 0.0, %v1864
    %1866 = vmatprep.mubr.f32.mxu0 0.0
    %1867 = vmatmul.mubr.f32.gmra.mxu0 %v970
    %v1868 = vpop.f32.mrf.mxu0
    %v1869 = vadd.f32 0.0, %v1868
    %v1870 = vpop.f32.mrf.mxu0
    %v1871 = vadd.f32 0.0, %v1870
    %1872 = vmatprep.mubr.f32.mxu0 0.0
    %1873 = vmatmul.mubr.f32.gmra.mxu0 %v971
    %v1874 = vpop.f32.mrf.mxu0
    %v1875 = vadd.f32 0.0, %v1874
    %v1876 = vpop.f32.mrf.mxu0
    %v1877 = vadd.f32 0.0, %v1876
    %1878 = vmatprep.mubr.f32.mxu0 0.0
    %1879 = vmatmul.mubr.f32.gmra.mxu0 %v972
    %v1880 = vpop.f32.mrf.mxu0
    %v1881 = vadd.f32 0.0, %v1880
    %v1882 = vpop.f32.mrf.mxu0
    %v1883 = vadd.f32 0.0, %v1882
    %1884 = vmatprep.mubr.f32.mxu0 0.0
    %1885 = vmatmul.mubr.f32.gmra.mxu0 %v973
    %v1886 = vpop.f32.mrf.mxu0
    %v1887 = vadd.f32 0.0, %v1886
    %v1888 = vpop.f32.mrf.mxu0
    %v1889 = vadd.f32 0.0, %v1888
    %1890 = vmatprep.mubr.f32.mxu0 0.0
    %1891 = vmatmul.mubr.f32.gmra.mxu0 %v974
    %v1892 = vpop.f32.mrf.mxu0
    %v1893 = vadd.f32 0.0, %v1892
    %v1894 = vpop.f32.mrf.mxu0
    %v1895 = vadd.f32 0.0, %v1894
    %1896 = vmatprep.mubr.f32.mxu0 0.0
    %1897 = vmatmul.mubr.f32.gmra.mxu0 %v975
    %v1898 = vpop.f32.mrf.mxu0
    %v1899 = vadd.f32 0.0, %v1898
    %v1900 = vpop.f32.mrf.mxu0
    %v1901 = vadd.f32 0.0, %v1900
    %1902 = vmatprep.mubr.f32.mxu0 0.0
    %1903 = vmatmul.mubr.f32.gmra.mxu0 %v976
    %v1904 = vpop.f32.mrf.mxu0
    %v1905 = vadd.f32 0.0, %v1904
    %v1906 = vpop.f32.mrf.mxu0
    %v1907 = vadd.f32 0.0, %v1906
    %1908 = vmatprep.mubr.f32.mxu0 0.0
    %1909 = vmatmul.mubr.f32.gmra.mxu0 %v977
    %v1910 = vpop.f32.mrf.mxu0
    %v1911 = vadd.f32 0.0, %v1910
    %v1912 = vpop.f32.mrf.mxu0
    %v1913 = vadd.f32 0.0, %v1912
    %1914 = vmatprep.mubr.f32.mxu0 0.0
    %1915 = vmatmul.mubr.f32.gmra.mxu0 %v978
    %v1916 = vpop.f32.mrf.mxu0
    %v1917 = vadd.f32 0.0, %v1916
    %v1918 = vpop.f32.mrf.mxu0
    %v1919 = vadd.f32 0.0, %v1918
    %1920 = vmatprep.mubr.f32.mxu0 0.0
    %1921 = vmatmul.mubr.f32.gmra.mxu0 %v979
    %v1922 = vpop.f32.mrf.mxu0
    %v1923 = vadd.f32 0.0, %v1922
    %v1924 = vpop.f32.mrf.mxu0
    %v1925 = vadd.f32 0.0, %v1924
    %1926 = vmatprep.mubr.f32.mxu0 0.0
    %1927 = vmatmul.mubr.f32.gmra.mxu0 %v980
    %v1928 = vpop.f32.mrf.mxu0
    %v1929 = vadd.f32 0.0, %v1928
    %v1930 = vpop.f32.mrf.mxu0
    %v1931 = vadd.f32 0.0, %v1930
    %1932 = vmatprep.mubr.f32.mxu0 0.0
    %1933 = vmatmul.mubr.f32.gmra.mxu0 %v981
    %v1934 = vpop.f32.mrf.mxu0
    %v1935 = vadd.f32 0.0, %v1934
    %v1936 = vpop.f32.mrf.mxu0
    %v1937 = vadd.f32 0.0, %v1936
    %1938 = vmatprep.mubr.f32.mxu0 0.0
    %1939 = vmatmul.mubr.f32.gmra.mxu0 %v982
    %v1940 = vpop.f32.mrf.mxu0
    %v1941 = vadd.f32 0.0, %v1940
    %v1942 = vpop.f32.mrf.mxu0
    %v1943 = vadd.f32 0.0, %v1942
    %1944 = vmatprep.mubr.f32.mxu0 0.0
    %1945 = vmatmul.mubr.f32.gmra.mxu0 %v983
    %v1946 = vpop.f32.mrf.mxu0
    %v1947 = vadd.f32 0.0, %v1946
    %v1948 = vpop.f32.mrf.mxu0
    %v1949 = vadd.f32 0.0, %v1948
    %1950 = vmatprep.mubr.f32.mxu0 0.0
    %1951 = vmatmul.mubr.f32.gmra.mxu0 %v984
    %v1952 = vpop.f32.mrf.mxu0
    %v1953 = vadd.f32 0.0, %v1952
    %v1954 = vpop.f32.mrf.mxu0
    %v1955 = vadd.f32 0.0, %v1954
    %1956 = vmatprep.mubr.f32.mxu0 0.0
    %1957 = vmatmul.mubr.f32.gmra.mxu0 %v985
    %v1958 = vpop.f32.mrf.mxu0
    %v1959 = vadd.f32 0.0, %v1958
    %v1960 = vpop.f32.mrf.mxu0
    %v1961 = vadd.f32 0.0, %v1960
    %1962 = vmatprep.mubr.f32.mxu0 0.0
    %1963 = vmatmul.mubr.f32.gmra.mxu0 %v986
    %v1964 = vpop.f32.mrf.mxu0
    %v1965 = vadd.f32 0.0, %v1964
    %v1966 = vpop.f32.mrf.mxu0
    %v1967 = vadd.f32 0.0, %v1966
    %1968 = vmatprep.mubr.f32.mxu0 0.0
    %1969 = vmatmul.mubr.f32.gmra.mxu0 %v987
    %v1970 = vpop.f32.mrf.mxu0
    %v1971 = vadd.f32 0.0, %v1970
    %v1972 = vpop.f32.mrf.mxu0
    %v1973 = vadd.f32 0.0, %v1972
    %1974 = vmatprep.mubr.f32.mxu0 0.0
    %1975 = vmatmul.mubr.f32.gmra.mxu0 %v988
    %v1976 = vpop.f32.mrf.mxu0
    %v1977 = vadd.f32 0.0, %v1976
    %v1978 = vpop.f32.mrf.mxu0
    %v1979 = vadd.f32 0.0, %v1978
    %1980 = vmatprep.mubr.f32.mxu0 0.0
    %1981 = vmatmul.mubr.f32.gmra.mxu0 %v989
    %v1982 = vpop.f32.mrf.mxu0
    %v1983 = vadd.f32 0.0, %v1982
    %v1984 = vpop.f32.mrf.mxu0
    %v1985 = vadd.f32 0.0, %v1984
    %1986 = vmatprep.mubr.f32.mxu0 0.0
    %1987 = vmatmul.mubr.f32.gmra.mxu0 %v990
    %v1988 = vpop.f32.mrf.mxu0
    %v1989 = vadd.f32 0.0, %v1988
    %v1990 = vpop.f32.mrf.mxu0
    %v1991 = vadd.f32 0.0, %v1990
    %1992 = vmatprep.mubr.f32.mxu0 0.0
    %1993 = vmatmul.mubr.f32.gmra.mxu0 %v991
    %v1994 = vpop.f32.mrf.mxu0
    %v1995 = vadd.f32 0.0, %v1994
    %v1996 = vpop.f32.mrf.mxu0
    %v1997 = vadd.f32 0.0, %v1996
    %1998 = vmatprep.mubr.f32.mxu0 0.0
    %1999 = vmatmul.mubr.f32.gmra.mxu0 %v992
    %v2000 = vpop.f32.mrf.mxu0
    %v2001 = vadd.f32 0.0, %v2000
    %v2002 = vpop.f32.mrf.mxu0
    %v2003 = vadd.f32 0.0, %v2002
    %2004 = vmatprep.mubr.f32.mxu0 0.0
    %2005 = vmatmul.mubr.f32.gmra.mxu0 %v993
    %v2006 = vpop.f32.mrf.mxu0
    %v2007 = vadd.f32 0.0, %v2006
    %v2008 = vpop.f32.mrf.mxu0
    %v2009 = vadd.f32 0.0, %v2008
    %2010 = vmatprep.mubr.f32.mxu0 0.0
    %2011 = vmatmul.mubr.f32.gmra.mxu0 %v994
    %v2012 = vpop.f32.mrf.mxu0
    %v2013 = vadd.f32 0.0, %v2012
    %v2014 = vpop.f32.mrf.mxu0
    %v2015 = vadd.f32 0.0, %v2014
    %2016 = vmatprep.mubr.f32.mxu0 0.0
    %2017 = vmatmul.mubr.f32.gmra.mxu0 %v995
    %v2018 = vpop.f32.mrf.mxu0
    %v2019 = vadd.f32 0.0, %v2018
    %v2020 = vpop.f32.mrf.mxu0
    %v2021 = vadd.f32 0.0, %v2020
    %2022 = vmatprep.mubr.f32.mxu0 0.0
    %2023 = vmatmul.mubr.f32.gmra.mxu0 %v996
    %v2024 = vpop.f32.mrf.mxu0
    %v2025 = vadd.f32 0.0, %v2024
    %v2026 = vpop.f32.mrf.mxu0
    %v2027 = vadd.f32 0.0, %v2026
    %2028 = vmatprep.mubr.f32.mxu0 0.0
    %2029 = vmatmul.mubr.f32.gmra.mxu0 %v997
    %v2030 = vpop.f32.mrf.mxu0
    %v2031 = vadd.f32 0.0, %v2030
    %v2032 = vpop.f32.mrf.mxu0
    %v2033 = vadd.f32 0.0, %v2032
    %2034 = vmatprep.mubr.f32.mxu0 0.0
    %2035 = vmatmul.mubr.f32.gmra.mxu0 %v998
    %v2036 = vpop.f32.mrf.mxu0
    %v2037 = vadd.f32 0.0, %v2036
    %v2038 = vpop.f32.mrf.mxu0
    %v2039 = vadd.f32 0.0, %v2038
    %2040 = vdwg.mxu0
    %2041 = vmatprep.subr.mxu0 %v1139
    %2042 = vmatpush1.msra.mxu0 %v1138
    %2043 = vmatprep.subr.mxu0 %v1130
    %2044 = vmatpush1.msra.mxu0 %v1129
    %2045 = vmatprep.subr.mxu0 %v1121
    %2046 = vmatpush1.msra.mxu0 %v1120
    %2047 = vmatprep.subr.mxu0 %v1112
    %2048 = vmatpush1.msra.mxu0 %v1111
    %2049 = vmatprep.subr.mxu0 %v1103
    %2050 = vmatpush1.msra.mxu0 %v1102
    %2051 = vmatprep.subr.mxu0 %v1094
    %2052 = vmatpush1.msra.mxu0 %v1093
    %2053 = vmatprep.subr.mxu0 %v1085
    %2054 = vmatpush1.msra.mxu0 %v1084
    %2055 = vmatprep.subr.mxu0 %v1076
    %2056 = vmatpush1.msra.mxu0 %v1075
    %2057 = vmatprep.subr.mxu0 %v1067
    %2058 = vmatpush1.msra.mxu0 %v1066
    %2059 = vmatprep.subr.mxu0 %v1058
    %2060 = vmatpush1.msra.mxu0 %v1057
    %2061 = vmatprep.subr.mxu0 %v1049
    %2062 = vmatpush1.msra.mxu0 %v1048
    %2063 = vmatprep.subr.mxu0 %v1040
    %2064 = vmatpush1.msra.mxu0 %v1039
    %2065 = vmatprep.subr.mxu0 %v1031
    %2066 = vmatpush1.msra.mxu0 %v1030
    %2067 = vmatprep.subr.mxu0 %v1022
    %2068 = vmatpush1.msra.mxu0 %v1021
    %2069 = vmatprep.subr.mxu0 %v1013
    %2070 = vmatpush1.msra.mxu0 %v1012
    %2071 = vmatprep.subr.mxu0 %v1004
    %2072 = vmatpush1.msra.mxu0 %v1003
    %2073 = vmatprep.subr.mxu0 0.0
    %2074 = vmatpush2.msra.mxu0 0.0
    %2075 = vmatprep.subr.mxu0 0.0
    %2076 = vmatpush2.msra.mxu0 0.0
    %2077 = vmatprep.subr.mxu0 0.0
    %2078 = vmatpush2.msra.mxu0 0.0
    %2079 = vmatprep.subr.mxu0 0.0
    %2080 = vmatpush2.msra.mxu0 0.0
    %2081 = vmatprep.subr.mxu0 0.0
    %2082 = vmatpush2.msra.mxu0 0.0
    %2083 = vmatprep.subr.mxu0 0.0
    %2084 = vmatpush2.msra.mxu0 0.0
    %2085 = vmatprep.subr.mxu0 0.0
    %2086 = vmatpush2.msra.mxu0 0.0
    %2087 = vmatprep.subr.mxu0 0.0
    %2088 = vmatpush2.msra.mxu0 0.0
    %2089 = vmatprep.subr.mxu0 0.0
    %2090 = vmatpush2.msra.mxu0 0.0
    %2091 = vmatprep.subr.mxu0 0.0
    %2092 = vmatpush2.msra.mxu0 0.0
    %2093 = vmatprep.subr.mxu0 0.0
    %2094 = vmatpush2.msra.mxu0 0.0
    %2095 = vmatprep.subr.mxu0 0.0
    %2096 = vmatpush2.msra.mxu0 0.0
    %2097 = vmatprep.subr.mxu0 0.0
    %2098 = vmatpush2.msra.mxu0 0.0
    %2099 = vmatprep.subr.mxu0 0.0
    %2100 = vmatpush2.msra.mxu0 0.0
    %2101 = vmatprep.subr.mxu0 0.0
    %2102 = vmatpush2.msra.mxu0 0.0
    %2103 = vmatprep.subr.mxu0 0.0
    %2104 = vmatpush2.msra.mxu0 0.0
    %2105 = vmatprep.mubr.f32.mxu0 0.0
    %2106 = vmatmul.mubr.f32.gmra.mxu0 %v935
    %v2107 = vpop.f32.mrf.mxu0
    %v2108 = vadd.f32 0.0, %v2107
    %v2109 = vpop.f32.mrf.mxu0
    %v2110 = vadd.f32 0.0, %v2109
    %2111 = vmatprep.mubr.f32.mxu0 0.0
    %2112 = vmatmul.mubr.f32.gmra.mxu0 %v936
    %v2113 = vpop.f32.mrf.mxu0
    %v2114 = vadd.f32 0.0, %v2113
    %v2115 = vpop.f32.mrf.mxu0
    %v2116 = vadd.f32 0.0, %v2115
    %2117 = vmatprep.mubr.f32.mxu0 0.0
    %2118 = vmatmul.mubr.f32.gmra.mxu0 %v937
    %v2119 = vpop.f32.mrf.mxu0
    %v2120 = vadd.f32 0.0, %v2119
    %v2121 = vpop.f32.mrf.mxu0
    %v2122 = vadd.f32 0.0, %v2121
    %2123 = vmatprep.mubr.f32.mxu0 0.0
    %2124 = vmatmul.mubr.f32.gmra.mxu0 %v938
    %v2125 = vpop.f32.mrf.mxu0
    %v2126 = vadd.f32 0.0, %v2125
    %v2127 = vpop.f32.mrf.mxu0
    %v2128 = vadd.f32 0.0, %v2127
    %2129 = vmatprep.mubr.f32.mxu0 0.0
    %2130 = vmatmul.mubr.f32.gmra.mxu0 %v939
    %v2131 = vpop.f32.mrf.mxu0
    %v2132 = vadd.f32 0.0, %v2131
    %v2133 = vpop.f32.mrf.mxu0
    %v2134 = vadd.f32 0.0, %v2133
    %2135 = vmatprep.mubr.f32.mxu0 0.0
    %2136 = vmatmul.mubr.f32.gmra.mxu0 %v940
    %v2137 = vpop.f32.mrf.mxu0
    %v2138 = vadd.f32 0.0, %v2137
    %v2139 = vpop.f32.mrf.mxu0
    %v2140 = vadd.f32 0.0, %v2139
    %2141 = vmatprep.mubr.f32.mxu0 0.0
    %2142 = vmatmul.mubr.f32.gmra.mxu0 %v941
    %v2143 = vpop.f32.mrf.mxu0
    %v2144 = vadd.f32 0.0, %v2143
    %v2145 = vpop.f32.mrf.mxu0
    %v2146 = vadd.f32 0.0, %v2145
    %2147 = vmatprep.mubr.f32.mxu0 0.0
    %2148 = vmatmul.mubr.f32.gmra.mxu0 %v942
    %v2149 = vpop.f32.mrf.mxu0
    %v2150 = vadd.f32 0.0, %v2149
    %v2151 = vpop.f32.mrf.mxu0
    %v2152 = vadd.f32 0.0, %v2151
    %2153 = vmatprep.mubr.f32.mxu0 0.0
    %2154 = vmatmul.mubr.f32.gmra.mxu0 %v943
    %v2155 = vpop.f32.mrf.mxu0
    %v2156 = vadd.f32 0.0, %v2155
    %v2157 = vpop.f32.mrf.mxu0
    %v2158 = vadd.f32 0.0, %v2157
    %2159 = vmatprep.mubr.f32.mxu0 0.0
    %2160 = vmatmul.mubr.f32.gmra.mxu0 %v944
    %v2161 = vpop.f32.mrf.mxu0
    %v2162 = vadd.f32 0.0, %v2161
    %v2163 = vpop.f32.mrf.mxu0
    %v2164 = vadd.f32 0.0, %v2163
    %2165 = vmatprep.mubr.f32.mxu0 0.0
    %2166 = vmatmul.mubr.f32.gmra.mxu0 %v945
    %v2167 = vpop.f32.mrf.mxu0
    %v2168 = vadd.f32 0.0, %v2167
    %v2169 = vpop.f32.mrf.mxu0
    %v2170 = vadd.f32 0.0, %v2169
    %2171 = vmatprep.mubr.f32.mxu0 0.0
    %2172 = vmatmul.mubr.f32.gmra.mxu0 %v946
    %v2173 = vpop.f32.mrf.mxu0
    %v2174 = vadd.f32 0.0, %v2173
    %v2175 = vpop.f32.mrf.mxu0
    %v2176 = vadd.f32 0.0, %v2175
    %2177 = vmatprep.mubr.f32.mxu0 0.0
    %2178 = vmatmul.mubr.f32.gmra.mxu0 %v947
    %v2179 = vpop.f32.mrf.mxu0
    %v2180 = vadd.f32 0.0, %v2179
    %v2181 = vpop.f32.mrf.mxu0
    %v2182 = vadd.f32 0.0, %v2181
    %2183 = vmatprep.mubr.f32.mxu0 0.0
    %2184 = vmatmul.mubr.f32.gmra.mxu0 %v948
    %v2185 = vpop.f32.mrf.mxu0
    %v2186 = vadd.f32 0.0, %v2185
    %v2187 = vpop.f32.mrf.mxu0
    %v2188 = vadd.f32 0.0, %v2187
    %2189 = vmatprep.mubr.f32.mxu0 0.0
    %2190 = vmatmul.mubr.f32.gmra.mxu0 %v949
    %v2191 = vpop.f32.mrf.mxu0
    %v2192 = vadd.f32 0.0, %v2191
    %v2193 = vpop.f32.mrf.mxu0
    %v2194 = vadd.f32 0.0, %v2193
    %2195 = vmatprep.mubr.f32.mxu0 0.0
    %2196 = vmatmul.mubr.f32.gmra.mxu0 %v950
    %v2197 = vpop.f32.mrf.mxu0
    %v2198 = vadd.f32 0.0, %v2197
    %v2199 = vpop.f32.mrf.mxu0
    %v2200 = vadd.f32 0.0, %v2199
    %2201 = vmatprep.mubr.f32.mxu0 0.0
    %2202 = vmatmul.mubr.f32.gmra.mxu0 %v951
    %v2203 = vpop.f32.mrf.mxu0
    %v2204 = vadd.f32 0.0, %v2203
    %v2205 = vpop.f32.mrf.mxu0
    %v2206 = vadd.f32 0.0, %v2205
    %2207 = vmatprep.mubr.f32.mxu0 0.0
    %2208 = vmatmul.mubr.f32.gmra.mxu0 %v952
    %v2209 = vpop.f32.mrf.mxu0
    %v2210 = vadd.f32 0.0, %v2209
    %v2211 = vpop.f32.mrf.mxu0
    %v2212 = vadd.f32 0.0, %v2211
    %2213 = vmatprep.mubr.f32.mxu0 0.0
    %2214 = vmatmul.mubr.f32.gmra.mxu0 %v953
    %v2215 = vpop.f32.mrf.mxu0
    %v2216 = vadd.f32 0.0, %v2215
    %v2217 = vpop.f32.mrf.mxu0
    %v2218 = vadd.f32 0.0, %v2217
    %2219 = vmatprep.mubr.f32.mxu0 0.0
    %2220 = vmatmul.mubr.f32.gmra.mxu0 %v954
    %v2221 = vpop.f32.mrf.mxu0
    %v2222 = vadd.f32 0.0, %v2221
    %v2223 = vpop.f32.mrf.mxu0
    %v2224 = vadd.f32 0.0, %v2223
    %2225 = vmatprep.mubr.f32.mxu0 0.0
    %2226 = vmatmul.mubr.f32.gmra.mxu0 %v955
    %v2227 = vpop.f32.mrf.mxu0
    %v2228 = vadd.f32 0.0, %v2227
    %v2229 = vpop.f32.mrf.mxu0
    %v2230 = vadd.f32 0.0, %v2229
    %2231 = vmatprep.mubr.f32.mxu0 0.0
    %2232 = vmatmul.mubr.f32.gmra.mxu0 %v956
    %v2233 = vpop.f32.mrf.mxu0
    %v2234 = vadd.f32 0.0, %v2233
    %v2235 = vpop.f32.mrf.mxu0
    %v2236 = vadd.f32 0.0, %v2235
    %2237 = vmatprep.mubr.f32.mxu0 0.0
    %2238 = vmatmul.mubr.f32.gmra.mxu0 %v957
    %v2239 = vpop.f32.mrf.mxu0
    %v2240 = vadd.f32 0.0, %v2239
    %v2241 = vpop.f32.mrf.mxu0
    %v2242 = vadd.f32 0.0, %v2241
    %2243 = vmatprep.mubr.f32.mxu0 0.0
    %2244 = vmatmul.mubr.f32.gmra.mxu0 %v958
    %v2245 = vpop.f32.mrf.mxu0
    %v2246 = vadd.f32 0.0, %v2245
    %v2247 = vpop.f32.mrf.mxu0
    %v2248 = vadd.f32 0.0, %v2247
    %2249 = vmatprep.mubr.f32.mxu0 0.0
    %2250 = vmatmul.mubr.f32.gmra.mxu0 %v959
    %v2251 = vpop.f32.mrf.mxu0
    %v2252 = vadd.f32 0.0, %v2251
    %v2253 = vpop.f32.mrf.mxu0
    %v2254 = vadd.f32 0.0, %v2253
    %2255 = vmatprep.mubr.f32.mxu0 0.0
    %2256 = vmatmul.mubr.f32.gmra.mxu0 %v960
    %v2257 = vpop.f32.mrf.mxu0
    %v2258 = vadd.f32 0.0, %v2257
    %v2259 = vpop.f32.mrf.mxu0
    %v2260 = vadd.f32 0.0, %v2259
    %2261 = vmatprep.mubr.f32.mxu0 0.0
    %2262 = vmatmul.mubr.f32.gmra.mxu0 %v961
    %v2263 = vpop.f32.mrf.mxu0
    %v2264 = vadd.f32 0.0, %v2263
    %v2265 = vpop.f32.mrf.mxu0
    %v2266 = vadd.f32 0.0, %v2265
    %2267 = vmatprep.mubr.f32.mxu0 0.0
    %2268 = vmatmul.mubr.f32.gmra.mxu0 %v962
    %v2269 = vpop.f32.mrf.mxu0
    %v2270 = vadd.f32 0.0, %v2269
    %v2271 = vpop.f32.mrf.mxu0
    %v2272 = vadd.f32 0.0, %v2271
    %2273 = vmatprep.mubr.f32.mxu0 0.0
    %2274 = vmatmul.mubr.f32.gmra.mxu0 %v963
    %v2275 = vpop.f32.mrf.mxu0
    %v2276 = vadd.f32 0.0, %v2275
    %v2277 = vpop.f32.mrf.mxu0
    %v2278 = vadd.f32 0.0, %v2277
    %2279 = vmatprep.mubr.f32.mxu0 0.0
    %2280 = vmatmul.mubr.f32.gmra.mxu0 %v964
    %v2281 = vpop.f32.mrf.mxu0
    %v2282 = vadd.f32 0.0, %v2281
    %v2283 = vpop.f32.mrf.mxu0
    %v2284 = vadd.f32 0.0, %v2283
    %2285 = vmatprep.mubr.f32.mxu0 0.0
    %2286 = vmatmul.mubr.f32.gmra.mxu0 %v965
    %v2287 = vpop.f32.mrf.mxu0
    %v2288 = vadd.f32 0.0, %v2287
    %v2289 = vpop.f32.mrf.mxu0
    %v2290 = vadd.f32 0.0, %v2289
    %2291 = vmatprep.mubr.f32.mxu0 0.0
    %2292 = vmatmul.mubr.f32.gmra.mxu0 %v966
    %v2293 = vpop.f32.mrf.mxu0
    %v2294 = vadd.f32 0.0, %v2293
    %v2295 = vpop.f32.mrf.mxu0
    %v2296 = vadd.f32 0.0, %v2295
    %2297 = vmatprep.mubr.f32.mxu0 0.0
    %2298 = vmatmul.mubr.f32.gmra.mxu0 %v967
    %v2299 = vpop.f32.mrf.mxu0
    %v2300 = vadd.f32 0.0, %v2299
    %v2301 = vpop.f32.mrf.mxu0
    %v2302 = vadd.f32 0.0, %v2301
    %2303 = vmatprep.mubr.f32.mxu0 0.0
    %2304 = vmatmul.mubr.f32.gmra.mxu0 %v968
    %v2305 = vpop.f32.mrf.mxu0
    %v2306 = vadd.f32 0.0, %v2305
    %v2307 = vpop.f32.mrf.mxu0
    %v2308 = vadd.f32 0.0, %v2307
    %2309 = vmatprep.mubr.f32.mxu0 0.0
    %2310 = vmatmul.mubr.f32.gmra.mxu0 %v969
    %v2311 = vpop.f32.mrf.mxu0
    %v2312 = vadd.f32 0.0, %v2311
    %v2313 = vpop.f32.mrf.mxu0
    %v2314 = vadd.f32 0.0, %v2313
    %2315 = vmatprep.mubr.f32.mxu0 0.0
    %2316 = vmatmul.mubr.f32.gmra.mxu0 %v970
    %v2317 = vpop.f32.mrf.mxu0
    %v2318 = vadd.f32 0.0, %v2317
    %v2319 = vpop.f32.mrf.mxu0
    %v2320 = vadd.f32 0.0, %v2319
    %2321 = vmatprep.mubr.f32.mxu0 0.0
    %2322 = vmatmul.mubr.f32.gmra.mxu0 %v971
    %v2323 = vpop.f32.mrf.mxu0
    %v2324 = vadd.f32 0.0, %v2323
    %v2325 = vpop.f32.mrf.mxu0
    %v2326 = vadd.f32 0.0, %v2325
    %2327 = vmatprep.mubr.f32.mxu0 0.0
    %2328 = vmatmul.mubr.f32.gmra.mxu0 %v972
    %v2329 = vpop.f32.mrf.mxu0
    %v2330 = vadd.f32 0.0, %v2329
    %v2331 = vpop.f32.mrf.mxu0
    %v2332 = vadd.f32 0.0, %v2331
    %2333 = vmatprep.mubr.f32.mxu0 0.0
    %2334 = vmatmul.mubr.f32.gmra.mxu0 %v973
    %v2335 = vpop.f32.mrf.mxu0
    %v2336 = vadd.f32 0.0, %v2335
    %v2337 = vpop.f32.mrf.mxu0
    %v2338 = vadd.f32 0.0, %v2337
    %2339 = vmatprep.mubr.f32.mxu0 0.0
    %2340 = vmatmul.mubr.f32.gmra.mxu0 %v974
    %v2341 = vpop.f32.mrf.mxu0
    %v2342 = vadd.f32 0.0, %v2341
    %v2343 = vpop.f32.mrf.mxu0
    %v2344 = vadd.f32 0.0, %v2343
    %2345 = vmatprep.mubr.f32.mxu0 0.0
    %2346 = vmatmul.mubr.f32.gmra.mxu0 %v975
    %v2347 = vpop.f32.mrf.mxu0
    %v2348 = vadd.f32 0.0, %v2347
    %v2349 = vpop.f32.mrf.mxu0
    %v2350 = vadd.f32 0.0, %v2349
    %2351 = vmatprep.mubr.f32.mxu0 0.0
    %2352 = vmatmul.mubr.f32.gmra.mxu0 %v976
    %v2353 = vpop.f32.mrf.mxu0
    %v2354 = vadd.f32 0.0, %v2353
    %v2355 = vpop.f32.mrf.mxu0
    %v2356 = vadd.f32 0.0, %v2355
    %2357 = vmatprep.mubr.f32.mxu0 0.0
    %2358 = vmatmul.mubr.f32.gmra.mxu0 %v977
    %v2359 = vpop.f32.mrf.mxu0
    %v2360 = vadd.f32 0.0, %v2359
    %v2361 = vpop.f32.mrf.mxu0
    %v2362 = vadd.f32 0.0, %v2361
    %2363 = vmatprep.mubr.f32.mxu0 0.0
    %2364 = vmatmul.mubr.f32.gmra.mxu0 %v978
    %v2365 = vpop.f32.mrf.mxu0
    %v2366 = vadd.f32 0.0, %v2365
    %v2367 = vpop.f32.mrf.mxu0
    %v2368 = vadd.f32 0.0, %v2367
    %2369 = vmatprep.mubr.f32.mxu0 0.0
    %2370 = vmatmul.mubr.f32.gmra.mxu0 %v979
    %v2371 = vpop.f32.mrf.mxu0
    %v2372 = vadd.f32 0.0, %v2371
    %v2373 = vpop.f32.mrf.mxu0
    %v2374 = vadd.f32 0.0, %v2373
    %2375 = vmatprep.mubr.f32.mxu0 0.0
    %2376 = vmatmul.mubr.f32.gmra.mxu0 %v980
    %v2377 = vpop.f32.mrf.mxu0
    %v2378 = vadd.f32 0.0, %v2377
    %v2379 = vpop.f32.mrf.mxu0
    %v2380 = vadd.f32 0.0, %v2379
    %2381 = vmatprep.mubr.f32.mxu0 0.0
    %2382 = vmatmul.mubr.f32.gmra.mxu0 %v981
    %v2383 = vpop.f32.mrf.mxu0
    %v2384 = vadd.f32 0.0, %v2383
    %v2385 = vpop.f32.mrf.mxu0
    %v2386 = vadd.f32 0.0, %v2385
    %2387 = vmatprep.mubr.f32.mxu0 0.0
    %2388 = vmatmul.mubr.f32.gmra.mxu0 %v982
    %v2389 = vpop.f32.mrf.mxu0
    %v2390 = vadd.f32 0.0, %v2389
    %v2391 = vpop.f32.mrf.mxu0
    %v2392 = vadd.f32 0.0, %v2391
    %2393 = vmatprep.mubr.f32.mxu0 0.0
    %2394 = vmatmul.mubr.f32.gmra.mxu0 %v983
    %v2395 = vpop.f32.mrf.mxu0
    %v2396 = vadd.f32 0.0, %v2395
    %v2397 = vpop.f32.mrf.mxu0
    %v2398 = vadd.f32 0.0, %v2397
    %2399 = vmatprep.mubr.f32.mxu0 0.0
    %2400 = vmatmul.mubr.f32.gmra.mxu0 %v984
    %v2401 = vpop.f32.mrf.mxu0
    %v2402 = vadd.f32 0.0, %v2401
    %v2403 = vpop.f32.mrf.mxu0
    %v2404 = vadd.f32 0.0, %v2403
    %2405 = vmatprep.mubr.f32.mxu0 0.0
    %2406 = vmatmul.mubr.f32.gmra.mxu0 %v985
    %v2407 = vpop.f32.mrf.mxu0
    %v2408 = vadd.f32 0.0, %v2407
    %v2409 = vpop.f32.mrf.mxu0
    %v2410 = vadd.f32 0.0, %v2409
    %2411 = vmatprep.mubr.f32.mxu0 0.0
    %2412 = vmatmul.mubr.f32.gmra.mxu0 %v986
    %v2413 = vpop.f32.mrf.mxu0
    %v2414 = vadd.f32 0.0, %v2413
    %v2415 = vpop.f32.mrf.mxu0
    %v2416 = vadd.f32 0.0, %v2415
    %2417 = vmatprep.mubr.f32.mxu0 0.0
    %2418 = vmatmul.mubr.f32.gmra.mxu0 %v987
    %v2419 = vpop.f32.mrf.mxu0
    %v2420 = vadd.f32 0.0, %v2419
    %v2421 = vpop.f32.mrf.mxu0
    %v2422 = vadd.f32 0.0, %v2421
    %2423 = vmatprep.mubr.f32.mxu0 0.0
    %2424 = vmatmul.mubr.f32.gmra.mxu0 %v988
    %v2425 = vpop.f32.mrf.mxu0
    %v2426 = vadd.f32 0.0, %v2425
    %v2427 = vpop.f32.mrf.mxu0
    %v2428 = vadd.f32 0.0, %v2427
    %2429 = vmatprep.mubr.f32.mxu0 0.0
    %2430 = vmatmul.mubr.f32.gmra.mxu0 %v989
    %v2431 = vpop.f32.mrf.mxu0
    %v2432 = vadd.f32 0.0, %v2431
    %v2433 = vpop.f32.mrf.mxu0
    %v2434 = vadd.f32 0.0, %v2433
    %2435 = vmatprep.mubr.f32.mxu0 0.0
    %2436 = vmatmul.mubr.f32.gmra.mxu0 %v990
    %v2437 = vpop.f32.mrf.mxu0
    %v2438 = vadd.f32 0.0, %v2437
    %v2439 = vpop.f32.mrf.mxu0
    %v2440 = vadd.f32 0.0, %v2439
    %2441 = vmatprep.mubr.f32.mxu0 0.0
    %2442 = vmatmul.mubr.f32.gmra.mxu0 %v991
    %v2443 = vpop.f32.mrf.mxu0
    %v2444 = vadd.f32 0.0, %v2443
    %v2445 = vpop.f32.mrf.mxu0
    %v2446 = vadd.f32 0.0, %v2445
    %2447 = vmatprep.mubr.f32.mxu0 0.0
    %2448 = vmatmul.mubr.f32.gmra.mxu0 %v992
    %v2449 = vpop.f32.mrf.mxu0
    %v2450 = vadd.f32 0.0, %v2449
    %v2451 = vpop.f32.mrf.mxu0
    %v2452 = vadd.f32 0.0, %v2451
    %2453 = vmatprep.mubr.f32.mxu0 0.0
    %2454 = vmatmul.mubr.f32.gmra.mxu0 %v993
    %v2455 = vpop.f32.mrf.mxu0
    %v2456 = vadd.f32 0.0, %v2455
    %v2457 = vpop.f32.mrf.mxu0
    %v2458 = vadd.f32 0.0, %v2457
    %2459 = vmatprep.mubr.f32.mxu0 0.0
    %2460 = vmatmul.mubr.f32.gmra.mxu0 %v994
    %v2461 = vpop.f32.mrf.mxu0
    %v2462 = vadd.f32 0.0, %v2461
    %v2463 = vpop.f32.mrf.mxu0
    %v2464 = vadd.f32 0.0, %v2463
    %2465 = vmatprep.mubr.f32.mxu0 0.0
    %2466 = vmatmul.mubr.f32.gmra.mxu0 %v995
    %v2467 = vpop.f32.mrf.mxu0
    %v2468 = vadd.f32 0.0, %v2467
    %v2469 = vpop.f32.mrf.mxu0
    %v2470 = vadd.f32 0.0, %v2469
    %2471 = vmatprep.mubr.f32.mxu0 0.0
    %2472 = vmatmul.mubr.f32.gmra.mxu0 %v996
    %v2473 = vpop.f32.mrf.mxu0
    %v2474 = vadd.f32 0.0, %v2473
    %v2475 = vpop.f32.mrf.mxu0
    %v2476 = vadd.f32 0.0, %v2475
    %2477 = vmatprep.mubr.f32.mxu0 0.0
    %2478 = vmatmul.mubr.f32.gmra.mxu0 %v997
    %v2479 = vpop.f32.mrf.mxu0
    %v2480 = vadd.f32 0.0, %v2479
    %v2481 = vpop.f32.mrf.mxu0
    %v2482 = vadd.f32 0.0, %v2481
    %2483 = vmatprep.mubr.f32.mxu0 0.0
    %2484 = vmatmul.mubr.f32.gmra.mxu0 %v998
    %v2485 = vpop.f32.mrf.mxu0
    %v2486 = vadd.f32 0.0, %v2485
    %v2487 = vpop.f32.mrf.mxu0
    %v2488 = vadd.f32 0.0, %v2487
    %2489 = vdwg.mxu0
    %2490 = vmatprep.subr.mxu0 %v1141
    %2491 = vmatpush1.msra.mxu0 %v1140
    %2492 = vmatprep.subr.mxu0 %v1132
    %2493 = vmatpush1.msra.mxu0 %v1131
    %2494 = vmatprep.subr.mxu0 %v1123
    %2495 = vmatpush1.msra.mxu0 %v1122
    %2496 = vmatprep.subr.mxu0 %v1114
    %2497 = vmatpush1.msra.mxu0 %v1113
    %2498 = vmatprep.subr.mxu0 %v1105
    %2499 = vmatpush1.msra.mxu0 %v1104
    %2500 = vmatprep.subr.mxu0 %v1096
    %2501 = vmatpush1.msra.mxu0 %v1095
    %2502 = vmatprep.subr.mxu0 %v1087
    %2503 = vmatpush1.msra.mxu0 %v1086
    %2504 = vmatprep.subr.mxu0 %v1078
    %2505 = vmatpush1.msra.mxu0 %v1077
    %2506 = vmatprep.subr.mxu0 %v1069
    %2507 = vmatpush1.msra.mxu0 %v1068
    %2508 = vmatprep.subr.mxu0 %v1060
    %2509 = vmatpush1.msra.mxu0 %v1059
    %2510 = vmatprep.subr.mxu0 %v1051
    %2511 = vmatpush1.msra.mxu0 %v1050
    %2512 = vmatprep.subr.mxu0 %v1042
    %2513 = vmatpush1.msra.mxu0 %v1041
    %2514 = vmatprep.subr.mxu0 %v1033
    %2515 = vmatpush1.msra.mxu0 %v1032
    %2516 = vmatprep.subr.mxu0 %v1024
    %2517 = vmatpush1.msra.mxu0 %v1023
    %2518 = vmatprep.subr.mxu0 %v1015
    %2519 = vmatpush1.msra.mxu0 %v1014
    %2520 = vmatprep.subr.mxu0 %v1006
    %2521 = vmatpush1.msra.mxu0 %v1005
    %2522 = vmatprep.subr.mxu0 0.0
    %2523 = vmatpush2.msra.mxu0 0.0
    %2524 = vmatprep.subr.mxu0 0.0
    %2525 = vmatpush2.msra.mxu0 0.0
    %2526 = vmatprep.subr.mxu0 0.0
    %2527 = vmatpush2.msra.mxu0 0.0
    %2528 = vmatprep.subr.mxu0 0.0
    %2529 = vmatpush2.msra.mxu0 0.0
    %2530 = vmatprep.subr.mxu0 0.0
    %2531 = vmatpush2.msra.mxu0 0.0
    %2532 = vmatprep.subr.mxu0 0.0
    %2533 = vmatpush2.msra.mxu0 0.0
    %2534 = vmatprep.subr.mxu0 0.0
    %2535 = vmatpush2.msra.mxu0 0.0
    %2536 = vmatprep.subr.mxu0 0.0
    %2537 = vmatpush2.msra.mxu0 0.0
    %2538 = vmatprep.subr.mxu0 0.0
    %2539 = vmatpush2.msra.mxu0 0.0
    %2540 = vmatprep.subr.mxu0 0.0
    %2541 = vmatpush2.msra.mxu0 0.0
    %2542 = vmatprep.subr.mxu0 0.0
    %2543 = vmatpush2.msra.mxu0 0.0
    %2544 = vmatprep.subr.mxu0 0.0
    %2545 = vmatpush2.msra.mxu0 0.0
    %2546 = vmatprep.subr.mxu0 0.0
    %2547 = vmatpush2.msra.mxu0 0.0
    %2548 = vmatprep.subr.mxu0 0.0
    %2549 = vmatpush2.msra.mxu0 0.0
    %2550 = vmatprep.subr.mxu0 0.0
    %2551 = vmatpush2.msra.mxu0 0.0
    %2552 = vmatprep.subr.mxu0 0.0
    %2553 = vmatpush2.msra.mxu0 0.0
    %2554 = vmatprep.mubr.f32.mxu0 0.0
    %2555 = vmatmul.mubr.f32.gmra.mxu0 %v935
    %v2556 = vpop.f32.mrf.mxu0
    %v2557 = vadd.f32 0.0, %v2556
    %v2558 = vpop.f32.mrf.mxu0
    %v2559 = vadd.f32 0.0, %v2558
    %2560 = vmatprep.mubr.f32.mxu0 0.0
    %2561 = vmatmul.mubr.f32.gmra.mxu0 %v936
    %v2562 = vpop.f32.mrf.mxu0
    %v2563 = vadd.f32 0.0, %v2562
    %v2564 = vpop.f32.mrf.mxu0
    %v2565 = vadd.f32 0.0, %v2564
    %2566 = vmatprep.mubr.f32.mxu0 0.0
    %2567 = vmatmul.mubr.f32.gmra.mxu0 %v937
    %v2568 = vpop.f32.mrf.mxu0
    %v2569 = vadd.f32 0.0, %v2568
    %v2570 = vpop.f32.mrf.mxu0
    %v2571 = vadd.f32 0.0, %v2570
    %2572 = vmatprep.mubr.f32.mxu0 0.0
    %2573 = vmatmul.mubr.f32.gmra.mxu0 %v938
    %v2574 = vpop.f32.mrf.mxu0
    %v2575 = vadd.f32 0.0, %v2574
    %v2576 = vpop.f32.mrf.mxu0
    %v2577 = vadd.f32 0.0, %v2576
    %2578 = vmatprep.mubr.f32.mxu0 0.0
    %2579 = vmatmul.mubr.f32.gmra.mxu0 %v939
    %v2580 = vpop.f32.mrf.mxu0
    %v2581 = vadd.f32 0.0, %v2580
    %v2582 = vpop.f32.mrf.mxu0
    %v2583 = vadd.f32 0.0, %v2582
    %2584 = vmatprep.mubr.f32.mxu0 0.0
    %2585 = vmatmul.mubr.f32.gmra.mxu0 %v940
    %v2586 = vpop.f32.mrf.mxu0
    %v2587 = vadd.f32 0.0, %v2586
    %v2588 = vpop.f32.mrf.mxu0
    %v2589 = vadd.f32 0.0, %v2588
    %2590 = vmatprep.mubr.f32.mxu0 0.0
    %2591 = vmatmul.mubr.f32.gmra.mxu0 %v941
    %v2592 = vpop.f32.mrf.mxu0
    %v2593 = vadd.f32 0.0, %v2592
    %v2594 = vpop.f32.mrf.mxu0
    %v2595 = vadd.f32 0.0, %v2594
    %2596 = vmatprep.mubr.f32.mxu0 0.0
    %2597 = vmatmul.mubr.f32.gmra.mxu0 %v942
    %v2598 = vpop.f32.mrf.mxu0
    %v2599 = vadd.f32 0.0, %v2598
    %v2600 = vpop.f32.mrf.mxu0
    %v2601 = vadd.f32 0.0, %v2600
    %2602 = vmatprep.mubr.f32.mxu0 0.0
    %2603 = vmatmul.mubr.f32.gmra.mxu0 %v943
    %v2604 = vpop.f32.mrf.mxu0
    %v2605 = vadd.f32 0.0, %v2604
    %v2606 = vpop.f32.mrf.mxu0
    %v2607 = vadd.f32 0.0, %v2606
    %2608 = vmatprep.mubr.f32.mxu0 0.0
    %2609 = vmatmul.mubr.f32.gmra.mxu0 %v944
    %v2610 = vpop.f32.mrf.mxu0
    %v2611 = vadd.f32 0.0, %v2610
    %v2612 = vpop.f32.mrf.mxu0
    %v2613 = vadd.f32 0.0, %v2612
    %2614 = vmatprep.mubr.f32.mxu0 0.0
    %2615 = vmatmul.mubr.f32.gmra.mxu0 %v945
    %v2616 = vpop.f32.mrf.mxu0
    %v2617 = vadd.f32 0.0, %v2616
    %v2618 = vpop.f32.mrf.mxu0
    %v2619 = vadd.f32 0.0, %v2618
    %2620 = vmatprep.mubr.f32.mxu0 0.0
    %2621 = vmatmul.mubr.f32.gmra.mxu0 %v946
    %v2622 = vpop.f32.mrf.mxu0
    %v2623 = vadd.f32 0.0, %v2622
    %v2624 = vpop.f32.mrf.mxu0
    %v2625 = vadd.f32 0.0, %v2624
    %2626 = vmatprep.mubr.f32.mxu0 0.0
    %2627 = vmatmul.mubr.f32.gmra.mxu0 %v947
    %v2628 = vpop.f32.mrf.mxu0
    %v2629 = vadd.f32 0.0, %v2628
    %v2630 = vpop.f32.mrf.mxu0
    %v2631 = vadd.f32 0.0, %v2630
    %2632 = vmatprep.mubr.f32.mxu0 0.0
    %2633 = vmatmul.mubr.f32.gmra.mxu0 %v948
    %v2634 = vpop.f32.mrf.mxu0
    %v2635 = vadd.f32 0.0, %v2634
    %v2636 = vpop.f32.mrf.mxu0
    %v2637 = vadd.f32 0.0, %v2636
    %2638 = vmatprep.mubr.f32.mxu0 0.0
    %2639 = vmatmul.mubr.f32.gmra.mxu0 %v949
    %v2640 = vpop.f32.mrf.mxu0
    %v2641 = vadd.f32 0.0, %v2640
    %v2642 = vpop.f32.mrf.mxu0
    %v2643 = vadd.f32 0.0, %v2642
    %2644 = vmatprep.mubr.f32.mxu0 0.0
    %2645 = vmatmul.mubr.f32.gmra.mxu0 %v950
    %v2646 = vpop.f32.mrf.mxu0
    %v2647 = vadd.f32 0.0, %v2646
    %v2648 = vpop.f32.mrf.mxu0
    %v2649 = vadd.f32 0.0, %v2648
    %2650 = vmatprep.mubr.f32.mxu0 0.0
    %2651 = vmatmul.mubr.f32.gmra.mxu0 %v951
    %v2652 = vpop.f32.mrf.mxu0
    %v2653 = vadd.f32 0.0, %v2652
    %v2654 = vpop.f32.mrf.mxu0
    %v2655 = vadd.f32 0.0, %v2654
    %2656 = vmatprep.mubr.f32.mxu0 0.0
    %2657 = vmatmul.mubr.f32.gmra.mxu0 %v952
    %v2658 = vpop.f32.mrf.mxu0
    %v2659 = vadd.f32 0.0, %v2658
    %v2660 = vpop.f32.mrf.mxu0
    %v2661 = vadd.f32 0.0, %v2660
    %2662 = vmatprep.mubr.f32.mxu0 0.0
    %2663 = vmatmul.mubr.f32.gmra.mxu0 %v953
    %v2664 = vpop.f32.mrf.mxu0
    %v2665 = vadd.f32 0.0, %v2664
    %v2666 = vpop.f32.mrf.mxu0
    %v2667 = vadd.f32 0.0, %v2666
    %2668 = vmatprep.mubr.f32.mxu0 0.0
    %2669 = vmatmul.mubr.f32.gmra.mxu0 %v954
    %v2670 = vpop.f32.mrf.mxu0
    %v2671 = vadd.f32 0.0, %v2670
    %v2672 = vpop.f32.mrf.mxu0
    %v2673 = vadd.f32 0.0, %v2672
    %2674 = vmatprep.mubr.f32.mxu0 0.0
    %2675 = vmatmul.mubr.f32.gmra.mxu0 %v955
    %v2676 = vpop.f32.mrf.mxu0
    %v2677 = vadd.f32 0.0, %v2676
    %v2678 = vpop.f32.mrf.mxu0
    %v2679 = vadd.f32 0.0, %v2678
    %2680 = vmatprep.mubr.f32.mxu0 0.0
    %2681 = vmatmul.mubr.f32.gmra.mxu0 %v956
    %v2682 = vpop.f32.mrf.mxu0
    %v2683 = vadd.f32 0.0, %v2682
    %v2684 = vpop.f32.mrf.mxu0
    %v2685 = vadd.f32 0.0, %v2684
    %2686 = vmatprep.mubr.f32.mxu0 0.0
    %2687 = vmatmul.mubr.f32.gmra.mxu0 %v957
    %v2688 = vpop.f32.mrf.mxu0
    %v2689 = vadd.f32 0.0, %v2688
    %v2690 = vpop.f32.mrf.mxu0
    %v2691 = vadd.f32 0.0, %v2690
    %2692 = vmatprep.mubr.f32.mxu0 0.0
    %2693 = vmatmul.mubr.f32.gmra.mxu0 %v958
    %v2694 = vpop.f32.mrf.mxu0
    %v2695 = vadd.f32 0.0, %v2694
    %v2696 = vpop.f32.mrf.mxu0
    %v2697 = vadd.f32 0.0, %v2696
    %2698 = vmatprep.mubr.f32.mxu0 0.0
    %2699 = vmatmul.mubr.f32.gmra.mxu0 %v959
    %v2700 = vpop.f32.mrf.mxu0
    %v2701 = vadd.f32 0.0, %v2700
    %v2702 = vpop.f32.mrf.mxu0
    %v2703 = vadd.f32 0.0, %v2702
    %2704 = vmatprep.mubr.f32.mxu0 0.0
    %2705 = vmatmul.mubr.f32.gmra.mxu0 %v960
    %v2706 = vpop.f32.mrf.mxu0
    %v2707 = vadd.f32 0.0, %v2706
    %v2708 = vpop.f32.mrf.mxu0
    %v2709 = vadd.f32 0.0, %v2708
    %2710 = vmatprep.mubr.f32.mxu0 0.0
    %2711 = vmatmul.mubr.f32.gmra.mxu0 %v961
    %v2712 = vpop.f32.mrf.mxu0
    %v2713 = vadd.f32 0.0, %v2712
    %v2714 = vpop.f32.mrf.mxu0
    %v2715 = vadd.f32 0.0, %v2714
    %2716 = vmatprep.mubr.f32.mxu0 0.0
    %2717 = vmatmul.mubr.f32.gmra.mxu0 %v962
    %v2718 = vpop.f32.mrf.mxu0
    %v2719 = vadd.f32 0.0, %v2718
    %v2720 = vpop.f32.mrf.mxu0
    %v2721 = vadd.f32 0.0, %v2720
    %2722 = vmatprep.mubr.f32.mxu0 0.0
    %2723 = vmatmul.mubr.f32.gmra.mxu0 %v963
    %v2724 = vpop.f32.mrf.mxu0
    %v2725 = vadd.f32 0.0, %v2724
    %v2726 = vpop.f32.mrf.mxu0
    %v2727 = vadd.f32 0.0, %v2726
    %2728 = vmatprep.mubr.f32.mxu0 0.0
    %2729 = vmatmul.mubr.f32.gmra.mxu0 %v964
    %v2730 = vpop.f32.mrf.mxu0
    %v2731 = vadd.f32 0.0, %v2730
    %v2732 = vpop.f32.mrf.mxu0
    %v2733 = vadd.f32 0.0, %v2732
    %2734 = vmatprep.mubr.f32.mxu0 0.0
    %2735 = vmatmul.mubr.f32.gmra.mxu0 %v965
    %v2736 = vpop.f32.mrf.mxu0
    %v2737 = vadd.f32 0.0, %v2736
    %v2738 = vpop.f32.mrf.mxu0
    %v2739 = vadd.f32 0.0, %v2738
    %2740 = vmatprep.mubr.f32.mxu0 0.0
    %2741 = vmatmul.mubr.f32.gmra.mxu0 %v966
    %v2742 = vpop.f32.mrf.mxu0
    %v2743 = vadd.f32 0.0, %v2742
    %v2744 = vpop.f32.mrf.mxu0
    %v2745 = vadd.f32 0.0, %v2744
    %2746 = vmatprep.mubr.f32.mxu0 0.0
    %2747 = vmatmul.mubr.f32.gmra.mxu0 %v967
    %v2748 = vpop.f32.mrf.mxu0
    %v2749 = vadd.f32 0.0, %v2748
    %v2750 = vpop.f32.mrf.mxu0
    %v2751 = vadd.f32 0.0, %v2750
    %2752 = vmatprep.mubr.f32.mxu0 0.0
    %2753 = vmatmul.mubr.f32.gmra.mxu0 %v968
    %v2754 = vpop.f32.mrf.mxu0
    %v2755 = vadd.f32 0.0, %v2754
    %v2756 = vpop.f32.mrf.mxu0
    %v2757 = vadd.f32 0.0, %v2756
    %2758 = vmatprep.mubr.f32.mxu0 0.0
    %2759 = vmatmul.mubr.f32.gmra.mxu0 %v969
    %v2760 = vpop.f32.mrf.mxu0
    %v2761 = vadd.f32 0.0, %v2760
    %v2762 = vpop.f32.mrf.mxu0
    %v2763 = vadd.f32 0.0, %v2762
    %2764 = vmatprep.mubr.f32.mxu0 0.0
    %2765 = vmatmul.mubr.f32.gmra.mxu0 %v970
    %v2766 = vpop.f32.mrf.mxu0
    %v2767 = vadd.f32 0.0, %v2766
    %v2768 = vpop.f32.mrf.mxu0
    %v2769 = vadd.f32 0.0, %v2768
    %2770 = vmatprep.mubr.f32.mxu0 0.0
    %2771 = vmatmul.mubr.f32.gmra.mxu0 %v971
    %v2772 = vpop.f32.mrf.mxu0
    %v2773 = vadd.f32 0.0, %v2772
    %v2774 = vpop.f32.mrf.mxu0
    %v2775 = vadd.f32 0.0, %v2774
    %2776 = vmatprep.mubr.f32.mxu0 0.0
    %2777 = vmatmul.mubr.f32.gmra.mxu0 %v972
    %v2778 = vpop.f32.mrf.mxu0
    %v2779 = vadd.f32 0.0, %v2778
    %v2780 = vpop.f32.mrf.mxu0
    %v2781 = vadd.f32 0.0, %v2780
    %2782 = vmatprep.mubr.f32.mxu0 0.0
    %2783 = vmatmul.mubr.f32.gmra.mxu0 %v973
    %v2784 = vpop.f32.mrf.mxu0
    %v2785 = vadd.f32 0.0, %v2784
    %v2786 = vpop.f32.mrf.mxu0
    %v2787 = vadd.f32 0.0, %v2786
    %2788 = vmatprep.mubr.f32.mxu0 0.0
    %2789 = vmatmul.mubr.f32.gmra.mxu0 %v974
    %v2790 = vpop.f32.mrf.mxu0
    %v2791 = vadd.f32 0.0, %v2790
    %v2792 = vpop.f32.mrf.mxu0
    %v2793 = vadd.f32 0.0, %v2792
    %2794 = vmatprep.mubr.f32.mxu0 0.0
    %2795 = vmatmul.mubr.f32.gmra.mxu0 %v975
    %v2796 = vpop.f32.mrf.mxu0
    %v2797 = vadd.f32 0.0, %v2796
    %v2798 = vpop.f32.mrf.mxu0
    %v2799 = vadd.f32 0.0, %v2798
    %2800 = vmatprep.mubr.f32.mxu0 0.0
    %2801 = vmatmul.mubr.f32.gmra.mxu0 %v976
    %v2802 = vpop.f32.mrf.mxu0
    %v2803 = vadd.f32 0.0, %v2802
    %v2804 = vpop.f32.mrf.mxu0
    %v2805 = vadd.f32 0.0, %v2804
    %2806 = vmatprep.mubr.f32.mxu0 0.0
    %2807 = vmatmul.mubr.f32.gmra.mxu0 %v977
    %v2808 = vpop.f32.mrf.mxu0
    %v2809 = vadd.f32 0.0, %v2808
    %v2810 = vpop.f32.mrf.mxu0
    %v2811 = vadd.f32 0.0, %v2810
    %2812 = vmatprep.mubr.f32.mxu0 0.0
    %2813 = vmatmul.mubr.f32.gmra.mxu0 %v978
    %v2814 = vpop.f32.mrf.mxu0
    %v2815 = vadd.f32 0.0, %v2814
    %v2816 = vpop.f32.mrf.mxu0
    %v2817 = vadd.f32 0.0, %v2816
    %2818 = vmatprep.mubr.f32.mxu0 0.0
    %2819 = vmatmul.mubr.f32.gmra.mxu0 %v979
    %v2820 = vpop.f32.mrf.mxu0
    %v2821 = vadd.f32 0.0, %v2820
    %v2822 = vpop.f32.mrf.mxu0
    %v2823 = vadd.f32 0.0, %v2822
    %2824 = vmatprep.mubr.f32.mxu0 0.0
    %2825 = vmatmul.mubr.f32.gmra.mxu0 %v980
    %v2826 = vpop.f32.mrf.mxu0
    %v2827 = vadd.f32 0.0, %v2826
    %v2828 = vpop.f32.mrf.mxu0
    %v2829 = vadd.f32 0.0, %v2828
    %2830 = vmatprep.mubr.f32.mxu0 0.0
    %2831 = vmatmul.mubr.f32.gmra.mxu0 %v981
    %v2832 = vpop.f32.mrf.mxu0
    %v2833 = vadd.f32 0.0, %v2832
    %v2834 = vpop.f32.mrf.mxu0
    %v2835 = vadd.f32 0.0, %v2834
    %2836 = vmatprep.mubr.f32.mxu0 0.0
    %2837 = vmatmul.mubr.f32.gmra.mxu0 %v982
    %v2838 = vpop.f32.mrf.mxu0
    %v2839 = vadd.f32 0.0, %v2838
    %v2840 = vpop.f32.mrf.mxu0
    %v2841 = vadd.f32 0.0, %v2840
    %2842 = vmatprep.mubr.f32.mxu0 0.0
    %2843 = vmatmul.mubr.f32.gmra.mxu0 %v983
    %v2844 = vpop.f32.mrf.mxu0
    %v2845 = vadd.f32 0.0, %v2844
    %v2846 = vpop.f32.mrf.mxu0
    %v2847 = vadd.f32 0.0, %v2846
    %2848 = vmatprep.mubr.f32.mxu0 0.0
    %2849 = vmatmul.mubr.f32.gmra.mxu0 %v984
    %v2850 = vpop.f32.mrf.mxu0
    %v2851 = vadd.f32 0.0, %v2850
    %v2852 = vpop.f32.mrf.mxu0
    %v2853 = vadd.f32 0.0, %v2852
    %2854 = vmatprep.mubr.f32.mxu0 0.0
    %2855 = vmatmul.mubr.f32.gmra.mxu0 %v985
    %v2856 = vpop.f32.mrf.mxu0
    %v2857 = vadd.f32 0.0, %v2856
    %v2858 = vpop.f32.mrf.mxu0
    %v2859 = vadd.f32 0.0, %v2858
    %2860 = vmatprep.mubr.f32.mxu0 0.0
    %2861 = vmatmul.mubr.f32.gmra.mxu0 %v986
    %v2862 = vpop.f32.mrf.mxu0
    %v2863 = vadd.f32 0.0, %v2862
    %v2864 = vpop.f32.mrf.mxu0
    %v2865 = vadd.f32 0.0, %v2864
    %2866 = vmatprep.mubr.f32.mxu0 0.0
    %2867 = vmatmul.mubr.f32.gmra.mxu0 %v987
    %v2868 = vpop.f32.mrf.mxu0
    %v2869 = vadd.f32 0.0, %v2868
    %v2870 = vpop.f32.mrf.mxu0
    %v2871 = vadd.f32 0.0, %v2870
    %2872 = vmatprep.mubr.f32.mxu0 0.0
    %2873 = vmatmul.mubr.f32.gmra.mxu0 %v988
    %v2874 = vpop.f32.mrf.mxu0
    %v2875 = vadd.f32 0.0, %v2874
    %v2876 = vpop.f32.mrf.mxu0
    %v2877 = vadd.f32 0.0, %v2876
    %2878 = vmatprep.mubr.f32.mxu0 0.0
    %2879 = vmatmul.mubr.f32.gmra.mxu0 %v989
    %v2880 = vpop.f32.mrf.mxu0
    %v2881 = vadd.f32 0.0, %v2880
    %v2882 = vpop.f32.mrf.mxu0
    %v2883 = vadd.f32 0.0, %v2882
    %2884 = vmatprep.mubr.f32.mxu0 0.0
    %2885 = vmatmul.mubr.f32.gmra.mxu0 %v990
    %v2886 = vpop.f32.mrf.mxu0
    %v2887 = vadd.f32 0.0, %v2886
    %v2888 = vpop.f32.mrf.mxu0
    %v2889 = vadd.f32 0.0, %v2888
    %2890 = vmatprep.mubr.f32.mxu0 0.0
    %2891 = vmatmul.mubr.f32.gmra.mxu0 %v991
    %v2892 = vpop.f32.mrf.mxu0
    %v2893 = vadd.f32 0.0, %v2892
    %v2894 = vpop.f32.mrf.mxu0
    %v2895 = vadd.f32 0.0, %v2894
    %2896 = vmatprep.mubr.f32.mxu0 0.0
    %2897 = vmatmul.mubr.f32.gmra.mxu0 %v992
    %v2898 = vpop.f32.mrf.mxu0
    %v2899 = vadd.f32 0.0, %v2898
    %v2900 = vpop.f32.mrf.mxu0
    %v2901 = vadd.f32 0.0, %v2900
    %2902 = vmatprep.mubr.f32.mxu0 0.0
    %2903 = vmatmul.mubr.f32.gmra.mxu0 %v993
    %v2904 = vpop.f32.mrf.mxu0
    %v2905 = vadd.f32 0.0, %v2904
    %v2906 = vpop.f32.mrf.mxu0
    %v2907 = vadd.f32 0.0, %v2906
    %2908 = vmatprep.mubr.f32.mxu0 0.0
    %2909 = vmatmul.mubr.f32.gmra.mxu0 %v994
    %v2910 = vpop.f32.mrf.mxu0
    %v2911 = vadd.f32 0.0, %v2910
    %v2912 = vpop.f32.mrf.mxu0
    %v2913 = vadd.f32 0.0, %v2912
    %2914 = vmatprep.mubr.f32.mxu0 0.0
    %2915 = vmatmul.mubr.f32.gmra.mxu0 %v995
    %v2916 = vpop.f32.mrf.mxu0
    %v2917 = vadd.f32 0.0, %v2916
    %v2918 = vpop.f32.mrf.mxu0
    %v2919 = vadd.f32 0.0, %v2918
    %2920 = vmatprep.mubr.f32.mxu0 0.0
    %2921 = vmatmul.mubr.f32.gmra.mxu0 %v996
    %v2922 = vpop.f32.mrf.mxu0
    %v2923 = vadd.f32 0.0, %v2922
    %v2924 = vpop.f32.mrf.mxu0
    %v2925 = vadd.f32 0.0, %v2924
    %2926 = vmatprep.mubr.f32.mxu0 0.0
    %2927 = vmatmul.mubr.f32.gmra.mxu0 %v997
    %v2928 = vpop.f32.mrf.mxu0
    %v2929 = vadd.f32 0.0, %v2928
    %v2930 = vpop.f32.mrf.mxu0
    %v2931 = vadd.f32 0.0, %v2930
    %2932 = vmatprep.mubr.f32.mxu0 0.0
    %2933 = vmatmul.mubr.f32.gmra.mxu0 %v998
    %v2934 = vpop.f32.mrf.mxu0
    %v2935 = vadd.f32 0.0, %v2934
    %v2936 = vpop.f32.mrf.mxu0
    %v2937 = vadd.f32 0.0, %v2936
    %2938 = vdwg.mxu0
    %2939 = vmatprep.subr.mxu0 0.0
    %2940 = vmatpush1.msra.mxu0 %v1142
    %2941 = vmatprep.subr.mxu0 0.0
    %2942 = vmatpush1.msra.mxu0 %v1133
    %2943 = vmatprep.subr.mxu0 0.0
    %2944 = vmatpush1.msra.mxu0 %v1124
    %2945 = vmatprep.subr.mxu0 0.0
    %2946 = vmatpush1.msra.mxu0 %v1115
    %2947 = vmatprep.subr.mxu0 0.0
    %2948 = vmatpush1.msra.mxu0 %v1106
    %2949 = vmatprep.subr.mxu0 0.0
    %2950 = vmatpush1.msra.mxu0 %v1097
    %2951 = vmatprep.subr.mxu0 0.0
    %2952 = vmatpush1.msra.mxu0 %v1088
    %2953 = vmatprep.subr.mxu0 0.0
    %2954 = vmatpush1.msra.mxu0 %v1079
    %2955 = vmatprep.subr.mxu0 0.0
    %2956 = vmatpush1.msra.mxu0 %v1070
    %2957 = vmatprep.subr.mxu0 0.0
    %2958 = vmatpush1.msra.mxu0 %v1061
    %2959 = vmatprep.subr.mxu0 0.0
    %2960 = vmatpush1.msra.mxu0 %v1052
    %2961 = vmatprep.subr.mxu0 0.0
    %2962 = vmatpush1.msra.mxu0 %v1043
    %2963 = vmatprep.subr.mxu0 0.0
    %2964 = vmatpush1.msra.mxu0 %v1034
    %2965 = vmatprep.subr.mxu0 0.0
    %2966 = vmatpush1.msra.mxu0 %v1025
    %2967 = vmatprep.subr.mxu0 0.0
    %2968 = vmatpush1.msra.mxu0 %v1016
    %2969 = vmatprep.subr.mxu0 0.0
    %2970 = vmatpush1.msra.mxu0 %v1007
    %2971 = vmatprep.subr.mxu0 0.0
    %2972 = vmatpush2.msra.mxu0 0.0
    %2973 = vmatprep.subr.mxu0 0.0
    %2974 = vmatpush2.msra.mxu0 0.0
    %2975 = vmatprep.subr.mxu0 0.0
    %2976 = vmatpush2.msra.mxu0 0.0
    %2977 = vmatprep.subr.mxu0 0.0
    %2978 = vmatpush2.msra.mxu0 0.0
    %2979 = vmatprep.subr.mxu0 0.0
    %2980 = vmatpush2.msra.mxu0 0.0
    %2981 = vmatprep.subr.mxu0 0.0
    %2982 = vmatpush2.msra.mxu0 0.0
    %2983 = vmatprep.subr.mxu0 0.0
    %2984 = vmatpush2.msra.mxu0 0.0
    %2985 = vmatprep.subr.mxu0 0.0
    %2986 = vmatpush2.msra.mxu0 0.0
    %2987 = vmatprep.subr.mxu0 0.0
    %2988 = vmatpush2.msra.mxu0 0.0
    %2989 = vmatprep.subr.mxu0 0.0
    %2990 = vmatpush2.msra.mxu0 0.0
    %2991 = vmatprep.subr.mxu0 0.0
    %2992 = vmatpush2.msra.mxu0 0.0
    %2993 = vmatprep.subr.mxu0 0.0
    %2994 = vmatpush2.msra.mxu0 0.0
    %2995 = vmatprep.subr.mxu0 0.0
    %2996 = vmatpush2.msra.mxu0 0.0
    %2997 = vmatprep.subr.mxu0 0.0
    %2998 = vmatpush2.msra.mxu0 0.0
    %2999 = vmatprep.subr.mxu0 0.0
    %3000 = vmatpush2.msra.mxu0 0.0
    %3001 = vmatprep.subr.mxu0 0.0
    %3002 = vmatpush2.msra.mxu0 0.0
    %3003 = vmatprep.mubr.f32.mxu0 0.0
    %3004 = vmatmul.mubr.f32.gmra.mxu0 %v935
    %v3005 = vpop.f32.mrf.mxu0
    %v3006 = vadd.f32 0.0, %v3005
    %v3007 = vpop.f32.mrf.mxu0
    %3008 = vmatprep.mubr.f32.mxu0 0.0
    %3009 = vmatmul.mubr.f32.gmra.mxu0 %v936
    %v3010 = vpop.f32.mrf.mxu0
    %v3011 = vadd.f32 0.0, %v3010
    %v3012 = vpop.f32.mrf.mxu0
    %3013 = vmatprep.mubr.f32.mxu0 0.0
    %3014 = vmatmul.mubr.f32.gmra.mxu0 %v937
    %v3015 = vpop.f32.mrf.mxu0
    %v3016 = vadd.f32 0.0, %v3015
    %v3017 = vpop.f32.mrf.mxu0
    %3018 = vmatprep.mubr.f32.mxu0 0.0
    %3019 = vmatmul.mubr.f32.gmra.mxu0 %v938
    %v3020 = vpop.f32.mrf.mxu0
    %v3021 = vadd.f32 0.0, %v3020
    %v3022 = vpop.f32.mrf.mxu0
    %3023 = vmatprep.mubr.f32.mxu0 0.0
    %3024 = vmatmul.mubr.f32.gmra.mxu0 %v939
    %v3025 = vpop.f32.mrf.mxu0
    %v3026 = vadd.f32 0.0, %v3025
    %v3027 = vpop.f32.mrf.mxu0
    %3028 = vmatprep.mubr.f32.mxu0 0.0
    %3029 = vmatmul.mubr.f32.gmra.mxu0 %v940
    %v3030 = vpop.f32.mrf.mxu0
    %v3031 = vadd.f32 0.0, %v3030
    %v3032 = vpop.f32.mrf.mxu0
    %3033 = vmatprep.mubr.f32.mxu0 0.0
    %3034 = vmatmul.mubr.f32.gmra.mxu0 %v941
    %v3035 = vpop.f32.mrf.mxu0
    %v3036 = vadd.f32 0.0, %v3035
    %v3037 = vpop.f32.mrf.mxu0
    %3038 = vmatprep.mubr.f32.mxu0 0.0
    %3039 = vmatmul.mubr.f32.gmra.mxu0 %v942
    %v3040 = vpop.f32.mrf.mxu0
    %v3041 = vadd.f32 0.0, %v3040
    %v3042 = vpop.f32.mrf.mxu0
    %3043 = vmatprep.mubr.f32.mxu0 0.0
    %3044 = vmatmul.mubr.f32.gmra.mxu0 %v943
    %v3045 = vpop.f32.mrf.mxu0
    %v3046 = vadd.f32 0.0, %v3045
    %v3047 = vpop.f32.mrf.mxu0
    %3048 = vmatprep.mubr.f32.mxu0 0.0
    %3049 = vmatmul.mubr.f32.gmra.mxu0 %v944
    %v3050 = vpop.f32.mrf.mxu0
    %v3051 = vadd.f32 0.0, %v3050
    %v3052 = vpop.f32.mrf.mxu0
    %3053 = vmatprep.mubr.f32.mxu0 0.0
    %3054 = vmatmul.mubr.f32.gmra.mxu0 %v945
    %v3055 = vpop.f32.mrf.mxu0
    %v3056 = vadd.f32 0.0, %v3055
    %v3057 = vpop.f32.mrf.mxu0
    %3058 = vmatprep.mubr.f32.mxu0 0.0
    %3059 = vmatmul.mubr.f32.gmra.mxu0 %v946
    %v3060 = vpop.f32.mrf.mxu0
    %v3061 = vadd.f32 0.0, %v3060
    %v3062 = vpop.f32.mrf.mxu0
    %3063 = vmatprep.mubr.f32.mxu0 0.0
    %3064 = vmatmul.mubr.f32.gmra.mxu0 %v947
    %v3065 = vpop.f32.mrf.mxu0
    %v3066 = vadd.f32 0.0, %v3065
    %v3067 = vpop.f32.mrf.mxu0
    %3068 = vmatprep.mubr.f32.mxu0 0.0
    %3069 = vmatmul.mubr.f32.gmra.mxu0 %v948
    %v3070 = vpop.f32.mrf.mxu0
    %v3071 = vadd.f32 0.0, %v3070
    %v3072 = vpop.f32.mrf.mxu0
    %3073 = vmatprep.mubr.f32.mxu0 0.0
    %3074 = vmatmul.mubr.f32.gmra.mxu0 %v949
    %v3075 = vpop.f32.mrf.mxu0
    %v3076 = vadd.f32 0.0, %v3075
    %v3077 = vpop.f32.mrf.mxu0
    %3078 = vmatprep.mubr.f32.mxu0 0.0
    %3079 = vmatmul.mubr.f32.gmra.mxu0 %v950
    %v3080 = vpop.f32.mrf.mxu0
    %v3081 = vadd.f32 0.0, %v3080
    %v3082 = vpop.f32.mrf.mxu0
    %3083 = vmatprep.mubr.f32.mxu0 0.0
    %3084 = vmatmul.mubr.f32.gmra.mxu0 %v951
    %v3085 = vpop.f32.mrf.mxu0
    %v3086 = vadd.f32 0.0, %v3085
    %v3087 = vpop.f32.mrf.mxu0
    %3088 = vmatprep.mubr.f32.mxu0 0.0
    %3089 = vmatmul.mubr.f32.gmra.mxu0 %v952
    %v3090 = vpop.f32.mrf.mxu0
    %v3091 = vadd.f32 0.0, %v3090
    %v3092 = vpop.f32.mrf.mxu0
    %3093 = vmatprep.mubr.f32.mxu0 0.0
    %3094 = vmatmul.mubr.f32.gmra.mxu0 %v953
    %v3095 = vpop.f32.mrf.mxu0
    %v3096 = vadd.f32 0.0, %v3095
    %v3097 = vpop.f32.mrf.mxu0
    %3098 = vmatprep.mubr.f32.mxu0 0.0
    %3099 = vmatmul.mubr.f32.gmra.mxu0 %v954
    %v3100 = vpop.f32.mrf.mxu0
    %v3101 = vadd.f32 0.0, %v3100
    %v3102 = vpop.f32.mrf.mxu0
    %3103 = vmatprep.mubr.f32.mxu0 0.0
    %3104 = vmatmul.mubr.f32.gmra.mxu0 %v955
    %v3105 = vpop.f32.mrf.mxu0
    %v3106 = vadd.f32 0.0, %v3105
    %v3107 = vpop.f32.mrf.mxu0
    %3108 = vmatprep.mubr.f32.mxu0 0.0
    %3109 = vmatmul.mubr.f32.gmra.mxu0 %v956
    %v3110 = vpop.f32.mrf.mxu0
    %v3111 = vadd.f32 0.0, %v3110
    %v3112 = vpop.f32.mrf.mxu0
    %3113 = vmatprep.mubr.f32.mxu0 0.0
    %3114 = vmatmul.mubr.f32.gmra.mxu0 %v957
    %v3115 = vpop.f32.mrf.mxu0
    %v3116 = vadd.f32 0.0, %v3115
    %v3117 = vpop.f32.mrf.mxu0
    %3118 = vmatprep.mubr.f32.mxu0 0.0
    %3119 = vmatmul.mubr.f32.gmra.mxu0 %v958
    %v3120 = vpop.f32.mrf.mxu0
    %v3121 = vadd.f32 0.0, %v3120
    %v3122 = vpop.f32.mrf.mxu0
    %3123 = vmatprep.mubr.f32.mxu0 0.0
    %3124 = vmatmul.mubr.f32.gmra.mxu0 %v959
    %v3125 = vpop.f32.mrf.mxu0
    %v3126 = vadd.f32 0.0, %v3125
    %v3127 = vpop.f32.mrf.mxu0
    %3128 = vmatprep.mubr.f32.mxu0 0.0
    %3129 = vmatmul.mubr.f32.gmra.mxu0 %v960
    %v3130 = vpop.f32.mrf.mxu0
    %v3131 = vadd.f32 0.0, %v3130
    %v3132 = vpop.f32.mrf.mxu0
    %3133 = vmatprep.mubr.f32.mxu0 0.0
    %3134 = vmatmul.mubr.f32.gmra.mxu0 %v961
    %v3135 = vpop.f32.mrf.mxu0
    %v3136 = vadd.f32 0.0, %v3135
    %v3137 = vpop.f32.mrf.mxu0
    %3138 = vmatprep.mubr.f32.mxu0 0.0
    %3139 = vmatmul.mubr.f32.gmra.mxu0 %v962
    %v3140 = vpop.f32.mrf.mxu0
    %v3141 = vadd.f32 0.0, %v3140
    %v3142 = vpop.f32.mrf.mxu0
    %3143 = vmatprep.mubr.f32.mxu0 0.0
    %3144 = vmatmul.mubr.f32.gmra.mxu0 %v963
    %v3145 = vpop.f32.mrf.mxu0
    %v3146 = vadd.f32 0.0, %v3145
    %v3147 = vpop.f32.mrf.mxu0
    %3148 = vmatprep.mubr.f32.mxu0 0.0
    %3149 = vmatmul.mubr.f32.gmra.mxu0 %v964
    %v3150 = vpop.f32.mrf.mxu0
    %v3151 = vadd.f32 0.0, %v3150
    %v3152 = vpop.f32.mrf.mxu0
    %3153 = vmatprep.mubr.f32.mxu0 0.0
    %3154 = vmatmul.mubr.f32.gmra.mxu0 %v965
    %v3155 = vpop.f32.mrf.mxu0
    %v3156 = vadd.f32 0.0, %v3155
    %v3157 = vpop.f32.mrf.mxu0
    %3158 = vmatprep.mubr.f32.mxu0 0.0
    %3159 = vmatmul.mubr.f32.gmra.mxu0 %v966
    %v3160 = vpop.f32.mrf.mxu0
    %v3161 = vadd.f32 0.0, %v3160
    %v3162 = vpop.f32.mrf.mxu0
    %3163 = vmatprep.mubr.f32.mxu0 0.0
    %3164 = vmatmul.mubr.f32.gmra.mxu0 %v967
    %v3165 = vpop.f32.mrf.mxu0
    %v3166 = vadd.f32 0.0, %v3165
    %v3167 = vpop.f32.mrf.mxu0
    %3168 = vmatprep.mubr.f32.mxu0 0.0
    %3169 = vmatmul.mubr.f32.gmra.mxu0 %v968
    %v3170 = vpop.f32.mrf.mxu0
    %v3171 = vadd.f32 0.0, %v3170
    %v3172 = vpop.f32.mrf.mxu0
    %3173 = vmatprep.mubr.f32.mxu0 0.0
    %3174 = vmatmul.mubr.f32.gmra.mxu0 %v969
    %v3175 = vpop.f32.mrf.mxu0
    %v3176 = vadd.f32 0.0, %v3175
    %v3177 = vpop.f32.mrf.mxu0
    %3178 = vmatprep.mubr.f32.mxu0 0.0
    %3179 = vmatmul.mubr.f32.gmra.mxu0 %v970
    %v3180 = vpop.f32.mrf.mxu0
    %v3181 = vadd.f32 0.0, %v3180
    %v3182 = vpop.f32.mrf.mxu0
    %3183 = vmatprep.mubr.f32.mxu0 0.0
    %3184 = vmatmul.mubr.f32.gmra.mxu0 %v971
    %v3185 = vpop.f32.mrf.mxu0
    %v3186 = vadd.f32 0.0, %v3185
    %v3187 = vpop.f32.mrf.mxu0
    %3188 = vmatprep.mubr.f32.mxu0 0.0
    %3189 = vmatmul.mubr.f32.gmra.mxu0 %v972
    %v3190 = vpop.f32.mrf.mxu0
    %v3191 = vadd.f32 0.0, %v3190
    %v3192 = vpop.f32.mrf.mxu0
    %3193 = vmatprep.mubr.f32.mxu0 0.0
    %3194 = vmatmul.mubr.f32.gmra.mxu0 %v973
    %v3195 = vpop.f32.mrf.mxu0
    %v3196 = vadd.f32 0.0, %v3195
    %v3197 = vpop.f32.mrf.mxu0
    %3198 = vmatprep.mubr.f32.mxu0 0.0
    %3199 = vmatmul.mubr.f32.gmra.mxu0 %v974
    %v3200 = vpop.f32.mrf.mxu0
    %v3201 = vadd.f32 0.0, %v3200
    %v3202 = vpop.f32.mrf.mxu0
    %3203 = vmatprep.mubr.f32.mxu0 0.0
    %3204 = vmatmul.mubr.f32.gmra.mxu0 %v975
    %v3205 = vpop.f32.mrf.mxu0
    %v3206 = vadd.f32 0.0, %v3205
    %v3207 = vpop.f32.mrf.mxu0
    %3208 = vmatprep.mubr.f32.mxu0 0.0
    %3209 = vmatmul.mubr.f32.gmra.mxu0 %v976
    %v3210 = vpop.f32.mrf.mxu0
    %v3211 = vadd.f32 0.0, %v3210
    %v3212 = vpop.f32.mrf.mxu0
    %3213 = vmatprep.mubr.f32.mxu0 0.0
    %3214 = vmatmul.mubr.f32.gmra.mxu0 %v977
    %v3215 = vpop.f32.mrf.mxu0
    %v3216 = vadd.f32 0.0, %v3215
    %v3217 = vpop.f32.mrf.mxu0
    %3218 = vmatprep.mubr.f32.mxu0 0.0
    %3219 = vmatmul.mubr.f32.gmra.mxu0 %v978
    %v3220 = vpop.f32.mrf.mxu0
    %v3221 = vadd.f32 0.0, %v3220
    %v3222 = vpop.f32.mrf.mxu0
    %3223 = vmatprep.mubr.f32.mxu0 0.0
    %3224 = vmatmul.mubr.f32.gmra.mxu0 %v979
    %v3225 = vpop.f32.mrf.mxu0
    %v3226 = vadd.f32 0.0, %v3225
    %v3227 = vpop.f32.mrf.mxu0
    %3228 = vmatprep.mubr.f32.mxu0 0.0
    %3229 = vmatmul.mubr.f32.gmra.mxu0 %v980
    %v3230 = vpop.f32.mrf.mxu0
    %v3231 = vadd.f32 0.0, %v3230
    %v3232 = vpop.f32.mrf.mxu0
    %3233 = vmatprep.mubr.f32.mxu0 0.0
    %3234 = vmatmul.mubr.f32.gmra.mxu0 %v981
    %v3235 = vpop.f32.mrf.mxu0
    %v3236 = vadd.f32 0.0, %v3235
    %v3237 = vpop.f32.mrf.mxu0
    %3238 = vmatprep.mubr.f32.mxu0 0.0
    %3239 = vmatmul.mubr.f32.gmra.mxu0 %v982
    %v3240 = vpop.f32.mrf.mxu0
    %v3241 = vadd.f32 0.0, %v3240
    %v3242 = vpop.f32.mrf.mxu0
    %3243 = vmatprep.mubr.f32.mxu0 0.0
    %3244 = vmatmul.mubr.f32.gmra.mxu0 %v983
    %v3245 = vpop.f32.mrf.mxu0
    %v3246 = vadd.f32 0.0, %v3245
    %v3247 = vpop.f32.mrf.mxu0
    %3248 = vmatprep.mubr.f32.mxu0 0.0
    %3249 = vmatmul.mubr.f32.gmra.mxu0 %v984
    %v3250 = vpop.f32.mrf.mxu0
    %v3251 = vadd.f32 0.0, %v3250
    %v3252 = vpop.f32.mrf.mxu0
    %3253 = vmatprep.mubr.f32.mxu0 0.0
    %3254 = vmatmul.mubr.f32.gmra.mxu0 %v985
    %v3255 = vpop.f32.mrf.mxu0
    %v3256 = vadd.f32 0.0, %v3255
    %v3257 = vpop.f32.mrf.mxu0
    %3258 = vmatprep.mubr.f32.mxu0 0.0
    %3259 = vmatmul.mubr.f32.gmra.mxu0 %v986
    %v3260 = vpop.f32.mrf.mxu0
    %v3261 = vadd.f32 0.0, %v3260
    %v3262 = vpop.f32.mrf.mxu0
    %3263 = vmatprep.mubr.f32.mxu0 0.0
    %3264 = vmatmul.mubr.f32.gmra.mxu0 %v987
    %v3265 = vpop.f32.mrf.mxu0
    %v3266 = vadd.f32 0.0, %v3265
    %v3267 = vpop.f32.mrf.mxu0
    %3268 = vmatprep.mubr.f32.mxu0 0.0
    %3269 = vmatmul.mubr.f32.gmra.mxu0 %v988
    %v3270 = vpop.f32.mrf.mxu0
    %v3271 = vadd.f32 0.0, %v3270
    %v3272 = vpop.f32.mrf.mxu0
    %3273 = vmatprep.mubr.f32.mxu0 0.0
    %3274 = vmatmul.mubr.f32.gmra.mxu0 %v989
    %v3275 = vpop.f32.mrf.mxu0
    %v3276 = vadd.f32 0.0, %v3275
    %v3277 = vpop.f32.mrf.mxu0
    %3278 = vmatprep.mubr.f32.mxu0 0.0
    %3279 = vmatmul.mubr.f32.gmra.mxu0 %v990
    %v3280 = vpop.f32.mrf.mxu0
    %v3281 = vadd.f32 0.0, %v3280
    %v3282 = vpop.f32.mrf.mxu0
    %3283 = vmatprep.mubr.f32.mxu0 0.0
    %3284 = vmatmul.mubr.f32.gmra.mxu0 %v991
    %v3285 = vpop.f32.mrf.mxu0
    %v3286 = vadd.f32 0.0, %v3285
    %v3287 = vpop.f32.mrf.mxu0
    %3288 = vmatprep.mubr.f32.mxu0 0.0
    %3289 = vmatmul.mubr.f32.gmra.mxu0 %v992
    %v3290 = vpop.f32.mrf.mxu0
    %v3291 = vadd.f32 0.0, %v3290
    %v3292 = vpop.f32.mrf.mxu0
    %3293 = vmatprep.mubr.f32.mxu0 0.0
    %3294 = vmatmul.mubr.f32.gmra.mxu0 %v993
    %v3295 = vpop.f32.mrf.mxu0
    %v3296 = vadd.f32 0.0, %v3295
    %v3297 = vpop.f32.mrf.mxu0
    %3298 = vmatprep.mubr.f32.mxu0 0.0
    %3299 = vmatmul.mubr.f32.gmra.mxu0 %v994
    %v3300 = vpop.f32.mrf.mxu0
    %v3301 = vadd.f32 0.0, %v3300
    %v3302 = vpop.f32.mrf.mxu0
    %3303 = vmatprep.mubr.f32.mxu0 0.0
    %3304 = vmatmul.mubr.f32.gmra.mxu0 %v995
    %v3305 = vpop.f32.mrf.mxu0
    %v3306 = vadd.f32 0.0, %v3305
    %v3307 = vpop.f32.mrf.mxu0
    %3308 = vmatprep.mubr.f32.mxu0 0.0
    %3309 = vmatmul.mubr.f32.gmra.mxu0 %v996
    %v3310 = vpop.f32.mrf.mxu0
    %v3311 = vadd.f32 0.0, %v3310
    %v3312 = vpop.f32.mrf.mxu0
    %3313 = vmatprep.mubr.f32.mxu0 0.0
    %3314 = vmatmul.mubr.f32.gmra.mxu0 %v997
    %v3315 = vpop.f32.mrf.mxu0
    %v3316 = vadd.f32 0.0, %v3315
    %v3317 = vpop.f32.mrf.mxu0
    %3318 = vmatprep.mubr.f32.mxu0 0.0
    %3319 = vmatmul.mubr.f32.gmra.mxu0 %v998
    %v3320 = vpop.f32.mrf.mxu0
    %v3321 = vadd.f32 0.0, %v3320
    %v3322 = vpop.f32.mrf.mxu0
    %3323 = vdwg.mxu0
    %v3324 = vld [vmem:[%s5] sm:$0xff]
    %v3325 = vld [vmem:[%s5 + $0x8] sm:$0xff]
    %v3326 = vld [vmem:[%s5 + $0x10] sm:$0xff]
    %v3327 = vld [vmem:[%s5 + $0x18] sm:$0xff]
    %v3328 = vld [vmem:[%s5 + $0x20] sm:$0xff]
    %v3329 = vld [vmem:[%s5 + $0x28] sm:$0xff]
    %v3330 = vld [vmem:[%s5 + $0x30] sm:$0xff]
    %v3331 = vld [vmem:[%s5 + $0x38] sm:$0xff]
    %v3332 = vld [vmem:[%s5 + $0x40] sm:$0xff]
    %v3333 = vld [vmem:[%s5 + $0x48] sm:$0xff]
    %v3334 = vld [vmem:[%s5 + $0x50] sm:$0xff]
    %v3335 = vld [vmem:[%s5 + $0x58] sm:$0xff]
    %v3336 = vld [vmem:[%s5 + $0x60] sm:$0xff]
    %v3337 = vld [vmem:[%s5 + $0x68] sm:$0xff]
    %v3338 = vld [vmem:[%s5 + $0x70] sm:$0xff]
    %v3339 = vld [vmem:[%s5 + $0x78] sm:$0xff]
    %v3340 = vld [vmem:[%s5 + $0x80] sm:$0xff]
    %v3341 = vld [vmem:[%s5 + $0x88] sm:$0xff]
    %v3342 = vld [vmem:[%s5 + $0x90] sm:$0xff]
    %v3343 = vld [vmem:[%s5 + $0x98] sm:$0xff]
    %v3344 = vld [vmem:[%s5 + $0xa0] sm:$0xff]
    %v3345 = vld [vmem:[%s5 + $0xa8] sm:$0xff]
    %v3346 = vld [vmem:[%s5 + $0xb0] sm:$0xff]
    %v3347 = vld [vmem:[%s5 + $0xb8] sm:$0xff]
    %v3348 = vld [vmem:[%s5 + $0xc0] sm:$0xff]
    %v3349 = vld [vmem:[%s5 + $0xc8] sm:$0xff]
    %v3350 = vld [vmem:[%s5 + $0xd0] sm:$0xff]
    %v3351 = vld [vmem:[%s5 + $0xd8] sm:$0xff]
    %v3352 = vld [vmem:[%s5 + $0xe0] sm:$0xff]
    %v3353 = vld [vmem:[%s5 + $0xe8] sm:$0xff]
    %v3354 = vld [vmem:[%s5 + $0xf0] sm:$0xff]
    %v3355 = vld [vmem:[%s5 + $0xf8] sm:$0xff]
    %v3356 = vld [vmem:[%s5 + $0x100] sm:$0xff]
    %v3357 = vld [vmem:[%s5 + $0x108] sm:$0xff]
    %v3358 = vld [vmem:[%s5 + $0x110] sm:$0xff]
    %v3359 = vld [vmem:[%s5 + $0x118] sm:$0xff]
    %v3360 = vld [vmem:[%s5 + $0x120] sm:$0xff]
    %v3361 = vld [vmem:[%s5 + $0x128] sm:$0xff]
    %v3362 = vld [vmem:[%s5 + $0x130] sm:$0xff]
    %v3363 = vld [vmem:[%s5 + $0x138] sm:$0xff]
    %v3364 = vld [vmem:[%s5 + $0x140] sm:$0xff]
    %v3365 = vld [vmem:[%s5 + $0x148] sm:$0xff]
    %v3366 = vld [vmem:[%s5 + $0x150] sm:$0xff]
    %v3367 = vld [vmem:[%s5 + $0x158] sm:$0xff]
    %v3368 = vld [vmem:[%s5 + $0x160] sm:$0xff]
    %v3369 = vld [vmem:[%s5 + $0x168] sm:$0xff]
    %v3370 = vld [vmem:[%s5 + $0x170] sm:$0xff]
    %v3371 = vld [vmem:[%s5 + $0x178] sm:$0xff]
    %v3372 = vld [vmem:[%s5 + $0x180] sm:$0xff]
    %v3373 = vld [vmem:[%s5 + $0x188] sm:$0xff]
    %v3374 = vld [vmem:[%s5 + $0x190] sm:$0xff]
    %v3375 = vld [vmem:[%s5 + $0x198] sm:$0xff]
    %v3376 = vld [vmem:[%s5 + $0x1a0] sm:$0xff]
    %v3377 = vld [vmem:[%s5 + $0x1a8] sm:$0xff]
    %v3378 = vld [vmem:[%s5 + $0x1b0] sm:$0xff]
    %v3379 = vld [vmem:[%s5 + $0x1b8] sm:$0xff]
    %v3380 = vld [vmem:[%s5 + $0x1c0] sm:$0xff]
    %v3381 = vld [vmem:[%s5 + $0x1c8] sm:$0xff]
    %v3382 = vld [vmem:[%s5 + $0x1d0] sm:$0xff]
    %v3383 = vld [vmem:[%s5 + $0x1d8] sm:$0xff]
    %v3384 = vld [vmem:[%s5 + $0x1e0] sm:$0xff]
    %v3385 = vld [vmem:[%s5 + $0x1e8] sm:$0xff]
    %v3386 = vld [vmem:[%s5 + $0x1f0] sm:$0xff]
    %v3387 = vld [vmem:[%s5 + $0x1f8] sm:$0xff]
    %s3388 = scalar_lea.vmem %s5, 512
    %v3389 = vld [vmem:[%s3388] sm:$0xff]
    %v3390 = vld [vmem:[%s3388 + $0x8] sm:$0xff]
    %v3391 = vld [vmem:[%s3388 + $0x10] sm:$0xff]
    %v3392 = vld [vmem:[%s3388 + $0x18] sm:$0xff]
    %v3393 = vld [vmem:[%s3388 + $0x20] sm:$0xff]
    %v3394 = vld [vmem:[%s3388 + $0x28] sm:$0xff]
    %v3395 = vld [vmem:[%s3388 + $0x30] sm:$0xff]
    %v3396 = vld [vmem:[%s3388 + $0x38] sm:$0xff]
    %v3397 = vld [vmem:[%s3388 + $0x40] sm:$0xff]
    %v3398 = vld [vmem:[%s3388 + $0x48] sm:$0xff]
    %v3399 = vld [vmem:[%s3388 + $0x50] sm:$0xff]
    %v3400 = vld [vmem:[%s3388 + $0x58] sm:$0xff]
    %v3401 = vld [vmem:[%s3388 + $0x60] sm:$0xff]
    %v3402 = vld [vmem:[%s3388 + $0x68] sm:$0xff]
    %v3403 = vld [vmem:[%s3388 + $0x70] sm:$0xff]
    %v3404 = vld [vmem:[%s3388 + $0x78] sm:$0xff]
    %v3405 = vld [vmem:[%s3388 + $0x80] sm:$0xff]
    %v3406 = vld [vmem:[%s3388 + $0x88] sm:$0xff]
    %v3407 = vld [vmem:[%s3388 + $0x90] sm:$0xff]
    %v3408 = vld [vmem:[%s3388 + $0x98] sm:$0xff]
    %v3409 = vld [vmem:[%s3388 + $0xa0] sm:$0xff]
    %v3410 = vld [vmem:[%s3388 + $0xa8] sm:$0xff]
    %v3411 = vld [vmem:[%s3388 + $0xb0] sm:$0xff]
    %v3412 = vld [vmem:[%s3388 + $0xb8] sm:$0xff]
    %v3413 = vld [vmem:[%s3388 + $0xc0] sm:$0xff]
    %v3414 = vld [vmem:[%s3388 + $0xc8] sm:$0xff]
    %v3415 = vld [vmem:[%s3388 + $0xd0] sm:$0xff]
    %v3416 = vld [vmem:[%s3388 + $0xd8] sm:$0xff]
    %v3417 = vld [vmem:[%s3388 + $0xe0] sm:$0xff]
    %v3418 = vld [vmem:[%s3388 + $0xe8] sm:$0xff]
    %v3419 = vld [vmem:[%s3388 + $0xf0] sm:$0xff]
    %v3420 = vld [vmem:[%s3388 + $0xf8] sm:$0xff]
    %v3421 = vld [vmem:[%s3388 + $0x100] sm:$0xff]
    %v3422 = vld [vmem:[%s3388 + $0x108] sm:$0xff]
    %v3423 = vld [vmem:[%s3388 + $0x110] sm:$0xff]
    %v3424 = vld [vmem:[%s3388 + $0x118] sm:$0xff]
    %v3425 = vld [vmem:[%s3388 + $0x120] sm:$0xff]
    %v3426 = vld [vmem:[%s3388 + $0x128] sm:$0xff]
    %v3427 = vld [vmem:[%s3388 + $0x130] sm:$0xff]
    %v3428 = vld [vmem:[%s3388 + $0x138] sm:$0xff]
    %v3429 = vld [vmem:[%s3388 + $0x140] sm:$0xff]
    %v3430 = vld [vmem:[%s3388 + $0x148] sm:$0xff]
    %v3431 = vld [vmem:[%s3388 + $0x150] sm:$0xff]
    %v3432 = vld [vmem:[%s3388 + $0x158] sm:$0xff]
    %v3433 = vld [vmem:[%s3388 + $0x160] sm:$0xff]
    %v3434 = vld [vmem:[%s3388 + $0x168] sm:$0xff]
    %v3435 = vld [vmem:[%s3388 + $0x170] sm:$0xff]
    %v3436 = vld [vmem:[%s3388 + $0x178] sm:$0xff]
    %v3437 = vld [vmem:[%s3388 + $0x180] sm:$0xff]
    %v3438 = vld [vmem:[%s3388 + $0x188] sm:$0xff]
    %v3439 = vld [vmem:[%s3388 + $0x190] sm:$0xff]
    %v3440 = vld [vmem:[%s3388 + $0x198] sm:$0xff]
    %v3441 = vld [vmem:[%s3388 + $0x1a0] sm:$0xff]
    %v3442 = vld [vmem:[%s3388 + $0x1a8] sm:$0xff]
    %v3443 = vld [vmem:[%s3388 + $0x1b0] sm:$0xff]
    %v3444 = vld [vmem:[%s3388 + $0x1b8] sm:$0xff]
    %v3445 = vld [vmem:[%s3388 + $0x1c0] sm:$0xff]
    %v3446 = vld [vmem:[%s3388 + $0x1c8] sm:$0xff]
    %v3447 = vld [vmem:[%s3388 + $0x1d0] sm:$0xff]
    %v3448 = vld [vmem:[%s3388 + $0x1d8] sm:$0xff]
    %v3449 = vld [vmem:[%s3388 + $0x1e0] sm:$0xff]
    %v3450 = vld [vmem:[%s3388 + $0x1e8] sm:$0xff]
    %v3451 = vld [vmem:[%s3388 + $0x1f0] sm:$0xff]
    %v3452 = vld [vmem:[%s3388 + $0x1f8] sm:$0xff]
    %3453 = vmatprep.subr.mxu0 0.0
    %3454 = vmatpush1.msra.mxu0 %v1302
    %3455 = vmatprep.subr.mxu0 0.0
    %3456 = vmatpush1.msra.mxu0 %v1296
    %3457 = vmatprep.subr.mxu0 0.0
    %3458 = vmatpush1.msra.mxu0 %v1290
    %3459 = vmatprep.subr.mxu0 0.0
    %3460 = vmatpush1.msra.mxu0 %v1284
    %3461 = vmatprep.subr.mxu0 0.0
    %3462 = vmatpush1.msra.mxu0 %v1278
    %3463 = vmatprep.subr.mxu0 0.0
    %3464 = vmatpush1.msra.mxu0 %v1272
    %3465 = vmatprep.subr.mxu0 0.0
    %3466 = vmatpush1.msra.mxu0 %v1266
    %3467 = vmatprep.subr.mxu0 0.0
    %3468 = vmatpush1.msra.mxu0 %v1260
    %3469 = vmatprep.subr.mxu0 0.0
    %3470 = vmatpush1.msra.mxu0 %v1254
    %3471 = vmatprep.subr.mxu0 0.0
    %3472 = vmatpush1.msra.mxu0 %v1248
    %3473 = vmatprep.subr.mxu0 0.0
    %3474 = vmatpush1.msra.mxu0 %v1242
    %3475 = vmatprep.subr.mxu0 0.0
    %3476 = vmatpush1.msra.mxu0 %v1236
    %3477 = vmatprep.subr.mxu0 0.0
    %3478 = vmatpush1.msra.mxu0 %v1230
    %3479 = vmatprep.subr.mxu0 0.0
    %3480 = vmatpush1.msra.mxu0 %v1224
    %3481 = vmatprep.subr.mxu0 0.0
    %3482 = vmatpush1.msra.mxu0 %v1218
    %3483 = vmatprep.subr.mxu0 0.0
    %3484 = vmatpush1.msra.mxu0 %v1212
    %3485 = vmatprep.subr.mxu0 0.0
    %3486 = vmatpush2.msra.mxu0 %v1398
    %3487 = vmatprep.subr.mxu0 0.0
    %3488 = vmatpush2.msra.mxu0 %v1392
    %3489 = vmatprep.subr.mxu0 0.0
    %3490 = vmatpush2.msra.mxu0 %v1386
    %3491 = vmatprep.subr.mxu0 0.0
    %3492 = vmatpush2.msra.mxu0 %v1380
    %3493 = vmatprep.subr.mxu0 0.0
    %3494 = vmatpush2.msra.mxu0 %v1374
    %3495 = vmatprep.subr.mxu0 0.0
    %3496 = vmatpush2.msra.mxu0 %v1368
    %3497 = vmatprep.subr.mxu0 0.0
    %3498 = vmatpush2.msra.mxu0 %v1362
    %3499 = vmatprep.subr.mxu0 0.0
    %3500 = vmatpush2.msra.mxu0 %v1356
    %3501 = vmatprep.subr.mxu0 0.0
    %3502 = vmatpush2.msra.mxu0 %v1350
    %3503 = vmatprep.subr.mxu0 0.0
    %3504 = vmatpush2.msra.mxu0 %v1344
    %3505 = vmatprep.subr.mxu0 0.0
    %3506 = vmatpush2.msra.mxu0 %v1338
    %3507 = vmatprep.subr.mxu0 0.0
    %3508 = vmatpush2.msra.mxu0 %v1332
    %3509 = vmatprep.subr.mxu0 0.0
    %3510 = vmatpush2.msra.mxu0 %v1326
    %3511 = vmatprep.subr.mxu0 0.0
    %3512 = vmatpush2.msra.mxu0 %v1320
    %3513 = vmatprep.subr.mxu0 0.0
    %3514 = vmatpush2.msra.mxu0 %v1314
    %3515 = vmatprep.subr.mxu0 0.0
    %3516 = vmatpush2.msra.mxu0 %v1308
    %3517 = vmatprep.mubr.f32.mxu0 %v3390
    %3518 = vmatmul.mubr.f32.gmra.mxu0 %v3389
    %v3519 = vpop.f32.mrf.mxu0
    %v3520 = vadd.f32 0.0, %v3519
    %v3521 = vpop.f32.mrf.mxu0
    %3522 = vmatprep.mubr.f32.mxu0 %v3394
    %3523 = vmatmul.mubr.f32.gmra.mxu0 %v3393
    %v3524 = vpop.f32.mrf.mxu0
    %v3525 = vadd.f32 0.0, %v3524
    %v3526 = vpop.f32.mrf.mxu0
    %3527 = vmatprep.mubr.f32.mxu0 %v3398
    %3528 = vmatmul.mubr.f32.gmra.mxu0 %v3397
    %v3529 = vpop.f32.mrf.mxu0
    %v3530 = vadd.f32 0.0, %v3529
    %v3531 = vpop.f32.mrf.mxu0
    %3532 = vmatprep.mubr.f32.mxu0 %v3402
    %3533 = vmatmul.mubr.f32.gmra.mxu0 %v3401
    %v3534 = vpop.f32.mrf.mxu0
    %v3535 = vadd.f32 0.0, %v3534
    %v3536 = vpop.f32.mrf.mxu0
    %3537 = vmatprep.mubr.f32.mxu0 %v3406
    %3538 = vmatmul.mubr.f32.gmra.mxu0 %v3405
    %v3539 = vpop.f32.mrf.mxu0
    %v3540 = vadd.f32 0.0, %v3539
    %v3541 = vpop.f32.mrf.mxu0
    %3542 = vmatprep.mubr.f32.mxu0 %v3410
    %3543 = vmatmul.mubr.f32.gmra.mxu0 %v3409
    %v3544 = vpop.f32.mrf.mxu0
    %v3545 = vadd.f32 0.0, %v3544
    %v3546 = vpop.f32.mrf.mxu0
    %3547 = vmatprep.mubr.f32.mxu0 %v3414
    %3548 = vmatmul.mubr.f32.gmra.mxu0 %v3413
    %v3549 = vpop.f32.mrf.mxu0
    %v3550 = vadd.f32 0.0, %v3549
    %v3551 = vpop.f32.mrf.mxu0
    %3552 = vmatprep.mubr.f32.mxu0 %v3418
    %3553 = vmatmul.mubr.f32.gmra.mxu0 %v3417
    %v3554 = vpop.f32.mrf.mxu0
    %v3555 = vadd.f32 0.0, %v3554
    %v3556 = vpop.f32.mrf.mxu0
    %3557 = vmatprep.mubr.f32.mxu0 %v3422
    %3558 = vmatmul.mubr.f32.gmra.mxu0 %v3421
    %v3559 = vpop.f32.mrf.mxu0
    %v3560 = vadd.f32 0.0, %v3559
    %v3561 = vpop.f32.mrf.mxu0
    %3562 = vmatprep.mubr.f32.mxu0 %v3426
    %3563 = vmatmul.mubr.f32.gmra.mxu0 %v3425
    %v3564 = vpop.f32.mrf.mxu0
    %v3565 = vadd.f32 0.0, %v3564
    %v3566 = vpop.f32.mrf.mxu0
    %3567 = vmatprep.mubr.f32.mxu0 %v3430
    %3568 = vmatmul.mubr.f32.gmra.mxu0 %v3429
    %v3569 = vpop.f32.mrf.mxu0
    %v3570 = vadd.f32 0.0, %v3569
    %v3571 = vpop.f32.mrf.mxu0
    %3572 = vmatprep.mubr.f32.mxu0 %v3434
    %3573 = vmatmul.mubr.f32.gmra.mxu0 %v3433
    %v3574 = vpop.f32.mrf.mxu0
    %v3575 = vadd.f32 0.0, %v3574
    %v3576 = vpop.f32.mrf.mxu0
    %3577 = vmatprep.mubr.f32.mxu0 %v3438
    %3578 = vmatmul.mubr.f32.gmra.mxu0 %v3437
    %v3579 = vpop.f32.mrf.mxu0
    %v3580 = vadd.f32 0.0, %v3579
    %v3581 = vpop.f32.mrf.mxu0
    %3582 = vmatprep.mubr.f32.mxu0 %v3442
    %3583 = vmatmul.mubr.f32.gmra.mxu0 %v3441
    %v3584 = vpop.f32.mrf.mxu0
    %v3585 = vadd.f32 0.0, %v3584
    %v3586 = vpop.f32.mrf.mxu0
    %3587 = vmatprep.mubr.f32.mxu0 %v3446
    %3588 = vmatmul.mubr.f32.gmra.mxu0 %v3445
    %v3589 = vpop.f32.mrf.mxu0
    %v3590 = vadd.f32 0.0, %v3589
    %v3591 = vpop.f32.mrf.mxu0
    %3592 = vmatprep.mubr.f32.mxu0 %v3450
    %3593 = vmatmul.mubr.f32.gmra.mxu0 %v3449
    %v3594 = vpop.f32.mrf.mxu0
    %v3595 = vadd.f32 0.0, %v3594
    %v3596 = vpop.f32.mrf.mxu0
    %3597 = vdwg.mxu0
    %3598 = vmatprep.subr.mxu0 0.0
    %3599 = vmatpush1.msra.mxu0 %v1494
    %3600 = vmatprep.subr.mxu0 0.0
    %3601 = vmatpush1.msra.mxu0 %v1488
    %3602 = vmatprep.subr.mxu0 0.0
    %3603 = vmatpush1.msra.mxu0 %v1482
    %3604 = vmatprep.subr.mxu0 0.0
    %3605 = vmatpush1.msra.mxu0 %v1476
    %3606 = vmatprep.subr.mxu0 0.0
    %3607 = vmatpush1.msra.mxu0 %v1470
    %3608 = vmatprep.subr.mxu0 0.0
    %3609 = vmatpush1.msra.mxu0 %v1464
    %3610 = vmatprep.subr.mxu0 0.0
    %3611 = vmatpush1.msra.mxu0 %v1458
    %3612 = vmatprep.subr.mxu0 0.0
    %3613 = vmatpush1.msra.mxu0 %v1452
    %3614 = vmatprep.subr.mxu0 0.0
    %3615 = vmatpush1.msra.mxu0 %v1446
    %3616 = vmatprep.subr.mxu0 0.0
    %3617 = vmatpush1.msra.mxu0 %v1440
    %3618 = vmatprep.subr.mxu0 0.0
    %3619 = vmatpush1.msra.mxu0 %v1434
    %3620 = vmatprep.subr.mxu0 0.0
    %3621 = vmatpush1.msra.mxu0 %v1428
    %3622 = vmatprep.subr.mxu0 0.0
    %3623 = vmatpush1.msra.mxu0 %v1422
    %3624 = vmatprep.subr.mxu0 0.0
    %3625 = vmatpush1.msra.mxu0 %v1416
    %3626 = vmatprep.subr.mxu0 0.0
    %3627 = vmatpush1.msra.mxu0 %v1410
    %3628 = vmatprep.subr.mxu0 0.0
    %3629 = vmatpush1.msra.mxu0 %v1404
    %3630 = vmatprep.subr.mxu0 0.0
    %3631 = vmatpush2.msra.mxu0 %v1590
    %3632 = vmatprep.subr.mxu0 0.0
    %3633 = vmatpush2.msra.mxu0 %v1584
    %3634 = vmatprep.subr.mxu0 0.0
    %3635 = vmatpush2.msra.mxu0 %v1578
    %3636 = vmatprep.subr.mxu0 0.0
    %3637 = vmatpush2.msra.mxu0 %v1572
    %3638 = vmatprep.subr.mxu0 0.0
    %3639 = vmatpush2.msra.mxu0 %v1566
    %3640 = vmatprep.subr.mxu0 0.0
    %3641 = vmatpush2.msra.mxu0 %v1560
    %3642 = vmatprep.subr.mxu0 0.0
    %3643 = vmatpush2.msra.mxu0 %v1554
    %3644 = vmatprep.subr.mxu0 0.0
    %3645 = vmatpush2.msra.mxu0 %v1548
    %3646 = vmatprep.subr.mxu0 0.0
    %3647 = vmatpush2.msra.mxu0 %v1542
    %3648 = vmatprep.subr.mxu0 0.0
    %3649 = vmatpush2.msra.mxu0 %v1536
    %3650 = vmatprep.subr.mxu0 0.0
    %3651 = vmatpush2.msra.mxu0 %v1530
    %3652 = vmatprep.subr.mxu0 0.0
    %3653 = vmatpush2.msra.mxu0 %v1524
    %3654 = vmatprep.subr.mxu0 0.0
    %3655 = vmatpush2.msra.mxu0 %v1518
    %3656 = vmatprep.subr.mxu0 0.0
    %3657 = vmatpush2.msra.mxu0 %v1512
    %3658 = vmatprep.subr.mxu0 0.0
    %3659 = vmatpush2.msra.mxu0 %v1506
    %3660 = vmatprep.subr.mxu0 0.0
    %3661 = vmatpush2.msra.mxu0 %v1500
    %3662 = vmatprep.mubr.f32.mxu0 %v3392
    %3663 = vmatmul.mubr.f32.gmra.mxu0 %v3391
    %v3664 = vpop.f32.mrf.mxu0
    %v3665 = vadd.f32 %v3520, %v3664
    %v3666 = vpop.f32.mrf.mxu0
    %3667 = vmatprep.mubr.f32.mxu0 %v3396
    %3668 = vmatmul.mubr.f32.gmra.mxu0 %v3395
    %v3669 = vpop.f32.mrf.mxu0
    %v3670 = vadd.f32 %v3525, %v3669
    %v3671 = vpop.f32.mrf.mxu0
    %3672 = vmatprep.mubr.f32.mxu0 %v3400
    %3673 = vmatmul.mubr.f32.gmra.mxu0 %v3399
    %v3674 = vpop.f32.mrf.mxu0
    %v3675 = vadd.f32 %v3530, %v3674
    %v3676 = vpop.f32.mrf.mxu0
    %3677 = vmatprep.mubr.f32.mxu0 %v3404
    %3678 = vmatmul.mubr.f32.gmra.mxu0 %v3403
    %v3679 = vpop.f32.mrf.mxu0
    %v3680 = vadd.f32 %v3535, %v3679
    %v3681 = vpop.f32.mrf.mxu0
    %3682 = vmatprep.mubr.f32.mxu0 %v3408
    %3683 = vmatmul.mubr.f32.gmra.mxu0 %v3407
    %v3684 = vpop.f32.mrf.mxu0
    %v3685 = vadd.f32 %v3540, %v3684
    %v3686 = vpop.f32.mrf.mxu0
    %3687 = vmatprep.mubr.f32.mxu0 %v3412
    %3688 = vmatmul.mubr.f32.gmra.mxu0 %v3411
    %v3689 = vpop.f32.mrf.mxu0
    %v3690 = vadd.f32 %v3545, %v3689
    %v3691 = vpop.f32.mrf.mxu0
    %3692 = vmatprep.mubr.f32.mxu0 %v3416
    %3693 = vmatmul.mubr.f32.gmra.mxu0 %v3415
    %v3694 = vpop.f32.mrf.mxu0
    %v3695 = vadd.f32 %v3550, %v3694
    %v3696 = vpop.f32.mrf.mxu0
    %3697 = vmatprep.mubr.f32.mxu0 %v3420
    %3698 = vmatmul.mubr.f32.gmra.mxu0 %v3419
    %v3699 = vpop.f32.mrf.mxu0
    %v3700 = vadd.f32 %v3555, %v3699
    %v3701 = vpop.f32.mrf.mxu0
    %3702 = vmatprep.mubr.f32.mxu0 %v3424
    %3703 = vmatmul.mubr.f32.gmra.mxu0 %v3423
    %v3704 = vpop.f32.mrf.mxu0
    %v3705 = vadd.f32 %v3560, %v3704
    %v3706 = vpop.f32.mrf.mxu0
    %3707 = vmatprep.mubr.f32.mxu0 %v3428
    %3708 = vmatmul.mubr.f32.gmra.mxu0 %v3427
    %v3709 = vpop.f32.mrf.mxu0
    %v3710 = vadd.f32 %v3565, %v3709
    %v3711 = vpop.f32.mrf.mxu0
    %3712 = vmatprep.mubr.f32.mxu0 %v3432
    %3713 = vmatmul.mubr.f32.gmra.mxu0 %v3431
    %v3714 = vpop.f32.mrf.mxu0
    %v3715 = vadd.f32 %v3570, %v3714
    %v3716 = vpop.f32.mrf.mxu0
    %3717 = vmatprep.mubr.f32.mxu0 %v3436
    %3718 = vmatmul.mubr.f32.gmra.mxu0 %v3435
    %v3719 = vpop.f32.mrf.mxu0
    %v3720 = vadd.f32 %v3575, %v3719
    %v3721 = vpop.f32.mrf.mxu0
    %3722 = vmatprep.mubr.f32.mxu0 %v3440
    %3723 = vmatmul.mubr.f32.gmra.mxu0 %v3439
    %v3724 = vpop.f32.mrf.mxu0
    %v3725 = vadd.f32 %v3580, %v3724
    %v3726 = vpop.f32.mrf.mxu0
    %3727 = vmatprep.mubr.f32.mxu0 %v3444
    %3728 = vmatmul.mubr.f32.gmra.mxu0 %v3443
    %v3729 = vpop.f32.mrf.mxu0
    %v3730 = vadd.f32 %v3585, %v3729
    %v3731 = vpop.f32.mrf.mxu0
    %3732 = vmatprep.mubr.f32.mxu0 %v3448
    %3733 = vmatmul.mubr.f32.gmra.mxu0 %v3447
    %v3734 = vpop.f32.mrf.mxu0
    %v3735 = vadd.f32 %v3590, %v3734
    %v3736 = vpop.f32.mrf.mxu0
    %3737 = vmatprep.mubr.f32.mxu0 %v3452
    %3738 = vmatmul.mubr.f32.gmra.mxu0 %v3451
    %v3739 = vpop.f32.mrf.mxu0
    %v3740 = vadd.f32 %v3595, %v3739
    %v3741 = vpop.f32.mrf.mxu0
    %3742 = vdwg.mxu0
    %3743 = vmatprep.subr.mxu0 0.0
    %3744 = vmatpush1.msra.mxu0 %v1300
    %3745 = vmatprep.subr.mxu0 0.0
    %3746 = vmatpush1.msra.mxu0 %v1294
    %3747 = vmatprep.subr.mxu0 0.0
    %3748 = vmatpush1.msra.mxu0 %v1288
    %3749 = vmatprep.subr.mxu0 0.0
    %3750 = vmatpush1.msra.mxu0 %v1282
    %3751 = vmatprep.subr.mxu0 0.0
    %3752 = vmatpush1.msra.mxu0 %v1276
    %3753 = vmatprep.subr.mxu0 0.0
    %3754 = vmatpush1.msra.mxu0 %v1270
    %3755 = vmatprep.subr.mxu0 0.0
    %3756 = vmatpush1.msra.mxu0 %v1264
    %3757 = vmatprep.subr.mxu0 0.0
    %3758 = vmatpush1.msra.mxu0 %v1258
    %3759 = vmatprep.subr.mxu0 0.0
    %3760 = vmatpush1.msra.mxu0 %v1252
    %3761 = vmatprep.subr.mxu0 0.0
    %3762 = vmatpush1.msra.mxu0 %v1246
    %3763 = vmatprep.subr.mxu0 0.0
    %3764 = vmatpush1.msra.mxu0 %v1240
    %3765 = vmatprep.subr.mxu0 0.0
    %3766 = vmatpush1.msra.mxu0 %v1234
    %3767 = vmatprep.subr.mxu0 0.0
    %3768 = vmatpush1.msra.mxu0 %v1228
    %3769 = vmatprep.subr.mxu0 0.0
    %3770 = vmatpush1.msra.mxu0 %v1222
    %3771 = vmatprep.subr.mxu0 0.0
    %3772 = vmatpush1.msra.mxu0 %v1216
    %3773 = vmatprep.subr.mxu0 0.0
    %3774 = vmatpush1.msra.mxu0 %v1210
    %3775 = vmatprep.subr.mxu0 0.0
    %3776 = vmatpush2.msra.mxu0 %v1396
    %3777 = vmatprep.subr.mxu0 0.0
    %3778 = vmatpush2.msra.mxu0 %v1390
    %3779 = vmatprep.subr.mxu0 0.0
    %3780 = vmatpush2.msra.mxu0 %v1384
    %3781 = vmatprep.subr.mxu0 0.0
    %3782 = vmatpush2.msra.mxu0 %v1378
    %3783 = vmatprep.subr.mxu0 0.0
    %3784 = vmatpush2.msra.mxu0 %v1372
    %3785 = vmatprep.subr.mxu0 0.0
    %3786 = vmatpush2.msra.mxu0 %v1366
    %3787 = vmatprep.subr.mxu0 0.0
    %3788 = vmatpush2.msra.mxu0 %v1360
    %3789 = vmatprep.subr.mxu0 0.0
    %3790 = vmatpush2.msra.mxu0 %v1354
    %3791 = vmatprep.subr.mxu0 0.0
    %3792 = vmatpush2.msra.mxu0 %v1348
    %3793 = vmatprep.subr.mxu0 0.0
    %3794 = vmatpush2.msra.mxu0 %v1342
    %3795 = vmatprep.subr.mxu0 0.0
    %3796 = vmatpush2.msra.mxu0 %v1336
    %3797 = vmatprep.subr.mxu0 0.0
    %3798 = vmatpush2.msra.mxu0 %v1330
    %3799 = vmatprep.subr.mxu0 0.0
    %3800 = vmatpush2.msra.mxu0 %v1324
    %3801 = vmatprep.subr.mxu0 0.0
    %3802 = vmatpush2.msra.mxu0 %v1318
    %3803 = vmatprep.subr.mxu0 0.0
    %3804 = vmatpush2.msra.mxu0 %v1312
    %3805 = vmatprep.subr.mxu0 0.0
    %3806 = vmatpush2.msra.mxu0 %v1306
    %3807 = vmatprep.mubr.f32.mxu0 %v3325
    %3808 = vmatmul.mubr.f32.gmra.mxu0 %v3324
    %v3809 = vpop.f32.mrf.mxu0
    %v3810 = vadd.f32 %v3665, %v3809
    %v3811 = vpop.f32.mrf.mxu0
    %3812 = vmatprep.mubr.f32.mxu0 %v3329
    %3813 = vmatmul.mubr.f32.gmra.mxu0 %v3328
    %v3814 = vpop.f32.mrf.mxu0
    %v3815 = vadd.f32 %v3670, %v3814
    %v3816 = vpop.f32.mrf.mxu0
    %3817 = vmatprep.mubr.f32.mxu0 %v3333
    %3818 = vmatmul.mubr.f32.gmra.mxu0 %v3332
    %v3819 = vpop.f32.mrf.mxu0
    %v3820 = vadd.f32 %v3675, %v3819
    %v3821 = vpop.f32.mrf.mxu0
    %3822 = vmatprep.mubr.f32.mxu0 %v3337
    %3823 = vmatmul.mubr.f32.gmra.mxu0 %v3336
    %v3824 = vpop.f32.mrf.mxu0
    %v3825 = vadd.f32 %v3680, %v3824
    %v3826 = vpop.f32.mrf.mxu0
    %3827 = vmatprep.mubr.f32.mxu0 %v3341
    %3828 = vmatmul.mubr.f32.gmra.mxu0 %v3340
    %v3829 = vpop.f32.mrf.mxu0
    %v3830 = vadd.f32 %v3685, %v3829
    %v3831 = vpop.f32.mrf.mxu0
    %3832 = vmatprep.mubr.f32.mxu0 %v3345
    %3833 = vmatmul.mubr.f32.gmra.mxu0 %v3344
    %v3834 = vpop.f32.mrf.mxu0
    %v3835 = vadd.f32 %v3690, %v3834
    %v3836 = vpop.f32.mrf.mxu0
    %3837 = vmatprep.mubr.f32.mxu0 %v3349
    %3838 = vmatmul.mubr.f32.gmra.mxu0 %v3348
    %v3839 = vpop.f32.mrf.mxu0
    %v3840 = vadd.f32 %v3695, %v3839
    %v3841 = vpop.f32.mrf.mxu0
    %3842 = vmatprep.mubr.f32.mxu0 %v3353
    %3843 = vmatmul.mubr.f32.gmra.mxu0 %v3352
    %v3844 = vpop.f32.mrf.mxu0
    %v3845 = vadd.f32 %v3700, %v3844
    %v3846 = vpop.f32.mrf.mxu0
    %3847 = vmatprep.mubr.f32.mxu0 %v3357
    %3848 = vmatmul.mubr.f32.gmra.mxu0 %v3356
    %v3849 = vpop.f32.mrf.mxu0
    %v3850 = vadd.f32 %v3705, %v3849
    %v3851 = vpop.f32.mrf.mxu0
    %3852 = vmatprep.mubr.f32.mxu0 %v3361
    %3853 = vmatmul.mubr.f32.gmra.mxu0 %v3360
    %v3854 = vpop.f32.mrf.mxu0
    %v3855 = vadd.f32 %v3710, %v3854
    %v3856 = vpop.f32.mrf.mxu0
    %3857 = vmatprep.mubr.f32.mxu0 %v3365
    %3858 = vmatmul.mubr.f32.gmra.mxu0 %v3364
    %v3859 = vpop.f32.mrf.mxu0
    %v3860 = vadd.f32 %v3715, %v3859
    %v3861 = vpop.f32.mrf.mxu0
    %3862 = vmatprep.mubr.f32.mxu0 %v3369
    %3863 = vmatmul.mubr.f32.gmra.mxu0 %v3368
    %v3864 = vpop.f32.mrf.mxu0
    %v3865 = vadd.f32 %v3720, %v3864
    %v3866 = vpop.f32.mrf.mxu0
    %3867 = vmatprep.mubr.f32.mxu0 %v3373
    %3868 = vmatmul.mubr.f32.gmra.mxu0 %v3372
    %v3869 = vpop.f32.mrf.mxu0
    %v3870 = vadd.f32 %v3725, %v3869
    %v3871 = vpop.f32.mrf.mxu0
    %3872 = vmatprep.mubr.f32.mxu0 %v3377
    %3873 = vmatmul.mubr.f32.gmra.mxu0 %v3376
    %v3874 = vpop.f32.mrf.mxu0
    %v3875 = vadd.f32 %v3730, %v3874
    %v3876 = vpop.f32.mrf.mxu0
    %3877 = vmatprep.mubr.f32.mxu0 %v3381
    %3878 = vmatmul.mubr.f32.gmra.mxu0 %v3380
    %v3879 = vpop.f32.mrf.mxu0
    %v3880 = vadd.f32 %v3735, %v3879
    %v3881 = vpop.f32.mrf.mxu0
    %3882 = vmatprep.mubr.f32.mxu0 %v3385
    %3883 = vmatmul.mubr.f32.gmra.mxu0 %v3384
    %v3884 = vpop.f32.mrf.mxu0
    %v3885 = vadd.f32 %v3740, %v3884
    %v3886 = vpop.f32.mrf.mxu0
    %3887 = vdwg.mxu0
    %3888 = vmatprep.subr.mxu0 0.0
    %3889 = vmatpush1.msra.mxu0 %v1492
    %3890 = vmatprep.subr.mxu0 0.0
    %3891 = vmatpush1.msra.mxu0 %v1486
    %3892 = vmatprep.subr.mxu0 0.0
    %3893 = vmatpush1.msra.mxu0 %v1480
    %3894 = vmatprep.subr.mxu0 0.0
    %3895 = vmatpush1.msra.mxu0 %v1474
    %3896 = vmatprep.subr.mxu0 0.0
    %3897 = vmatpush1.msra.mxu0 %v1468
    %3898 = vmatprep.subr.mxu0 0.0
    %3899 = vmatpush1.msra.mxu0 %v1462
    %3900 = vmatprep.subr.mxu0 0.0
    %3901 = vmatpush1.msra.mxu0 %v1456
    %3902 = vmatprep.subr.mxu0 0.0
    %3903 = vmatpush1.msra.mxu0 %v1450
    %3904 = vmatprep.subr.mxu0 0.0
    %3905 = vmatpush1.msra.mxu0 %v1444
    %3906 = vmatprep.subr.mxu0 0.0
    %3907 = vmatpush1.msra.mxu0 %v1438
    %3908 = vmatprep.subr.mxu0 0.0
    %3909 = vmatpush1.msra.mxu0 %v1432
    %3910 = vmatprep.subr.mxu0 0.0
    %3911 = vmatpush1.msra.mxu0 %v1426
    %3912 = vmatprep.subr.mxu0 0.0
    %3913 = vmatpush1.msra.mxu0 %v1420
    %3914 = vmatprep.subr.mxu0 0.0
    %3915 = vmatpush1.msra.mxu0 %v1414
    %3916 = vmatprep.subr.mxu0 0.0
    %3917 = vmatpush1.msra.mxu0 %v1408
    %3918 = vmatprep.subr.mxu0 0.0
    %3919 = vmatpush1.msra.mxu0 %v1402
    %3920 = vmatprep.subr.mxu0 0.0
    %3921 = vmatpush2.msra.mxu0 %v1588
    %3922 = vmatprep.subr.mxu0 0.0
    %3923 = vmatpush2.msra.mxu0 %v1582
    %3924 = vmatprep.subr.mxu0 0.0
    %3925 = vmatpush2.msra.mxu0 %v1576
    %3926 = vmatprep.subr.mxu0 0.0
    %3927 = vmatpush2.msra.mxu0 %v1570
    %3928 = vmatprep.subr.mxu0 0.0
    %3929 = vmatpush2.msra.mxu0 %v1564
    %3930 = vmatprep.subr.mxu0 0.0
    %3931 = vmatpush2.msra.mxu0 %v1558
    %3932 = vmatprep.subr.mxu0 0.0
    %3933 = vmatpush2.msra.mxu0 %v1552
    %3934 = vmatprep.subr.mxu0 0.0
    %3935 = vmatpush2.msra.mxu0 %v1546
    %3936 = vmatprep.subr.mxu0 0.0
    %3937 = vmatpush2.msra.mxu0 %v1540
    %3938 = vmatprep.subr.mxu0 0.0
    %3939 = vmatpush2.msra.mxu0 %v1534
    %3940 = vmatprep.subr.mxu0 0.0
    %3941 = vmatpush2.msra.mxu0 %v1528
    %3942 = vmatprep.subr.mxu0 0.0
    %3943 = vmatpush2.msra.mxu0 %v1522
    %3944 = vmatprep.subr.mxu0 0.0
    %3945 = vmatpush2.msra.mxu0 %v1516
    %3946 = vmatprep.subr.mxu0 0.0
    %3947 = vmatpush2.msra.mxu0 %v1510
    %3948 = vmatprep.subr.mxu0 0.0
    %3949 = vmatpush2.msra.mxu0 %v1504
    %3950 = vmatprep.subr.mxu0 0.0
    %3951 = vmatpush2.msra.mxu0 %v1498
    %3952 = vmatprep.mubr.f32.mxu0 %v3327
    %3953 = vmatmul.mubr.f32.gmra.mxu0 %v3326
    %v3954 = vpop.f32.mrf.mxu0
    %v3955 = vadd.f32 %v3810, %v3954
    %v3956 = vpop.f32.mrf.mxu0
    %3957 = vmatprep.mubr.f32.mxu0 %v3331
    %3958 = vmatmul.mubr.f32.gmra.mxu0 %v3330
    %v3959 = vpop.f32.mrf.mxu0
    %v3960 = vadd.f32 %v3815, %v3959
    %v3961 = vpop.f32.mrf.mxu0
    %3962 = vmatprep.mubr.f32.mxu0 %v3335
    %3963 = vmatmul.mubr.f32.gmra.mxu0 %v3334
    %v3964 = vpop.f32.mrf.mxu0
    %v3965 = vadd.f32 %v3820, %v3964
    %v3966 = vpop.f32.mrf.mxu0
    %3967 = vmatprep.mubr.f32.mxu0 %v3339
    %3968 = vmatmul.mubr.f32.gmra.mxu0 %v3338
    %v3969 = vpop.f32.mrf.mxu0
    %v3970 = vadd.f32 %v3825, %v3969
    %v3971 = vpop.f32.mrf.mxu0
    %3972 = vmatprep.mubr.f32.mxu0 %v3343
    %3973 = vmatmul.mubr.f32.gmra.mxu0 %v3342
    %v3974 = vpop.f32.mrf.mxu0
    %v3975 = vadd.f32 %v3830, %v3974
    %v3976 = vpop.f32.mrf.mxu0
    %3977 = vmatprep.mubr.f32.mxu0 %v3347
    %3978 = vmatmul.mubr.f32.gmra.mxu0 %v3346
    %v3979 = vpop.f32.mrf.mxu0
    %v3980 = vadd.f32 %v3835, %v3979
    %v3981 = vpop.f32.mrf.mxu0
    %3982 = vmatprep.mubr.f32.mxu0 %v3351
    %3983 = vmatmul.mubr.f32.gmra.mxu0 %v3350
    %v3984 = vpop.f32.mrf.mxu0
    %v3985 = vadd.f32 %v3840, %v3984
    %v3986 = vpop.f32.mrf.mxu0
    %3987 = vmatprep.mubr.f32.mxu0 %v3355
    %3988 = vmatmul.mubr.f32.gmra.mxu0 %v3354
    %v3989 = vpop.f32.mrf.mxu0
    %v3990 = vadd.f32 %v3845, %v3989
    %v3991 = vpop.f32.mrf.mxu0
    %3992 = vmatprep.mubr.f32.mxu0 %v3359
    %3993 = vmatmul.mubr.f32.gmra.mxu0 %v3358
    %v3994 = vpop.f32.mrf.mxu0
    %v3995 = vadd.f32 %v3850, %v3994
    %v3996 = vpop.f32.mrf.mxu0
    %3997 = vmatprep.mubr.f32.mxu0 %v3363
    %3998 = vmatmul.mubr.f32.gmra.mxu0 %v3362
    %v3999 = vpop.f32.mrf.mxu0
    %v4000 = vadd.f32 %v3855, %v3999
    %v4001 = vpop.f32.mrf.mxu0
    %4002 = vmatprep.mubr.f32.mxu0 %v3367
    %4003 = vmatmul.mubr.f32.gmra.mxu0 %v3366
    %v4004 = vpop.f32.mrf.mxu0
    %v4005 = vadd.f32 %v3860, %v4004
    %v4006 = vpop.f32.mrf.mxu0
    %4007 = vmatprep.mubr.f32.mxu0 %v3371
    %4008 = vmatmul.mubr.f32.gmra.mxu0 %v3370
    %v4009 = vpop.f32.mrf.mxu0
    %v4010 = vadd.f32 %v3865, %v4009
    %v4011 = vpop.f32.mrf.mxu0
    %4012 = vmatprep.mubr.f32.mxu0 %v3375
    %4013 = vmatmul.mubr.f32.gmra.mxu0 %v3374
    %v4014 = vpop.f32.mrf.mxu0
    %v4015 = vadd.f32 %v3870, %v4014
    %v4016 = vpop.f32.mrf.mxu0
    %4017 = vmatprep.mubr.f32.mxu0 %v3379
    %4018 = vmatmul.mubr.f32.gmra.mxu0 %v3378
    %v4019 = vpop.f32.mrf.mxu0
    %v4020 = vadd.f32 %v3875, %v4019
    %v4021 = vpop.f32.mrf.mxu0
    %4022 = vmatprep.mubr.f32.mxu0 %v3383
    %4023 = vmatmul.mubr.f32.gmra.mxu0 %v3382
    %v4024 = vpop.f32.mrf.mxu0
    %v4025 = vadd.f32 %v3880, %v4024
    %v4026 = vpop.f32.mrf.mxu0
    %4027 = vmatprep.mubr.f32.mxu0 %v3387
    %4028 = vmatmul.mubr.f32.gmra.mxu0 %v3386
    %v4029 = vpop.f32.mrf.mxu0
    %v4030 = vadd.f32 %v3885, %v4029
    %v4031 = vpop.f32.mrf.mxu0
    %4032 = vdwg.mxu0
    %s4033 = scalar_lea.vmem %s5, 1024
    %v4034 = vld [vmem:[%s4033] sm:$0xff]
    %v4035 = vld [vmem:[%s4033 + $0x8] sm:$0xff]
    %v4036 = vld [vmem:[%s4033 + $0x10] sm:$0xff]
    %v4037 = vld [vmem:[%s4033 + $0x18] sm:$0xff]
    %v4038 = vld [vmem:[%s4033 + $0x20] sm:$0xff]
    %v4039 = vld [vmem:[%s4033 + $0x28] sm:$0xff]
    %v4040 = vld [vmem:[%s4033 + $0x30] sm:$0xff]
    %v4041 = vld [vmem:[%s4033 + $0x38] sm:$0xff]
    %v4042 = vld [vmem:[%s4033 + $0x40] sm:$0xff]
    %v4043 = vld [vmem:[%s4033 + $0x48] sm:$0xff]
    %v4044 = vld [vmem:[%s4033 + $0x50] sm:$0xff]
    %v4045 = vld [vmem:[%s4033 + $0x58] sm:$0xff]
    %v4046 = vld [vmem:[%s4033 + $0x60] sm:$0xff]
    %v4047 = vld [vmem:[%s4033 + $0x68] sm:$0xff]
    %v4048 = vld [vmem:[%s4033 + $0x70] sm:$0xff]
    %v4049 = vld [vmem:[%s4033 + $0x78] sm:$0xff]
    %v4050 = vld [vmem:[%s4033 + $0x80] sm:$0xff]
    %v4051 = vld [vmem:[%s4033 + $0x88] sm:$0xff]
    %v4052 = vld [vmem:[%s4033 + $0x90] sm:$0xff]
    %v4053 = vld [vmem:[%s4033 + $0x98] sm:$0xff]
    %v4054 = vld [vmem:[%s4033 + $0xa0] sm:$0xff]
    %v4055 = vld [vmem:[%s4033 + $0xa8] sm:$0xff]
    %v4056 = vld [vmem:[%s4033 + $0xb0] sm:$0xff]
    %v4057 = vld [vmem:[%s4033 + $0xb8] sm:$0xff]
    %v4058 = vld [vmem:[%s4033 + $0xc0] sm:$0xff]
    %v4059 = vld [vmem:[%s4033 + $0xc8] sm:$0xff]
    %v4060 = vld [vmem:[%s4033 + $0xd0] sm:$0xff]
    %v4061 = vld [vmem:[%s4033 + $0xd8] sm:$0xff]
    %v4062 = vld [vmem:[%s4033 + $0xe0] sm:$0xff]
    %v4063 = vld [vmem:[%s4033 + $0xe8] sm:$0xff]
    %v4064 = vld [vmem:[%s4033 + $0xf0] sm:$0xff]
    %v4065 = vld [vmem:[%s4033 + $0xf8] sm:$0xff]
    %v4066 = vld [vmem:[%s4033 + $0x100] sm:$0xff]
    %v4067 = vld [vmem:[%s4033 + $0x108] sm:$0xff]
    %v4068 = vld [vmem:[%s4033 + $0x110] sm:$0xff]
    %v4069 = vld [vmem:[%s4033 + $0x118] sm:$0xff]
    %v4070 = vld [vmem:[%s4033 + $0x120] sm:$0xff]
    %v4071 = vld [vmem:[%s4033 + $0x128] sm:$0xff]
    %v4072 = vld [vmem:[%s4033 + $0x130] sm:$0xff]
    %v4073 = vld [vmem:[%s4033 + $0x138] sm:$0xff]
    %v4074 = vld [vmem:[%s4033 + $0x140] sm:$0xff]
    %v4075 = vld [vmem:[%s4033 + $0x148] sm:$0xff]
    %v4076 = vld [vmem:[%s4033 + $0x150] sm:$0xff]
    %v4077 = vld [vmem:[%s4033 + $0x158] sm:$0xff]
    %v4078 = vld [vmem:[%s4033 + $0x160] sm:$0xff]
    %v4079 = vld [vmem:[%s4033 + $0x168] sm:$0xff]
    %v4080 = vld [vmem:[%s4033 + $0x170] sm:$0xff]
    %v4081 = vld [vmem:[%s4033 + $0x178] sm:$0xff]
    %v4082 = vld [vmem:[%s4033 + $0x180] sm:$0xff]
    %v4083 = vld [vmem:[%s4033 + $0x188] sm:$0xff]
    %v4084 = vld [vmem:[%s4033 + $0x190] sm:$0xff]
    %v4085 = vld [vmem:[%s4033 + $0x198] sm:$0xff]
    %v4086 = vld [vmem:[%s4033 + $0x1a0] sm:$0xff]
    %v4087 = vld [vmem:[%s4033 + $0x1a8] sm:$0xff]
    %v4088 = vld [vmem:[%s4033 + $0x1b0] sm:$0xff]
    %v4089 = vld [vmem:[%s4033 + $0x1b8] sm:$0xff]
    %v4090 = vld [vmem:[%s4033 + $0x1c0] sm:$0xff]
    %v4091 = vld [vmem:[%s4033 + $0x1c8] sm:$0xff]
    %v4092 = vld [vmem:[%s4033 + $0x1d0] sm:$0xff]
    %v4093 = vld [vmem:[%s4033 + $0x1d8] sm:$0xff]
    %v4094 = vld [vmem:[%s4033 + $0x1e0] sm:$0xff]
    %v4095 = vld [vmem:[%s4033 + $0x1e8] sm:$0xff]
    %v4096 = vld [vmem:[%s4033 + $0x1f0] sm:$0xff]
    %v4097 = vld [vmem:[%s4033 + $0x1f8] sm:$0xff]
    %4098 = vmatprep.subr.mxu0 0.0
    %4099 = vmatpush1.msra.mxu0 %v1749
    %4100 = vmatprep.subr.mxu0 0.0
    %4101 = vmatpush1.msra.mxu0 %v1743
    %4102 = vmatprep.subr.mxu0 0.0
    %4103 = vmatpush1.msra.mxu0 %v1737
    %4104 = vmatprep.subr.mxu0 0.0
    %4105 = vmatpush1.msra.mxu0 %v1731
    %4106 = vmatprep.subr.mxu0 0.0
    %4107 = vmatpush1.msra.mxu0 %v1725
    %4108 = vmatprep.subr.mxu0 0.0
    %4109 = vmatpush1.msra.mxu0 %v1719
    %4110 = vmatprep.subr.mxu0 0.0
    %4111 = vmatpush1.msra.mxu0 %v1713
    %4112 = vmatprep.subr.mxu0 0.0
    %4113 = vmatpush1.msra.mxu0 %v1707
    %4114 = vmatprep.subr.mxu0 0.0
    %4115 = vmatpush1.msra.mxu0 %v1701
    %4116 = vmatprep.subr.mxu0 0.0
    %4117 = vmatpush1.msra.mxu0 %v1695
    %4118 = vmatprep.subr.mxu0 0.0
    %4119 = vmatpush1.msra.mxu0 %v1689
    %4120 = vmatprep.subr.mxu0 0.0
    %4121 = vmatpush1.msra.mxu0 %v1683
    %4122 = vmatprep.subr.mxu0 0.0
    %4123 = vmatpush1.msra.mxu0 %v1677
    %4124 = vmatprep.subr.mxu0 0.0
    %4125 = vmatpush1.msra.mxu0 %v1671
    %4126 = vmatprep.subr.mxu0 0.0
    %4127 = vmatpush1.msra.mxu0 %v1665
    %4128 = vmatprep.subr.mxu0 0.0
    %4129 = vmatpush1.msra.mxu0 %v1659
    %4130 = vmatprep.subr.mxu0 0.0
    %4131 = vmatpush2.msra.mxu0 %v1845
    %4132 = vmatprep.subr.mxu0 0.0
    %4133 = vmatpush2.msra.mxu0 %v1839
    %4134 = vmatprep.subr.mxu0 0.0
    %4135 = vmatpush2.msra.mxu0 %v1833
    %4136 = vmatprep.subr.mxu0 0.0
    %4137 = vmatpush2.msra.mxu0 %v1827
    %4138 = vmatprep.subr.mxu0 0.0
    %4139 = vmatpush2.msra.mxu0 %v1821
    %4140 = vmatprep.subr.mxu0 0.0
    %4141 = vmatpush2.msra.mxu0 %v1815
    %4142 = vmatprep.subr.mxu0 0.0
    %4143 = vmatpush2.msra.mxu0 %v1809
    %4144 = vmatprep.subr.mxu0 0.0
    %4145 = vmatpush2.msra.mxu0 %v1803
    %4146 = vmatprep.subr.mxu0 0.0
    %4147 = vmatpush2.msra.mxu0 %v1797
    %4148 = vmatprep.subr.mxu0 0.0
    %4149 = vmatpush2.msra.mxu0 %v1791
    %4150 = vmatprep.subr.mxu0 0.0
    %4151 = vmatpush2.msra.mxu0 %v1785
    %4152 = vmatprep.subr.mxu0 0.0
    %4153 = vmatpush2.msra.mxu0 %v1779
    %4154 = vmatprep.subr.mxu0 0.0
    %4155 = vmatpush2.msra.mxu0 %v1773
    %4156 = vmatprep.subr.mxu0 0.0
    %4157 = vmatpush2.msra.mxu0 %v1767
    %4158 = vmatprep.subr.mxu0 0.0
    %4159 = vmatpush2.msra.mxu0 %v1761
    %4160 = vmatprep.subr.mxu0 0.0
    %4161 = vmatpush2.msra.mxu0 %v1755
    %4162 = vmatprep.mubr.f32.mxu0 %v4035
    %4163 = vmatmul.mubr.f32.gmra.mxu0 %v4034
    %v4164 = vpop.f32.mrf.mxu0
    %v4165 = vadd.f32 0.0, %v4164
    %v4166 = vpop.f32.mrf.mxu0
    %4167 = vmatprep.mubr.f32.mxu0 %v4039
    %4168 = vmatmul.mubr.f32.gmra.mxu0 %v4038
    %v4169 = vpop.f32.mrf.mxu0
    %v4170 = vadd.f32 0.0, %v4169
    %v4171 = vpop.f32.mrf.mxu0
    %4172 = vmatprep.mubr.f32.mxu0 %v4043
    %4173 = vmatmul.mubr.f32.gmra.mxu0 %v4042
    %v4174 = vpop.f32.mrf.mxu0
    %v4175 = vadd.f32 0.0, %v4174
    %v4176 = vpop.f32.mrf.mxu0
    %4177 = vmatprep.mubr.f32.mxu0 %v4047
    %4178 = vmatmul.mubr.f32.gmra.mxu0 %v4046
    %v4179 = vpop.f32.mrf.mxu0
    %v4180 = vadd.f32 0.0, %v4179
    %v4181 = vpop.f32.mrf.mxu0
    %4182 = vmatprep.mubr.f32.mxu0 %v4051
    %4183 = vmatmul.mubr.f32.gmra.mxu0 %v4050
    %v4184 = vpop.f32.mrf.mxu0
    %v4185 = vadd.f32 0.0, %v4184
    %v4186 = vpop.f32.mrf.mxu0
    %4187 = vmatprep.mubr.f32.mxu0 %v4055
    %4188 = vmatmul.mubr.f32.gmra.mxu0 %v4054
    %v4189 = vpop.f32.mrf.mxu0
    %v4190 = vadd.f32 0.0, %v4189
    %v4191 = vpop.f32.mrf.mxu0
    %4192 = vmatprep.mubr.f32.mxu0 %v4059
    %4193 = vmatmul.mubr.f32.gmra.mxu0 %v4058
    %v4194 = vpop.f32.mrf.mxu0
    %v4195 = vadd.f32 0.0, %v4194
    %v4196 = vpop.f32.mrf.mxu0
    %4197 = vmatprep.mubr.f32.mxu0 %v4063
    %4198 = vmatmul.mubr.f32.gmra.mxu0 %v4062
    %v4199 = vpop.f32.mrf.mxu0
    %v4200 = vadd.f32 0.0, %v4199
    %v4201 = vpop.f32.mrf.mxu0
    %4202 = vmatprep.mubr.f32.mxu0 %v4067
    %4203 = vmatmul.mubr.f32.gmra.mxu0 %v4066
    %v4204 = vpop.f32.mrf.mxu0
    %v4205 = vadd.f32 0.0, %v4204
    %v4206 = vpop.f32.mrf.mxu0
    %4207 = vmatprep.mubr.f32.mxu0 %v4071
    %4208 = vmatmul.mubr.f32.gmra.mxu0 %v4070
    %v4209 = vpop.f32.mrf.mxu0
    %v4210 = vadd.f32 0.0, %v4209
    %v4211 = vpop.f32.mrf.mxu0
    %4212 = vmatprep.mubr.f32.mxu0 %v4075
    %4213 = vmatmul.mubr.f32.gmra.mxu0 %v4074
    %v4214 = vpop.f32.mrf.mxu0
    %v4215 = vadd.f32 0.0, %v4214
    %v4216 = vpop.f32.mrf.mxu0
    %4217 = vmatprep.mubr.f32.mxu0 %v4079
    %4218 = vmatmul.mubr.f32.gmra.mxu0 %v4078
    %v4219 = vpop.f32.mrf.mxu0
    %v4220 = vadd.f32 0.0, %v4219
    %v4221 = vpop.f32.mrf.mxu0
    %4222 = vmatprep.mubr.f32.mxu0 %v4083
    %4223 = vmatmul.mubr.f32.gmra.mxu0 %v4082
    %v4224 = vpop.f32.mrf.mxu0
    %v4225 = vadd.f32 0.0, %v4224
    %v4226 = vpop.f32.mrf.mxu0
    %4227 = vmatprep.mubr.f32.mxu0 %v4087
    %4228 = vmatmul.mubr.f32.gmra.mxu0 %v4086
    %v4229 = vpop.f32.mrf.mxu0
    %v4230 = vadd.f32 0.0, %v4229
    %v4231 = vpop.f32.mrf.mxu0
    %4232 = vmatprep.mubr.f32.mxu0 %v4091
    %4233 = vmatmul.mubr.f32.gmra.mxu0 %v4090
    %v4234 = vpop.f32.mrf.mxu0
    %v4235 = vadd.f32 0.0, %v4234
    %v4236 = vpop.f32.mrf.mxu0
    %4237 = vmatprep.mubr.f32.mxu0 %v4095
    %4238 = vmatmul.mubr.f32.gmra.mxu0 %v4094
    %v4239 = vpop.f32.mrf.mxu0
    %v4240 = vadd.f32 0.0, %v4239
    %v4241 = vpop.f32.mrf.mxu0
    %4242 = vdwg.mxu0
    %4243 = vmatprep.subr.mxu0 0.0
    %4244 = vmatpush1.msra.mxu0 %v1941
    %4245 = vmatprep.subr.mxu0 0.0
    %4246 = vmatpush1.msra.mxu0 %v1935
    %4247 = vmatprep.subr.mxu0 0.0
    %4248 = vmatpush1.msra.mxu0 %v1929
    %4249 = vmatprep.subr.mxu0 0.0
    %4250 = vmatpush1.msra.mxu0 %v1923
    %4251 = vmatprep.subr.mxu0 0.0
    %4252 = vmatpush1.msra.mxu0 %v1917
    %4253 = vmatprep.subr.mxu0 0.0
    %4254 = vmatpush1.msra.mxu0 %v1911
    %4255 = vmatprep.subr.mxu0 0.0
    %4256 = vmatpush1.msra.mxu0 %v1905
    %4257 = vmatprep.subr.mxu0 0.0
    %4258 = vmatpush1.msra.mxu0 %v1899
    %4259 = vmatprep.subr.mxu0 0.0
    %4260 = vmatpush1.msra.mxu0 %v1893
    %4261 = vmatprep.subr.mxu0 0.0
    %4262 = vmatpush1.msra.mxu0 %v1887
    %4263 = vmatprep.subr.mxu0 0.0
    %4264 = vmatpush1.msra.mxu0 %v1881
    %4265 = vmatprep.subr.mxu0 0.0
    %4266 = vmatpush1.msra.mxu0 %v1875
    %4267 = vmatprep.subr.mxu0 0.0
    %4268 = vmatpush1.msra.mxu0 %v1869
    %4269 = vmatprep.subr.mxu0 0.0
    %4270 = vmatpush1.msra.mxu0 %v1863
    %4271 = vmatprep.subr.mxu0 0.0
    %4272 = vmatpush1.msra.mxu0 %v1857
    %4273 = vmatprep.subr.mxu0 0.0
    %4274 = vmatpush1.msra.mxu0 %v1851
    %4275 = vmatprep.subr.mxu0 0.0
    %4276 = vmatpush2.msra.mxu0 %v2037
    %4277 = vmatprep.subr.mxu0 0.0
    %4278 = vmatpush2.msra.mxu0 %v2031
    %4279 = vmatprep.subr.mxu0 0.0
    %4280 = vmatpush2.msra.mxu0 %v2025
    %4281 = vmatprep.subr.mxu0 0.0
    %4282 = vmatpush2.msra.mxu0 %v2019
    %4283 = vmatprep.subr.mxu0 0.0
    %4284 = vmatpush2.msra.mxu0 %v2013
    %4285 = vmatprep.subr.mxu0 0.0
    %4286 = vmatpush2.msra.mxu0 %v2007
    %4287 = vmatprep.subr.mxu0 0.0
    %4288 = vmatpush2.msra.mxu0 %v2001
    %4289 = vmatprep.subr.mxu0 0.0
    %4290 = vmatpush2.msra.mxu0 %v1995
    %4291 = vmatprep.subr.mxu0 0.0
    %4292 = vmatpush2.msra.mxu0 %v1989
    %4293 = vmatprep.subr.mxu0 0.0
    %4294 = vmatpush2.msra.mxu0 %v1983
    %4295 = vmatprep.subr.mxu0 0.0
    %4296 = vmatpush2.msra.mxu0 %v1977
    %4297 = vmatprep.subr.mxu0 0.0
    %4298 = vmatpush2.msra.mxu0 %v1971
    %4299 = vmatprep.subr.mxu0 0.0
    %4300 = vmatpush2.msra.mxu0 %v1965
    %4301 = vmatprep.subr.mxu0 0.0
    %4302 = vmatpush2.msra.mxu0 %v1959
    %4303 = vmatprep.subr.mxu0 0.0
    %4304 = vmatpush2.msra.mxu0 %v1953
    %4305 = vmatprep.subr.mxu0 0.0
    %4306 = vmatpush2.msra.mxu0 %v1947
    %4307 = vmatprep.mubr.f32.mxu0 %v4037
    %4308 = vmatmul.mubr.f32.gmra.mxu0 %v4036
    %v4309 = vpop.f32.mrf.mxu0
    %v4310 = vadd.f32 %v4165, %v4309
    %v4311 = vpop.f32.mrf.mxu0
    %4312 = vmatprep.mubr.f32.mxu0 %v4041
    %4313 = vmatmul.mubr.f32.gmra.mxu0 %v4040
    %v4314 = vpop.f32.mrf.mxu0
    %v4315 = vadd.f32 %v4170, %v4314
    %v4316 = vpop.f32.mrf.mxu0
    %4317 = vmatprep.mubr.f32.mxu0 %v4045
    %4318 = vmatmul.mubr.f32.gmra.mxu0 %v4044
    %v4319 = vpop.f32.mrf.mxu0
    %v4320 = vadd.f32 %v4175, %v4319
    %v4321 = vpop.f32.mrf.mxu0
    %4322 = vmatprep.mubr.f32.mxu0 %v4049
    %4323 = vmatmul.mubr.f32.gmra.mxu0 %v4048
    %v4324 = vpop.f32.mrf.mxu0
    %v4325 = vadd.f32 %v4180, %v4324
    %v4326 = vpop.f32.mrf.mxu0
    %4327 = vmatprep.mubr.f32.mxu0 %v4053
    %4328 = vmatmul.mubr.f32.gmra.mxu0 %v4052
    %v4329 = vpop.f32.mrf.mxu0
    %v4330 = vadd.f32 %v4185, %v4329
    %v4331 = vpop.f32.mrf.mxu0
    %4332 = vmatprep.mubr.f32.mxu0 %v4057
    %4333 = vmatmul.mubr.f32.gmra.mxu0 %v4056
    %v4334 = vpop.f32.mrf.mxu0
    %v4335 = vadd.f32 %v4190, %v4334
    %v4336 = vpop.f32.mrf.mxu0
    %4337 = vmatprep.mubr.f32.mxu0 %v4061
    %4338 = vmatmul.mubr.f32.gmra.mxu0 %v4060
    %v4339 = vpop.f32.mrf.mxu0
    %v4340 = vadd.f32 %v4195, %v4339
    %v4341 = vpop.f32.mrf.mxu0
    %4342 = vmatprep.mubr.f32.mxu0 %v4065
    %4343 = vmatmul.mubr.f32.gmra.mxu0 %v4064
    %v4344 = vpop.f32.mrf.mxu0
    %v4345 = vadd.f32 %v4200, %v4344
    %v4346 = vpop.f32.mrf.mxu0
    %4347 = vmatprep.mubr.f32.mxu0 %v4069
    %4348 = vmatmul.mubr.f32.gmra.mxu0 %v4068
    %v4349 = vpop.f32.mrf.mxu0
    %v4350 = vadd.f32 %v4205, %v4349
    %v4351 = vpop.f32.mrf.mxu0
    %4352 = vmatprep.mubr.f32.mxu0 %v4073
    %4353 = vmatmul.mubr.f32.gmra.mxu0 %v4072
    %v4354 = vpop.f32.mrf.mxu0
    %v4355 = vadd.f32 %v4210, %v4354
    %v4356 = vpop.f32.mrf.mxu0
    %4357 = vmatprep.mubr.f32.mxu0 %v4077
    %4358 = vmatmul.mubr.f32.gmra.mxu0 %v4076
    %v4359 = vpop.f32.mrf.mxu0
    %v4360 = vadd.f32 %v4215, %v4359
    %v4361 = vpop.f32.mrf.mxu0
    %4362 = vmatprep.mubr.f32.mxu0 %v4081
    %4363 = vmatmul.mubr.f32.gmra.mxu0 %v4080
    %v4364 = vpop.f32.mrf.mxu0
    %v4365 = vadd.f32 %v4220, %v4364
    %v4366 = vpop.f32.mrf.mxu0
    %4367 = vmatprep.mubr.f32.mxu0 %v4085
    %4368 = vmatmul.mubr.f32.gmra.mxu0 %v4084
    %v4369 = vpop.f32.mrf.mxu0
    %v4370 = vadd.f32 %v4225, %v4369
    %v4371 = vpop.f32.mrf.mxu0
    %4372 = vmatprep.mubr.f32.mxu0 %v4089
    %4373 = vmatmul.mubr.f32.gmra.mxu0 %v4088
    %v4374 = vpop.f32.mrf.mxu0
    %v4375 = vadd.f32 %v4230, %v4374
    %v4376 = vpop.f32.mrf.mxu0
    %4377 = vmatprep.mubr.f32.mxu0 %v4093
    %4378 = vmatmul.mubr.f32.gmra.mxu0 %v4092
    %v4379 = vpop.f32.mrf.mxu0
    %v4380 = vadd.f32 %v4235, %v4379
    %v4381 = vpop.f32.mrf.mxu0
    %4382 = vmatprep.mubr.f32.mxu0 %v4097
    %4383 = vmatmul.mubr.f32.gmra.mxu0 %v4096
    %v4384 = vpop.f32.mrf.mxu0
    %v4385 = vadd.f32 %v4240, %v4384
    %v4386 = vpop.f32.mrf.mxu0
    %4387 = vdwg.mxu0
    %v4388 = vadd.f32 %v3955, %v4310
    %v4389 = vadd.f32 %v3960, %v4315
    %v4390 = vadd.f32 %v3965, %v4320
    %v4391 = vadd.f32 %v3970, %v4325
    %v4392 = vadd.f32 %v3975, %v4330
    %v4393 = vadd.f32 %v3980, %v4335
    %v4394 = vadd.f32 %v3985, %v4340
    %v4395 = vadd.f32 %v3990, %v4345
    %v4396 = vadd.f32 %v3995, %v4350
    %v4397 = vadd.f32 %v4000, %v4355
    %v4398 = vadd.f32 %v4005, %v4360
    %v4399 = vadd.f32 %v4010, %v4365
    %v4400 = vadd.f32 %v4015, %v4370
    %v4401 = vadd.f32 %v4020, %v4375
    %v4402 = vadd.f32 %v4025, %v4380
    %v4403 = vadd.f32 %v4030, %v4385
    %s4404 = scalar_lea.vmem %s5, 1536
    %v4405 = vld [vmem:[%s4404] sm:$0xff]
    %v4406 = vld [vmem:[%s4404 + $0x8] sm:$0xff]
    %v4407 = vld [vmem:[%s4404 + $0x10] sm:$0xff]
    %v4408 = vld [vmem:[%s4404 + $0x18] sm:$0xff]
    %v4409 = vld [vmem:[%s4404 + $0x20] sm:$0xff]
    %v4410 = vld [vmem:[%s4404 + $0x28] sm:$0xff]
    %v4411 = vld [vmem:[%s4404 + $0x30] sm:$0xff]
    %v4412 = vld [vmem:[%s4404 + $0x38] sm:$0xff]
    %v4413 = vld [vmem:[%s4404 + $0x40] sm:$0xff]
    %v4414 = vld [vmem:[%s4404 + $0x48] sm:$0xff]
    %v4415 = vld [vmem:[%s4404 + $0x50] sm:$0xff]
    %v4416 = vld [vmem:[%s4404 + $0x58] sm:$0xff]
    %v4417 = vld [vmem:[%s4404 + $0x60] sm:$0xff]
    %v4418 = vld [vmem:[%s4404 + $0x68] sm:$0xff]
    %v4419 = vld [vmem:[%s4404 + $0x70] sm:$0xff]
    %v4420 = vld [vmem:[%s4404 + $0x78] sm:$0xff]
    %v4421 = vld [vmem:[%s4404 + $0x80] sm:$0xff]
    %v4422 = vld [vmem:[%s4404 + $0x88] sm:$0xff]
    %v4423 = vld [vmem:[%s4404 + $0x90] sm:$0xff]
    %v4424 = vld [vmem:[%s4404 + $0x98] sm:$0xff]
    %v4425 = vld [vmem:[%s4404 + $0xa0] sm:$0xff]
    %v4426 = vld [vmem:[%s4404 + $0xa8] sm:$0xff]
    %v4427 = vld [vmem:[%s4404 + $0xb0] sm:$0xff]
    %v4428 = vld [vmem:[%s4404 + $0xb8] sm:$0xff]
    %v4429 = vld [vmem:[%s4404 + $0xc0] sm:$0xff]
    %v4430 = vld [vmem:[%s4404 + $0xc8] sm:$0xff]
    %v4431 = vld [vmem:[%s4404 + $0xd0] sm:$0xff]
    %v4432 = vld [vmem:[%s4404 + $0xd8] sm:$0xff]
    %v4433 = vld [vmem:[%s4404 + $0xe0] sm:$0xff]
    %v4434 = vld [vmem:[%s4404 + $0xe8] sm:$0xff]
    %v4435 = vld [vmem:[%s4404 + $0xf0] sm:$0xff]
    %v4436 = vld [vmem:[%s4404 + $0xf8] sm:$0xff]
    %v4437 = vld [vmem:[%s4404 + $0x100] sm:$0xff]
    %v4438 = vld [vmem:[%s4404 + $0x108] sm:$0xff]
    %v4439 = vld [vmem:[%s4404 + $0x110] sm:$0xff]
    %v4440 = vld [vmem:[%s4404 + $0x118] sm:$0xff]
    %v4441 = vld [vmem:[%s4404 + $0x120] sm:$0xff]
    %v4442 = vld [vmem:[%s4404 + $0x128] sm:$0xff]
    %v4443 = vld [vmem:[%s4404 + $0x130] sm:$0xff]
    %v4444 = vld [vmem:[%s4404 + $0x138] sm:$0xff]
    %v4445 = vld [vmem:[%s4404 + $0x140] sm:$0xff]
    %v4446 = vld [vmem:[%s4404 + $0x148] sm:$0xff]
    %v4447 = vld [vmem:[%s4404 + $0x150] sm:$0xff]
    %v4448 = vld [vmem:[%s4404 + $0x158] sm:$0xff]
    %v4449 = vld [vmem:[%s4404 + $0x160] sm:$0xff]
    %v4450 = vld [vmem:[%s4404 + $0x168] sm:$0xff]
    %v4451 = vld [vmem:[%s4404 + $0x170] sm:$0xff]
    %v4452 = vld [vmem:[%s4404 + $0x178] sm:$0xff]
    %v4453 = vld [vmem:[%s4404 + $0x180] sm:$0xff]
    %v4454 = vld [vmem:[%s4404 + $0x188] sm:$0xff]
    %v4455 = vld [vmem:[%s4404 + $0x190] sm:$0xff]
    %v4456 = vld [vmem:[%s4404 + $0x198] sm:$0xff]
    %v4457 = vld [vmem:[%s4404 + $0x1a0] sm:$0xff]
    %v4458 = vld [vmem:[%s4404 + $0x1a8] sm:$0xff]
    %v4459 = vld [vmem:[%s4404 + $0x1b0] sm:$0xff]
    %v4460 = vld [vmem:[%s4404 + $0x1b8] sm:$0xff]
    %v4461 = vld [vmem:[%s4404 + $0x1c0] sm:$0xff]
    %v4462 = vld [vmem:[%s4404 + $0x1c8] sm:$0xff]
    %v4463 = vld [vmem:[%s4404 + $0x1d0] sm:$0xff]
    %v4464 = vld [vmem:[%s4404 + $0x1d8] sm:$0xff]
    %v4465 = vld [vmem:[%s4404 + $0x1e0] sm:$0xff]
    %v4466 = vld [vmem:[%s4404 + $0x1e8] sm:$0xff]
    %v4467 = vld [vmem:[%s4404 + $0x1f0] sm:$0xff]
    %v4468 = vld [vmem:[%s4404 + $0x1f8] sm:$0xff]
    %4469 = vmatprep.subr.mxu0 0.0
    %4470 = vmatpush1.msra.mxu0 %v1751
    %4471 = vmatprep.subr.mxu0 0.0
    %4472 = vmatpush1.msra.mxu0 %v1745
    %4473 = vmatprep.subr.mxu0 0.0
    %4474 = vmatpush1.msra.mxu0 %v1739
    %4475 = vmatprep.subr.mxu0 0.0
    %4476 = vmatpush1.msra.mxu0 %v1733
    %4477 = vmatprep.subr.mxu0 0.0
    %4478 = vmatpush1.msra.mxu0 %v1727
    %4479 = vmatprep.subr.mxu0 0.0
    %4480 = vmatpush1.msra.mxu0 %v1721
    %4481 = vmatprep.subr.mxu0 0.0
    %4482 = vmatpush1.msra.mxu0 %v1715
    %4483 = vmatprep.subr.mxu0 0.0
    %4484 = vmatpush1.msra.mxu0 %v1709
    %4485 = vmatprep.subr.mxu0 0.0
    %4486 = vmatpush1.msra.mxu0 %v1703
    %4487 = vmatprep.subr.mxu0 0.0
    %4488 = vmatpush1.msra.mxu0 %v1697
    %4489 = vmatprep.subr.mxu0 0.0
    %4490 = vmatpush1.msra.mxu0 %v1691
    %4491 = vmatprep.subr.mxu0 0.0
    %4492 = vmatpush1.msra.mxu0 %v1685
    %4493 = vmatprep.subr.mxu0 0.0
    %4494 = vmatpush1.msra.mxu0 %v1679
    %4495 = vmatprep.subr.mxu0 0.0
    %4496 = vmatpush1.msra.mxu0 %v1673
    %4497 = vmatprep.subr.mxu0 0.0
    %4498 = vmatpush1.msra.mxu0 %v1667
    %4499 = vmatprep.subr.mxu0 0.0
    %4500 = vmatpush1.msra.mxu0 %v1661
    %4501 = vmatprep.subr.mxu0 0.0
    %4502 = vmatpush2.msra.mxu0 %v1847
    %4503 = vmatprep.subr.mxu0 0.0
    %4504 = vmatpush2.msra.mxu0 %v1841
    %4505 = vmatprep.subr.mxu0 0.0
    %4506 = vmatpush2.msra.mxu0 %v1835
    %4507 = vmatprep.subr.mxu0 0.0
    %4508 = vmatpush2.msra.mxu0 %v1829
    %4509 = vmatprep.subr.mxu0 0.0
    %4510 = vmatpush2.msra.mxu0 %v1823
    %4511 = vmatprep.subr.mxu0 0.0
    %4512 = vmatpush2.msra.mxu0 %v1817
    %4513 = vmatprep.subr.mxu0 0.0
    %4514 = vmatpush2.msra.mxu0 %v1811
    %4515 = vmatprep.subr.mxu0 0.0
    %4516 = vmatpush2.msra.mxu0 %v1805
    %4517 = vmatprep.subr.mxu0 0.0
    %4518 = vmatpush2.msra.mxu0 %v1799
    %4519 = vmatprep.subr.mxu0 0.0
    %4520 = vmatpush2.msra.mxu0 %v1793
    %4521 = vmatprep.subr.mxu0 0.0
    %4522 = vmatpush2.msra.mxu0 %v1787
    %4523 = vmatprep.subr.mxu0 0.0
    %4524 = vmatpush2.msra.mxu0 %v1781
    %4525 = vmatprep.subr.mxu0 0.0
    %4526 = vmatpush2.msra.mxu0 %v1775
    %4527 = vmatprep.subr.mxu0 0.0
    %4528 = vmatpush2.msra.mxu0 %v1769
    %4529 = vmatprep.subr.mxu0 0.0
    %4530 = vmatpush2.msra.mxu0 %v1763
    %4531 = vmatprep.subr.mxu0 0.0
    %4532 = vmatpush2.msra.mxu0 %v1757
    %4533 = vmatprep.mubr.f32.mxu0 %v4406
    %4534 = vmatmul.mubr.f32.gmra.mxu0 %v4405
    %v4535 = vpop.f32.mrf.mxu0
    %v4536 = vadd.f32 0.0, %v4535
    %v4537 = vpop.f32.mrf.mxu0
    %4538 = vmatprep.mubr.f32.mxu0 %v4410
    %4539 = vmatmul.mubr.f32.gmra.mxu0 %v4409
    %v4540 = vpop.f32.mrf.mxu0
    %v4541 = vadd.f32 0.0, %v4540
    %v4542 = vpop.f32.mrf.mxu0
    %4543 = vmatprep.mubr.f32.mxu0 %v4414
    %4544 = vmatmul.mubr.f32.gmra.mxu0 %v4413
    %v4545 = vpop.f32.mrf.mxu0
    %v4546 = vadd.f32 0.0, %v4545
    %v4547 = vpop.f32.mrf.mxu0
    %4548 = vmatprep.mubr.f32.mxu0 %v4418
    %4549 = vmatmul.mubr.f32.gmra.mxu0 %v4417
    %v4550 = vpop.f32.mrf.mxu0
    %v4551 = vadd.f32 0.0, %v4550
    %v4552 = vpop.f32.mrf.mxu0
    %4553 = vmatprep.mubr.f32.mxu0 %v4422
    %4554 = vmatmul.mubr.f32.gmra.mxu0 %v4421
    %v4555 = vpop.f32.mrf.mxu0
    %v4556 = vadd.f32 0.0, %v4555
    %v4557 = vpop.f32.mrf.mxu0
    %4558 = vmatprep.mubr.f32.mxu0 %v4426
    %4559 = vmatmul.mubr.f32.gmra.mxu0 %v4425
    %v4560 = vpop.f32.mrf.mxu0
    %v4561 = vadd.f32 0.0, %v4560
    %v4562 = vpop.f32.mrf.mxu0
    %4563 = vmatprep.mubr.f32.mxu0 %v4430
    %4564 = vmatmul.mubr.f32.gmra.mxu0 %v4429
    %v4565 = vpop.f32.mrf.mxu0
    %v4566 = vadd.f32 0.0, %v4565
    %v4567 = vpop.f32.mrf.mxu0
    %4568 = vmatprep.mubr.f32.mxu0 %v4434
    %4569 = vmatmul.mubr.f32.gmra.mxu0 %v4433
    %v4570 = vpop.f32.mrf.mxu0
    %v4571 = vadd.f32 0.0, %v4570
    %v4572 = vpop.f32.mrf.mxu0
    %4573 = vmatprep.mubr.f32.mxu0 %v4438
    %4574 = vmatmul.mubr.f32.gmra.mxu0 %v4437
    %v4575 = vpop.f32.mrf.mxu0
    %v4576 = vadd.f32 0.0, %v4575
    %v4577 = vpop.f32.mrf.mxu0
    %4578 = vmatprep.mubr.f32.mxu0 %v4442
    %4579 = vmatmul.mubr.f32.gmra.mxu0 %v4441
    %v4580 = vpop.f32.mrf.mxu0
    %v4581 = vadd.f32 0.0, %v4580
    %v4582 = vpop.f32.mrf.mxu0
    %4583 = vmatprep.mubr.f32.mxu0 %v4446
    %4584 = vmatmul.mubr.f32.gmra.mxu0 %v4445
    %v4585 = vpop.f32.mrf.mxu0
    %v4586 = vadd.f32 0.0, %v4585
    %v4587 = vpop.f32.mrf.mxu0
    %4588 = vmatprep.mubr.f32.mxu0 %v4450
    %4589 = vmatmul.mubr.f32.gmra.mxu0 %v4449
    %v4590 = vpop.f32.mrf.mxu0
    %v4591 = vadd.f32 0.0, %v4590
    %v4592 = vpop.f32.mrf.mxu0
    %4593 = vmatprep.mubr.f32.mxu0 %v4454
    %4594 = vmatmul.mubr.f32.gmra.mxu0 %v4453
    %v4595 = vpop.f32.mrf.mxu0
    %v4596 = vadd.f32 0.0, %v4595
    %v4597 = vpop.f32.mrf.mxu0
    %4598 = vmatprep.mubr.f32.mxu0 %v4458
    %4599 = vmatmul.mubr.f32.gmra.mxu0 %v4457
    %v4600 = vpop.f32.mrf.mxu0
    %v4601 = vadd.f32 0.0, %v4600
    %v4602 = vpop.f32.mrf.mxu0
    %4603 = vmatprep.mubr.f32.mxu0 %v4462
    %4604 = vmatmul.mubr.f32.gmra.mxu0 %v4461
    %v4605 = vpop.f32.mrf.mxu0
    %v4606 = vadd.f32 0.0, %v4605
    %v4607 = vpop.f32.mrf.mxu0
    %4608 = vmatprep.mubr.f32.mxu0 %v4466
    %4609 = vmatmul.mubr.f32.gmra.mxu0 %v4465
    %v4610 = vpop.f32.mrf.mxu0
    %v4611 = vadd.f32 0.0, %v4610
    %v4612 = vpop.f32.mrf.mxu0
    %4613 = vdwg.mxu0
    %4614 = vmatprep.subr.mxu0 0.0
    %4615 = vmatpush1.msra.mxu0 %v1943
    %4616 = vmatprep.subr.mxu0 0.0
    %4617 = vmatpush1.msra.mxu0 %v1937
    %4618 = vmatprep.subr.mxu0 0.0
    %4619 = vmatpush1.msra.mxu0 %v1931
    %4620 = vmatprep.subr.mxu0 0.0
    %4621 = vmatpush1.msra.mxu0 %v1925
    %4622 = vmatprep.subr.mxu0 0.0
    %4623 = vmatpush1.msra.mxu0 %v1919
    %4624 = vmatprep.subr.mxu0 0.0
    %4625 = vmatpush1.msra.mxu0 %v1913
    %4626 = vmatprep.subr.mxu0 0.0
    %4627 = vmatpush1.msra.mxu0 %v1907
    %4628 = vmatprep.subr.mxu0 0.0
    %4629 = vmatpush1.msra.mxu0 %v1901
    %4630 = vmatprep.subr.mxu0 0.0
    %4631 = vmatpush1.msra.mxu0 %v1895
    %4632 = vmatprep.subr.mxu0 0.0
    %4633 = vmatpush1.msra.mxu0 %v1889
    %4634 = vmatprep.subr.mxu0 0.0
    %4635 = vmatpush1.msra.mxu0 %v1883
    %4636 = vmatprep.subr.mxu0 0.0
    %4637 = vmatpush1.msra.mxu0 %v1877
    %4638 = vmatprep.subr.mxu0 0.0
    %4639 = vmatpush1.msra.mxu0 %v1871
    %4640 = vmatprep.subr.mxu0 0.0
    %4641 = vmatpush1.msra.mxu0 %v1865
    %4642 = vmatprep.subr.mxu0 0.0
    %4643 = vmatpush1.msra.mxu0 %v1859
    %4644 = vmatprep.subr.mxu0 0.0
    %4645 = vmatpush1.msra.mxu0 %v1853
    %4646 = vmatprep.subr.mxu0 0.0
    %4647 = vmatpush2.msra.mxu0 %v2039
    %4648 = vmatprep.subr.mxu0 0.0
    %4649 = vmatpush2.msra.mxu0 %v2033
    %4650 = vmatprep.subr.mxu0 0.0
    %4651 = vmatpush2.msra.mxu0 %v2027
    %4652 = vmatprep.subr.mxu0 0.0
    %4653 = vmatpush2.msra.mxu0 %v2021
    %4654 = vmatprep.subr.mxu0 0.0
    %4655 = vmatpush2.msra.mxu0 %v2015
    %4656 = vmatprep.subr.mxu0 0.0
    %4657 = vmatpush2.msra.mxu0 %v2009
    %4658 = vmatprep.subr.mxu0 0.0
    %4659 = vmatpush2.msra.mxu0 %v2003
    %4660 = vmatprep.subr.mxu0 0.0
    %4661 = vmatpush2.msra.mxu0 %v1997
    %4662 = vmatprep.subr.mxu0 0.0
    %4663 = vmatpush2.msra.mxu0 %v1991
    %4664 = vmatprep.subr.mxu0 0.0
    %4665 = vmatpush2.msra.mxu0 %v1985
    %4666 = vmatprep.subr.mxu0 0.0
    %4667 = vmatpush2.msra.mxu0 %v1979
    %4668 = vmatprep.subr.mxu0 0.0
    %4669 = vmatpush2.msra.mxu0 %v1973
    %4670 = vmatprep.subr.mxu0 0.0
    %4671 = vmatpush2.msra.mxu0 %v1967
    %4672 = vmatprep.subr.mxu0 0.0
    %4673 = vmatpush2.msra.mxu0 %v1961
    %4674 = vmatprep.subr.mxu0 0.0
    %4675 = vmatpush2.msra.mxu0 %v1955
    %4676 = vmatprep.subr.mxu0 0.0
    %4677 = vmatpush2.msra.mxu0 %v1949
    %4678 = vmatprep.mubr.f32.mxu0 %v4408
    %4679 = vmatmul.mubr.f32.gmra.mxu0 %v4407
    %v4680 = vpop.f32.mrf.mxu0
    %v4681 = vadd.f32 %v4536, %v4680
    %v4682 = vpop.f32.mrf.mxu0
    %4683 = vmatprep.mubr.f32.mxu0 %v4412
    %4684 = vmatmul.mubr.f32.gmra.mxu0 %v4411
    %v4685 = vpop.f32.mrf.mxu0
    %v4686 = vadd.f32 %v4541, %v4685
    %v4687 = vpop.f32.mrf.mxu0
    %4688 = vmatprep.mubr.f32.mxu0 %v4416
    %4689 = vmatmul.mubr.f32.gmra.mxu0 %v4415
    %v4690 = vpop.f32.mrf.mxu0
    %v4691 = vadd.f32 %v4546, %v4690
    %v4692 = vpop.f32.mrf.mxu0
    %4693 = vmatprep.mubr.f32.mxu0 %v4420
    %4694 = vmatmul.mubr.f32.gmra.mxu0 %v4419
    %v4695 = vpop.f32.mrf.mxu0
    %v4696 = vadd.f32 %v4551, %v4695
    %v4697 = vpop.f32.mrf.mxu0
    %4698 = vmatprep.mubr.f32.mxu0 %v4424
    %4699 = vmatmul.mubr.f32.gmra.mxu0 %v4423
    %v4700 = vpop.f32.mrf.mxu0
    %v4701 = vadd.f32 %v4556, %v4700
    %v4702 = vpop.f32.mrf.mxu0
    %4703 = vmatprep.mubr.f32.mxu0 %v4428
    %4704 = vmatmul.mubr.f32.gmra.mxu0 %v4427
    %v4705 = vpop.f32.mrf.mxu0
    %v4706 = vadd.f32 %v4561, %v4705
    %v4707 = vpop.f32.mrf.mxu0
    %4708 = vmatprep.mubr.f32.mxu0 %v4432
    %4709 = vmatmul.mubr.f32.gmra.mxu0 %v4431
    %v4710 = vpop.f32.mrf.mxu0
    %v4711 = vadd.f32 %v4566, %v4710
    %v4712 = vpop.f32.mrf.mxu0
    %4713 = vmatprep.mubr.f32.mxu0 %v4436
    %4714 = vmatmul.mubr.f32.gmra.mxu0 %v4435
    %v4715 = vpop.f32.mrf.mxu0
    %v4716 = vadd.f32 %v4571, %v4715
    %v4717 = vpop.f32.mrf.mxu0
    %4718 = vmatprep.mubr.f32.mxu0 %v4440
    %4719 = vmatmul.mubr.f32.gmra.mxu0 %v4439
    %v4720 = vpop.f32.mrf.mxu0
    %v4721 = vadd.f32 %v4576, %v4720
    %v4722 = vpop.f32.mrf.mxu0
    %4723 = vmatprep.mubr.f32.mxu0 %v4444
    %4724 = vmatmul.mubr.f32.gmra.mxu0 %v4443
    %v4725 = vpop.f32.mrf.mxu0
    %v4726 = vadd.f32 %v4581, %v4725
    %v4727 = vpop.f32.mrf.mxu0
    %4728 = vmatprep.mubr.f32.mxu0 %v4448
    %4729 = vmatmul.mubr.f32.gmra.mxu0 %v4447
    %v4730 = vpop.f32.mrf.mxu0
    %v4731 = vadd.f32 %v4586, %v4730
    %v4732 = vpop.f32.mrf.mxu0
    %4733 = vmatprep.mubr.f32.mxu0 %v4452
    %4734 = vmatmul.mubr.f32.gmra.mxu0 %v4451
    %v4735 = vpop.f32.mrf.mxu0
    %v4736 = vadd.f32 %v4591, %v4735
    %v4737 = vpop.f32.mrf.mxu0
    %4738 = vmatprep.mubr.f32.mxu0 %v4456
    %4739 = vmatmul.mubr.f32.gmra.mxu0 %v4455
    %v4740 = vpop.f32.mrf.mxu0
    %v4741 = vadd.f32 %v4596, %v4740
    %v4742 = vpop.f32.mrf.mxu0
    %4743 = vmatprep.mubr.f32.mxu0 %v4460
    %4744 = vmatmul.mubr.f32.gmra.mxu0 %v4459
    %v4745 = vpop.f32.mrf.mxu0
    %v4746 = vadd.f32 %v4601, %v4745
    %v4747 = vpop.f32.mrf.mxu0
    %4748 = vmatprep.mubr.f32.mxu0 %v4464
    %4749 = vmatmul.mubr.f32.gmra.mxu0 %v4463
    %v4750 = vpop.f32.mrf.mxu0
    %v4751 = vadd.f32 %v4606, %v4750
    %v4752 = vpop.f32.mrf.mxu0
    %4753 = vmatprep.mubr.f32.mxu0 %v4468
    %4754 = vmatmul.mubr.f32.gmra.mxu0 %v4467
    %v4755 = vpop.f32.mrf.mxu0
    %v4756 = vadd.f32 %v4611, %v4755
    %v4757 = vpop.f32.mrf.mxu0
    %4758 = vdwg.mxu0
    %v4759 = vadd.f32 %v4388, %v4681
    %v4760 = vadd.f32 %v4389, %v4686
    %v4761 = vadd.f32 %v4390, %v4691
    %v4762 = vadd.f32 %v4391, %v4696
    %v4763 = vadd.f32 %v4392, %v4701
    %v4764 = vadd.f32 %v4393, %v4706
    %v4765 = vadd.f32 %v4394, %v4711
    %v4766 = vadd.f32 %v4395, %v4716
    %v4767 = vadd.f32 %v4396, %v4721
    %v4768 = vadd.f32 %v4397, %v4726
    %v4769 = vadd.f32 %v4398, %v4731
    %v4770 = vadd.f32 %v4399, %v4736
    %v4771 = vadd.f32 %v4400, %v4741
    %v4772 = vadd.f32 %v4401, %v4746
    %v4773 = vadd.f32 %v4402, %v4751
    %v4774 = vadd.f32 %v4403, %v4756
    %s4775 = scalar_lea.vmem %s5, 2048
    %v4776 = vld [vmem:[%s4775] sm:$0xff]
    %v4777 = vld [vmem:[%s4775 + $0x8] sm:$0xff]
    %v4778 = vld [vmem:[%s4775 + $0x10] sm:$0xff]
    %v4779 = vld [vmem:[%s4775 + $0x18] sm:$0xff]
    %v4780 = vld [vmem:[%s4775 + $0x20] sm:$0xff]
    %v4781 = vld [vmem:[%s4775 + $0x28] sm:$0xff]
    %v4782 = vld [vmem:[%s4775 + $0x30] sm:$0xff]
    %v4783 = vld [vmem:[%s4775 + $0x38] sm:$0xff]
    %v4784 = vld [vmem:[%s4775 + $0x40] sm:$0xff]
    %v4785 = vld [vmem:[%s4775 + $0x48] sm:$0xff]
    %v4786 = vld [vmem:[%s4775 + $0x50] sm:$0xff]
    %v4787 = vld [vmem:[%s4775 + $0x58] sm:$0xff]
    %v4788 = vld [vmem:[%s4775 + $0x60] sm:$0xff]
    %v4789 = vld [vmem:[%s4775 + $0x68] sm:$0xff]
    %v4790 = vld [vmem:[%s4775 + $0x70] sm:$0xff]
    %v4791 = vld [vmem:[%s4775 + $0x78] sm:$0xff]
    %v4792 = vld [vmem:[%s4775 + $0x80] sm:$0xff]
    %v4793 = vld [vmem:[%s4775 + $0x88] sm:$0xff]
    %v4794 = vld [vmem:[%s4775 + $0x90] sm:$0xff]
    %v4795 = vld [vmem:[%s4775 + $0x98] sm:$0xff]
    %v4796 = vld [vmem:[%s4775 + $0xa0] sm:$0xff]
    %v4797 = vld [vmem:[%s4775 + $0xa8] sm:$0xff]
    %v4798 = vld [vmem:[%s4775 + $0xb0] sm:$0xff]
    %v4799 = vld [vmem:[%s4775 + $0xb8] sm:$0xff]
    %v4800 = vld [vmem:[%s4775 + $0xc0] sm:$0xff]
    %v4801 = vld [vmem:[%s4775 + $0xc8] sm:$0xff]
    %v4802 = vld [vmem:[%s4775 + $0xd0] sm:$0xff]
    %v4803 = vld [vmem:[%s4775 + $0xd8] sm:$0xff]
    %v4804 = vld [vmem:[%s4775 + $0xe0] sm:$0xff]
    %v4805 = vld [vmem:[%s4775 + $0xe8] sm:$0xff]
    %v4806 = vld [vmem:[%s4775 + $0xf0] sm:$0xff]
    %v4807 = vld [vmem:[%s4775 + $0xf8] sm:$0xff]
    %v4808 = vld [vmem:[%s4775 + $0x100] sm:$0xff]
    %v4809 = vld [vmem:[%s4775 + $0x108] sm:$0xff]
    %v4810 = vld [vmem:[%s4775 + $0x110] sm:$0xff]
    %v4811 = vld [vmem:[%s4775 + $0x118] sm:$0xff]
    %v4812 = vld [vmem:[%s4775 + $0x120] sm:$0xff]
    %v4813 = vld [vmem:[%s4775 + $0x128] sm:$0xff]
    %v4814 = vld [vmem:[%s4775 + $0x130] sm:$0xff]
    %v4815 = vld [vmem:[%s4775 + $0x138] sm:$0xff]
    %v4816 = vld [vmem:[%s4775 + $0x140] sm:$0xff]
    %v4817 = vld [vmem:[%s4775 + $0x148] sm:$0xff]
    %v4818 = vld [vmem:[%s4775 + $0x150] sm:$0xff]
    %v4819 = vld [vmem:[%s4775 + $0x158] sm:$0xff]
    %v4820 = vld [vmem:[%s4775 + $0x160] sm:$0xff]
    %v4821 = vld [vmem:[%s4775 + $0x168] sm:$0xff]
    %v4822 = vld [vmem:[%s4775 + $0x170] sm:$0xff]
    %v4823 = vld [vmem:[%s4775 + $0x178] sm:$0xff]
    %v4824 = vld [vmem:[%s4775 + $0x180] sm:$0xff]
    %v4825 = vld [vmem:[%s4775 + $0x188] sm:$0xff]
    %v4826 = vld [vmem:[%s4775 + $0x190] sm:$0xff]
    %v4827 = vld [vmem:[%s4775 + $0x198] sm:$0xff]
    %v4828 = vld [vmem:[%s4775 + $0x1a0] sm:$0xff]
    %v4829 = vld [vmem:[%s4775 + $0x1a8] sm:$0xff]
    %v4830 = vld [vmem:[%s4775 + $0x1b0] sm:$0xff]
    %v4831 = vld [vmem:[%s4775 + $0x1b8] sm:$0xff]
    %v4832 = vld [vmem:[%s4775 + $0x1c0] sm:$0xff]
    %v4833 = vld [vmem:[%s4775 + $0x1c8] sm:$0xff]
    %v4834 = vld [vmem:[%s4775 + $0x1d0] sm:$0xff]
    %v4835 = vld [vmem:[%s4775 + $0x1d8] sm:$0xff]
    %v4836 = vld [vmem:[%s4775 + $0x1e0] sm:$0xff]
    %v4837 = vld [vmem:[%s4775 + $0x1e8] sm:$0xff]
    %v4838 = vld [vmem:[%s4775 + $0x1f0] sm:$0xff]
    %v4839 = vld [vmem:[%s4775 + $0x1f8] sm:$0xff]
    %4840 = vmatprep.subr.mxu0 0.0
    %4841 = vmatpush1.msra.mxu0 %v2198
    %4842 = vmatprep.subr.mxu0 0.0
    %4843 = vmatpush1.msra.mxu0 %v2192
    %4844 = vmatprep.subr.mxu0 0.0
    %4845 = vmatpush1.msra.mxu0 %v2186
    %4846 = vmatprep.subr.mxu0 0.0
    %4847 = vmatpush1.msra.mxu0 %v2180
    %4848 = vmatprep.subr.mxu0 0.0
    %4849 = vmatpush1.msra.mxu0 %v2174
    %4850 = vmatprep.subr.mxu0 0.0
    %4851 = vmatpush1.msra.mxu0 %v2168
    %4852 = vmatprep.subr.mxu0 0.0
    %4853 = vmatpush1.msra.mxu0 %v2162
    %4854 = vmatprep.subr.mxu0 0.0
    %4855 = vmatpush1.msra.mxu0 %v2156
    %4856 = vmatprep.subr.mxu0 0.0
    %4857 = vmatpush1.msra.mxu0 %v2150
    %4858 = vmatprep.subr.mxu0 0.0
    %4859 = vmatpush1.msra.mxu0 %v2144
    %4860 = vmatprep.subr.mxu0 0.0
    %4861 = vmatpush1.msra.mxu0 %v2138
    %4862 = vmatprep.subr.mxu0 0.0
    %4863 = vmatpush1.msra.mxu0 %v2132
    %4864 = vmatprep.subr.mxu0 0.0
    %4865 = vmatpush1.msra.mxu0 %v2126
    %4866 = vmatprep.subr.mxu0 0.0
    %4867 = vmatpush1.msra.mxu0 %v2120
    %4868 = vmatprep.subr.mxu0 0.0
    %4869 = vmatpush1.msra.mxu0 %v2114
    %4870 = vmatprep.subr.mxu0 0.0
    %4871 = vmatpush1.msra.mxu0 %v2108
    %4872 = vmatprep.subr.mxu0 0.0
    %4873 = vmatpush2.msra.mxu0 %v2294
    %4874 = vmatprep.subr.mxu0 0.0
    %4875 = vmatpush2.msra.mxu0 %v2288
    %4876 = vmatprep.subr.mxu0 0.0
    %4877 = vmatpush2.msra.mxu0 %v2282
    %4878 = vmatprep.subr.mxu0 0.0
    %4879 = vmatpush2.msra.mxu0 %v2276
    %4880 = vmatprep.subr.mxu0 0.0
    %4881 = vmatpush2.msra.mxu0 %v2270
    %4882 = vmatprep.subr.mxu0 0.0
    %4883 = vmatpush2.msra.mxu0 %v2264
    %4884 = vmatprep.subr.mxu0 0.0
    %4885 = vmatpush2.msra.mxu0 %v2258
    %4886 = vmatprep.subr.mxu0 0.0
    %4887 = vmatpush2.msra.mxu0 %v2252
    %4888 = vmatprep.subr.mxu0 0.0
    %4889 = vmatpush2.msra.mxu0 %v2246
    %4890 = vmatprep.subr.mxu0 0.0
    %4891 = vmatpush2.msra.mxu0 %v2240
    %4892 = vmatprep.subr.mxu0 0.0
    %4893 = vmatpush2.msra.mxu0 %v2234
    %4894 = vmatprep.subr.mxu0 0.0
    %4895 = vmatpush2.msra.mxu0 %v2228
    %4896 = vmatprep.subr.mxu0 0.0
    %4897 = vmatpush2.msra.mxu0 %v2222
    %4898 = vmatprep.subr.mxu0 0.0
    %4899 = vmatpush2.msra.mxu0 %v2216
    %4900 = vmatprep.subr.mxu0 0.0
    %4901 = vmatpush2.msra.mxu0 %v2210
    %4902 = vmatprep.subr.mxu0 0.0
    %4903 = vmatpush2.msra.mxu0 %v2204
    %4904 = vmatprep.mubr.f32.mxu0 %v4777
    %4905 = vmatmul.mubr.f32.gmra.mxu0 %v4776
    %v4906 = vpop.f32.mrf.mxu0
    %v4907 = vadd.f32 0.0, %v4906
    %v4908 = vpop.f32.mrf.mxu0
    %4909 = vmatprep.mubr.f32.mxu0 %v4781
    %4910 = vmatmul.mubr.f32.gmra.mxu0 %v4780
    %v4911 = vpop.f32.mrf.mxu0
    %v4912 = vadd.f32 0.0, %v4911
    %v4913 = vpop.f32.mrf.mxu0
    %4914 = vmatprep.mubr.f32.mxu0 %v4785
    %4915 = vmatmul.mubr.f32.gmra.mxu0 %v4784
    %v4916 = vpop.f32.mrf.mxu0
    %v4917 = vadd.f32 0.0, %v4916
    %v4918 = vpop.f32.mrf.mxu0
    %4919 = vmatprep.mubr.f32.mxu0 %v4789
    %4920 = vmatmul.mubr.f32.gmra.mxu0 %v4788
    %v4921 = vpop.f32.mrf.mxu0
    %v4922 = vadd.f32 0.0, %v4921
    %v4923 = vpop.f32.mrf.mxu0
    %4924 = vmatprep.mubr.f32.mxu0 %v4793
    %4925 = vmatmul.mubr.f32.gmra.mxu0 %v4792
    %v4926 = vpop.f32.mrf.mxu0
    %v4927 = vadd.f32 0.0, %v4926
    %v4928 = vpop.f32.mrf.mxu0
    %4929 = vmatprep.mubr.f32.mxu0 %v4797
    %4930 = vmatmul.mubr.f32.gmra.mxu0 %v4796
    %v4931 = vpop.f32.mrf.mxu0
    %v4932 = vadd.f32 0.0, %v4931
    %v4933 = vpop.f32.mrf.mxu0
    %4934 = vmatprep.mubr.f32.mxu0 %v4801
    %4935 = vmatmul.mubr.f32.gmra.mxu0 %v4800
    %v4936 = vpop.f32.mrf.mxu0
    %v4937 = vadd.f32 0.0, %v4936
    %v4938 = vpop.f32.mrf.mxu0
    %4939 = vmatprep.mubr.f32.mxu0 %v4805
    %4940 = vmatmul.mubr.f32.gmra.mxu0 %v4804
    %v4941 = vpop.f32.mrf.mxu0
    %v4942 = vadd.f32 0.0, %v4941
    %v4943 = vpop.f32.mrf.mxu0
    %4944 = vmatprep.mubr.f32.mxu0 %v4809
    %4945 = vmatmul.mubr.f32.gmra.mxu0 %v4808
    %v4946 = vpop.f32.mrf.mxu0
    %v4947 = vadd.f32 0.0, %v4946
    %v4948 = vpop.f32.mrf.mxu0
    %4949 = vmatprep.mubr.f32.mxu0 %v4813
    %4950 = vmatmul.mubr.f32.gmra.mxu0 %v4812
    %v4951 = vpop.f32.mrf.mxu0
    %v4952 = vadd.f32 0.0, %v4951
    %v4953 = vpop.f32.mrf.mxu0
    %4954 = vmatprep.mubr.f32.mxu0 %v4817
    %4955 = vmatmul.mubr.f32.gmra.mxu0 %v4816
    %v4956 = vpop.f32.mrf.mxu0
    %v4957 = vadd.f32 0.0, %v4956
    %v4958 = vpop.f32.mrf.mxu0
    %4959 = vmatprep.mubr.f32.mxu0 %v4821
    %4960 = vmatmul.mubr.f32.gmra.mxu0 %v4820
    %v4961 = vpop.f32.mrf.mxu0
    %v4962 = vadd.f32 0.0, %v4961
    %v4963 = vpop.f32.mrf.mxu0
    %4964 = vmatprep.mubr.f32.mxu0 %v4825
    %4965 = vmatmul.mubr.f32.gmra.mxu0 %v4824
    %v4966 = vpop.f32.mrf.mxu0
    %v4967 = vadd.f32 0.0, %v4966
    %v4968 = vpop.f32.mrf.mxu0
    %4969 = vmatprep.mubr.f32.mxu0 %v4829
    %4970 = vmatmul.mubr.f32.gmra.mxu0 %v4828
    %v4971 = vpop.f32.mrf.mxu0
    %v4972 = vadd.f32 0.0, %v4971
    %v4973 = vpop.f32.mrf.mxu0
    %4974 = vmatprep.mubr.f32.mxu0 %v4833
    %4975 = vmatmul.mubr.f32.gmra.mxu0 %v4832
    %v4976 = vpop.f32.mrf.mxu0
    %v4977 = vadd.f32 0.0, %v4976
    %v4978 = vpop.f32.mrf.mxu0
    %4979 = vmatprep.mubr.f32.mxu0 %v4837
    %4980 = vmatmul.mubr.f32.gmra.mxu0 %v4836
    %v4981 = vpop.f32.mrf.mxu0
    %v4982 = vadd.f32 0.0, %v4981
    %v4983 = vpop.f32.mrf.mxu0
    %4984 = vdwg.mxu0
    %4985 = vmatprep.subr.mxu0 0.0
    %4986 = vmatpush1.msra.mxu0 %v2390
    %4987 = vmatprep.subr.mxu0 0.0
    %4988 = vmatpush1.msra.mxu0 %v2384
    %4989 = vmatprep.subr.mxu0 0.0
    %4990 = vmatpush1.msra.mxu0 %v2378
    %4991 = vmatprep.subr.mxu0 0.0
    %4992 = vmatpush1.msra.mxu0 %v2372
    %4993 = vmatprep.subr.mxu0 0.0
    %4994 = vmatpush1.msra.mxu0 %v2366
    %4995 = vmatprep.subr.mxu0 0.0
    %4996 = vmatpush1.msra.mxu0 %v2360
    %4997 = vmatprep.subr.mxu0 0.0
    %4998 = vmatpush1.msra.mxu0 %v2354
    %4999 = vmatprep.subr.mxu0 0.0
    %5000 = vmatpush1.msra.mxu0 %v2348
    %5001 = vmatprep.subr.mxu0 0.0
    %5002 = vmatpush1.msra.mxu0 %v2342
    %5003 = vmatprep.subr.mxu0 0.0
    %5004 = vmatpush1.msra.mxu0 %v2336
    %5005 = vmatprep.subr.mxu0 0.0
    %5006 = vmatpush1.msra.mxu0 %v2330
    %5007 = vmatprep.subr.mxu0 0.0
    %5008 = vmatpush1.msra.mxu0 %v2324
    %5009 = vmatprep.subr.mxu0 0.0
    %5010 = vmatpush1.msra.mxu0 %v2318
    %5011 = vmatprep.subr.mxu0 0.0
    %5012 = vmatpush1.msra.mxu0 %v2312
    %5013 = vmatprep.subr.mxu0 0.0
    %5014 = vmatpush1.msra.mxu0 %v2306
    %5015 = vmatprep.subr.mxu0 0.0
    %5016 = vmatpush1.msra.mxu0 %v2300
    %5017 = vmatprep.subr.mxu0 0.0
    %5018 = vmatpush2.msra.mxu0 %v2486
    %5019 = vmatprep.subr.mxu0 0.0
    %5020 = vmatpush2.msra.mxu0 %v2480
    %5021 = vmatprep.subr.mxu0 0.0
    %5022 = vmatpush2.msra.mxu0 %v2474
    %5023 = vmatprep.subr.mxu0 0.0
    %5024 = vmatpush2.msra.mxu0 %v2468
    %5025 = vmatprep.subr.mxu0 0.0
    %5026 = vmatpush2.msra.mxu0 %v2462
    %5027 = vmatprep.subr.mxu0 0.0
    %5028 = vmatpush2.msra.mxu0 %v2456
    %5029 = vmatprep.subr.mxu0 0.0
    %5030 = vmatpush2.msra.mxu0 %v2450
    %5031 = vmatprep.subr.mxu0 0.0
    %5032 = vmatpush2.msra.mxu0 %v2444
    %5033 = vmatprep.subr.mxu0 0.0
    %5034 = vmatpush2.msra.mxu0 %v2438
    %5035 = vmatprep.subr.mxu0 0.0
    %5036 = vmatpush2.msra.mxu0 %v2432
    %5037 = vmatprep.subr.mxu0 0.0
    %5038 = vmatpush2.msra.mxu0 %v2426
    %5039 = vmatprep.subr.mxu0 0.0
    %5040 = vmatpush2.msra.mxu0 %v2420
    %5041 = vmatprep.subr.mxu0 0.0
    %5042 = vmatpush2.msra.mxu0 %v2414
    %5043 = vmatprep.subr.mxu0 0.0
    %5044 = vmatpush2.msra.mxu0 %v2408
    %5045 = vmatprep.subr.mxu0 0.0
    %5046 = vmatpush2.msra.mxu0 %v2402
    %5047 = vmatprep.subr.mxu0 0.0
    %5048 = vmatpush2.msra.mxu0 %v2396
    %5049 = vmatprep.mubr.f32.mxu0 %v4779
    %5050 = vmatmul.mubr.f32.gmra.mxu0 %v4778
    %v5051 = vpop.f32.mrf.mxu0
    %v5052 = vadd.f32 %v4907, %v5051
    %v5053 = vpop.f32.mrf.mxu0
    %5054 = vmatprep.mubr.f32.mxu0 %v4783
    %5055 = vmatmul.mubr.f32.gmra.mxu0 %v4782
    %v5056 = vpop.f32.mrf.mxu0
    %v5057 = vadd.f32 %v4912, %v5056
    %v5058 = vpop.f32.mrf.mxu0
    %5059 = vmatprep.mubr.f32.mxu0 %v4787
    %5060 = vmatmul.mubr.f32.gmra.mxu0 %v4786
    %v5061 = vpop.f32.mrf.mxu0
    %v5062 = vadd.f32 %v4917, %v5061
    %v5063 = vpop.f32.mrf.mxu0
    %5064 = vmatprep.mubr.f32.mxu0 %v4791
    %5065 = vmatmul.mubr.f32.gmra.mxu0 %v4790
    %v5066 = vpop.f32.mrf.mxu0
    %v5067 = vadd.f32 %v4922, %v5066
    %v5068 = vpop.f32.mrf.mxu0
    %5069 = vmatprep.mubr.f32.mxu0 %v4795
    %5070 = vmatmul.mubr.f32.gmra.mxu0 %v4794
    %v5071 = vpop.f32.mrf.mxu0
    %v5072 = vadd.f32 %v4927, %v5071
    %v5073 = vpop.f32.mrf.mxu0
    %5074 = vmatprep.mubr.f32.mxu0 %v4799
    %5075 = vmatmul.mubr.f32.gmra.mxu0 %v4798
    %v5076 = vpop.f32.mrf.mxu0
    %v5077 = vadd.f32 %v4932, %v5076
    %v5078 = vpop.f32.mrf.mxu0
    %5079 = vmatprep.mubr.f32.mxu0 %v4803
    %5080 = vmatmul.mubr.f32.gmra.mxu0 %v4802
    %v5081 = vpop.f32.mrf.mxu0
    %v5082 = vadd.f32 %v4937, %v5081
    %v5083 = vpop.f32.mrf.mxu0
    %5084 = vmatprep.mubr.f32.mxu0 %v4807
    %5085 = vmatmul.mubr.f32.gmra.mxu0 %v4806
    %v5086 = vpop.f32.mrf.mxu0
    %v5087 = vadd.f32 %v4942, %v5086
    %v5088 = vpop.f32.mrf.mxu0
    %5089 = vmatprep.mubr.f32.mxu0 %v4811
    %5090 = vmatmul.mubr.f32.gmra.mxu0 %v4810
    %v5091 = vpop.f32.mrf.mxu0
    %v5092 = vadd.f32 %v4947, %v5091
    %v5093 = vpop.f32.mrf.mxu0
    %5094 = vmatprep.mubr.f32.mxu0 %v4815
    %5095 = vmatmul.mubr.f32.gmra.mxu0 %v4814
    %v5096 = vpop.f32.mrf.mxu0
    %v5097 = vadd.f32 %v4952, %v5096
    %v5098 = vpop.f32.mrf.mxu0
    %5099 = vmatprep.mubr.f32.mxu0 %v4819
    %5100 = vmatmul.mubr.f32.gmra.mxu0 %v4818
    %v5101 = vpop.f32.mrf.mxu0
    %v5102 = vadd.f32 %v4957, %v5101
    %v5103 = vpop.f32.mrf.mxu0
    %5104 = vmatprep.mubr.f32.mxu0 %v4823
    %5105 = vmatmul.mubr.f32.gmra.mxu0 %v4822
    %v5106 = vpop.f32.mrf.mxu0
    %v5107 = vadd.f32 %v4962, %v5106
    %v5108 = vpop.f32.mrf.mxu0
    %5109 = vmatprep.mubr.f32.mxu0 %v4827
    %5110 = vmatmul.mubr.f32.gmra.mxu0 %v4826
    %v5111 = vpop.f32.mrf.mxu0
    %v5112 = vadd.f32 %v4967, %v5111
    %v5113 = vpop.f32.mrf.mxu0
    %5114 = vmatprep.mubr.f32.mxu0 %v4831
    %5115 = vmatmul.mubr.f32.gmra.mxu0 %v4830
    %v5116 = vpop.f32.mrf.mxu0
    %v5117 = vadd.f32 %v4972, %v5116
    %v5118 = vpop.f32.mrf.mxu0
    %5119 = vmatprep.mubr.f32.mxu0 %v4835
    %5120 = vmatmul.mubr.f32.gmra.mxu0 %v4834
    %v5121 = vpop.f32.mrf.mxu0
    %v5122 = vadd.f32 %v4977, %v5121
    %v5123 = vpop.f32.mrf.mxu0
    %5124 = vmatprep.mubr.f32.mxu0 %v4839
    %5125 = vmatmul.mubr.f32.gmra.mxu0 %v4838
    %v5126 = vpop.f32.mrf.mxu0
    %v5127 = vadd.f32 %v4982, %v5126
    %v5128 = vpop.f32.mrf.mxu0
    %5129 = vdwg.mxu0
    %v5130 = vadd.f32 %v4759, %v5052
    %v5131 = vadd.f32 %v4760, %v5057
    %v5132 = vadd.f32 %v4761, %v5062
    %v5133 = vadd.f32 %v4762, %v5067
    %v5134 = vadd.f32 %v4763, %v5072
    %v5135 = vadd.f32 %v4764, %v5077
    %v5136 = vadd.f32 %v4765, %v5082
    %v5137 = vadd.f32 %v4766, %v5087
    %v5138 = vadd.f32 %v4767, %v5092
    %v5139 = vadd.f32 %v4768, %v5097
    %v5140 = vadd.f32 %v4769, %v5102
    %v5141 = vadd.f32 %v4770, %v5107
    %v5142 = vadd.f32 %v4771, %v5112
    %v5143 = vadd.f32 %v4772, %v5117
    %v5144 = vadd.f32 %v4773, %v5122
    %v5145 = vadd.f32 %v4774, %v5127
    %s5146 = scalar_lea.vmem %s5, 2560
    %v5147 = vld [vmem:[%s5146] sm:$0xff]
    %v5148 = vld [vmem:[%s5146 + $0x8] sm:$0xff]
    %v5149 = vld [vmem:[%s5146 + $0x10] sm:$0xff]
    %v5150 = vld [vmem:[%s5146 + $0x18] sm:$0xff]
    %v5151 = vld [vmem:[%s5146 + $0x20] sm:$0xff]
    %v5152 = vld [vmem:[%s5146 + $0x28] sm:$0xff]
    %v5153 = vld [vmem:[%s5146 + $0x30] sm:$0xff]
    %v5154 = vld [vmem:[%s5146 + $0x38] sm:$0xff]
    %v5155 = vld [vmem:[%s5146 + $0x40] sm:$0xff]
    %v5156 = vld [vmem:[%s5146 + $0x48] sm:$0xff]
    %v5157 = vld [vmem:[%s5146 + $0x50] sm:$0xff]
    %v5158 = vld [vmem:[%s5146 + $0x58] sm:$0xff]
    %v5159 = vld [vmem:[%s5146 + $0x60] sm:$0xff]
    %v5160 = vld [vmem:[%s5146 + $0x68] sm:$0xff]
    %v5161 = vld [vmem:[%s5146 + $0x70] sm:$0xff]
    %v5162 = vld [vmem:[%s5146 + $0x78] sm:$0xff]
    %v5163 = vld [vmem:[%s5146 + $0x80] sm:$0xff]
    %v5164 = vld [vmem:[%s5146 + $0x88] sm:$0xff]
    %v5165 = vld [vmem:[%s5146 + $0x90] sm:$0xff]
    %v5166 = vld [vmem:[%s5146 + $0x98] sm:$0xff]
    %v5167 = vld [vmem:[%s5146 + $0xa0] sm:$0xff]
    %v5168 = vld [vmem:[%s5146 + $0xa8] sm:$0xff]
    %v5169 = vld [vmem:[%s5146 + $0xb0] sm:$0xff]
    %v5170 = vld [vmem:[%s5146 + $0xb8] sm:$0xff]
    %v5171 = vld [vmem:[%s5146 + $0xc0] sm:$0xff]
    %v5172 = vld [vmem:[%s5146 + $0xc8] sm:$0xff]
    %v5173 = vld [vmem:[%s5146 + $0xd0] sm:$0xff]
    %v5174 = vld [vmem:[%s5146 + $0xd8] sm:$0xff]
    %v5175 = vld [vmem:[%s5146 + $0xe0] sm:$0xff]
    %v5176 = vld [vmem:[%s5146 + $0xe8] sm:$0xff]
    %v5177 = vld [vmem:[%s5146 + $0xf0] sm:$0xff]
    %v5178 = vld [vmem:[%s5146 + $0xf8] sm:$0xff]
    %v5179 = vld [vmem:[%s5146 + $0x100] sm:$0xff]
    %v5180 = vld [vmem:[%s5146 + $0x108] sm:$0xff]
    %v5181 = vld [vmem:[%s5146 + $0x110] sm:$0xff]
    %v5182 = vld [vmem:[%s5146 + $0x118] sm:$0xff]
    %v5183 = vld [vmem:[%s5146 + $0x120] sm:$0xff]
    %v5184 = vld [vmem:[%s5146 + $0x128] sm:$0xff]
    %v5185 = vld [vmem:[%s5146 + $0x130] sm:$0xff]
    %v5186 = vld [vmem:[%s5146 + $0x138] sm:$0xff]
    %v5187 = vld [vmem:[%s5146 + $0x140] sm:$0xff]
    %v5188 = vld [vmem:[%s5146 + $0x148] sm:$0xff]
    %v5189 = vld [vmem:[%s5146 + $0x150] sm:$0xff]
    %v5190 = vld [vmem:[%s5146 + $0x158] sm:$0xff]
    %v5191 = vld [vmem:[%s5146 + $0x160] sm:$0xff]
    %v5192 = vld [vmem:[%s5146 + $0x168] sm:$0xff]
    %v5193 = vld [vmem:[%s5146 + $0x170] sm:$0xff]
    %v5194 = vld [vmem:[%s5146 + $0x178] sm:$0xff]
    %v5195 = vld [vmem:[%s5146 + $0x180] sm:$0xff]
    %v5196 = vld [vmem:[%s5146 + $0x188] sm:$0xff]
    %v5197 = vld [vmem:[%s5146 + $0x190] sm:$0xff]
    %v5198 = vld [vmem:[%s5146 + $0x198] sm:$0xff]
    %v5199 = vld [vmem:[%s5146 + $0x1a0] sm:$0xff]
    %v5200 = vld [vmem:[%s5146 + $0x1a8] sm:$0xff]
    %v5201 = vld [vmem:[%s5146 + $0x1b0] sm:$0xff]
    %v5202 = vld [vmem:[%s5146 + $0x1b8] sm:$0xff]
    %v5203 = vld [vmem:[%s5146 + $0x1c0] sm:$0xff]
    %v5204 = vld [vmem:[%s5146 + $0x1c8] sm:$0xff]
    %v5205 = vld [vmem:[%s5146 + $0x1d0] sm:$0xff]
    %v5206 = vld [vmem:[%s5146 + $0x1d8] sm:$0xff]
    %v5207 = vld [vmem:[%s5146 + $0x1e0] sm:$0xff]
    %v5208 = vld [vmem:[%s5146 + $0x1e8] sm:$0xff]
    %v5209 = vld [vmem:[%s5146 + $0x1f0] sm:$0xff]
    %v5210 = vld [vmem:[%s5146 + $0x1f8] sm:$0xff]
    %5211 = vmatprep.subr.mxu0 0.0
    %5212 = vmatpush1.msra.mxu0 %v2200
    %5213 = vmatprep.subr.mxu0 0.0
    %5214 = vmatpush1.msra.mxu0 %v2194
    %5215 = vmatprep.subr.mxu0 0.0
    %5216 = vmatpush1.msra.mxu0 %v2188
    %5217 = vmatprep.subr.mxu0 0.0
    %5218 = vmatpush1.msra.mxu0 %v2182
    %5219 = vmatprep.subr.mxu0 0.0
    %5220 = vmatpush1.msra.mxu0 %v2176
    %5221 = vmatprep.subr.mxu0 0.0
    %5222 = vmatpush1.msra.mxu0 %v2170
    %5223 = vmatprep.subr.mxu0 0.0
    %5224 = vmatpush1.msra.mxu0 %v2164
    %5225 = vmatprep.subr.mxu0 0.0
    %5226 = vmatpush1.msra.mxu0 %v2158
    %5227 = vmatprep.subr.mxu0 0.0
    %5228 = vmatpush1.msra.mxu0 %v2152
    %5229 = vmatprep.subr.mxu0 0.0
    %5230 = vmatpush1.msra.mxu0 %v2146
    %5231 = vmatprep.subr.mxu0 0.0
    %5232 = vmatpush1.msra.mxu0 %v2140
    %5233 = vmatprep.subr.mxu0 0.0
    %5234 = vmatpush1.msra.mxu0 %v2134
    %5235 = vmatprep.subr.mxu0 0.0
    %5236 = vmatpush1.msra.mxu0 %v2128
    %5237 = vmatprep.subr.mxu0 0.0
    %5238 = vmatpush1.msra.mxu0 %v2122
    %5239 = vmatprep.subr.mxu0 0.0
    %5240 = vmatpush1.msra.mxu0 %v2116
    %5241 = vmatprep.subr.mxu0 0.0
    %5242 = vmatpush1.msra.mxu0 %v2110
    %5243 = vmatprep.subr.mxu0 0.0
    %5244 = vmatpush2.msra.mxu0 %v2296
    %5245 = vmatprep.subr.mxu0 0.0
    %5246 = vmatpush2.msra.mxu0 %v2290
    %5247 = vmatprep.subr.mxu0 0.0
    %5248 = vmatpush2.msra.mxu0 %v2284
    %5249 = vmatprep.subr.mxu0 0.0
    %5250 = vmatpush2.msra.mxu0 %v2278
    %5251 = vmatprep.subr.mxu0 0.0
    %5252 = vmatpush2.msra.mxu0 %v2272
    %5253 = vmatprep.subr.mxu0 0.0
    %5254 = vmatpush2.msra.mxu0 %v2266
    %5255 = vmatprep.subr.mxu0 0.0
    %5256 = vmatpush2.msra.mxu0 %v2260
    %5257 = vmatprep.subr.mxu0 0.0
    %5258 = vmatpush2.msra.mxu0 %v2254
    %5259 = vmatprep.subr.mxu0 0.0
    %5260 = vmatpush2.msra.mxu0 %v2248
    %5261 = vmatprep.subr.mxu0 0.0
    %5262 = vmatpush2.msra.mxu0 %v2242
    %5263 = vmatprep.subr.mxu0 0.0
    %5264 = vmatpush2.msra.mxu0 %v2236
    %5265 = vmatprep.subr.mxu0 0.0
    %5266 = vmatpush2.msra.mxu0 %v2230
    %5267 = vmatprep.subr.mxu0 0.0
    %5268 = vmatpush2.msra.mxu0 %v2224
    %5269 = vmatprep.subr.mxu0 0.0
    %5270 = vmatpush2.msra.mxu0 %v2218
    %5271 = vmatprep.subr.mxu0 0.0
    %5272 = vmatpush2.msra.mxu0 %v2212
    %5273 = vmatprep.subr.mxu0 0.0
    %5274 = vmatpush2.msra.mxu0 %v2206
    %5275 = vmatprep.mubr.f32.mxu0 %v5148
    %5276 = vmatmul.mubr.f32.gmra.mxu0 %v5147
    %v5277 = vpop.f32.mrf.mxu0
    %v5278 = vadd.f32 0.0, %v5277
    %v5279 = vpop.f32.mrf.mxu0
    %5280 = vmatprep.mubr.f32.mxu0 %v5152
    %5281 = vmatmul.mubr.f32.gmra.mxu0 %v5151
    %v5282 = vpop.f32.mrf.mxu0
    %v5283 = vadd.f32 0.0, %v5282
    %v5284 = vpop.f32.mrf.mxu0
    %5285 = vmatprep.mubr.f32.mxu0 %v5156
    %5286 = vmatmul.mubr.f32.gmra.mxu0 %v5155
    %v5287 = vpop.f32.mrf.mxu0
    %v5288 = vadd.f32 0.0, %v5287
    %v5289 = vpop.f32.mrf.mxu0
    %5290 = vmatprep.mubr.f32.mxu0 %v5160
    %5291 = vmatmul.mubr.f32.gmra.mxu0 %v5159
    %v5292 = vpop.f32.mrf.mxu0
    %v5293 = vadd.f32 0.0, %v5292
    %v5294 = vpop.f32.mrf.mxu0
    %5295 = vmatprep.mubr.f32.mxu0 %v5164
    %5296 = vmatmul.mubr.f32.gmra.mxu0 %v5163
    %v5297 = vpop.f32.mrf.mxu0
    %v5298 = vadd.f32 0.0, %v5297
    %v5299 = vpop.f32.mrf.mxu0
    %5300 = vmatprep.mubr.f32.mxu0 %v5168
    %5301 = vmatmul.mubr.f32.gmra.mxu0 %v5167
    %v5302 = vpop.f32.mrf.mxu0
    %v5303 = vadd.f32 0.0, %v5302
    %v5304 = vpop.f32.mrf.mxu0
    %5305 = vmatprep.mubr.f32.mxu0 %v5172
    %5306 = vmatmul.mubr.f32.gmra.mxu0 %v5171
    %v5307 = vpop.f32.mrf.mxu0
    %v5308 = vadd.f32 0.0, %v5307
    %v5309 = vpop.f32.mrf.mxu0
    %5310 = vmatprep.mubr.f32.mxu0 %v5176
    %5311 = vmatmul.mubr.f32.gmra.mxu0 %v5175
    %v5312 = vpop.f32.mrf.mxu0
    %v5313 = vadd.f32 0.0, %v5312
    %v5314 = vpop.f32.mrf.mxu0
    %5315 = vmatprep.mubr.f32.mxu0 %v5180
    %5316 = vmatmul.mubr.f32.gmra.mxu0 %v5179
    %v5317 = vpop.f32.mrf.mxu0
    %v5318 = vadd.f32 0.0, %v5317
    %v5319 = vpop.f32.mrf.mxu0
    %5320 = vmatprep.mubr.f32.mxu0 %v5184
    %5321 = vmatmul.mubr.f32.gmra.mxu0 %v5183
    %v5322 = vpop.f32.mrf.mxu0
    %v5323 = vadd.f32 0.0, %v5322
    %v5324 = vpop.f32.mrf.mxu0
    %5325 = vmatprep.mubr.f32.mxu0 %v5188
    %5326 = vmatmul.mubr.f32.gmra.mxu0 %v5187
    %v5327 = vpop.f32.mrf.mxu0
    %v5328 = vadd.f32 0.0, %v5327
    %v5329 = vpop.f32.mrf.mxu0
    %5330 = vmatprep.mubr.f32.mxu0 %v5192
    %5331 = vmatmul.mubr.f32.gmra.mxu0 %v5191
    %v5332 = vpop.f32.mrf.mxu0
    %v5333 = vadd.f32 0.0, %v5332
    %v5334 = vpop.f32.mrf.mxu0
    %5335 = vmatprep.mubr.f32.mxu0 %v5196
    %5336 = vmatmul.mubr.f32.gmra.mxu0 %v5195
    %v5337 = vpop.f32.mrf.mxu0
    %v5338 = vadd.f32 0.0, %v5337
    %v5339 = vpop.f32.mrf.mxu0
    %5340 = vmatprep.mubr.f32.mxu0 %v5200
    %5341 = vmatmul.mubr.f32.gmra.mxu0 %v5199
    %v5342 = vpop.f32.mrf.mxu0
    %v5343 = vadd.f32 0.0, %v5342
    %v5344 = vpop.f32.mrf.mxu0
    %5345 = vmatprep.mubr.f32.mxu0 %v5204
    %5346 = vmatmul.mubr.f32.gmra.mxu0 %v5203
    %v5347 = vpop.f32.mrf.mxu0
    %v5348 = vadd.f32 0.0, %v5347
    %v5349 = vpop.f32.mrf.mxu0
    %5350 = vmatprep.mubr.f32.mxu0 %v5208
    %5351 = vmatmul.mubr.f32.gmra.mxu0 %v5207
    %v5352 = vpop.f32.mrf.mxu0
    %v5353 = vadd.f32 0.0, %v5352
    %v5354 = vpop.f32.mrf.mxu0
    %5355 = vdwg.mxu0
    %5356 = vmatprep.subr.mxu0 0.0
    %5357 = vmatpush1.msra.mxu0 %v2392
    %5358 = vmatprep.subr.mxu0 0.0
    %5359 = vmatpush1.msra.mxu0 %v2386
    %5360 = vmatprep.subr.mxu0 0.0
    %5361 = vmatpush1.msra.mxu0 %v2380
    %5362 = vmatprep.subr.mxu0 0.0
    %5363 = vmatpush1.msra.mxu0 %v2374
    %5364 = vmatprep.subr.mxu0 0.0
    %5365 = vmatpush1.msra.mxu0 %v2368
    %5366 = vmatprep.subr.mxu0 0.0
    %5367 = vmatpush1.msra.mxu0 %v2362
    %5368 = vmatprep.subr.mxu0 0.0
    %5369 = vmatpush1.msra.mxu0 %v2356
    %5370 = vmatprep.subr.mxu0 0.0
    %5371 = vmatpush1.msra.mxu0 %v2350
    %5372 = vmatprep.subr.mxu0 0.0
    %5373 = vmatpush1.msra.mxu0 %v2344
    %5374 = vmatprep.subr.mxu0 0.0
    %5375 = vmatpush1.msra.mxu0 %v2338
    %5376 = vmatprep.subr.mxu0 0.0
    %5377 = vmatpush1.msra.mxu0 %v2332
    %5378 = vmatprep.subr.mxu0 0.0
    %5379 = vmatpush1.msra.mxu0 %v2326
    %5380 = vmatprep.subr.mxu0 0.0
    %5381 = vmatpush1.msra.mxu0 %v2320
    %5382 = vmatprep.subr.mxu0 0.0
    %5383 = vmatpush1.msra.mxu0 %v2314
    %5384 = vmatprep.subr.mxu0 0.0
    %5385 = vmatpush1.msra.mxu0 %v2308
    %5386 = vmatprep.subr.mxu0 0.0
    %5387 = vmatpush1.msra.mxu0 %v2302
    %5388 = vmatprep.subr.mxu0 0.0
    %5389 = vmatpush2.msra.mxu0 %v2488
    %5390 = vmatprep.subr.mxu0 0.0
    %5391 = vmatpush2.msra.mxu0 %v2482
    %5392 = vmatprep.subr.mxu0 0.0
    %5393 = vmatpush2.msra.mxu0 %v2476
    %5394 = vmatprep.subr.mxu0 0.0
    %5395 = vmatpush2.msra.mxu0 %v2470
    %5396 = vmatprep.subr.mxu0 0.0
    %5397 = vmatpush2.msra.mxu0 %v2464
    %5398 = vmatprep.subr.mxu0 0.0
    %5399 = vmatpush2.msra.mxu0 %v2458
    %5400 = vmatprep.subr.mxu0 0.0
    %5401 = vmatpush2.msra.mxu0 %v2452
    %5402 = vmatprep.subr.mxu0 0.0
    %5403 = vmatpush2.msra.mxu0 %v2446
    %5404 = vmatprep.subr.mxu0 0.0
    %5405 = vmatpush2.msra.mxu0 %v2440
    %5406 = vmatprep.subr.mxu0 0.0
    %5407 = vmatpush2.msra.mxu0 %v2434
    %5408 = vmatprep.subr.mxu0 0.0
    %5409 = vmatpush2.msra.mxu0 %v2428
    %5410 = vmatprep.subr.mxu0 0.0
    %5411 = vmatpush2.msra.mxu0 %v2422
    %5412 = vmatprep.subr.mxu0 0.0
    %5413 = vmatpush2.msra.mxu0 %v2416
    %5414 = vmatprep.subr.mxu0 0.0
    %5415 = vmatpush2.msra.mxu0 %v2410
    %5416 = vmatprep.subr.mxu0 0.0
    %5417 = vmatpush2.msra.mxu0 %v2404
    %5418 = vmatprep.subr.mxu0 0.0
    %5419 = vmatpush2.msra.mxu0 %v2398
    %5420 = vmatprep.mubr.f32.mxu0 %v5150
    %5421 = vmatmul.mubr.f32.gmra.mxu0 %v5149
    %v5422 = vpop.f32.mrf.mxu0
    %v5423 = vadd.f32 %v5278, %v5422
    %v5424 = vpop.f32.mrf.mxu0
    %5425 = vmatprep.mubr.f32.mxu0 %v5154
    %5426 = vmatmul.mubr.f32.gmra.mxu0 %v5153
    %v5427 = vpop.f32.mrf.mxu0
    %v5428 = vadd.f32 %v5283, %v5427
    %v5429 = vpop.f32.mrf.mxu0
    %5430 = vmatprep.mubr.f32.mxu0 %v5158
    %5431 = vmatmul.mubr.f32.gmra.mxu0 %v5157
    %v5432 = vpop.f32.mrf.mxu0
    %v5433 = vadd.f32 %v5288, %v5432
    %v5434 = vpop.f32.mrf.mxu0
    %5435 = vmatprep.mubr.f32.mxu0 %v5162
    %5436 = vmatmul.mubr.f32.gmra.mxu0 %v5161
    %v5437 = vpop.f32.mrf.mxu0
    %v5438 = vadd.f32 %v5293, %v5437
    %v5439 = vpop.f32.mrf.mxu0
    %5440 = vmatprep.mubr.f32.mxu0 %v5166
    %5441 = vmatmul.mubr.f32.gmra.mxu0 %v5165
    %v5442 = vpop.f32.mrf.mxu0
    %v5443 = vadd.f32 %v5298, %v5442
    %v5444 = vpop.f32.mrf.mxu0
    %5445 = vmatprep.mubr.f32.mxu0 %v5170
    %5446 = vmatmul.mubr.f32.gmra.mxu0 %v5169
    %v5447 = vpop.f32.mrf.mxu0
    %v5448 = vadd.f32 %v5303, %v5447
    %v5449 = vpop.f32.mrf.mxu0
    %5450 = vmatprep.mubr.f32.mxu0 %v5174
    %5451 = vmatmul.mubr.f32.gmra.mxu0 %v5173
    %v5452 = vpop.f32.mrf.mxu0
    %v5453 = vadd.f32 %v5308, %v5452
    %v5454 = vpop.f32.mrf.mxu0
    %5455 = vmatprep.mubr.f32.mxu0 %v5178
    %5456 = vmatmul.mubr.f32.gmra.mxu0 %v5177
    %v5457 = vpop.f32.mrf.mxu0
    %v5458 = vadd.f32 %v5313, %v5457
    %v5459 = vpop.f32.mrf.mxu0
    %5460 = vmatprep.mubr.f32.mxu0 %v5182
    %5461 = vmatmul.mubr.f32.gmra.mxu0 %v5181
    %v5462 = vpop.f32.mrf.mxu0
    %v5463 = vadd.f32 %v5318, %v5462
    %v5464 = vpop.f32.mrf.mxu0
    %5465 = vmatprep.mubr.f32.mxu0 %v5186
    %5466 = vmatmul.mubr.f32.gmra.mxu0 %v5185
    %v5467 = vpop.f32.mrf.mxu0
    %v5468 = vadd.f32 %v5323, %v5467
    %v5469 = vpop.f32.mrf.mxu0
    %5470 = vmatprep.mubr.f32.mxu0 %v5190
    %5471 = vmatmul.mubr.f32.gmra.mxu0 %v5189
    %v5472 = vpop.f32.mrf.mxu0
    %v5473 = vadd.f32 %v5328, %v5472
    %v5474 = vpop.f32.mrf.mxu0
    %5475 = vmatprep.mubr.f32.mxu0 %v5194
    %5476 = vmatmul.mubr.f32.gmra.mxu0 %v5193
    %v5477 = vpop.f32.mrf.mxu0
    %v5478 = vadd.f32 %v5333, %v5477
    %v5479 = vpop.f32.mrf.mxu0
    %5480 = vmatprep.mubr.f32.mxu0 %v5198
    %5481 = vmatmul.mubr.f32.gmra.mxu0 %v5197
    %v5482 = vpop.f32.mrf.mxu0
    %v5483 = vadd.f32 %v5338, %v5482
    %v5484 = vpop.f32.mrf.mxu0
    %5485 = vmatprep.mubr.f32.mxu0 %v5202
    %5486 = vmatmul.mubr.f32.gmra.mxu0 %v5201
    %v5487 = vpop.f32.mrf.mxu0
    %v5488 = vadd.f32 %v5343, %v5487
    %v5489 = vpop.f32.mrf.mxu0
    %5490 = vmatprep.mubr.f32.mxu0 %v5206
    %5491 = vmatmul.mubr.f32.gmra.mxu0 %v5205
    %v5492 = vpop.f32.mrf.mxu0
    %v5493 = vadd.f32 %v5348, %v5492
    %v5494 = vpop.f32.mrf.mxu0
    %5495 = vmatprep.mubr.f32.mxu0 %v5210
    %5496 = vmatmul.mubr.f32.gmra.mxu0 %v5209
    %v5497 = vpop.f32.mrf.mxu0
    %v5498 = vadd.f32 %v5353, %v5497
    %v5499 = vpop.f32.mrf.mxu0
    %5500 = vdwg.mxu0
    %v5501 = vadd.f32 %v5130, %v5423
    %v5502 = vadd.f32 %v5131, %v5428
    %v5503 = vadd.f32 %v5132, %v5433
    %v5504 = vadd.f32 %v5133, %v5438
    %v5505 = vadd.f32 %v5134, %v5443
    %v5506 = vadd.f32 %v5135, %v5448
    %v5507 = vadd.f32 %v5136, %v5453
    %v5508 = vadd.f32 %v5137, %v5458
    %v5509 = vadd.f32 %v5138, %v5463
    %v5510 = vadd.f32 %v5139, %v5468
    %v5511 = vadd.f32 %v5140, %v5473
    %v5512 = vadd.f32 %v5141, %v5478
    %v5513 = vadd.f32 %v5142, %v5483
    %v5514 = vadd.f32 %v5143, %v5488
    %v5515 = vadd.f32 %v5144, %v5493
    %v5516 = vadd.f32 %v5145, %v5498
    %s5517 = scalar_lea.vmem %s5, 3072
    %v5518 = vld [vmem:[%s5517] sm:$0xff]
    %v5519 = vld [vmem:[%s5517 + $0x8] sm:$0xff]
    %v5520 = vld [vmem:[%s5517 + $0x10] sm:$0xff]
    %v5521 = vld [vmem:[%s5517 + $0x18] sm:$0xff]
    %v5522 = vld [vmem:[%s5517 + $0x20] sm:$0xff]
    %v5523 = vld [vmem:[%s5517 + $0x28] sm:$0xff]
    %v5524 = vld [vmem:[%s5517 + $0x30] sm:$0xff]
    %v5525 = vld [vmem:[%s5517 + $0x38] sm:$0xff]
    %v5526 = vld [vmem:[%s5517 + $0x40] sm:$0xff]
    %v5527 = vld [vmem:[%s5517 + $0x48] sm:$0xff]
    %v5528 = vld [vmem:[%s5517 + $0x50] sm:$0xff]
    %v5529 = vld [vmem:[%s5517 + $0x58] sm:$0xff]
    %v5530 = vld [vmem:[%s5517 + $0x60] sm:$0xff]
    %v5531 = vld [vmem:[%s5517 + $0x68] sm:$0xff]
    %v5532 = vld [vmem:[%s5517 + $0x70] sm:$0xff]
    %v5533 = vld [vmem:[%s5517 + $0x78] sm:$0xff]
    %v5534 = vld [vmem:[%s5517 + $0x80] sm:$0xff]
    %v5535 = vld [vmem:[%s5517 + $0x88] sm:$0xff]
    %v5536 = vld [vmem:[%s5517 + $0x90] sm:$0xff]
    %v5537 = vld [vmem:[%s5517 + $0x98] sm:$0xff]
    %v5538 = vld [vmem:[%s5517 + $0xa0] sm:$0xff]
    %v5539 = vld [vmem:[%s5517 + $0xa8] sm:$0xff]
    %v5540 = vld [vmem:[%s5517 + $0xb0] sm:$0xff]
    %v5541 = vld [vmem:[%s5517 + $0xb8] sm:$0xff]
    %v5542 = vld [vmem:[%s5517 + $0xc0] sm:$0xff]
    %v5543 = vld [vmem:[%s5517 + $0xc8] sm:$0xff]
    %v5544 = vld [vmem:[%s5517 + $0xd0] sm:$0xff]
    %v5545 = vld [vmem:[%s5517 + $0xd8] sm:$0xff]
    %v5546 = vld [vmem:[%s5517 + $0xe0] sm:$0xff]
    %v5547 = vld [vmem:[%s5517 + $0xe8] sm:$0xff]
    %v5548 = vld [vmem:[%s5517 + $0xf0] sm:$0xff]
    %v5549 = vld [vmem:[%s5517 + $0xf8] sm:$0xff]
    %v5550 = vld [vmem:[%s5517 + $0x100] sm:$0xff]
    %v5551 = vld [vmem:[%s5517 + $0x108] sm:$0xff]
    %v5552 = vld [vmem:[%s5517 + $0x110] sm:$0xff]
    %v5553 = vld [vmem:[%s5517 + $0x118] sm:$0xff]
    %v5554 = vld [vmem:[%s5517 + $0x120] sm:$0xff]
    %v5555 = vld [vmem:[%s5517 + $0x128] sm:$0xff]
    %v5556 = vld [vmem:[%s5517 + $0x130] sm:$0xff]
    %v5557 = vld [vmem:[%s5517 + $0x138] sm:$0xff]
    %v5558 = vld [vmem:[%s5517 + $0x140] sm:$0xff]
    %v5559 = vld [vmem:[%s5517 + $0x148] sm:$0xff]
    %v5560 = vld [vmem:[%s5517 + $0x150] sm:$0xff]
    %v5561 = vld [vmem:[%s5517 + $0x158] sm:$0xff]
    %v5562 = vld [vmem:[%s5517 + $0x160] sm:$0xff]
    %v5563 = vld [vmem:[%s5517 + $0x168] sm:$0xff]
    %v5564 = vld [vmem:[%s5517 + $0x170] sm:$0xff]
    %v5565 = vld [vmem:[%s5517 + $0x178] sm:$0xff]
    %v5566 = vld [vmem:[%s5517 + $0x180] sm:$0xff]
    %v5567 = vld [vmem:[%s5517 + $0x188] sm:$0xff]
    %v5568 = vld [vmem:[%s5517 + $0x190] sm:$0xff]
    %v5569 = vld [vmem:[%s5517 + $0x198] sm:$0xff]
    %v5570 = vld [vmem:[%s5517 + $0x1a0] sm:$0xff]
    %v5571 = vld [vmem:[%s5517 + $0x1a8] sm:$0xff]
    %v5572 = vld [vmem:[%s5517 + $0x1b0] sm:$0xff]
    %v5573 = vld [vmem:[%s5517 + $0x1b8] sm:$0xff]
    %v5574 = vld [vmem:[%s5517 + $0x1c0] sm:$0xff]
    %v5575 = vld [vmem:[%s5517 + $0x1c8] sm:$0xff]
    %v5576 = vld [vmem:[%s5517 + $0x1d0] sm:$0xff]
    %v5577 = vld [vmem:[%s5517 + $0x1d8] sm:$0xff]
    %v5578 = vld [vmem:[%s5517 + $0x1e0] sm:$0xff]
    %v5579 = vld [vmem:[%s5517 + $0x1e8] sm:$0xff]
    %v5580 = vld [vmem:[%s5517 + $0x1f0] sm:$0xff]
    %v5581 = vld [vmem:[%s5517 + $0x1f8] sm:$0xff]
    %5582 = vmatprep.subr.mxu0 0.0
    %5583 = vmatpush1.msra.mxu0 %v2647
    %5584 = vmatprep.subr.mxu0 0.0
    %5585 = vmatpush1.msra.mxu0 %v2641
    %5586 = vmatprep.subr.mxu0 0.0
    %5587 = vmatpush1.msra.mxu0 %v2635
    %5588 = vmatprep.subr.mxu0 0.0
    %5589 = vmatpush1.msra.mxu0 %v2629
    %5590 = vmatprep.subr.mxu0 0.0
    %5591 = vmatpush1.msra.mxu0 %v2623
    %5592 = vmatprep.subr.mxu0 0.0
    %5593 = vmatpush1.msra.mxu0 %v2617
    %5594 = vmatprep.subr.mxu0 0.0
    %5595 = vmatpush1.msra.mxu0 %v2611
    %5596 = vmatprep.subr.mxu0 0.0
    %5597 = vmatpush1.msra.mxu0 %v2605
    %5598 = vmatprep.subr.mxu0 0.0
    %5599 = vmatpush1.msra.mxu0 %v2599
    %5600 = vmatprep.subr.mxu0 0.0
    %5601 = vmatpush1.msra.mxu0 %v2593
    %5602 = vmatprep.subr.mxu0 0.0
    %5603 = vmatpush1.msra.mxu0 %v2587
    %5604 = vmatprep.subr.mxu0 0.0
    %5605 = vmatpush1.msra.mxu0 %v2581
    %5606 = vmatprep.subr.mxu0 0.0
    %5607 = vmatpush1.msra.mxu0 %v2575
    %5608 = vmatprep.subr.mxu0 0.0
    %5609 = vmatpush1.msra.mxu0 %v2569
    %5610 = vmatprep.subr.mxu0 0.0
    %5611 = vmatpush1.msra.mxu0 %v2563
    %5612 = vmatprep.subr.mxu0 0.0
    %5613 = vmatpush1.msra.mxu0 %v2557
    %5614 = vmatprep.subr.mxu0 0.0
    %5615 = vmatpush2.msra.mxu0 %v2743
    %5616 = vmatprep.subr.mxu0 0.0
    %5617 = vmatpush2.msra.mxu0 %v2737
    %5618 = vmatprep.subr.mxu0 0.0
    %5619 = vmatpush2.msra.mxu0 %v2731
    %5620 = vmatprep.subr.mxu0 0.0
    %5621 = vmatpush2.msra.mxu0 %v2725
    %5622 = vmatprep.subr.mxu0 0.0
    %5623 = vmatpush2.msra.mxu0 %v2719
    %5624 = vmatprep.subr.mxu0 0.0
    %5625 = vmatpush2.msra.mxu0 %v2713
    %5626 = vmatprep.subr.mxu0 0.0
    %5627 = vmatpush2.msra.mxu0 %v2707
    %5628 = vmatprep.subr.mxu0 0.0
    %5629 = vmatpush2.msra.mxu0 %v2701
    %5630 = vmatprep.subr.mxu0 0.0
    %5631 = vmatpush2.msra.mxu0 %v2695
    %5632 = vmatprep.subr.mxu0 0.0
    %5633 = vmatpush2.msra.mxu0 %v2689
    %5634 = vmatprep.subr.mxu0 0.0
    %5635 = vmatpush2.msra.mxu0 %v2683
    %5636 = vmatprep.subr.mxu0 0.0
    %5637 = vmatpush2.msra.mxu0 %v2677
    %5638 = vmatprep.subr.mxu0 0.0
    %5639 = vmatpush2.msra.mxu0 %v2671
    %5640 = vmatprep.subr.mxu0 0.0
    %5641 = vmatpush2.msra.mxu0 %v2665
    %5642 = vmatprep.subr.mxu0 0.0
    %5643 = vmatpush2.msra.mxu0 %v2659
    %5644 = vmatprep.subr.mxu0 0.0
    %5645 = vmatpush2.msra.mxu0 %v2653
    %5646 = vmatprep.mubr.f32.mxu0 %v5519
    %5647 = vmatmul.mubr.f32.gmra.mxu0 %v5518
    %v5648 = vpop.f32.mrf.mxu0
    %v5649 = vadd.f32 0.0, %v5648
    %v5650 = vpop.f32.mrf.mxu0
    %5651 = vmatprep.mubr.f32.mxu0 %v5523
    %5652 = vmatmul.mubr.f32.gmra.mxu0 %v5522
    %v5653 = vpop.f32.mrf.mxu0
    %v5654 = vadd.f32 0.0, %v5653
    %v5655 = vpop.f32.mrf.mxu0
    %5656 = vmatprep.mubr.f32.mxu0 %v5527
    %5657 = vmatmul.mubr.f32.gmra.mxu0 %v5526
    %v5658 = vpop.f32.mrf.mxu0
    %v5659 = vadd.f32 0.0, %v5658
    %v5660 = vpop.f32.mrf.mxu0
    %5661 = vmatprep.mubr.f32.mxu0 %v5531
    %5662 = vmatmul.mubr.f32.gmra.mxu0 %v5530
    %v5663 = vpop.f32.mrf.mxu0
    %v5664 = vadd.f32 0.0, %v5663
    %v5665 = vpop.f32.mrf.mxu0
    %5666 = vmatprep.mubr.f32.mxu0 %v5535
    %5667 = vmatmul.mubr.f32.gmra.mxu0 %v5534
    %v5668 = vpop.f32.mrf.mxu0
    %v5669 = vadd.f32 0.0, %v5668
    %v5670 = vpop.f32.mrf.mxu0
    %5671 = vmatprep.mubr.f32.mxu0 %v5539
    %5672 = vmatmul.mubr.f32.gmra.mxu0 %v5538
    %v5673 = vpop.f32.mrf.mxu0
    %v5674 = vadd.f32 0.0, %v5673
    %v5675 = vpop.f32.mrf.mxu0
    %5676 = vmatprep.mubr.f32.mxu0 %v5543
    %5677 = vmatmul.mubr.f32.gmra.mxu0 %v5542
    %v5678 = vpop.f32.mrf.mxu0
    %v5679 = vadd.f32 0.0, %v5678
    %v5680 = vpop.f32.mrf.mxu0
    %5681 = vmatprep.mubr.f32.mxu0 %v5547
    %5682 = vmatmul.mubr.f32.gmra.mxu0 %v5546
    %v5683 = vpop.f32.mrf.mxu0
    %v5684 = vadd.f32 0.0, %v5683
    %v5685 = vpop.f32.mrf.mxu0
    %5686 = vmatprep.mubr.f32.mxu0 %v5551
    %5687 = vmatmul.mubr.f32.gmra.mxu0 %v5550
    %v5688 = vpop.f32.mrf.mxu0
    %v5689 = vadd.f32 0.0, %v5688
    %v5690 = vpop.f32.mrf.mxu0
    %5691 = vmatprep.mubr.f32.mxu0 %v5555
    %5692 = vmatmul.mubr.f32.gmra.mxu0 %v5554
    %v5693 = vpop.f32.mrf.mxu0
    %v5694 = vadd.f32 0.0, %v5693
    %v5695 = vpop.f32.mrf.mxu0
    %5696 = vmatprep.mubr.f32.mxu0 %v5559
    %5697 = vmatmul.mubr.f32.gmra.mxu0 %v5558
    %v5698 = vpop.f32.mrf.mxu0
    %v5699 = vadd.f32 0.0, %v5698
    %v5700 = vpop.f32.mrf.mxu0
    %5701 = vmatprep.mubr.f32.mxu0 %v5563
    %5702 = vmatmul.mubr.f32.gmra.mxu0 %v5562
    %v5703 = vpop.f32.mrf.mxu0
    %v5704 = vadd.f32 0.0, %v5703
    %v5705 = vpop.f32.mrf.mxu0
    %5706 = vmatprep.mubr.f32.mxu0 %v5567
    %5707 = vmatmul.mubr.f32.gmra.mxu0 %v5566
    %v5708 = vpop.f32.mrf.mxu0
    %v5709 = vadd.f32 0.0, %v5708
    %v5710 = vpop.f32.mrf.mxu0
    %5711 = vmatprep.mubr.f32.mxu0 %v5571
    %5712 = vmatmul.mubr.f32.gmra.mxu0 %v5570
    %v5713 = vpop.f32.mrf.mxu0
    %v5714 = vadd.f32 0.0, %v5713
    %v5715 = vpop.f32.mrf.mxu0
    %5716 = vmatprep.mubr.f32.mxu0 %v5575
    %5717 = vmatmul.mubr.f32.gmra.mxu0 %v5574
    %v5718 = vpop.f32.mrf.mxu0
    %v5719 = vadd.f32 0.0, %v5718
    %v5720 = vpop.f32.mrf.mxu0
    %5721 = vmatprep.mubr.f32.mxu0 %v5579
    %5722 = vmatmul.mubr.f32.gmra.mxu0 %v5578
    %v5723 = vpop.f32.mrf.mxu0
    %v5724 = vadd.f32 0.0, %v5723
    %v5725 = vpop.f32.mrf.mxu0
    %5726 = vdwg.mxu0
    %5727 = vmatprep.subr.mxu0 0.0
    %5728 = vmatpush1.msra.mxu0 %v2839
    %5729 = vmatprep.subr.mxu0 0.0
    %5730 = vmatpush1.msra.mxu0 %v2833
    %5731 = vmatprep.subr.mxu0 0.0
    %5732 = vmatpush1.msra.mxu0 %v2827
    %5733 = vmatprep.subr.mxu0 0.0
    %5734 = vmatpush1.msra.mxu0 %v2821
    %5735 = vmatprep.subr.mxu0 0.0
    %5736 = vmatpush1.msra.mxu0 %v2815
    %5737 = vmatprep.subr.mxu0 0.0
    %5738 = vmatpush1.msra.mxu0 %v2809
    %5739 = vmatprep.subr.mxu0 0.0
    %5740 = vmatpush1.msra.mxu0 %v2803
    %5741 = vmatprep.subr.mxu0 0.0
    %5742 = vmatpush1.msra.mxu0 %v2797
    %5743 = vmatprep.subr.mxu0 0.0
    %5744 = vmatpush1.msra.mxu0 %v2791
    %5745 = vmatprep.subr.mxu0 0.0
    %5746 = vmatpush1.msra.mxu0 %v2785
    %5747 = vmatprep.subr.mxu0 0.0
    %5748 = vmatpush1.msra.mxu0 %v2779
    %5749 = vmatprep.subr.mxu0 0.0
    %5750 = vmatpush1.msra.mxu0 %v2773
    %5751 = vmatprep.subr.mxu0 0.0
    %5752 = vmatpush1.msra.mxu0 %v2767
    %5753 = vmatprep.subr.mxu0 0.0
    %5754 = vmatpush1.msra.mxu0 %v2761
    %5755 = vmatprep.subr.mxu0 0.0
    %5756 = vmatpush1.msra.mxu0 %v2755
    %5757 = vmatprep.subr.mxu0 0.0
    %5758 = vmatpush1.msra.mxu0 %v2749
    %5759 = vmatprep.subr.mxu0 0.0
    %5760 = vmatpush2.msra.mxu0 %v2935
    %5761 = vmatprep.subr.mxu0 0.0
    %5762 = vmatpush2.msra.mxu0 %v2929
    %5763 = vmatprep.subr.mxu0 0.0
    %5764 = vmatpush2.msra.mxu0 %v2923
    %5765 = vmatprep.subr.mxu0 0.0
    %5766 = vmatpush2.msra.mxu0 %v2917
    %5767 = vmatprep.subr.mxu0 0.0
    %5768 = vmatpush2.msra.mxu0 %v2911
    %5769 = vmatprep.subr.mxu0 0.0
    %5770 = vmatpush2.msra.mxu0 %v2905
    %5771 = vmatprep.subr.mxu0 0.0
    %5772 = vmatpush2.msra.mxu0 %v2899
    %5773 = vmatprep.subr.mxu0 0.0
    %5774 = vmatpush2.msra.mxu0 %v2893
    %5775 = vmatprep.subr.mxu0 0.0
    %5776 = vmatpush2.msra.mxu0 %v2887
    %5777 = vmatprep.subr.mxu0 0.0
    %5778 = vmatpush2.msra.mxu0 %v2881
    %5779 = vmatprep.subr.mxu0 0.0
    %5780 = vmatpush2.msra.mxu0 %v2875
    %5781 = vmatprep.subr.mxu0 0.0
    %5782 = vmatpush2.msra.mxu0 %v2869
    %5783 = vmatprep.subr.mxu0 0.0
    %5784 = vmatpush2.msra.mxu0 %v2863
    %5785 = vmatprep.subr.mxu0 0.0
    %5786 = vmatpush2.msra.mxu0 %v2857
    %5787 = vmatprep.subr.mxu0 0.0
    %5788 = vmatpush2.msra.mxu0 %v2851
    %5789 = vmatprep.subr.mxu0 0.0
    %5790 = vmatpush2.msra.mxu0 %v2845
    %5791 = vmatprep.mubr.f32.mxu0 %v5521
    %5792 = vmatmul.mubr.f32.gmra.mxu0 %v5520
    %v5793 = vpop.f32.mrf.mxu0
    %v5794 = vadd.f32 %v5649, %v5793
    %v5795 = vpop.f32.mrf.mxu0
    %5796 = vmatprep.mubr.f32.mxu0 %v5525
    %5797 = vmatmul.mubr.f32.gmra.mxu0 %v5524
    %v5798 = vpop.f32.mrf.mxu0
    %v5799 = vadd.f32 %v5654, %v5798
    %v5800 = vpop.f32.mrf.mxu0
    %5801 = vmatprep.mubr.f32.mxu0 %v5529
    %5802 = vmatmul.mubr.f32.gmra.mxu0 %v5528
    %v5803 = vpop.f32.mrf.mxu0
    %v5804 = vadd.f32 %v5659, %v5803
    %v5805 = vpop.f32.mrf.mxu0
    %5806 = vmatprep.mubr.f32.mxu0 %v5533
    %5807 = vmatmul.mubr.f32.gmra.mxu0 %v5532
    %v5808 = vpop.f32.mrf.mxu0
    %v5809 = vadd.f32 %v5664, %v5808
    %v5810 = vpop.f32.mrf.mxu0
    %5811 = vmatprep.mubr.f32.mxu0 %v5537
    %5812 = vmatmul.mubr.f32.gmra.mxu0 %v5536
    %v5813 = vpop.f32.mrf.mxu0
    %v5814 = vadd.f32 %v5669, %v5813
    %v5815 = vpop.f32.mrf.mxu0
    %5816 = vmatprep.mubr.f32.mxu0 %v5541
    %5817 = vmatmul.mubr.f32.gmra.mxu0 %v5540
    %v5818 = vpop.f32.mrf.mxu0
    %v5819 = vadd.f32 %v5674, %v5818
    %v5820 = vpop.f32.mrf.mxu0
    %5821 = vmatprep.mubr.f32.mxu0 %v5545
    %5822 = vmatmul.mubr.f32.gmra.mxu0 %v5544
    %v5823 = vpop.f32.mrf.mxu0
    %v5824 = vadd.f32 %v5679, %v5823
    %v5825 = vpop.f32.mrf.mxu0
    %5826 = vmatprep.mubr.f32.mxu0 %v5549
    %5827 = vmatmul.mubr.f32.gmra.mxu0 %v5548
    %v5828 = vpop.f32.mrf.mxu0
    %v5829 = vadd.f32 %v5684, %v5828
    %v5830 = vpop.f32.mrf.mxu0
    %5831 = vmatprep.mubr.f32.mxu0 %v5553
    %5832 = vmatmul.mubr.f32.gmra.mxu0 %v5552
    %v5833 = vpop.f32.mrf.mxu0
    %v5834 = vadd.f32 %v5689, %v5833
    %v5835 = vpop.f32.mrf.mxu0
    %5836 = vmatprep.mubr.f32.mxu0 %v5557
    %5837 = vmatmul.mubr.f32.gmra.mxu0 %v5556
    %v5838 = vpop.f32.mrf.mxu0
    %v5839 = vadd.f32 %v5694, %v5838
    %v5840 = vpop.f32.mrf.mxu0
    %5841 = vmatprep.mubr.f32.mxu0 %v5561
    %5842 = vmatmul.mubr.f32.gmra.mxu0 %v5560
    %v5843 = vpop.f32.mrf.mxu0
    %v5844 = vadd.f32 %v5699, %v5843
    %v5845 = vpop.f32.mrf.mxu0
    %5846 = vmatprep.mubr.f32.mxu0 %v5565
    %5847 = vmatmul.mubr.f32.gmra.mxu0 %v5564
    %v5848 = vpop.f32.mrf.mxu0
    %v5849 = vadd.f32 %v5704, %v5848
    %v5850 = vpop.f32.mrf.mxu0
    %5851 = vmatprep.mubr.f32.mxu0 %v5569
    %5852 = vmatmul.mubr.f32.gmra.mxu0 %v5568
    %v5853 = vpop.f32.mrf.mxu0
    %v5854 = vadd.f32 %v5709, %v5853
    %v5855 = vpop.f32.mrf.mxu0
    %5856 = vmatprep.mubr.f32.mxu0 %v5573
    %5857 = vmatmul.mubr.f32.gmra.mxu0 %v5572
    %v5858 = vpop.f32.mrf.mxu0
    %v5859 = vadd.f32 %v5714, %v5858
    %v5860 = vpop.f32.mrf.mxu0
    %5861 = vmatprep.mubr.f32.mxu0 %v5577
    %5862 = vmatmul.mubr.f32.gmra.mxu0 %v5576
    %v5863 = vpop.f32.mrf.mxu0
    %v5864 = vadd.f32 %v5719, %v5863
    %v5865 = vpop.f32.mrf.mxu0
    %5866 = vmatprep.mubr.f32.mxu0 %v5581
    %5867 = vmatmul.mubr.f32.gmra.mxu0 %v5580
    %v5868 = vpop.f32.mrf.mxu0
    %v5869 = vadd.f32 %v5724, %v5868
    %v5870 = vpop.f32.mrf.mxu0
    %5871 = vdwg.mxu0
    %v5872 = vadd.f32 %v5501, %v5794
    %v5873 = vadd.f32 %v5502, %v5799
    %v5874 = vadd.f32 %v5503, %v5804
    %v5875 = vadd.f32 %v5504, %v5809
    %v5876 = vadd.f32 %v5505, %v5814
    %v5877 = vadd.f32 %v5506, %v5819
    %v5878 = vadd.f32 %v5507, %v5824
    %v5879 = vadd.f32 %v5508, %v5829
    %v5880 = vadd.f32 %v5509, %v5834
    %v5881 = vadd.f32 %v5510, %v5839
    %v5882 = vadd.f32 %v5511, %v5844
    %v5883 = vadd.f32 %v5512, %v5849
    %v5884 = vadd.f32 %v5513, %v5854
    %v5885 = vadd.f32 %v5514, %v5859
    %v5886 = vadd.f32 %v5515, %v5864
    %v5887 = vadd.f32 %v5516, %v5869
    %s5888 = scalar_lea.vmem %s5, 3584
    %v5889 = vld [vmem:[%s5888] sm:$0xff]
    %v5890 = vld [vmem:[%s5888 + $0x8] sm:$0xff]
    %v5891 = vld [vmem:[%s5888 + $0x10] sm:$0xff]
    %v5892 = vld [vmem:[%s5888 + $0x18] sm:$0xff]
    %v5893 = vld [vmem:[%s5888 + $0x20] sm:$0xff]
    %v5894 = vld [vmem:[%s5888 + $0x28] sm:$0xff]
    %v5895 = vld [vmem:[%s5888 + $0x30] sm:$0xff]
    %v5896 = vld [vmem:[%s5888 + $0x38] sm:$0xff]
    %v5897 = vld [vmem:[%s5888 + $0x40] sm:$0xff]
    %v5898 = vld [vmem:[%s5888 + $0x48] sm:$0xff]
    %v5899 = vld [vmem:[%s5888 + $0x50] sm:$0xff]
    %v5900 = vld [vmem:[%s5888 + $0x58] sm:$0xff]
    %v5901 = vld [vmem:[%s5888 + $0x60] sm:$0xff]
    %v5902 = vld [vmem:[%s5888 + $0x68] sm:$0xff]
    %v5903 = vld [vmem:[%s5888 + $0x70] sm:$0xff]
    %v5904 = vld [vmem:[%s5888 + $0x78] sm:$0xff]
    %v5905 = vld [vmem:[%s5888 + $0x80] sm:$0xff]
    %v5906 = vld [vmem:[%s5888 + $0x88] sm:$0xff]
    %v5907 = vld [vmem:[%s5888 + $0x90] sm:$0xff]
    %v5908 = vld [vmem:[%s5888 + $0x98] sm:$0xff]
    %v5909 = vld [vmem:[%s5888 + $0xa0] sm:$0xff]
    %v5910 = vld [vmem:[%s5888 + $0xa8] sm:$0xff]
    %v5911 = vld [vmem:[%s5888 + $0xb0] sm:$0xff]
    %v5912 = vld [vmem:[%s5888 + $0xb8] sm:$0xff]
    %v5913 = vld [vmem:[%s5888 + $0xc0] sm:$0xff]
    %v5914 = vld [vmem:[%s5888 + $0xc8] sm:$0xff]
    %v5915 = vld [vmem:[%s5888 + $0xd0] sm:$0xff]
    %v5916 = vld [vmem:[%s5888 + $0xd8] sm:$0xff]
    %v5917 = vld [vmem:[%s5888 + $0xe0] sm:$0xff]
    %v5918 = vld [vmem:[%s5888 + $0xe8] sm:$0xff]
    %v5919 = vld [vmem:[%s5888 + $0xf0] sm:$0xff]
    %v5920 = vld [vmem:[%s5888 + $0xf8] sm:$0xff]
    %v5921 = vld [vmem:[%s5888 + $0x100] sm:$0xff]
    %v5922 = vld [vmem:[%s5888 + $0x108] sm:$0xff]
    %v5923 = vld [vmem:[%s5888 + $0x110] sm:$0xff]
    %v5924 = vld [vmem:[%s5888 + $0x118] sm:$0xff]
    %v5925 = vld [vmem:[%s5888 + $0x120] sm:$0xff]
    %v5926 = vld [vmem:[%s5888 + $0x128] sm:$0xff]
    %v5927 = vld [vmem:[%s5888 + $0x130] sm:$0xff]
    %v5928 = vld [vmem:[%s5888 + $0x138] sm:$0xff]
    %v5929 = vld [vmem:[%s5888 + $0x140] sm:$0xff]
    %v5930 = vld [vmem:[%s5888 + $0x148] sm:$0xff]
    %v5931 = vld [vmem:[%s5888 + $0x150] sm:$0xff]
    %v5932 = vld [vmem:[%s5888 + $0x158] sm:$0xff]
    %v5933 = vld [vmem:[%s5888 + $0x160] sm:$0xff]
    %v5934 = vld [vmem:[%s5888 + $0x168] sm:$0xff]
    %v5935 = vld [vmem:[%s5888 + $0x170] sm:$0xff]
    %v5936 = vld [vmem:[%s5888 + $0x178] sm:$0xff]
    %v5937 = vld [vmem:[%s5888 + $0x180] sm:$0xff]
    %v5938 = vld [vmem:[%s5888 + $0x188] sm:$0xff]
    %v5939 = vld [vmem:[%s5888 + $0x190] sm:$0xff]
    %v5940 = vld [vmem:[%s5888 + $0x198] sm:$0xff]
    %v5941 = vld [vmem:[%s5888 + $0x1a0] sm:$0xff]
    %v5942 = vld [vmem:[%s5888 + $0x1a8] sm:$0xff]
    %v5943 = vld [vmem:[%s5888 + $0x1b0] sm:$0xff]
    %v5944 = vld [vmem:[%s5888 + $0x1b8] sm:$0xff]
    %v5945 = vld [vmem:[%s5888 + $0x1c0] sm:$0xff]
    %v5946 = vld [vmem:[%s5888 + $0x1c8] sm:$0xff]
    %v5947 = vld [vmem:[%s5888 + $0x1d0] sm:$0xff]
    %v5948 = vld [vmem:[%s5888 + $0x1d8] sm:$0xff]
    %v5949 = vld [vmem:[%s5888 + $0x1e0] sm:$0xff]
    %v5950 = vld [vmem:[%s5888 + $0x1e8] sm:$0xff]
    %v5951 = vld [vmem:[%s5888 + $0x1f0] sm:$0xff]
    %v5952 = vld [vmem:[%s5888 + $0x1f8] sm:$0xff]
    %5953 = vmatprep.subr.mxu0 0.0
    %5954 = vmatpush1.msra.mxu0 %v2649
    %5955 = vmatprep.subr.mxu0 0.0
    %5956 = vmatpush1.msra.mxu0 %v2643
    %5957 = vmatprep.subr.mxu0 0.0
    %5958 = vmatpush1.msra.mxu0 %v2637
    %5959 = vmatprep.subr.mxu0 0.0
    %5960 = vmatpush1.msra.mxu0 %v2631
    %5961 = vmatprep.subr.mxu0 0.0
    %5962 = vmatpush1.msra.mxu0 %v2625
    %5963 = vmatprep.subr.mxu0 0.0
    %5964 = vmatpush1.msra.mxu0 %v2619
    %5965 = vmatprep.subr.mxu0 0.0
    %5966 = vmatpush1.msra.mxu0 %v2613
    %5967 = vmatprep.subr.mxu0 0.0
    %5968 = vmatpush1.msra.mxu0 %v2607
    %5969 = vmatprep.subr.mxu0 0.0
    %5970 = vmatpush1.msra.mxu0 %v2601
    %5971 = vmatprep.subr.mxu0 0.0
    %5972 = vmatpush1.msra.mxu0 %v2595
    %5973 = vmatprep.subr.mxu0 0.0
    %5974 = vmatpush1.msra.mxu0 %v2589
    %5975 = vmatprep.subr.mxu0 0.0
    %5976 = vmatpush1.msra.mxu0 %v2583
    %5977 = vmatprep.subr.mxu0 0.0
    %5978 = vmatpush1.msra.mxu0 %v2577
    %5979 = vmatprep.subr.mxu0 0.0
    %5980 = vmatpush1.msra.mxu0 %v2571
    %5981 = vmatprep.subr.mxu0 0.0
    %5982 = vmatpush1.msra.mxu0 %v2565
    %5983 = vmatprep.subr.mxu0 0.0
    %5984 = vmatpush1.msra.mxu0 %v2559
    %5985 = vmatprep.subr.mxu0 0.0
    %5986 = vmatpush2.msra.mxu0 %v2745
    %5987 = vmatprep.subr.mxu0 0.0
    %5988 = vmatpush2.msra.mxu0 %v2739
    %5989 = vmatprep.subr.mxu0 0.0
    %5990 = vmatpush2.msra.mxu0 %v2733
    %5991 = vmatprep.subr.mxu0 0.0
    %5992 = vmatpush2.msra.mxu0 %v2727
    %5993 = vmatprep.subr.mxu0 0.0
    %5994 = vmatpush2.msra.mxu0 %v2721
    %5995 = vmatprep.subr.mxu0 0.0
    %5996 = vmatpush2.msra.mxu0 %v2715
    %5997 = vmatprep.subr.mxu0 0.0
    %5998 = vmatpush2.msra.mxu0 %v2709
    %5999 = vmatprep.subr.mxu0 0.0
    %6000 = vmatpush2.msra.mxu0 %v2703
    %6001 = vmatprep.subr.mxu0 0.0
    %6002 = vmatpush2.msra.mxu0 %v2697
    %6003 = vmatprep.subr.mxu0 0.0
    %6004 = vmatpush2.msra.mxu0 %v2691
    %6005 = vmatprep.subr.mxu0 0.0
    %6006 = vmatpush2.msra.mxu0 %v2685
    %6007 = vmatprep.subr.mxu0 0.0
    %6008 = vmatpush2.msra.mxu0 %v2679
    %6009 = vmatprep.subr.mxu0 0.0
    %6010 = vmatpush2.msra.mxu0 %v2673
    %6011 = vmatprep.subr.mxu0 0.0
    %6012 = vmatpush2.msra.mxu0 %v2667
    %6013 = vmatprep.subr.mxu0 0.0
    %6014 = vmatpush2.msra.mxu0 %v2661
    %6015 = vmatprep.subr.mxu0 0.0
    %6016 = vmatpush2.msra.mxu0 %v2655
    %6017 = vmatprep.mubr.f32.mxu0 %v5890
    %6018 = vmatmul.mubr.f32.gmra.mxu0 %v5889
    %v6019 = vpop.f32.mrf.mxu0
    %v6020 = vadd.f32 0.0, %v6019
    %v6021 = vpop.f32.mrf.mxu0
    %6022 = vmatprep.mubr.f32.mxu0 %v5894
    %6023 = vmatmul.mubr.f32.gmra.mxu0 %v5893
    %v6024 = vpop.f32.mrf.mxu0
    %v6025 = vadd.f32 0.0, %v6024
    %v6026 = vpop.f32.mrf.mxu0
    %6027 = vmatprep.mubr.f32.mxu0 %v5898
    %6028 = vmatmul.mubr.f32.gmra.mxu0 %v5897
    %v6029 = vpop.f32.mrf.mxu0
    %v6030 = vadd.f32 0.0, %v6029
    %v6031 = vpop.f32.mrf.mxu0
    %6032 = vmatprep.mubr.f32.mxu0 %v5902
    %6033 = vmatmul.mubr.f32.gmra.mxu0 %v5901
    %v6034 = vpop.f32.mrf.mxu0
    %v6035 = vadd.f32 0.0, %v6034
    %v6036 = vpop.f32.mrf.mxu0
    %6037 = vmatprep.mubr.f32.mxu0 %v5906
    %6038 = vmatmul.mubr.f32.gmra.mxu0 %v5905
    %v6039 = vpop.f32.mrf.mxu0
    %v6040 = vadd.f32 0.0, %v6039
    %v6041 = vpop.f32.mrf.mxu0
    %6042 = vmatprep.mubr.f32.mxu0 %v5910
    %6043 = vmatmul.mubr.f32.gmra.mxu0 %v5909
    %v6044 = vpop.f32.mrf.mxu0
    %v6045 = vadd.f32 0.0, %v6044
    %v6046 = vpop.f32.mrf.mxu0
    %6047 = vmatprep.mubr.f32.mxu0 %v5914
    %6048 = vmatmul.mubr.f32.gmra.mxu0 %v5913
    %v6049 = vpop.f32.mrf.mxu0
    %v6050 = vadd.f32 0.0, %v6049
    %v6051 = vpop.f32.mrf.mxu0
    %6052 = vmatprep.mubr.f32.mxu0 %v5918
    %6053 = vmatmul.mubr.f32.gmra.mxu0 %v5917
    %v6054 = vpop.f32.mrf.mxu0
    %v6055 = vadd.f32 0.0, %v6054
    %v6056 = vpop.f32.mrf.mxu0
    %6057 = vmatprep.mubr.f32.mxu0 %v5922
    %6058 = vmatmul.mubr.f32.gmra.mxu0 %v5921
    %v6059 = vpop.f32.mrf.mxu0
    %v6060 = vadd.f32 0.0, %v6059
    %v6061 = vpop.f32.mrf.mxu0
    %6062 = vmatprep.mubr.f32.mxu0 %v5926
    %6063 = vmatmul.mubr.f32.gmra.mxu0 %v5925
    %v6064 = vpop.f32.mrf.mxu0
    %v6065 = vadd.f32 0.0, %v6064
    %v6066 = vpop.f32.mrf.mxu0
    %6067 = vmatprep.mubr.f32.mxu0 %v5930
    %6068 = vmatmul.mubr.f32.gmra.mxu0 %v5929
    %v6069 = vpop.f32.mrf.mxu0
    %v6070 = vadd.f32 0.0, %v6069
    %v6071 = vpop.f32.mrf.mxu0
    %6072 = vmatprep.mubr.f32.mxu0 %v5934
    %6073 = vmatmul.mubr.f32.gmra.mxu0 %v5933
    %v6074 = vpop.f32.mrf.mxu0
    %v6075 = vadd.f32 0.0, %v6074
    %v6076 = vpop.f32.mrf.mxu0
    %6077 = vmatprep.mubr.f32.mxu0 %v5938
    %6078 = vmatmul.mubr.f32.gmra.mxu0 %v5937
    %v6079 = vpop.f32.mrf.mxu0
    %v6080 = vadd.f32 0.0, %v6079
    %v6081 = vpop.f32.mrf.mxu0
    %6082 = vmatprep.mubr.f32.mxu0 %v5942
    %6083 = vmatmul.mubr.f32.gmra.mxu0 %v5941
    %v6084 = vpop.f32.mrf.mxu0
    %v6085 = vadd.f32 0.0, %v6084
    %v6086 = vpop.f32.mrf.mxu0
    %6087 = vmatprep.mubr.f32.mxu0 %v5946
    %6088 = vmatmul.mubr.f32.gmra.mxu0 %v5945
    %v6089 = vpop.f32.mrf.mxu0
    %v6090 = vadd.f32 0.0, %v6089
    %v6091 = vpop.f32.mrf.mxu0
    %6092 = vmatprep.mubr.f32.mxu0 %v5950
    %6093 = vmatmul.mubr.f32.gmra.mxu0 %v5949
    %v6094 = vpop.f32.mrf.mxu0
    %v6095 = vadd.f32 0.0, %v6094
    %v6096 = vpop.f32.mrf.mxu0
    %6097 = vdwg.mxu0
    %6098 = vmatprep.subr.mxu0 0.0
    %6099 = vmatpush1.msra.mxu0 %v2841
    %6100 = vmatprep.subr.mxu0 0.0
    %6101 = vmatpush1.msra.mxu0 %v2835
    %6102 = vmatprep.subr.mxu0 0.0
    %6103 = vmatpush1.msra.mxu0 %v2829
    %6104 = vmatprep.subr.mxu0 0.0
    %6105 = vmatpush1.msra.mxu0 %v2823
    %6106 = vmatprep.subr.mxu0 0.0
    %6107 = vmatpush1.msra.mxu0 %v2817
    %6108 = vmatprep.subr.mxu0 0.0
    %6109 = vmatpush1.msra.mxu0 %v2811
    %6110 = vmatprep.subr.mxu0 0.0
    %6111 = vmatpush1.msra.mxu0 %v2805
    %6112 = vmatprep.subr.mxu0 0.0
    %6113 = vmatpush1.msra.mxu0 %v2799
    %6114 = vmatprep.subr.mxu0 0.0
    %6115 = vmatpush1.msra.mxu0 %v2793
    %6116 = vmatprep.subr.mxu0 0.0
    %6117 = vmatpush1.msra.mxu0 %v2787
    %6118 = vmatprep.subr.mxu0 0.0
    %6119 = vmatpush1.msra.mxu0 %v2781
    %6120 = vmatprep.subr.mxu0 0.0
    %6121 = vmatpush1.msra.mxu0 %v2775
    %6122 = vmatprep.subr.mxu0 0.0
    %6123 = vmatpush1.msra.mxu0 %v2769
    %6124 = vmatprep.subr.mxu0 0.0
    %6125 = vmatpush1.msra.mxu0 %v2763
    %6126 = vmatprep.subr.mxu0 0.0
    %6127 = vmatpush1.msra.mxu0 %v2757
    %6128 = vmatprep.subr.mxu0 0.0
    %6129 = vmatpush1.msra.mxu0 %v2751
    %6130 = vmatprep.subr.mxu0 0.0
    %6131 = vmatpush2.msra.mxu0 %v2937
    %6132 = vmatprep.subr.mxu0 0.0
    %6133 = vmatpush2.msra.mxu0 %v2931
    %6134 = vmatprep.subr.mxu0 0.0
    %6135 = vmatpush2.msra.mxu0 %v2925
    %6136 = vmatprep.subr.mxu0 0.0
    %6137 = vmatpush2.msra.mxu0 %v2919
    %6138 = vmatprep.subr.mxu0 0.0
    %6139 = vmatpush2.msra.mxu0 %v2913
    %6140 = vmatprep.subr.mxu0 0.0
    %6141 = vmatpush2.msra.mxu0 %v2907
    %6142 = vmatprep.subr.mxu0 0.0
    %6143 = vmatpush2.msra.mxu0 %v2901
    %6144 = vmatprep.subr.mxu0 0.0
    %6145 = vmatpush2.msra.mxu0 %v2895
    %6146 = vmatprep.subr.mxu0 0.0
    %6147 = vmatpush2.msra.mxu0 %v2889
    %6148 = vmatprep.subr.mxu0 0.0
    %6149 = vmatpush2.msra.mxu0 %v2883
    %6150 = vmatprep.subr.mxu0 0.0
    %6151 = vmatpush2.msra.mxu0 %v2877
    %6152 = vmatprep.subr.mxu0 0.0
    %6153 = vmatpush2.msra.mxu0 %v2871
    %6154 = vmatprep.subr.mxu0 0.0
    %6155 = vmatpush2.msra.mxu0 %v2865
    %6156 = vmatprep.subr.mxu0 0.0
    %6157 = vmatpush2.msra.mxu0 %v2859
    %6158 = vmatprep.subr.mxu0 0.0
    %6159 = vmatpush2.msra.mxu0 %v2853
    %6160 = vmatprep.subr.mxu0 0.0
    %6161 = vmatpush2.msra.mxu0 %v2847
    %6162 = vmatprep.mubr.f32.mxu0 %v5892
    %6163 = vmatmul.mubr.f32.gmra.mxu0 %v5891
    %v6164 = vpop.f32.mrf.mxu0
    %v6165 = vadd.f32 %v6020, %v6164
    %v6166 = vpop.f32.mrf.mxu0
    %6167 = vmatprep.mubr.f32.mxu0 %v5896
    %6168 = vmatmul.mubr.f32.gmra.mxu0 %v5895
    %v6169 = vpop.f32.mrf.mxu0
    %v6170 = vadd.f32 %v6025, %v6169
    %v6171 = vpop.f32.mrf.mxu0
    %6172 = vmatprep.mubr.f32.mxu0 %v5900
    %6173 = vmatmul.mubr.f32.gmra.mxu0 %v5899
    %v6174 = vpop.f32.mrf.mxu0
    %v6175 = vadd.f32 %v6030, %v6174
    %v6176 = vpop.f32.mrf.mxu0
    %6177 = vmatprep.mubr.f32.mxu0 %v5904
    %6178 = vmatmul.mubr.f32.gmra.mxu0 %v5903
    %v6179 = vpop.f32.mrf.mxu0
    %v6180 = vadd.f32 %v6035, %v6179
    %v6181 = vpop.f32.mrf.mxu0
    %6182 = vmatprep.mubr.f32.mxu0 %v5908
    %6183 = vmatmul.mubr.f32.gmra.mxu0 %v5907
    %v6184 = vpop.f32.mrf.mxu0
    %v6185 = vadd.f32 %v6040, %v6184
    %v6186 = vpop.f32.mrf.mxu0
    %6187 = vmatprep.mubr.f32.mxu0 %v5912
    %6188 = vmatmul.mubr.f32.gmra.mxu0 %v5911
    %v6189 = vpop.f32.mrf.mxu0
    %v6190 = vadd.f32 %v6045, %v6189
    %v6191 = vpop.f32.mrf.mxu0
    %6192 = vmatprep.mubr.f32.mxu0 %v5916
    %6193 = vmatmul.mubr.f32.gmra.mxu0 %v5915
    %v6194 = vpop.f32.mrf.mxu0
    %v6195 = vadd.f32 %v6050, %v6194
    %v6196 = vpop.f32.mrf.mxu0
    %6197 = vmatprep.mubr.f32.mxu0 %v5920
    %6198 = vmatmul.mubr.f32.gmra.mxu0 %v5919
    %v6199 = vpop.f32.mrf.mxu0
    %v6200 = vadd.f32 %v6055, %v6199
    %v6201 = vpop.f32.mrf.mxu0
    %6202 = vmatprep.mubr.f32.mxu0 %v5924
    %6203 = vmatmul.mubr.f32.gmra.mxu0 %v5923
    %v6204 = vpop.f32.mrf.mxu0
    %v6205 = vadd.f32 %v6060, %v6204
    %v6206 = vpop.f32.mrf.mxu0
    %6207 = vmatprep.mubr.f32.mxu0 %v5928
    %6208 = vmatmul.mubr.f32.gmra.mxu0 %v5927
    %v6209 = vpop.f32.mrf.mxu0
    %v6210 = vadd.f32 %v6065, %v6209
    %v6211 = vpop.f32.mrf.mxu0
    %6212 = vmatprep.mubr.f32.mxu0 %v5932
    %6213 = vmatmul.mubr.f32.gmra.mxu0 %v5931
    %v6214 = vpop.f32.mrf.mxu0
    %v6215 = vadd.f32 %v6070, %v6214
    %v6216 = vpop.f32.mrf.mxu0
    %6217 = vmatprep.mubr.f32.mxu0 %v5936
    %6218 = vmatmul.mubr.f32.gmra.mxu0 %v5935
    %v6219 = vpop.f32.mrf.mxu0
    %v6220 = vadd.f32 %v6075, %v6219
    %v6221 = vpop.f32.mrf.mxu0
    %6222 = vmatprep.mubr.f32.mxu0 %v5940
    %6223 = vmatmul.mubr.f32.gmra.mxu0 %v5939
    %v6224 = vpop.f32.mrf.mxu0
    %v6225 = vadd.f32 %v6080, %v6224
    %v6226 = vpop.f32.mrf.mxu0
    %6227 = vmatprep.mubr.f32.mxu0 %v5944
    %6228 = vmatmul.mubr.f32.gmra.mxu0 %v5943
    %v6229 = vpop.f32.mrf.mxu0
    %v6230 = vadd.f32 %v6085, %v6229
    %v6231 = vpop.f32.mrf.mxu0
    %6232 = vmatprep.mubr.f32.mxu0 %v5948
    %6233 = vmatmul.mubr.f32.gmra.mxu0 %v5947
    %v6234 = vpop.f32.mrf.mxu0
    %v6235 = vadd.f32 %v6090, %v6234
    %v6236 = vpop.f32.mrf.mxu0
    %6237 = vmatprep.mubr.f32.mxu0 %v5952
    %6238 = vmatmul.mubr.f32.gmra.mxu0 %v5951
    %v6239 = vpop.f32.mrf.mxu0
    %v6240 = vadd.f32 %v6095, %v6239
    %v6241 = vpop.f32.mrf.mxu0
    %6242 = vdwg.mxu0
    %v6243 = vadd.f32 %v5872, %v6165
    %v6244 = vadd.f32 %v5873, %v6170
    %v6245 = vadd.f32 %v5874, %v6175
    %v6246 = vadd.f32 %v5875, %v6180
    %v6247 = vadd.f32 %v5876, %v6185
    %v6248 = vadd.f32 %v5877, %v6190
    %v6249 = vadd.f32 %v5878, %v6195
    %v6250 = vadd.f32 %v5879, %v6200
    %v6251 = vadd.f32 %v5880, %v6205
    %v6252 = vadd.f32 %v5881, %v6210
    %v6253 = vadd.f32 %v5882, %v6215
    %v6254 = vadd.f32 %v5883, %v6220
    %v6255 = vadd.f32 %v5884, %v6225
    %v6256 = vadd.f32 %v5885, %v6230
    %v6257 = vadd.f32 %v5886, %v6235
    %v6258 = vadd.f32 %v5887, %v6240
    %s6259 = scalar_lea.vmem %s5, 4096
    %v6260 = vld [vmem:[%s6259] sm:$0xff]
    %v6261 = vld [vmem:[%s6259 + $0x8] sm:$0xff]
    %v6262 = vld [vmem:[%s6259 + $0x10] sm:$0xff]
    %v6263 = vld [vmem:[%s6259 + $0x18] sm:$0xff]
    %v6264 = vld [vmem:[%s6259 + $0x20] sm:$0xff]
    %v6265 = vld [vmem:[%s6259 + $0x28] sm:$0xff]
    %v6266 = vld [vmem:[%s6259 + $0x30] sm:$0xff]
    %v6267 = vld [vmem:[%s6259 + $0x38] sm:$0xff]
    %v6268 = vld [vmem:[%s6259 + $0x40] sm:$0xff]
    %v6269 = vld [vmem:[%s6259 + $0x48] sm:$0xff]
    %v6270 = vld [vmem:[%s6259 + $0x50] sm:$0xff]
    %v6271 = vld [vmem:[%s6259 + $0x58] sm:$0xff]
    %v6272 = vld [vmem:[%s6259 + $0x60] sm:$0xff]
    %v6273 = vld [vmem:[%s6259 + $0x68] sm:$0xff]
    %v6274 = vld [vmem:[%s6259 + $0x70] sm:$0xff]
    %v6275 = vld [vmem:[%s6259 + $0x78] sm:$0xff]
    %v6276 = vld [vmem:[%s6259 + $0x80] sm:$0xff]
    %v6277 = vld [vmem:[%s6259 + $0x88] sm:$0xff]
    %v6278 = vld [vmem:[%s6259 + $0x90] sm:$0xff]
    %v6279 = vld [vmem:[%s6259 + $0x98] sm:$0xff]
    %v6280 = vld [vmem:[%s6259 + $0xa0] sm:$0xff]
    %v6281 = vld [vmem:[%s6259 + $0xa8] sm:$0xff]
    %v6282 = vld [vmem:[%s6259 + $0xb0] sm:$0xff]
    %v6283 = vld [vmem:[%s6259 + $0xb8] sm:$0xff]
    %v6284 = vld [vmem:[%s6259 + $0xc0] sm:$0xff]
    %v6285 = vld [vmem:[%s6259 + $0xc8] sm:$0xff]
    %v6286 = vld [vmem:[%s6259 + $0xd0] sm:$0xff]
    %v6287 = vld [vmem:[%s6259 + $0xd8] sm:$0xff]
    %v6288 = vld [vmem:[%s6259 + $0xe0] sm:$0xff]
    %v6289 = vld [vmem:[%s6259 + $0xe8] sm:$0xff]
    %v6290 = vld [vmem:[%s6259 + $0xf0] sm:$0xff]
    %v6291 = vld [vmem:[%s6259 + $0xf8] sm:$0xff]
    %v6292 = vld [vmem:[%s6259 + $0x100] sm:$0xff]
    %v6293 = vld [vmem:[%s6259 + $0x108] sm:$0xff]
    %v6294 = vld [vmem:[%s6259 + $0x110] sm:$0xff]
    %v6295 = vld [vmem:[%s6259 + $0x118] sm:$0xff]
    %v6296 = vld [vmem:[%s6259 + $0x120] sm:$0xff]
    %v6297 = vld [vmem:[%s6259 + $0x128] sm:$0xff]
    %v6298 = vld [vmem:[%s6259 + $0x130] sm:$0xff]
    %v6299 = vld [vmem:[%s6259 + $0x138] sm:$0xff]
    %v6300 = vld [vmem:[%s6259 + $0x140] sm:$0xff]
    %v6301 = vld [vmem:[%s6259 + $0x148] sm:$0xff]
    %v6302 = vld [vmem:[%s6259 + $0x150] sm:$0xff]
    %v6303 = vld [vmem:[%s6259 + $0x158] sm:$0xff]
    %v6304 = vld [vmem:[%s6259 + $0x160] sm:$0xff]
    %v6305 = vld [vmem:[%s6259 + $0x168] sm:$0xff]
    %v6306 = vld [vmem:[%s6259 + $0x170] sm:$0xff]
    %v6307 = vld [vmem:[%s6259 + $0x178] sm:$0xff]
    %v6308 = vld [vmem:[%s6259 + $0x180] sm:$0xff]
    %v6309 = vld [vmem:[%s6259 + $0x188] sm:$0xff]
    %v6310 = vld [vmem:[%s6259 + $0x190] sm:$0xff]
    %v6311 = vld [vmem:[%s6259 + $0x198] sm:$0xff]
    %v6312 = vld [vmem:[%s6259 + $0x1a0] sm:$0xff]
    %v6313 = vld [vmem:[%s6259 + $0x1a8] sm:$0xff]
    %v6314 = vld [vmem:[%s6259 + $0x1b0] sm:$0xff]
    %v6315 = vld [vmem:[%s6259 + $0x1b8] sm:$0xff]
    %v6316 = vld [vmem:[%s6259 + $0x1c0] sm:$0xff]
    %v6317 = vld [vmem:[%s6259 + $0x1c8] sm:$0xff]
    %v6318 = vld [vmem:[%s6259 + $0x1d0] sm:$0xff]
    %v6319 = vld [vmem:[%s6259 + $0x1d8] sm:$0xff]
    %v6320 = vld [vmem:[%s6259 + $0x1e0] sm:$0xff]
    %v6321 = vld [vmem:[%s6259 + $0x1e8] sm:$0xff]
    %v6322 = vld [vmem:[%s6259 + $0x1f0] sm:$0xff]
    %v6323 = vld [vmem:[%s6259 + $0x1f8] sm:$0xff]
    %6324 = vmatprep.subr.mxu0 0.0
    %6325 = vmatpush1.msra.mxu0 %v3081
    %6326 = vmatprep.subr.mxu0 0.0
    %6327 = vmatpush1.msra.mxu0 %v3076
    %6328 = vmatprep.subr.mxu0 0.0
    %6329 = vmatpush1.msra.mxu0 %v3071
    %6330 = vmatprep.subr.mxu0 0.0
    %6331 = vmatpush1.msra.mxu0 %v3066
    %6332 = vmatprep.subr.mxu0 0.0
    %6333 = vmatpush1.msra.mxu0 %v3061
    %6334 = vmatprep.subr.mxu0 0.0
    %6335 = vmatpush1.msra.mxu0 %v3056
    %6336 = vmatprep.subr.mxu0 0.0
    %6337 = vmatpush1.msra.mxu0 %v3051
    %6338 = vmatprep.subr.mxu0 0.0
    %6339 = vmatpush1.msra.mxu0 %v3046
    %6340 = vmatprep.subr.mxu0 0.0
    %6341 = vmatpush1.msra.mxu0 %v3041
    %6342 = vmatprep.subr.mxu0 0.0
    %6343 = vmatpush1.msra.mxu0 %v3036
    %6344 = vmatprep.subr.mxu0 0.0
    %6345 = vmatpush1.msra.mxu0 %v3031
    %6346 = vmatprep.subr.mxu0 0.0
    %6347 = vmatpush1.msra.mxu0 %v3026
    %6348 = vmatprep.subr.mxu0 0.0
    %6349 = vmatpush1.msra.mxu0 %v3021
    %6350 = vmatprep.subr.mxu0 0.0
    %6351 = vmatpush1.msra.mxu0 %v3016
    %6352 = vmatprep.subr.mxu0 0.0
    %6353 = vmatpush1.msra.mxu0 %v3011
    %6354 = vmatprep.subr.mxu0 0.0
    %6355 = vmatpush1.msra.mxu0 %v3006
    %6356 = vmatprep.subr.mxu0 0.0
    %6357 = vmatpush2.msra.mxu0 %v3161
    %6358 = vmatprep.subr.mxu0 0.0
    %6359 = vmatpush2.msra.mxu0 %v3156
    %6360 = vmatprep.subr.mxu0 0.0
    %6361 = vmatpush2.msra.mxu0 %v3151
    %6362 = vmatprep.subr.mxu0 0.0
    %6363 = vmatpush2.msra.mxu0 %v3146
    %6364 = vmatprep.subr.mxu0 0.0
    %6365 = vmatpush2.msra.mxu0 %v3141
    %6366 = vmatprep.subr.mxu0 0.0
    %6367 = vmatpush2.msra.mxu0 %v3136
    %6368 = vmatprep.subr.mxu0 0.0
    %6369 = vmatpush2.msra.mxu0 %v3131
    %6370 = vmatprep.subr.mxu0 0.0
    %6371 = vmatpush2.msra.mxu0 %v3126
    %6372 = vmatprep.subr.mxu0 0.0
    %6373 = vmatpush2.msra.mxu0 %v3121
    %6374 = vmatprep.subr.mxu0 0.0
    %6375 = vmatpush2.msra.mxu0 %v3116
    %6376 = vmatprep.subr.mxu0 0.0
    %6377 = vmatpush2.msra.mxu0 %v3111
    %6378 = vmatprep.subr.mxu0 0.0
    %6379 = vmatpush2.msra.mxu0 %v3106
    %6380 = vmatprep.subr.mxu0 0.0
    %6381 = vmatpush2.msra.mxu0 %v3101
    %6382 = vmatprep.subr.mxu0 0.0
    %6383 = vmatpush2.msra.mxu0 %v3096
    %6384 = vmatprep.subr.mxu0 0.0
    %6385 = vmatpush2.msra.mxu0 %v3091
    %6386 = vmatprep.subr.mxu0 0.0
    %6387 = vmatpush2.msra.mxu0 %v3086
    %6388 = vmatprep.mubr.f32.mxu0 %v6261
    %6389 = vmatmul.mubr.f32.gmra.mxu0 %v6260
    %v6390 = vpop.f32.mrf.mxu0
    %v6391 = vadd.f32 0.0, %v6390
    %v6392 = vpop.f32.mrf.mxu0
    %6393 = vmatprep.mubr.f32.mxu0 %v6265
    %6394 = vmatmul.mubr.f32.gmra.mxu0 %v6264
    %v6395 = vpop.f32.mrf.mxu0
    %v6396 = vadd.f32 0.0, %v6395
    %v6397 = vpop.f32.mrf.mxu0
    %6398 = vmatprep.mubr.f32.mxu0 %v6269
    %6399 = vmatmul.mubr.f32.gmra.mxu0 %v6268
    %v6400 = vpop.f32.mrf.mxu0
    %v6401 = vadd.f32 0.0, %v6400
    %v6402 = vpop.f32.mrf.mxu0
    %6403 = vmatprep.mubr.f32.mxu0 %v6273
    %6404 = vmatmul.mubr.f32.gmra.mxu0 %v6272
    %v6405 = vpop.f32.mrf.mxu0
    %v6406 = vadd.f32 0.0, %v6405
    %v6407 = vpop.f32.mrf.mxu0
    %6408 = vmatprep.mubr.f32.mxu0 %v6277
    %6409 = vmatmul.mubr.f32.gmra.mxu0 %v6276
    %v6410 = vpop.f32.mrf.mxu0
    %v6411 = vadd.f32 0.0, %v6410
    %v6412 = vpop.f32.mrf.mxu0
    %6413 = vmatprep.mubr.f32.mxu0 %v6281
    %6414 = vmatmul.mubr.f32.gmra.mxu0 %v6280
    %v6415 = vpop.f32.mrf.mxu0
    %v6416 = vadd.f32 0.0, %v6415
    %v6417 = vpop.f32.mrf.mxu0
    %6418 = vmatprep.mubr.f32.mxu0 %v6285
    %6419 = vmatmul.mubr.f32.gmra.mxu0 %v6284
    %v6420 = vpop.f32.mrf.mxu0
    %v6421 = vadd.f32 0.0, %v6420
    %v6422 = vpop.f32.mrf.mxu0
    %6423 = vmatprep.mubr.f32.mxu0 %v6289
    %6424 = vmatmul.mubr.f32.gmra.mxu0 %v6288
    %v6425 = vpop.f32.mrf.mxu0
    %v6426 = vadd.f32 0.0, %v6425
    %v6427 = vpop.f32.mrf.mxu0
    %6428 = vmatprep.mubr.f32.mxu0 %v6293
    %6429 = vmatmul.mubr.f32.gmra.mxu0 %v6292
    %v6430 = vpop.f32.mrf.mxu0
    %v6431 = vadd.f32 0.0, %v6430
    %v6432 = vpop.f32.mrf.mxu0
    %6433 = vmatprep.mubr.f32.mxu0 %v6297
    %6434 = vmatmul.mubr.f32.gmra.mxu0 %v6296
    %v6435 = vpop.f32.mrf.mxu0
    %v6436 = vadd.f32 0.0, %v6435
    %v6437 = vpop.f32.mrf.mxu0
    %6438 = vmatprep.mubr.f32.mxu0 %v6301
    %6439 = vmatmul.mubr.f32.gmra.mxu0 %v6300
    %v6440 = vpop.f32.mrf.mxu0
    %v6441 = vadd.f32 0.0, %v6440
    %v6442 = vpop.f32.mrf.mxu0
    %6443 = vmatprep.mubr.f32.mxu0 %v6305
    %6444 = vmatmul.mubr.f32.gmra.mxu0 %v6304
    %v6445 = vpop.f32.mrf.mxu0
    %v6446 = vadd.f32 0.0, %v6445
    %v6447 = vpop.f32.mrf.mxu0
    %6448 = vmatprep.mubr.f32.mxu0 %v6309
    %6449 = vmatmul.mubr.f32.gmra.mxu0 %v6308
    %v6450 = vpop.f32.mrf.mxu0
    %v6451 = vadd.f32 0.0, %v6450
    %v6452 = vpop.f32.mrf.mxu0
    %6453 = vmatprep.mubr.f32.mxu0 %v6313
    %6454 = vmatmul.mubr.f32.gmra.mxu0 %v6312
    %v6455 = vpop.f32.mrf.mxu0
    %v6456 = vadd.f32 0.0, %v6455
    %v6457 = vpop.f32.mrf.mxu0
    %6458 = vmatprep.mubr.f32.mxu0 %v6317
    %6459 = vmatmul.mubr.f32.gmra.mxu0 %v6316
    %v6460 = vpop.f32.mrf.mxu0
    %v6461 = vadd.f32 0.0, %v6460
    %v6462 = vpop.f32.mrf.mxu0
    %6463 = vmatprep.mubr.f32.mxu0 %v6321
    %6464 = vmatmul.mubr.f32.gmra.mxu0 %v6320
    %v6465 = vpop.f32.mrf.mxu0
    %v6466 = vadd.f32 0.0, %v6465
    %v6467 = vpop.f32.mrf.mxu0
    %6468 = vdwg.mxu0
    %6469 = vmatprep.subr.mxu0 0.0
    %6470 = vmatpush1.msra.mxu0 %v3241
    %6471 = vmatprep.subr.mxu0 0.0
    %6472 = vmatpush1.msra.mxu0 %v3236
    %6473 = vmatprep.subr.mxu0 0.0
    %6474 = vmatpush1.msra.mxu0 %v3231
    %6475 = vmatprep.subr.mxu0 0.0
    %6476 = vmatpush1.msra.mxu0 %v3226
    %6477 = vmatprep.subr.mxu0 0.0
    %6478 = vmatpush1.msra.mxu0 %v3221
    %6479 = vmatprep.subr.mxu0 0.0
    %6480 = vmatpush1.msra.mxu0 %v3216
    %6481 = vmatprep.subr.mxu0 0.0
    %6482 = vmatpush1.msra.mxu0 %v3211
    %6483 = vmatprep.subr.mxu0 0.0
    %6484 = vmatpush1.msra.mxu0 %v3206
    %6485 = vmatprep.subr.mxu0 0.0
    %6486 = vmatpush1.msra.mxu0 %v3201
    %6487 = vmatprep.subr.mxu0 0.0
    %6488 = vmatpush1.msra.mxu0 %v3196
    %6489 = vmatprep.subr.mxu0 0.0
    %6490 = vmatpush1.msra.mxu0 %v3191
    %6491 = vmatprep.subr.mxu0 0.0
    %6492 = vmatpush1.msra.mxu0 %v3186
    %6493 = vmatprep.subr.mxu0 0.0
    %6494 = vmatpush1.msra.mxu0 %v3181
    %6495 = vmatprep.subr.mxu0 0.0
    %6496 = vmatpush1.msra.mxu0 %v3176
    %6497 = vmatprep.subr.mxu0 0.0
    %6498 = vmatpush1.msra.mxu0 %v3171
    %6499 = vmatprep.subr.mxu0 0.0
    %6500 = vmatpush1.msra.mxu0 %v3166
    %6501 = vmatprep.subr.mxu0 0.0
    %6502 = vmatpush2.msra.mxu0 %v3321
    %6503 = vmatprep.subr.mxu0 0.0
    %6504 = vmatpush2.msra.mxu0 %v3316
    %6505 = vmatprep.subr.mxu0 0.0
    %6506 = vmatpush2.msra.mxu0 %v3311
    %6507 = vmatprep.subr.mxu0 0.0
    %6508 = vmatpush2.msra.mxu0 %v3306
    %6509 = vmatprep.subr.mxu0 0.0
    %6510 = vmatpush2.msra.mxu0 %v3301
    %6511 = vmatprep.subr.mxu0 0.0
    %6512 = vmatpush2.msra.mxu0 %v3296
    %6513 = vmatprep.subr.mxu0 0.0
    %6514 = vmatpush2.msra.mxu0 %v3291
    %6515 = vmatprep.subr.mxu0 0.0
    %6516 = vmatpush2.msra.mxu0 %v3286
    %6517 = vmatprep.subr.mxu0 0.0
    %6518 = vmatpush2.msra.mxu0 %v3281
    %6519 = vmatprep.subr.mxu0 0.0
    %6520 = vmatpush2.msra.mxu0 %v3276
    %6521 = vmatprep.subr.mxu0 0.0
    %6522 = vmatpush2.msra.mxu0 %v3271
    %6523 = vmatprep.subr.mxu0 0.0
    %6524 = vmatpush2.msra.mxu0 %v3266
    %6525 = vmatprep.subr.mxu0 0.0
    %6526 = vmatpush2.msra.mxu0 %v3261
    %6527 = vmatprep.subr.mxu0 0.0
    %6528 = vmatpush2.msra.mxu0 %v3256
    %6529 = vmatprep.subr.mxu0 0.0
    %6530 = vmatpush2.msra.mxu0 %v3251
    %6531 = vmatprep.subr.mxu0 0.0
    %6532 = vmatpush2.msra.mxu0 %v3246
    %6533 = vmatprep.mubr.f32.mxu0 %v6263
    %6534 = vmatmul.mubr.f32.gmra.mxu0 %v6262
    %v6535 = vpop.f32.mrf.mxu0
    %v6536 = vadd.f32 %v6391, %v6535
    %v6537 = vpop.f32.mrf.mxu0
    %6538 = vmatprep.mubr.f32.mxu0 %v6267
    %6539 = vmatmul.mubr.f32.gmra.mxu0 %v6266
    %v6540 = vpop.f32.mrf.mxu0
    %v6541 = vadd.f32 %v6396, %v6540
    %v6542 = vpop.f32.mrf.mxu0
    %6543 = vmatprep.mubr.f32.mxu0 %v6271
    %6544 = vmatmul.mubr.f32.gmra.mxu0 %v6270
    %v6545 = vpop.f32.mrf.mxu0
    %v6546 = vadd.f32 %v6401, %v6545
    %v6547 = vpop.f32.mrf.mxu0
    %6548 = vmatprep.mubr.f32.mxu0 %v6275
    %6549 = vmatmul.mubr.f32.gmra.mxu0 %v6274
    %v6550 = vpop.f32.mrf.mxu0
    %v6551 = vadd.f32 %v6406, %v6550
    %v6552 = vpop.f32.mrf.mxu0
    %6553 = vmatprep.mubr.f32.mxu0 %v6279
    %6554 = vmatmul.mubr.f32.gmra.mxu0 %v6278
    %v6555 = vpop.f32.mrf.mxu0
    %v6556 = vadd.f32 %v6411, %v6555
    %v6557 = vpop.f32.mrf.mxu0
    %6558 = vmatprep.mubr.f32.mxu0 %v6283
    %6559 = vmatmul.mubr.f32.gmra.mxu0 %v6282
    %v6560 = vpop.f32.mrf.mxu0
    %v6561 = vadd.f32 %v6416, %v6560
    %v6562 = vpop.f32.mrf.mxu0
    %6563 = vmatprep.mubr.f32.mxu0 %v6287
    %6564 = vmatmul.mubr.f32.gmra.mxu0 %v6286
    %v6565 = vpop.f32.mrf.mxu0
    %v6566 = vadd.f32 %v6421, %v6565
    %v6567 = vpop.f32.mrf.mxu0
    %6568 = vmatprep.mubr.f32.mxu0 %v6291
    %6569 = vmatmul.mubr.f32.gmra.mxu0 %v6290
    %v6570 = vpop.f32.mrf.mxu0
    %v6571 = vadd.f32 %v6426, %v6570
    %v6572 = vpop.f32.mrf.mxu0
    %6573 = vmatprep.mubr.f32.mxu0 %v6295
    %6574 = vmatmul.mubr.f32.gmra.mxu0 %v6294
    %v6575 = vpop.f32.mrf.mxu0
    %v6576 = vadd.f32 %v6431, %v6575
    %v6577 = vpop.f32.mrf.mxu0
    %6578 = vmatprep.mubr.f32.mxu0 %v6299
    %6579 = vmatmul.mubr.f32.gmra.mxu0 %v6298
    %v6580 = vpop.f32.mrf.mxu0
    %v6581 = vadd.f32 %v6436, %v6580
    %v6582 = vpop.f32.mrf.mxu0
    %6583 = vmatprep.mubr.f32.mxu0 %v6303
    %6584 = vmatmul.mubr.f32.gmra.mxu0 %v6302
    %v6585 = vpop.f32.mrf.mxu0
    %v6586 = vadd.f32 %v6441, %v6585
    %v6587 = vpop.f32.mrf.mxu0
    %6588 = vmatprep.mubr.f32.mxu0 %v6307
    %6589 = vmatmul.mubr.f32.gmra.mxu0 %v6306
    %v6590 = vpop.f32.mrf.mxu0
    %v6591 = vadd.f32 %v6446, %v6590
    %v6592 = vpop.f32.mrf.mxu0
    %6593 = vmatprep.mubr.f32.mxu0 %v6311
    %6594 = vmatmul.mubr.f32.gmra.mxu0 %v6310
    %v6595 = vpop.f32.mrf.mxu0
    %v6596 = vadd.f32 %v6451, %v6595
    %v6597 = vpop.f32.mrf.mxu0
    %6598 = vmatprep.mubr.f32.mxu0 %v6315
    %6599 = vmatmul.mubr.f32.gmra.mxu0 %v6314
    %v6600 = vpop.f32.mrf.mxu0
    %v6601 = vadd.f32 %v6456, %v6600
    %v6602 = vpop.f32.mrf.mxu0
    %6603 = vmatprep.mubr.f32.mxu0 %v6319
    %6604 = vmatmul.mubr.f32.gmra.mxu0 %v6318
    %v6605 = vpop.f32.mrf.mxu0
    %v6606 = vadd.f32 %v6461, %v6605
    %v6607 = vpop.f32.mrf.mxu0
    %6608 = vmatprep.mubr.f32.mxu0 %v6323
    %6609 = vmatmul.mubr.f32.gmra.mxu0 %v6322
    %v6610 = vpop.f32.mrf.mxu0
    %v6611 = vadd.f32 %v6466, %v6610
    %v6612 = vpop.f32.mrf.mxu0
    %6613 = vdwg.mxu0
    %v6614 = vadd.f32 %v6243, %v6536
    %v6615 = vadd.f32 %v6244, %v6541
    %v6616 = vadd.f32 %v6245, %v6546
    %v6617 = vadd.f32 %v6246, %v6551
    %v6618 = vadd.f32 %v6247, %v6556
    %v6619 = vadd.f32 %v6248, %v6561
    %v6620 = vadd.f32 %v6249, %v6566
    %v6621 = vadd.f32 %v6250, %v6571
    %v6622 = vadd.f32 %v6251, %v6576
    %v6623 = vadd.f32 %v6252, %v6581
    %v6624 = vadd.f32 %v6253, %v6586
    %v6625 = vadd.f32 %v6254, %v6591
    %v6626 = vadd.f32 %v6255, %v6596
    %v6627 = vadd.f32 %v6256, %v6601
    %v6628 = vadd.f32 %v6257, %v6606
    %v6629 = vadd.f32 %v6258, %v6611
    %v6630 = vld [vmem:[%s7] sm:$0x1]
    %v6632 = vlaneseq
    %v6633 = vshrl.u32 %v6632, 7
    %v6634 = vsub.s32 0, %v6633
    %v6635 = vrot.slane %v6630, %v6634
    %v6637 = vadd.f32 %v6614, %v6635
    %v6638 = vadd.f32 %v6615, %v6635
    %v6639 = vadd.f32 %v6616, %v6635
    %v6640 = vadd.f32 %v6617, %v6635
    %v6641 = vadd.f32 %v6618, %v6635
    %v6642 = vadd.f32 %v6619, %v6635
    %v6643 = vadd.f32 %v6620, %v6635
    %v6644 = vadd.f32 %v6621, %v6635
    %v6645 = vadd.f32 %v6622, %v6635
    %v6646 = vadd.f32 %v6623, %v6635
    %v6647 = vadd.f32 %v6624, %v6635
    %v6648 = vadd.f32 %v6625, %v6635
    %v6649 = vadd.f32 %v6626, %v6635
    %v6650 = vadd.f32 %v6627, %v6635
    %v6651 = vadd.f32 %v6628, %v6635
    %v6652 = vadd.f32 %v6629, %v6635
    %v6653 = vmax.f32 %v6637, 0.0
    %v6654 = vmax.f32 %v6638, 0.0
    %v6655 = vmax.f32 %v6639, 0.0
    %v6656 = vmax.f32 %v6640, 0.0
    %v6657 = vmax.f32 %v6641, 0.0
    %v6658 = vmax.f32 %v6642, 0.0
    %v6659 = vmax.f32 %v6643, 0.0
    %v6660 = vmax.f32 %v6644, 0.0
    %v6661 = vmax.f32 %v6645, 0.0
    %v6662 = vmax.f32 %v6646, 0.0
    %v6663 = vmax.f32 %v6647, 0.0
    %v6664 = vmax.f32 %v6648, 0.0
    %v6665 = vmax.f32 %v6649, 0.0
    %v6666 = vmax.f32 %v6650, 0.0
    %v6667 = vmax.f32 %v6651, 0.0
    %v6668 = vmax.f32 %v6652, 0.0
    %v6669 = vadd.f32 %v6653, %v6654
    %v6670 = vadd.f32 %v6669, %v6655
    %v6671 = vadd.f32 %v6670, %v6656
    %v6672 = vadd.f32 %v6671, %v6657
    %v6673 = vadd.f32 %v6672, %v6658
    %v6674 = vadd.f32 %v6673, %v6659
    %v6675 = vadd.f32 %v6674, %v6660
    %v6676 = vadd.f32 %v6675, %v6661
    %v6677 = vadd.f32 %v6676, %v6662
    %v6678 = vadd.f32 %v6677, %v6663
    %v6679 = vadd.f32 %v6678, %v6664
    %v6680 = vadd.f32 %v6679, %v6665
    %v6681 = vadd.f32 %v6680, %v6666
    %v6682 = vadd.f32 %v6681, %v6667
    %v6683 = vadd.f32 %v6682, %v6668
    %v6684 = vrot.slane %v6683, 4
    %v6685 = vadd.f32 %v6683, %v6684
    %v6686 = vrot.slane %v6685, 2
    %v6687 = vadd.f32 %v6685, %v6686
    %v6688 = vrot.slane %v6687, 1
    %v6689 = vadd.f32 %v6687, %v6688
    %v6690 = vmul.f32 %v6689, 0.0078125
    %v6691 = vmul.f32 %v6653, %v6653
    %v6692 = vmul.f32 %v6654, %v6654
    %v6693 = vmul.f32 %v6655, %v6655
    %v6694 = vmul.f32 %v6656, %v6656
    %v6695 = vmul.f32 %v6657, %v6657
    %v6696 = vmul.f32 %v6658, %v6658
    %v6697 = vmul.f32 %v6659, %v6659
    %v6698 = vmul.f32 %v6660, %v6660
    %v6699 = vmul.f32 %v6661, %v6661
    %v6700 = vmul.f32 %v6662, %v6662
    %v6701 = vmul.f32 %v6663, %v6663
    %v6702 = vmul.f32 %v6664, %v6664
    %v6703 = vmul.f32 %v6665, %v6665
    %v6704 = vmul.f32 %v6666, %v6666
    %v6705 = vmul.f32 %v6667, %v6667
    %v6706 = vmul.f32 %v6668, %v6668
    %v6707 = vadd.f32 %v6691, %v6692
    %v6708 = vadd.f32 %v6707, %v6693
    %v6709 = vadd.f32 %v6708, %v6694
    %v6710 = vadd.f32 %v6709, %v6695
    %v6711 = vadd.f32 %v6710, %v6696
    %v6712 = vadd.f32 %v6711, %v6697
    %v6713 = vadd.f32 %v6712, %v6698
    %v6714 = vadd.f32 %v6713, %v6699
    %v6715 = vadd.f32 %v6714, %v6700
    %v6716 = vadd.f32 %v6715, %v6701
    %v6717 = vadd.f32 %v6716, %v6702
    %v6718 = vadd.f32 %v6717, %v6703
    %v6719 = vadd.f32 %v6718, %v6704
    %v6720 = vadd.f32 %v6719, %v6705
    %v6721 = vadd.f32 %v6720, %v6706
    %v6722 = vrot.slane %v6721, 4
    %v6723 = vadd.f32 %v6721, %v6722
    %v6724 = vrot.slane %v6723, 2
    %v6725 = vadd.f32 %v6723, %v6724
    %v6726 = vrot.slane %v6725, 1
    %v6727 = vadd.f32 %v6725, %v6726
    %v6728 = vmul.f32 %v6727, 0.0078125
    %v6729 = vmul.f32 %v6690, %v6690
    %v6730 = vsub.f32 %v6728, %v6729
    %v6731 = vld [vmem:[%s8] sm:$0x1]
    %v6732 = vadd.f32 %v6730, 1e-05
    %v6733 = vrsqrt.pop %v6732
    %v6734 = vmul.f32 %v6731, %v6733
    %v6735 = vld [vmem:[%s9] sm:$0x1]
    %v6736 = vmul.f32 %v6690, %v6734
    %v6737 = vsub.f32 %v6735, %v6736
    %v6739 = vlaneseq
    %v6740 = vshrl.u32 %v6739, 7
    %v6741 = vsub.s32 0, %v6740
    %v6742 = vrot.slane %v6734, %v6741
    %v6744 = vmul.f32 %v6653, %v6742
    %v6745 = vmul.f32 %v6654, %v6742
    %v6746 = vmul.f32 %v6655, %v6742
    %v6747 = vmul.f32 %v6656, %v6742
    %v6748 = vmul.f32 %v6657, %v6742
    %v6749 = vmul.f32 %v6658, %v6742
    %v6750 = vmul.f32 %v6659, %v6742
    %v6751 = vmul.f32 %v6660, %v6742
    %v6752 = vmul.f32 %v6661, %v6742
    %v6753 = vmul.f32 %v6662, %v6742
    %v6754 = vmul.f32 %v6663, %v6742
    %v6755 = vmul.f32 %v6664, %v6742
    %v6756 = vmul.f32 %v6665, %v6742
    %v6757 = vmul.f32 %v6666, %v6742
    %v6758 = vmul.f32 %v6667, %v6742
    %v6759 = vmul.f32 %v6668, %v6742
    %v6761 = vlaneseq
    %v6762 = vshrl.u32 %v6761, 7
    %v6763 = vsub.s32 0, %v6762
    %v6764 = vrot.slane %v6737, %v6763
    %v6766 = vadd.f32 %v6744, %v6764
    %v6767 = vadd.f32 %v6745, %v6764
    %v6768 = vadd.f32 %v6746, %v6764
    %v6769 = vadd.f32 %v6747, %v6764
    %v6770 = vadd.f32 %v6748, %v6764
    %v6771 = vadd.f32 %v6749, %v6764
    %v6772 = vadd.f32 %v6750, %v6764
    %v6773 = vadd.f32 %v6751, %v6764
    %v6774 = vadd.f32 %v6752, %v6764
    %v6775 = vadd.f32 %v6753, %v6764
    %v6776 = vadd.f32 %v6754, %v6764
    %v6777 = vadd.f32 %v6755, %v6764
    %v6778 = vadd.f32 %v6756, %v6764
    %v6779 = vadd.f32 %v6757, %v6764
    %v6780 = vadd.f32 %v6758, %v6764
    %v6781 = vadd.f32 %v6759, %v6764
    %v6782 = vld [vmem:[#allocation2] sm:$0xff]
    %v6783 = vld [vmem:[#allocation2 + $0x8] sm:$0xff]
    %v6784 = vld [vmem:[#allocation2 + $0x10] sm:$0xff]
    %v6785 = vld [vmem:[#allocation2 + $0x18] sm:$0xff]
    %v6786 = vld [vmem:[#allocation2 + $0x20] sm:$0xff]
    %v6787 = vld [vmem:[#allocation2 + $0x28] sm:$0xff]
    %v6788 = vld [vmem:[#allocation2 + $0x30] sm:$0xff]
    %v6789 = vld [vmem:[#allocation2 + $0x38] sm:$0xff]
    %v6790 = vld [vmem:[#allocation2 + $0x40] sm:$0xff]
    %v6791 = vld [vmem:[#allocation2 + $0x48] sm:$0xff]
    %v6792 = vld [vmem:[#allocation2 + $0x50] sm:$0xff]
    %v6793 = vld [vmem:[#allocation2 + $0x58] sm:$0xff]
    %v6794 = vld [vmem:[#allocation2 + $0x60] sm:$0xff]
    %v6795 = vld [vmem:[#allocation2 + $0x68] sm:$0xff]
    %v6796 = vld [vmem:[#allocation2 + $0x70] sm:$0xff]
    %v6797 = vld [vmem:[#allocation2 + $0x78] sm:$0xff]
    %v6798 = vld [vmem:[#allocation2 + $0x80] sm:$0xff]
    %v6799 = vld [vmem:[#allocation2 + $0x88] sm:$0xff]
    %v6800 = vld [vmem:[#allocation2 + $0x90] sm:$0xff]
    %v6801 = vld [vmem:[#allocation2 + $0x98] sm:$0xff]
    %v6802 = vld [vmem:[#allocation2 + $0xa0] sm:$0xff]
    %v6803 = vld [vmem:[#allocation2 + $0xa8] sm:$0xff]
    %v6804 = vld [vmem:[#allocation2 + $0xb0] sm:$0xff]
    %v6805 = vld [vmem:[#allocation2 + $0xb8] sm:$0xff]
    %v6806 = vld [vmem:[#allocation2 + $0xc0] sm:$0xff]
    %v6807 = vld [vmem:[#allocation2 + $0xc8] sm:$0xff]
    %v6808 = vld [vmem:[#allocation2 + $0xd0] sm:$0xff]
    %v6809 = vld [vmem:[#allocation2 + $0xd8] sm:$0xff]
    %v6810 = vld [vmem:[#allocation2 + $0xe0] sm:$0xff]
    %v6811 = vld [vmem:[#allocation2 + $0xe8] sm:$0xff]
    %v6812 = vld [vmem:[#allocation2 + $0xf0] sm:$0xff]
    %v6813 = vld [vmem:[#allocation2 + $0xf8] sm:$0xff]
    %v6814 = vld [vmem:[#allocation2 + $0x100] sm:$0xff]
    %v6815 = vld [vmem:[#allocation2 + $0x108] sm:$0xff]
    %v6816 = vld [vmem:[#allocation2 + $0x110] sm:$0xff]
    %v6817 = vld [vmem:[#allocation2 + $0x118] sm:$0xff]
    %v6818 = vld [vmem:[#allocation2 + $0x120] sm:$0xff]
    %v6819 = vld [vmem:[#allocation2 + $0x128] sm:$0xff]
    %v6820 = vld [vmem:[#allocation2 + $0x130] sm:$0xff]
    %v6821 = vld [vmem:[#allocation2 + $0x138] sm:$0xff]
    %v6822 = vld [vmem:[#allocation2 + $0x140] sm:$0xff]
    %v6823 = vld [vmem:[#allocation2 + $0x148] sm:$0xff]
    %v6824 = vld [vmem:[#allocation2 + $0x150] sm:$0xff]
    %v6825 = vld [vmem:[#allocation2 + $0x158] sm:$0xff]
    %v6826 = vld [vmem:[#allocation2 + $0x160] sm:$0xff]
    %v6827 = vld [vmem:[#allocation2 + $0x168] sm:$0xff]
    %v6828 = vld [vmem:[#allocation2 + $0x170] sm:$0xff]
    %v6829 = vld [vmem:[#allocation2 + $0x178] sm:$0xff]
    %v6830 = vld [vmem:[#allocation2 + $0x180] sm:$0xff]
    %v6831 = vld [vmem:[#allocation2 + $0x188] sm:$0xff]
    %v6832 = vld [vmem:[#allocation2 + $0x190] sm:$0xff]
    %v6833 = vld [vmem:[#allocation2 + $0x198] sm:$0xff]
    %v6834 = vld [vmem:[#allocation2 + $0x1a0] sm:$0xff]
    %v6835 = vld [vmem:[#allocation2 + $0x1a8] sm:$0xff]
    %v6836 = vld [vmem:[#allocation2 + $0x1b0] sm:$0xff]
    %v6837 = vld [vmem:[#allocation2 + $0x1b8] sm:$0xff]
    %v6838 = vld [vmem:[#allocation2 + $0x1c0] sm:$0xff]
    %v6839 = vld [vmem:[#allocation2 + $0x1c8] sm:$0xff]
    %v6840 = vld [vmem:[#allocation2 + $0x1d0] sm:$0xff]
    %v6841 = vld [vmem:[#allocation2 + $0x1d8] sm:$0xff]
    %v6842 = vld [vmem:[#allocation2 + $0x1e0] sm:$0xff]
    %v6843 = vld [vmem:[#allocation2 + $0x1e8] sm:$0xff]
    %v6844 = vld [vmem:[#allocation2 + $0x1f0] sm:$0xff]
    %v6845 = vld [vmem:[#allocation2 + $0x1f8] sm:$0xff]
    %v6846 = vld [vmem:[#allocation2 + $0x200] sm:$0xff]
    %v6847 = vld [vmem:[#allocation2 + $0x208] sm:$0xff]
    %v6848 = vld [vmem:[#allocation2 + $0x210] sm:$0xff]
    %v6849 = vld [vmem:[#allocation2 + $0x218] sm:$0xff]
    %v6850 = vld [vmem:[#allocation2 + $0x220] sm:$0xff]
    %v6851 = vld [vmem:[#allocation2 + $0x228] sm:$0xff]
    %v6852 = vld [vmem:[#allocation2 + $0x230] sm:$0xff]
    %v6853 = vld [vmem:[#allocation2 + $0x238] sm:$0xff]
    %v6854 = vld [vmem:[#allocation2 + $0x240] sm:$0xff]
    %v6855 = vld [vmem:[#allocation2 + $0x248] sm:$0xff]
    %v6856 = vld [vmem:[#allocation2 + $0x250] sm:$0xff]
    %v6857 = vld [vmem:[#allocation2 + $0x258] sm:$0xff]
    %v6858 = vld [vmem:[#allocation2 + $0x260] sm:$0xff]
    %v6859 = vld [vmem:[#allocation2 + $0x268] sm:$0xff]
    %v6860 = vld [vmem:[#allocation2 + $0x270] sm:$0xff]
    %v6861 = vld [vmem:[#allocation2 + $0x278] sm:$0xff]
    %v6862 = vld [vmem:[#allocation2 + $0x280] sm:$0xff]
    %v6863 = vld [vmem:[#allocation2 + $0x288] sm:$0xff]
    %v6864 = vld [vmem:[#allocation2 + $0x290] sm:$0xff]
    %v6865 = vld [vmem:[#allocation2 + $0x298] sm:$0xff]
    %v6866 = vld [vmem:[#allocation2 + $0x2a0] sm:$0xff]
    %v6867 = vld [vmem:[#allocation2 + $0x2a8] sm:$0xff]
    %v6868 = vld [vmem:[#allocation2 + $0x2b0] sm:$0xff]
    %v6869 = vld [vmem:[#allocation2 + $0x2b8] sm:$0xff]
    %v6870 = vld [vmem:[#allocation2 + $0x2c0] sm:$0xff]
    %v6871 = vld [vmem:[#allocation2 + $0x2c8] sm:$0xff]
    %v6872 = vld [vmem:[#allocation2 + $0x2d0] sm:$0xff]
    %v6873 = vld [vmem:[#allocation2 + $0x2d8] sm:$0xff]
    %v6874 = vld [vmem:[#allocation2 + $0x2e0] sm:$0xff]
    %v6875 = vld [vmem:[#allocation2 + $0x2e8] sm:$0xff]
    %v6876 = vld [vmem:[#allocation2 + $0x2f0] sm:$0xff]
    %v6877 = vld [vmem:[#allocation2 + $0x2f8] sm:$0xff]
    %v6878 = vld [vmem:[#allocation2 + $0x300] sm:$0xff]
    %v6879 = vld [vmem:[#allocation2 + $0x308] sm:$0xff]
    %v6880 = vld [vmem:[#allocation2 + $0x310] sm:$0xff]
    %v6881 = vld [vmem:[#allocation2 + $0x318] sm:$0xff]
    %v6882 = vld [vmem:[#allocation2 + $0x320] sm:$0xff]
    %v6883 = vld [vmem:[#allocation2 + $0x328] sm:$0xff]
    %v6884 = vld [vmem:[#allocation2 + $0x330] sm:$0xff]
    %v6885 = vld [vmem:[#allocation2 + $0x338] sm:$0xff]
    %v6886 = vld [vmem:[#allocation2 + $0x340] sm:$0xff]
    %v6887 = vld [vmem:[#allocation2 + $0x348] sm:$0xff]
    %v6888 = vld [vmem:[#allocation2 + $0x350] sm:$0xff]
    %v6889 = vld [vmem:[#allocation2 + $0x358] sm:$0xff]
    %v6890 = vld [vmem:[#allocation2 + $0x360] sm:$0xff]
    %v6891 = vld [vmem:[#allocation2 + $0x368] sm:$0xff]
    %v6892 = vld [vmem:[#allocation2 + $0x370] sm:$0xff]
    %v6893 = vld [vmem:[#allocation2 + $0x378] sm:$0xff]
    %v6894 = vld [vmem:[#allocation2 + $0x380] sm:$0xff]
    %v6895 = vld [vmem:[#allocation2 + $0x388] sm:$0xff]
    %v6896 = vld [vmem:[#allocation2 + $0x390] sm:$0xff]
    %v6897 = vld [vmem:[#allocation2 + $0x398] sm:$0xff]
    %v6898 = vld [vmem:[#allocation2 + $0x3a0] sm:$0xff]
    %v6899 = vld [vmem:[#allocation2 + $0x3a8] sm:$0xff]
    %v6900 = vld [vmem:[#allocation2 + $0x3b0] sm:$0xff]
    %v6901 = vld [vmem:[#allocation2 + $0x3b8] sm:$0xff]
    %v6902 = vld [vmem:[#allocation2 + $0x3c0] sm:$0xff]
    %v6903 = vld [vmem:[#allocation2 + $0x3c8] sm:$0xff]
    %v6904 = vld [vmem:[#allocation2 + $0x3d0] sm:$0xff]
    %v6905 = vld [vmem:[#allocation2 + $0x3d8] sm:$0xff]
    %v6906 = vld [vmem:[#allocation2 + $0x3e0] sm:$0xff]
    %v6907 = vld [vmem:[#allocation2 + $0x3e8] sm:$0xff]
    %v6908 = vld [vmem:[#allocation2 + $0x3f0] sm:$0xff]
    %v6909 = vld [vmem:[#allocation2 + $0x3f8] sm:$0xff]
    %v6910 = vld [vmem:[#allocation2 + $0x400] sm:$0xff]
    %v6911 = vld [vmem:[#allocation2 + $0x408] sm:$0xff]
    %v6912 = vld [vmem:[#allocation2 + $0x410] sm:$0xff]
    %v6913 = vld [vmem:[#allocation2 + $0x418] sm:$0xff]
    %v6914 = vld [vmem:[#allocation2 + $0x420] sm:$0xff]
    %v6915 = vld [vmem:[#allocation2 + $0x428] sm:$0xff]
    %v6916 = vld [vmem:[#allocation2 + $0x430] sm:$0xff]
    %v6917 = vld [vmem:[#allocation2 + $0x438] sm:$0xff]
    %v6918 = vld [vmem:[#allocation2 + $0x440] sm:$0xff]
    %v6919 = vld [vmem:[#allocation2 + $0x448] sm:$0xff]
    %v6920 = vld [vmem:[#allocation2 + $0x450] sm:$0xff]
    %v6921 = vld [vmem:[#allocation2 + $0x458] sm:$0xff]
    %v6922 = vld [vmem:[#allocation2 + $0x460] sm:$0xff]
    %v6923 = vld [vmem:[#allocation2 + $0x468] sm:$0xff]
    %v6924 = vld [vmem:[#allocation2 + $0x470] sm:$0xff]
    %v6925 = vld [vmem:[#allocation2 + $0x478] sm:$0xff]
    %6926 = vmatprep.subr.mxu0 %v6918
    %6927 = vmatpush1.msra.mxu0 %v6917
    %6928 = vmatprep.subr.mxu0 %v6909
    %6929 = vmatpush1.msra.mxu0 %v6908
    %6930 = vmatprep.subr.mxu0 %v6900
    %6931 = vmatpush1.msra.mxu0 %v6899
    %6932 = vmatprep.subr.mxu0 %v6891
    %6933 = vmatpush1.msra.mxu0 %v6890
    %6934 = vmatprep.subr.mxu0 %v6882
    %6935 = vmatpush1.msra.mxu0 %v6881
    %6936 = vmatprep.subr.mxu0 %v6873
    %6937 = vmatpush1.msra.mxu0 %v6872
    %6938 = vmatprep.subr.mxu0 %v6864
    %6939 = vmatpush1.msra.mxu0 %v6863
    %6940 = vmatprep.subr.mxu0 %v6855
    %6941 = vmatpush1.msra.mxu0 %v6854
    %6942 = vmatprep.subr.mxu0 %v6846
    %6943 = vmatpush1.msra.mxu0 %v6845
    %6944 = vmatprep.subr.mxu0 %v6837
    %6945 = vmatpush1.msra.mxu0 %v6836
    %6946 = vmatprep.subr.mxu0 %v6828
    %6947 = vmatpush1.msra.mxu0 %v6827
    %6948 = vmatprep.subr.mxu0 %v6819
    %6949 = vmatpush1.msra.mxu0 %v6818
    %6950 = vmatprep.subr.mxu0 %v6810
    %6951 = vmatpush1.msra.mxu0 %v6809
    %6952 = vmatprep.subr.mxu0 %v6801
    %6953 = vmatpush1.msra.mxu0 %v6800
    %6954 = vmatprep.subr.mxu0 %v6792
    %6955 = vmatpush1.msra.mxu0 %v6791
    %6956 = vmatprep.subr.mxu0 %v6783
    %6957 = vmatpush1.msra.mxu0 %v6782
    %6958 = vmatprep.subr.mxu0 0.0
    %6959 = vmatpush2.msra.mxu0 0.0
    %6960 = vmatprep.subr.mxu0 0.0
    %6961 = vmatpush2.msra.mxu0 0.0
    %6962 = vmatprep.subr.mxu0 0.0
    %6963 = vmatpush2.msra.mxu0 0.0
    %6964 = vmatprep.subr.mxu0 0.0
    %6965 = vmatpush2.msra.mxu0 0.0
    %6966 = vmatprep.subr.mxu0 0.0
    %6967 = vmatpush2.msra.mxu0 0.0
    %6968 = vmatprep.subr.mxu0 0.0
    %6969 = vmatpush2.msra.mxu0 0.0
    %6970 = vmatprep.subr.mxu0 0.0
    %6971 = vmatpush2.msra.mxu0 0.0
    %6972 = vmatprep.subr.mxu0 0.0
    %6973 = vmatpush2.msra.mxu0 0.0
    %6974 = vmatprep.subr.mxu0 0.0
    %6975 = vmatpush2.msra.mxu0 0.0
    %6976 = vmatprep.subr.mxu0 0.0
    %6977 = vmatpush2.msra.mxu0 0.0
    %6978 = vmatprep.subr.mxu0 0.0
    %6979 = vmatpush2.msra.mxu0 0.0
    %6980 = vmatprep.subr.mxu0 0.0
    %6981 = vmatpush2.msra.mxu0 0.0
    %6982 = vmatprep.subr.mxu0 0.0
    %6983 = vmatpush2.msra.mxu0 0.0
    %6984 = vmatprep.subr.mxu0 0.0
    %6985 = vmatpush2.msra.mxu0 0.0
    %6986 = vmatprep.subr.mxu0 0.0
    %6987 = vmatpush2.msra.mxu0 0.0
    %6988 = vmatprep.subr.mxu0 0.0
    %6989 = vmatpush2.msra.mxu0 0.0
    %6990 = vmatprep.mubr.f32.mxu0 0.0
    %6991 = vmatmul.mubr.f32.gmra.mxu0 %v6766
    %v6992 = vpop.f32.mrf.mxu0
    %v6993 = vadd.f32 0.0, %v6992
    %v6994 = vpop.f32.mrf.mxu0
    %v6995 = vadd.f32 0.0, %v6994
    %6996 = vmatprep.mubr.f32.mxu0 0.0
    %6997 = vmatmul.mubr.f32.gmra.mxu0 %v6767
    %v6998 = vpop.f32.mrf.mxu0
    %v6999 = vadd.f32 0.0, %v6998
    %v7000 = vpop.f32.mrf.mxu0
    %v7001 = vadd.f32 0.0, %v7000
    %7002 = vmatprep.mubr.f32.mxu0 0.0
    %7003 = vmatmul.mubr.f32.gmra.mxu0 %v6768
    %v7004 = vpop.f32.mrf.mxu0
    %v7005 = vadd.f32 0.0, %v7004
    %v7006 = vpop.f32.mrf.mxu0
    %v7007 = vadd.f32 0.0, %v7006
    %7008 = vmatprep.mubr.f32.mxu0 0.0
    %7009 = vmatmul.mubr.f32.gmra.mxu0 %v6769
    %v7010 = vpop.f32.mrf.mxu0
    %v7011 = vadd.f32 0.0, %v7010
    %v7012 = vpop.f32.mrf.mxu0
    %v7013 = vadd.f32 0.0, %v7012
    %7014 = vmatprep.mubr.f32.mxu0 0.0
    %7015 = vmatmul.mubr.f32.gmra.mxu0 %v6770
    %v7016 = vpop.f32.mrf.mxu0
    %v7017 = vadd.f32 0.0, %v7016
    %v7018 = vpop.f32.mrf.mxu0
    %v7019 = vadd.f32 0.0, %v7018
    %7020 = vmatprep.mubr.f32.mxu0 0.0
    %7021 = vmatmul.mubr.f32.gmra.mxu0 %v6771
    %v7022 = vpop.f32.mrf.mxu0
    %v7023 = vadd.f32 0.0, %v7022
    %v7024 = vpop.f32.mrf.mxu0
    %v7025 = vadd.f32 0.0, %v7024
    %7026 = vmatprep.mubr.f32.mxu0 0.0
    %7027 = vmatmul.mubr.f32.gmra.mxu0 %v6772
    %v7028 = vpop.f32.mrf.mxu0
    %v7029 = vadd.f32 0.0, %v7028
    %v7030 = vpop.f32.mrf.mxu0
    %v7031 = vadd.f32 0.0, %v7030
    %7032 = vmatprep.mubr.f32.mxu0 0.0
    %7033 = vmatmul.mubr.f32.gmra.mxu0 %v6773
    %v7034 = vpop.f32.mrf.mxu0
    %v7035 = vadd.f32 0.0, %v7034
    %v7036 = vpop.f32.mrf.mxu0
    %v7037 = vadd.f32 0.0, %v7036
    %7038 = vmatprep.mubr.f32.mxu0 0.0
    %7039 = vmatmul.mubr.f32.gmra.mxu0 %v6774
    %v7040 = vpop.f32.mrf.mxu0
    %v7041 = vadd.f32 0.0, %v7040
    %v7042 = vpop.f32.mrf.mxu0
    %v7043 = vadd.f32 0.0, %v7042
    %7044 = vmatprep.mubr.f32.mxu0 0.0
    %7045 = vmatmul.mubr.f32.gmra.mxu0 %v6775
    %v7046 = vpop.f32.mrf.mxu0
    %v7047 = vadd.f32 0.0, %v7046
    %v7048 = vpop.f32.mrf.mxu0
    %v7049 = vadd.f32 0.0, %v7048
    %7050 = vmatprep.mubr.f32.mxu0 0.0
    %7051 = vmatmul.mubr.f32.gmra.mxu0 %v6776
    %v7052 = vpop.f32.mrf.mxu0
    %v7053 = vadd.f32 0.0, %v7052
    %v7054 = vpop.f32.mrf.mxu0
    %v7055 = vadd.f32 0.0, %v7054
    %7056 = vmatprep.mubr.f32.mxu0 0.0
    %7057 = vmatmul.mubr.f32.gmra.mxu0 %v6777
    %v7058 = vpop.f32.mrf.mxu0
    %v7059 = vadd.f32 0.0, %v7058
    %v7060 = vpop.f32.mrf.mxu0
    %v7061 = vadd.f32 0.0, %v7060
    %7062 = vmatprep.mubr.f32.mxu0 0.0
    %7063 = vmatmul.mubr.f32.gmra.mxu0 %v6778
    %v7064 = vpop.f32.mrf.mxu0
    %v7065 = vadd.f32 0.0, %v7064
    %v7066 = vpop.f32.mrf.mxu0
    %v7067 = vadd.f32 0.0, %v7066
    %7068 = vmatprep.mubr.f32.mxu0 0.0
    %7069 = vmatmul.mubr.f32.gmra.mxu0 %v6779
    %v7070 = vpop.f32.mrf.mxu0
    %v7071 = vadd.f32 0.0, %v7070
    %v7072 = vpop.f32.mrf.mxu0
    %v7073 = vadd.f32 0.0, %v7072
    %7074 = vmatprep.mubr.f32.mxu0 0.0
    %7075 = vmatmul.mubr.f32.gmra.mxu0 %v6780
    %v7076 = vpop.f32.mrf.mxu0
    %v7077 = vadd.f32 0.0, %v7076
    %v7078 = vpop.f32.mrf.mxu0
    %v7079 = vadd.f32 0.0, %v7078
    %7080 = vmatprep.mubr.f32.mxu0 0.0
    %7081 = vmatmul.mubr.f32.gmra.mxu0 %v6781
    %v7082 = vpop.f32.mrf.mxu0
    %v7083 = vadd.f32 0.0, %v7082
    %v7084 = vpop.f32.mrf.mxu0
    %v7085 = vadd.f32 0.0, %v7084
    %7086 = vdwg.mxu0
    %7087 = vmatprep.subr.mxu0 %v6920
    %7088 = vmatpush1.msra.mxu0 %v6919
    %7089 = vmatprep.subr.mxu0 %v6911
    %7090 = vmatpush1.msra.mxu0 %v6910
    %7091 = vmatprep.subr.mxu0 %v6902
    %7092 = vmatpush1.msra.mxu0 %v6901
    %7093 = vmatprep.subr.mxu0 %v6893
    %7094 = vmatpush1.msra.mxu0 %v6892
    %7095 = vmatprep.subr.mxu0 %v6884
    %7096 = vmatpush1.msra.mxu0 %v6883
    %7097 = vmatprep.subr.mxu0 %v6875
    %7098 = vmatpush1.msra.mxu0 %v6874
    %7099 = vmatprep.subr.mxu0 %v6866
    %7100 = vmatpush1.msra.mxu0 %v6865
    %7101 = vmatprep.subr.mxu0 %v6857
    %7102 = vmatpush1.msra.mxu0 %v6856
    %7103 = vmatprep.subr.mxu0 %v6848
    %7104 = vmatpush1.msra.mxu0 %v6847
    %7105 = vmatprep.subr.mxu0 %v6839
    %7106 = vmatpush1.msra.mxu0 %v6838
    %7107 = vmatprep.subr.mxu0 %v6830
    %7108 = vmatpush1.msra.mxu0 %v6829
    %7109 = vmatprep.subr.mxu0 %v6821
    %7110 = vmatpush1.msra.mxu0 %v6820
    %7111 = vmatprep.subr.mxu0 %v6812
    %7112 = vmatpush1.msra.mxu0 %v6811
    %7113 = vmatprep.subr.mxu0 %v6803
    %7114 = vmatpush1.msra.mxu0 %v6802
    %7115 = vmatprep.subr.mxu0 %v6794
    %7116 = vmatpush1.msra.mxu0 %v6793
    %7117 = vmatprep.subr.mxu0 %v6785
    %7118 = vmatpush1.msra.mxu0 %v6784
    %7119 = vmatprep.subr.mxu0 0.0
    %7120 = vmatpush2.msra.mxu0 0.0
    %7121 = vmatprep.subr.mxu0 0.0
    %7122 = vmatpush2.msra.mxu0 0.0
    %7123 = vmatprep.subr.mxu0 0.0
    %7124 = vmatpush2.msra.mxu0 0.0
    %7125 = vmatprep.subr.mxu0 0.0
    %7126 = vmatpush2.msra.mxu0 0.0
    %7127 = vmatprep.subr.mxu0 0.0
    %7128 = vmatpush2.msra.mxu0 0.0
    %7129 = vmatprep.subr.mxu0 0.0
    %7130 = vmatpush2.msra.mxu0 0.0
    %7131 = vmatprep.subr.mxu0 0.0
    %7132 = vmatpush2.msra.mxu0 0.0
    %7133 = vmatprep.subr.mxu0 0.0
    %7134 = vmatpush2.msra.mxu0 0.0
    %7135 = vmatprep.subr.mxu0 0.0
    %7136 = vmatpush2.msra.mxu0 0.0
    %7137 = vmatprep.subr.mxu0 0.0
    %7138 = vmatpush2.msra.mxu0 0.0
    %7139 = vmatprep.subr.mxu0 0.0
    %7140 = vmatpush2.msra.mxu0 0.0
    %7141 = vmatprep.subr.mxu0 0.0
    %7142 = vmatpush2.msra.mxu0 0.0
    %7143 = vmatprep.subr.mxu0 0.0
    %7144 = vmatpush2.msra.mxu0 0.0
    %7145 = vmatprep.subr.mxu0 0.0
    %7146 = vmatpush2.msra.mxu0 0.0
    %7147 = vmatprep.subr.mxu0 0.0
    %7148 = vmatpush2.msra.mxu0 0.0
    %7149 = vmatprep.subr.mxu0 0.0
    %7150 = vmatpush2.msra.mxu0 0.0
    %7151 = vmatprep.mubr.f32.mxu0 0.0
    %7152 = vmatmul.mubr.f32.gmra.mxu0 %v6766
    %v7153 = vpop.f32.mrf.mxu0
    %v7154 = vadd.f32 0.0, %v7153
    %v7155 = vpop.f32.mrf.mxu0
    %v7156 = vadd.f32 0.0, %v7155
    %7157 = vmatprep.mubr.f32.mxu0 0.0
    %7158 = vmatmul.mubr.f32.gmra.mxu0 %v6767
    %v7159 = vpop.f32.mrf.mxu0
    %v7160 = vadd.f32 0.0, %v7159
    %v7161 = vpop.f32.mrf.mxu0
    %v7162 = vadd.f32 0.0, %v7161
    %7163 = vmatprep.mubr.f32.mxu0 0.0
    %7164 = vmatmul.mubr.f32.gmra.mxu0 %v6768
    %v7165 = vpop.f32.mrf.mxu0
    %v7166 = vadd.f32 0.0, %v7165
    %v7167 = vpop.f32.mrf.mxu0
    %v7168 = vadd.f32 0.0, %v7167
    %7169 = vmatprep.mubr.f32.mxu0 0.0
    %7170 = vmatmul.mubr.f32.gmra.mxu0 %v6769
    %v7171 = vpop.f32.mrf.mxu0
    %v7172 = vadd.f32 0.0, %v7171
    %v7173 = vpop.f32.mrf.mxu0
    %v7174 = vadd.f32 0.0, %v7173
    %7175 = vmatprep.mubr.f32.mxu0 0.0
    %7176 = vmatmul.mubr.f32.gmra.mxu0 %v6770
    %v7177 = vpop.f32.mrf.mxu0
    %v7178 = vadd.f32 0.0, %v7177
    %v7179 = vpop.f32.mrf.mxu0
    %v7180 = vadd.f32 0.0, %v7179
    %7181 = vmatprep.mubr.f32.mxu0 0.0
    %7182 = vmatmul.mubr.f32.gmra.mxu0 %v6771
    %v7183 = vpop.f32.mrf.mxu0
    %v7184 = vadd.f32 0.0, %v7183
    %v7185 = vpop.f32.mrf.mxu0
    %v7186 = vadd.f32 0.0, %v7185
    %7187 = vmatprep.mubr.f32.mxu0 0.0
    %7188 = vmatmul.mubr.f32.gmra.mxu0 %v6772
    %v7189 = vpop.f32.mrf.mxu0
    %v7190 = vadd.f32 0.0, %v7189
    %v7191 = vpop.f32.mrf.mxu0
    %v7192 = vadd.f32 0.0, %v7191
    %7193 = vmatprep.mubr.f32.mxu0 0.0
    %7194 = vmatmul.mubr.f32.gmra.mxu0 %v6773
    %v7195 = vpop.f32.mrf.mxu0
    %v7196 = vadd.f32 0.0, %v7195
    %v7197 = vpop.f32.mrf.mxu0
    %v7198 = vadd.f32 0.0, %v7197
    %7199 = vmatprep.mubr.f32.mxu0 0.0
    %7200 = vmatmul.mubr.f32.gmra.mxu0 %v6774
    %v7201 = vpop.f32.mrf.mxu0
    %v7202 = vadd.f32 0.0, %v7201
    %v7203 = vpop.f32.mrf.mxu0
    %v7204 = vadd.f32 0.0, %v7203
    %7205 = vmatprep.mubr.f32.mxu0 0.0
    %7206 = vmatmul.mubr.f32.gmra.mxu0 %v6775
    %v7207 = vpop.f32.mrf.mxu0
    %v7208 = vadd.f32 0.0, %v7207
    %v7209 = vpop.f32.mrf.mxu0
    %v7210 = vadd.f32 0.0, %v7209
    %7211 = vmatprep.mubr.f32.mxu0 0.0
    %7212 = vmatmul.mubr.f32.gmra.mxu0 %v6776
    %v7213 = vpop.f32.mrf.mxu0
    %v7214 = vadd.f32 0.0, %v7213
    %v7215 = vpop.f32.mrf.mxu0
    %v7216 = vadd.f32 0.0, %v7215
    %7217 = vmatprep.mubr.f32.mxu0 0.0
    %7218 = vmatmul.mubr.f32.gmra.mxu0 %v6777
    %v7219 = vpop.f32.mrf.mxu0
    %v7220 = vadd.f32 0.0, %v7219
    %v7221 = vpop.f32.mrf.mxu0
    %v7222 = vadd.f32 0.0, %v7221
    %7223 = vmatprep.mubr.f32.mxu0 0.0
    %7224 = vmatmul.mubr.f32.gmra.mxu0 %v6778
    %v7225 = vpop.f32.mrf.mxu0
    %v7226 = vadd.f32 0.0, %v7225
    %v7227 = vpop.f32.mrf.mxu0
    %v7228 = vadd.f32 0.0, %v7227
    %7229 = vmatprep.mubr.f32.mxu0 0.0
    %7230 = vmatmul.mubr.f32.gmra.mxu0 %v6779
    %v7231 = vpop.f32.mrf.mxu0
    %v7232 = vadd.f32 0.0, %v7231
    %v7233 = vpop.f32.mrf.mxu0
    %v7234 = vadd.f32 0.0, %v7233
    %7235 = vmatprep.mubr.f32.mxu0 0.0
    %7236 = vmatmul.mubr.f32.gmra.mxu0 %v6780
    %v7237 = vpop.f32.mrf.mxu0
    %v7238 = vadd.f32 0.0, %v7237
    %v7239 = vpop.f32.mrf.mxu0
    %v7240 = vadd.f32 0.0, %v7239
    %7241 = vmatprep.mubr.f32.mxu0 0.0
    %7242 = vmatmul.mubr.f32.gmra.mxu0 %v6781
    %v7243 = vpop.f32.mrf.mxu0
    %v7244 = vadd.f32 0.0, %v7243
    %v7245 = vpop.f32.mrf.mxu0
    %v7246 = vadd.f32 0.0, %v7245
    %7247 = vdwg.mxu0
    %7248 = vmatprep.subr.mxu0 %v6922
    %7249 = vmatpush1.msra.mxu0 %v6921
    %7250 = vmatprep.subr.mxu0 %v6913
    %7251 = vmatpush1.msra.mxu0 %v6912
    %7252 = vmatprep.subr.mxu0 %v6904
    %7253 = vmatpush1.msra.mxu0 %v6903
    %7254 = vmatprep.subr.mxu0 %v6895
    %7255 = vmatpush1.msra.mxu0 %v6894
    %7256 = vmatprep.subr.mxu0 %v6886
    %7257 = vmatpush1.msra.mxu0 %v6885
    %7258 = vmatprep.subr.mxu0 %v6877
    %7259 = vmatpush1.msra.mxu0 %v6876
    %7260 = vmatprep.subr.mxu0 %v6868
    %7261 = vmatpush1.msra.mxu0 %v6867
    %7262 = vmatprep.subr.mxu0 %v6859
    %7263 = vmatpush1.msra.mxu0 %v6858
    %7264 = vmatprep.subr.mxu0 %v6850
    %7265 = vmatpush1.msra.mxu0 %v6849
    %7266 = vmatprep.subr.mxu0 %v6841
    %7267 = vmatpush1.msra.mxu0 %v6840
    %7268 = vmatprep.subr.mxu0 %v6832
    %7269 = vmatpush1.msra.mxu0 %v6831
    %7270 = vmatprep.subr.mxu0 %v6823
    %7271 = vmatpush1.msra.mxu0 %v6822
    %7272 = vmatprep.subr.mxu0 %v6814
    %7273 = vmatpush1.msra.mxu0 %v6813
    %7274 = vmatprep.subr.mxu0 %v6805
    %7275 = vmatpush1.msra.mxu0 %v6804
    %7276 = vmatprep.subr.mxu0 %v6796
    %7277 = vmatpush1.msra.mxu0 %v6795
    %7278 = vmatprep.subr.mxu0 %v6787
    %7279 = vmatpush1.msra.mxu0 %v6786
    %7280 = vmatprep.subr.mxu0 0.0
    %7281 = vmatpush2.msra.mxu0 0.0
    %7282 = vmatprep.subr.mxu0 0.0
    %7283 = vmatpush2.msra.mxu0 0.0
    %7284 = vmatprep.subr.mxu0 0.0
    %7285 = vmatpush2.msra.mxu0 0.0
    %7286 = vmatprep.subr.mxu0 0.0
    %7287 = vmatpush2.msra.mxu0 0.0
    %7288 = vmatprep.subr.mxu0 0.0
    %7289 = vmatpush2.msra.mxu0 0.0
    %7290 = vmatprep.subr.mxu0 0.0
    %7291 = vmatpush2.msra.mxu0 0.0
    %7292 = vmatprep.subr.mxu0 0.0
    %7293 = vmatpush2.msra.mxu0 0.0
    %7294 = vmatprep.subr.mxu0 0.0
    %7295 = vmatpush2.msra.mxu0 0.0
    %7296 = vmatprep.subr.mxu0 0.0
    %7297 = vmatpush2.msra.mxu0 0.0
    %7298 = vmatprep.subr.mxu0 0.0
    %7299 = vmatpush2.msra.mxu0 0.0
    %7300 = vmatprep.subr.mxu0 0.0
    %7301 = vmatpush2.msra.mxu0 0.0
    %7302 = vmatprep.subr.mxu0 0.0
    %7303 = vmatpush2.msra.mxu0 0.0
    %7304 = vmatprep.subr.mxu0 0.0
    %7305 = vmatpush2.msra.mxu0 0.0
    %7306 = vmatprep.subr.mxu0 0.0
    %7307 = vmatpush2.msra.mxu0 0.0
    %7308 = vmatprep.subr.mxu0 0.0
    %7309 = vmatpush2.msra.mxu0 0.0
    %7310 = vmatprep.subr.mxu0 0.0
    %7311 = vmatpush2.msra.mxu0 0.0
    %7312 = vmatprep.mubr.f32.mxu0 0.0
    %7313 = vmatmul.mubr.f32.gmra.mxu0 %v6766
    %v7314 = vpop.f32.mrf.mxu0
    %v7315 = vadd.f32 0.0, %v7314
    %v7316 = vpop.f32.mrf.mxu0
    %v7317 = vadd.f32 0.0, %v7316
    %7318 = vmatprep.mubr.f32.mxu0 0.0
    %7319 = vmatmul.mubr.f32.gmra.mxu0 %v6767
    %v7320 = vpop.f32.mrf.mxu0
    %v7321 = vadd.f32 0.0, %v7320
    %v7322 = vpop.f32.mrf.mxu0
    %v7323 = vadd.f32 0.0, %v7322
    %7324 = vmatprep.mubr.f32.mxu0 0.0
    %7325 = vmatmul.mubr.f32.gmra.mxu0 %v6768
    %v7326 = vpop.f32.mrf.mxu0
    %v7327 = vadd.f32 0.0, %v7326
    %v7328 = vpop.f32.mrf.mxu0
    %v7329 = vadd.f32 0.0, %v7328
    %7330 = vmatprep.mubr.f32.mxu0 0.0
    %7331 = vmatmul.mubr.f32.gmra.mxu0 %v6769
    %v7332 = vpop.f32.mrf.mxu0
    %v7333 = vadd.f32 0.0, %v7332
    %v7334 = vpop.f32.mrf.mxu0
    %v7335 = vadd.f32 0.0, %v7334
    %7336 = vmatprep.mubr.f32.mxu0 0.0
    %7337 = vmatmul.mubr.f32.gmra.mxu0 %v6770
    %v7338 = vpop.f32.mrf.mxu0
    %v7339 = vadd.f32 0.0, %v7338
    %v7340 = vpop.f32.mrf.mxu0
    %v7341 = vadd.f32 0.0, %v7340
    %7342 = vmatprep.mubr.f32.mxu0 0.0
    %7343 = vmatmul.mubr.f32.gmra.mxu0 %v6771
    %v7344 = vpop.f32.mrf.mxu0
    %v7345 = vadd.f32 0.0, %v7344
    %v7346 = vpop.f32.mrf.mxu0
    %v7347 = vadd.f32 0.0, %v7346
    %7348 = vmatprep.mubr.f32.mxu0 0.0
    %7349 = vmatmul.mubr.f32.gmra.mxu0 %v6772
    %v7350 = vpop.f32.mrf.mxu0
    %v7351 = vadd.f32 0.0, %v7350
    %v7352 = vpop.f32.mrf.mxu0
    %v7353 = vadd.f32 0.0, %v7352
    %7354 = vmatprep.mubr.f32.mxu0 0.0
    %7355 = vmatmul.mubr.f32.gmra.mxu0 %v6773
    %v7356 = vpop.f32.mrf.mxu0
    %v7357 = vadd.f32 0.0, %v7356
    %v7358 = vpop.f32.mrf.mxu0
    %v7359 = vadd.f32 0.0, %v7358
    %7360 = vmatprep.mubr.f32.mxu0 0.0
    %7361 = vmatmul.mubr.f32.gmra.mxu0 %v6774
    %v7362 = vpop.f32.mrf.mxu0
    %v7363 = vadd.f32 0.0, %v7362
    %v7364 = vpop.f32.mrf.mxu0
    %v7365 = vadd.f32 0.0, %v7364
    %7366 = vmatprep.mubr.f32.mxu0 0.0
    %7367 = vmatmul.mubr.f32.gmra.mxu0 %v6775
    %v7368 = vpop.f32.mrf.mxu0
    %v7369 = vadd.f32 0.0, %v7368
    %v7370 = vpop.f32.mrf.mxu0
    %v7371 = vadd.f32 0.0, %v7370
    %7372 = vmatprep.mubr.f32.mxu0 0.0
    %7373 = vmatmul.mubr.f32.gmra.mxu0 %v6776
    %v7374 = vpop.f32.mrf.mxu0
    %v7375 = vadd.f32 0.0, %v7374
    %v7376 = vpop.f32.mrf.mxu0
    %v7377 = vadd.f32 0.0, %v7376
    %7378 = vmatprep.mubr.f32.mxu0 0.0
    %7379 = vmatmul.mubr.f32.gmra.mxu0 %v6777
    %v7380 = vpop.f32.mrf.mxu0
    %v7381 = vadd.f32 0.0, %v7380
    %v7382 = vpop.f32.mrf.mxu0
    %v7383 = vadd.f32 0.0, %v7382
    %7384 = vmatprep.mubr.f32.mxu0 0.0
    %7385 = vmatmul.mubr.f32.gmra.mxu0 %v6778
    %v7386 = vpop.f32.mrf.mxu0
    %v7387 = vadd.f32 0.0, %v7386
    %v7388 = vpop.f32.mrf.mxu0
    %v7389 = vadd.f32 0.0, %v7388
    %7390 = vmatprep.mubr.f32.mxu0 0.0
    %7391 = vmatmul.mubr.f32.gmra.mxu0 %v6779
    %v7392 = vpop.f32.mrf.mxu0
    %v7393 = vadd.f32 0.0, %v7392
    %v7394 = vpop.f32.mrf.mxu0
    %v7395 = vadd.f32 0.0, %v7394
    %7396 = vmatprep.mubr.f32.mxu0 0.0
    %7397 = vmatmul.mubr.f32.gmra.mxu0 %v6780
    %v7398 = vpop.f32.mrf.mxu0
    %v7399 = vadd.f32 0.0, %v7398
    %v7400 = vpop.f32.mrf.mxu0
    %v7401 = vadd.f32 0.0, %v7400
    %7402 = vmatprep.mubr.f32.mxu0 0.0
    %7403 = vmatmul.mubr.f32.gmra.mxu0 %v6781
    %v7404 = vpop.f32.mrf.mxu0
    %v7405 = vadd.f32 0.0, %v7404
    %v7406 = vpop.f32.mrf.mxu0
    %v7407 = vadd.f32 0.0, %v7406
    %7408 = vdwg.mxu0
    %7409 = vmatprep.subr.mxu0 %v6924
    %7410 = vmatpush1.msra.mxu0 %v6923
    %7411 = vmatprep.subr.mxu0 %v6915
    %7412 = vmatpush1.msra.mxu0 %v6914
    %7413 = vmatprep.subr.mxu0 %v6906
    %7414 = vmatpush1.msra.mxu0 %v6905
    %7415 = vmatprep.subr.mxu0 %v6897
    %7416 = vmatpush1.msra.mxu0 %v6896
    %7417 = vmatprep.subr.mxu0 %v6888
    %7418 = vmatpush1.msra.mxu0 %v6887
    %7419 = vmatprep.subr.mxu0 %v6879
    %7420 = vmatpush1.msra.mxu0 %v6878
    %7421 = vmatprep.subr.mxu0 %v6870
    %7422 = vmatpush1.msra.mxu0 %v6869
    %7423 = vmatprep.subr.mxu0 %v6861
    %7424 = vmatpush1.msra.mxu0 %v6860
    %7425 = vmatprep.subr.mxu0 %v6852
    %7426 = vmatpush1.msra.mxu0 %v6851
    %7427 = vmatprep.subr.mxu0 %v6843
    %7428 = vmatpush1.msra.mxu0 %v6842
    %7429 = vmatprep.subr.mxu0 %v6834
    %7430 = vmatpush1.msra.mxu0 %v6833
    %7431 = vmatprep.subr.mxu0 %v6825
    %7432 = vmatpush1.msra.mxu0 %v6824
    %7433 = vmatprep.subr.mxu0 %v6816
    %7434 = vmatpush1.msra.mxu0 %v6815
    %7435 = vmatprep.subr.mxu0 %v6807
    %7436 = vmatpush1.msra.mxu0 %v6806
    %7437 = vmatprep.subr.mxu0 %v6798
    %7438 = vmatpush1.msra.mxu0 %v6797
    %7439 = vmatprep.subr.mxu0 %v6789
    %7440 = vmatpush1.msra.mxu0 %v6788
    %7441 = vmatprep.subr.mxu0 0.0
    %7442 = vmatpush2.msra.mxu0 0.0
    %7443 = vmatprep.subr.mxu0 0.0
    %7444 = vmatpush2.msra.mxu0 0.0
    %7445 = vmatprep.subr.mxu0 0.0
    %7446 = vmatpush2.msra.mxu0 0.0
    %7447 = vmatprep.subr.mxu0 0.0
    %7448 = vmatpush2.msra.mxu0 0.0
    %7449 = vmatprep.subr.mxu0 0.0
    %7450 = vmatpush2.msra.mxu0 0.0
    %7451 = vmatprep.subr.mxu0 0.0
    %7452 = vmatpush2.msra.mxu0 0.0
    %7453 = vmatprep.subr.mxu0 0.0
    %7454 = vmatpush2.msra.mxu0 0.0
    %7455 = vmatprep.subr.mxu0 0.0
    %7456 = vmatpush2.msra.mxu0 0.0
    %7457 = vmatprep.subr.mxu0 0.0
    %7458 = vmatpush2.msra.mxu0 0.0
    %7459 = vmatprep.subr.mxu0 0.0
    %7460 = vmatpush2.msra.mxu0 0.0
    %7461 = vmatprep.subr.mxu0 0.0
    %7462 = vmatpush2.msra.mxu0 0.0
    %7463 = vmatprep.subr.mxu0 0.0
    %7464 = vmatpush2.msra.mxu0 0.0
    %7465 = vmatprep.subr.mxu0 0.0
    %7466 = vmatpush2.msra.mxu0 0.0
    %7467 = vmatprep.subr.mxu0 0.0
    %7468 = vmatpush2.msra.mxu0 0.0
    %7469 = vmatprep.subr.mxu0 0.0
    %7470 = vmatpush2.msra.mxu0 0.0
    %7471 = vmatprep.subr.mxu0 0.0
    %7472 = vmatpush2.msra.mxu0 0.0
    %7473 = vmatprep.mubr.f32.mxu0 0.0
    %7474 = vmatmul.mubr.f32.gmra.mxu0 %v6766
    %v7475 = vpop.f32.mrf.mxu0
    %v7476 = vadd.f32 0.0, %v7475
    %v7477 = vpop.f32.mrf.mxu0
    %v7478 = vadd.f32 0.0, %v7477
    %7479 = vmatprep.mubr.f32.mxu0 0.0
    %7480 = vmatmul.mubr.f32.gmra.mxu0 %v6767
    %v7481 = vpop.f32.mrf.mxu0
    %v7482 = vadd.f32 0.0, %v7481
    %v7483 = vpop.f32.mrf.mxu0
    %v7484 = vadd.f32 0.0, %v7483
    %7485 = vmatprep.mubr.f32.mxu0 0.0
    %7486 = vmatmul.mubr.f32.gmra.mxu0 %v6768
    %v7487 = vpop.f32.mrf.mxu0
    %v7488 = vadd.f32 0.0, %v7487
    %v7489 = vpop.f32.mrf.mxu0
    %v7490 = vadd.f32 0.0, %v7489
    %7491 = vmatprep.mubr.f32.mxu0 0.0
    %7492 = vmatmul.mubr.f32.gmra.mxu0 %v6769
    %v7493 = vpop.f32.mrf.mxu0
    %v7494 = vadd.f32 0.0, %v7493
    %v7495 = vpop.f32.mrf.mxu0
    %v7496 = vadd.f32 0.0, %v7495
    %7497 = vmatprep.mubr.f32.mxu0 0.0
    %7498 = vmatmul.mubr.f32.gmra.mxu0 %v6770
    %v7499 = vpop.f32.mrf.mxu0
    %v7500 = vadd.f32 0.0, %v7499
    %v7501 = vpop.f32.mrf.mxu0
    %v7502 = vadd.f32 0.0, %v7501
    %7503 = vmatprep.mubr.f32.mxu0 0.0
    %7504 = vmatmul.mubr.f32.gmra.mxu0 %v6771
    %v7505 = vpop.f32.mrf.mxu0
    %v7506 = vadd.f32 0.0, %v7505
    %v7507 = vpop.f32.mrf.mxu0
    %v7508 = vadd.f32 0.0, %v7507
    %7509 = vmatprep.mubr.f32.mxu0 0.0
    %7510 = vmatmul.mubr.f32.gmra.mxu0 %v6772
    %v7511 = vpop.f32.mrf.mxu0
    %v7512 = vadd.f32 0.0, %v7511
    %v7513 = vpop.f32.mrf.mxu0
    %v7514 = vadd.f32 0.0, %v7513
    %7515 = vmatprep.mubr.f32.mxu0 0.0
    %7516 = vmatmul.mubr.f32.gmra.mxu0 %v6773
    %v7517 = vpop.f32.mrf.mxu0
    %v7518 = vadd.f32 0.0, %v7517
    %v7519 = vpop.f32.mrf.mxu0
    %v7520 = vadd.f32 0.0, %v7519
    %7521 = vmatprep.mubr.f32.mxu0 0.0
    %7522 = vmatmul.mubr.f32.gmra.mxu0 %v6774
    %v7523 = vpop.f32.mrf.mxu0
    %v7524 = vadd.f32 0.0, %v7523
    %v7525 = vpop.f32.mrf.mxu0
    %v7526 = vadd.f32 0.0, %v7525
    %7527 = vmatprep.mubr.f32.mxu0 0.0
    %7528 = vmatmul.mubr.f32.gmra.mxu0 %v6775
    %v7529 = vpop.f32.mrf.mxu0
    %v7530 = vadd.f32 0.0, %v7529
    %v7531 = vpop.f32.mrf.mxu0
    %v7532 = vadd.f32 0.0, %v7531
    %7533 = vmatprep.mubr.f32.mxu0 0.0
    %7534 = vmatmul.mubr.f32.gmra.mxu0 %v6776
    %v7535 = vpop.f32.mrf.mxu0
    %v7536 = vadd.f32 0.0, %v7535
    %v7537 = vpop.f32.mrf.mxu0
    %v7538 = vadd.f32 0.0, %v7537
    %7539 = vmatprep.mubr.f32.mxu0 0.0
    %7540 = vmatmul.mubr.f32.gmra.mxu0 %v6777
    %v7541 = vpop.f32.mrf.mxu0
    %v7542 = vadd.f32 0.0, %v7541
    %v7543 = vpop.f32.mrf.mxu0
    %v7544 = vadd.f32 0.0, %v7543
    %7545 = vmatprep.mubr.f32.mxu0 0.0
    %7546 = vmatmul.mubr.f32.gmra.mxu0 %v6778
    %v7547 = vpop.f32.mrf.mxu0
    %v7548 = vadd.f32 0.0, %v7547
    %v7549 = vpop.f32.mrf.mxu0
    %v7550 = vadd.f32 0.0, %v7549
    %7551 = vmatprep.mubr.f32.mxu0 0.0
    %7552 = vmatmul.mubr.f32.gmra.mxu0 %v6779
    %v7553 = vpop.f32.mrf.mxu0
    %v7554 = vadd.f32 0.0, %v7553
    %v7555 = vpop.f32.mrf.mxu0
    %v7556 = vadd.f32 0.0, %v7555
    %7557 = vmatprep.mubr.f32.mxu0 0.0
    %7558 = vmatmul.mubr.f32.gmra.mxu0 %v6780
    %v7559 = vpop.f32.mrf.mxu0
    %v7560 = vadd.f32 0.0, %v7559
    %v7561 = vpop.f32.mrf.mxu0
    %v7562 = vadd.f32 0.0, %v7561
    %7563 = vmatprep.mubr.f32.mxu0 0.0
    %7564 = vmatmul.mubr.f32.gmra.mxu0 %v6781
    %v7565 = vpop.f32.mrf.mxu0
    %v7566 = vadd.f32 0.0, %v7565
    %v7567 = vpop.f32.mrf.mxu0
    %v7568 = vadd.f32 0.0, %v7567
    %7569 = vdwg.mxu0
    %7570 = vmatprep.subr.mxu0 0.0
    %7571 = vmatpush1.msra.mxu0 %v6925
    %7572 = vmatprep.subr.mxu0 0.0
    %7573 = vmatpush1.msra.mxu0 %v6916
    %7574 = vmatprep.subr.mxu0 0.0
    %7575 = vmatpush1.msra.mxu0 %v6907
    %7576 = vmatprep.subr.mxu0 0.0
    %7577 = vmatpush1.msra.mxu0 %v6898
    %7578 = vmatprep.subr.mxu0 0.0
    %7579 = vmatpush1.msra.mxu0 %v6889
    %7580 = vmatprep.subr.mxu0 0.0
    %7581 = vmatpush1.msra.mxu0 %v6880
    %7582 = vmatprep.subr.mxu0 0.0
    %7583 = vmatpush1.msra.mxu0 %v6871
    %7584 = vmatprep.subr.mxu0 0.0
    %7585 = vmatpush1.msra.mxu0 %v6862
    %7586 = vmatprep.subr.mxu0 0.0
    %7587 = vmatpush1.msra.mxu0 %v6853
    %7588 = vmatprep.subr.mxu0 0.0
    %7589 = vmatpush1.msra.mxu0 %v6844
    %7590 = vmatprep.subr.mxu0 0.0
    %7591 = vmatpush1.msra.mxu0 %v6835
    %7592 = vmatprep.subr.mxu0 0.0
    %7593 = vmatpush1.msra.mxu0 %v6826
    %7594 = vmatprep.subr.mxu0 0.0
    %7595 = vmatpush1.msra.mxu0 %v6817
    %7596 = vmatprep.subr.mxu0 0.0
    %7597 = vmatpush1.msra.mxu0 %v6808
    %7598 = vmatprep.subr.mxu0 0.0
    %7599 = vmatpush1.msra.mxu0 %v6799
    %7600 = vmatprep.subr.mxu0 0.0
    %7601 = vmatpush1.msra.mxu0 %v6790
    %7602 = vmatprep.subr.mxu0 0.0
    %7603 = vmatpush2.msra.mxu0 0.0
    %7604 = vmatprep.subr.mxu0 0.0
    %7605 = vmatpush2.msra.mxu0 0.0
    %7606 = vmatprep.subr.mxu0 0.0
    %7607 = vmatpush2.msra.mxu0 0.0
    %7608 = vmatprep.subr.mxu0 0.0
    %7609 = vmatpush2.msra.mxu0 0.0
    %7610 = vmatprep.subr.mxu0 0.0
    %7611 = vmatpush2.msra.mxu0 0.0
    %7612 = vmatprep.subr.mxu0 0.0
    %7613 = vmatpush2.msra.mxu0 0.0
    %7614 = vmatprep.subr.mxu0 0.0
    %7615 = vmatpush2.msra.mxu0 0.0
    %7616 = vmatprep.subr.mxu0 0.0
    %7617 = vmatpush2.msra.mxu0 0.0
    %7618 = vmatprep.subr.mxu0 0.0
    %7619 = vmatpush2.msra.mxu0 0.0
    %7620 = vmatprep.subr.mxu0 0.0
    %7621 = vmatpush2.msra.mxu0 0.0
    %7622 = vmatprep.subr.mxu0 0.0
    %7623 = vmatpush2.msra.mxu0 0.0
    %7624 = vmatprep.subr.mxu0 0.0
    %7625 = vmatpush2.msra.mxu0 0.0
    %7626 = vmatprep.subr.mxu0 0.0
    %7627 = vmatpush2.msra.mxu0 0.0
    %7628 = vmatprep.subr.mxu0 0.0
    %7629 = vmatpush2.msra.mxu0 0.0
    %7630 = vmatprep.subr.mxu0 0.0
    %7631 = vmatpush2.msra.mxu0 0.0
    %7632 = vmatprep.subr.mxu0 0.0
    %7633 = vmatpush2.msra.mxu0 0.0
    %7634 = vmatprep.mubr.f32.mxu0 0.0
    %7635 = vmatmul.mubr.f32.gmra.mxu0 %v6766
    %v7636 = vpop.f32.mrf.mxu0
    %v7637 = vadd.f32 0.0, %v7636
    %v7638 = vpop.f32.mrf.mxu0
    %7639 = vmatprep.mubr.f32.mxu0 0.0
    %7640 = vmatmul.mubr.f32.gmra.mxu0 %v6767
    %v7641 = vpop.f32.mrf.mxu0
    %v7642 = vadd.f32 0.0, %v7641
    %v7643 = vpop.f32.mrf.mxu0
    %7644 = vmatprep.mubr.f32.mxu0 0.0
    %7645 = vmatmul.mubr.f32.gmra.mxu0 %v6768
    %v7646 = vpop.f32.mrf.mxu0
    %v7647 = vadd.f32 0.0, %v7646
    %v7648 = vpop.f32.mrf.mxu0
    %7649 = vmatprep.mubr.f32.mxu0 0.0
    %7650 = vmatmul.mubr.f32.gmra.mxu0 %v6769
    %v7651 = vpop.f32.mrf.mxu0
    %v7652 = vadd.f32 0.0, %v7651
    %v7653 = vpop.f32.mrf.mxu0
    %7654 = vmatprep.mubr.f32.mxu0 0.0
    %7655 = vmatmul.mubr.f32.gmra.mxu0 %v6770
    %v7656 = vpop.f32.mrf.mxu0
    %v7657 = vadd.f32 0.0, %v7656
    %v7658 = vpop.f32.mrf.mxu0
    %7659 = vmatprep.mubr.f32.mxu0 0.0
    %7660 = vmatmul.mubr.f32.gmra.mxu0 %v6771
    %v7661 = vpop.f32.mrf.mxu0
    %v7662 = vadd.f32 0.0, %v7661
    %v7663 = vpop.f32.mrf.mxu0
    %7664 = vmatprep.mubr.f32.mxu0 0.0
    %7665 = vmatmul.mubr.f32.gmra.mxu0 %v6772
    %v7666 = vpop.f32.mrf.mxu0
    %v7667 = vadd.f32 0.0, %v7666
    %v7668 = vpop.f32.mrf.mxu0
    %7669 = vmatprep.mubr.f32.mxu0 0.0
    %7670 = vmatmul.mubr.f32.gmra.mxu0 %v6773
    %v7671 = vpop.f32.mrf.mxu0
    %v7672 = vadd.f32 0.0, %v7671
    %v7673 = vpop.f32.mrf.mxu0
    %7674 = vmatprep.mubr.f32.mxu0 0.0
    %7675 = vmatmul.mubr.f32.gmra.mxu0 %v6774
    %v7676 = vpop.f32.mrf.mxu0
    %v7677 = vadd.f32 0.0, %v7676
    %v7678 = vpop.f32.mrf.mxu0
    %7679 = vmatprep.mubr.f32.mxu0 0.0
    %7680 = vmatmul.mubr.f32.gmra.mxu0 %v6775
    %v7681 = vpop.f32.mrf.mxu0
    %v7682 = vadd.f32 0.0, %v7681
    %v7683 = vpop.f32.mrf.mxu0
    %7684 = vmatprep.mubr.f32.mxu0 0.0
    %7685 = vmatmul.mubr.f32.gmra.mxu0 %v6776
    %v7686 = vpop.f32.mrf.mxu0
    %v7687 = vadd.f32 0.0, %v7686
    %v7688 = vpop.f32.mrf.mxu0
    %7689 = vmatprep.mubr.f32.mxu0 0.0
    %7690 = vmatmul.mubr.f32.gmra.mxu0 %v6777
    %v7691 = vpop.f32.mrf.mxu0
    %v7692 = vadd.f32 0.0, %v7691
    %v7693 = vpop.f32.mrf.mxu0
    %7694 = vmatprep.mubr.f32.mxu0 0.0
    %7695 = vmatmul.mubr.f32.gmra.mxu0 %v6778
    %v7696 = vpop.f32.mrf.mxu0
    %v7697 = vadd.f32 0.0, %v7696
    %v7698 = vpop.f32.mrf.mxu0
    %7699 = vmatprep.mubr.f32.mxu0 0.0
    %7700 = vmatmul.mubr.f32.gmra.mxu0 %v6779
    %v7701 = vpop.f32.mrf.mxu0
    %v7702 = vadd.f32 0.0, %v7701
    %v7703 = vpop.f32.mrf.mxu0
    %7704 = vmatprep.mubr.f32.mxu0 0.0
    %7705 = vmatmul.mubr.f32.gmra.mxu0 %v6780
    %v7706 = vpop.f32.mrf.mxu0
    %v7707 = vadd.f32 0.0, %v7706
    %v7708 = vpop.f32.mrf.mxu0
    %7709 = vmatprep.mubr.f32.mxu0 0.0
    %7710 = vmatmul.mubr.f32.gmra.mxu0 %v6781
    %v7711 = vpop.f32.mrf.mxu0
    %v7712 = vadd.f32 0.0, %v7711
    %v7713 = vpop.f32.mrf.mxu0
    %7714 = vdwg.mxu0
    %v7715 = vld [vmem:[%s10] sm:$0xff]
    %v7716 = vld [vmem:[%s10 + $0x8] sm:$0xff]
    %v7717 = vld [vmem:[%s10 + $0x10] sm:$0xff]
    %v7718 = vld [vmem:[%s10 + $0x18] sm:$0xff]
    %s7719 = scalar_lea.vmem %s10, 32
    %v7720 = vld [vmem:[%s7719] sm:$0xff]
    %v7721 = vld [vmem:[%s7719 + $0x8] sm:$0xff]
    %v7722 = vld [vmem:[%s7719 + $0x10] sm:$0xff]
    %v7723 = vld [vmem:[%s7719 + $0x18] sm:$0xff]
    %7724 = vmatprep.subr.mxu0 0.0
    %7725 = vmatpush1.msra.mxu0 %v7085
    %7726 = vmatprep.subr.mxu0 0.0
    %7727 = vmatpush1.msra.mxu0 %v7079
    %7728 = vmatprep.subr.mxu0 0.0
    %7729 = vmatpush1.msra.mxu0 %v7073
    %7730 = vmatprep.subr.mxu0 0.0
    %7731 = vmatpush1.msra.mxu0 %v7067
    %7732 = vmatprep.subr.mxu0 0.0
    %7733 = vmatpush1.msra.mxu0 %v7061
    %7734 = vmatprep.subr.mxu0 0.0
    %7735 = vmatpush1.msra.mxu0 %v7055
    %7736 = vmatprep.subr.mxu0 0.0
    %7737 = vmatpush1.msra.mxu0 %v7049
    %7738 = vmatprep.subr.mxu0 0.0
    %7739 = vmatpush1.msra.mxu0 %v7043
    %7740 = vmatprep.subr.mxu0 0.0
    %7741 = vmatpush1.msra.mxu0 %v7037
    %7742 = vmatprep.subr.mxu0 0.0
    %7743 = vmatpush1.msra.mxu0 %v7031
    %7744 = vmatprep.subr.mxu0 0.0
    %7745 = vmatpush1.msra.mxu0 %v7025
    %7746 = vmatprep.subr.mxu0 0.0
    %7747 = vmatpush1.msra.mxu0 %v7019
    %7748 = vmatprep.subr.mxu0 0.0
    %7749 = vmatpush1.msra.mxu0 %v7013
    %7750 = vmatprep.subr.mxu0 0.0
    %7751 = vmatpush1.msra.mxu0 %v7007
    %7752 = vmatprep.subr.mxu0 0.0
    %7753 = vmatpush1.msra.mxu0 %v7001
    %7754 = vmatprep.subr.mxu0 0.0
    %7755 = vmatpush1.msra.mxu0 %v6995
    %7756 = vmatprep.subr.mxu0 0.0
    %7757 = vmatpush2.msra.mxu0 0.0
    %7758 = vmatprep.subr.mxu0 0.0
    %7759 = vmatpush2.msra.mxu0 0.0
    %7760 = vmatprep.subr.mxu0 0.0
    %7761 = vmatpush2.msra.mxu0 0.0
    %7762 = vmatprep.subr.mxu0 0.0
    %7763 = vmatpush2.msra.mxu0 0.0
    %7764 = vmatprep.subr.mxu0 0.0
    %7765 = vmatpush2.msra.mxu0 0.0
    %7766 = vmatprep.subr.mxu0 0.0
    %7767 = vmatpush2.msra.mxu0 0.0
    %7768 = vmatprep.subr.mxu0 0.0
    %7769 = vmatpush2.msra.mxu0 0.0
    %7770 = vmatprep.subr.mxu0 0.0
    %7771 = vmatpush2.msra.mxu0 0.0
    %7772 = vmatprep.subr.mxu0 0.0
    %7773 = vmatpush2.msra.mxu0 0.0
    %7774 = vmatprep.subr.mxu0 0.0
    %7775 = vmatpush2.msra.mxu0 0.0
    %7776 = vmatprep.subr.mxu0 0.0
    %7777 = vmatpush2.msra.mxu0 0.0
    %7778 = vmatprep.subr.mxu0 0.0
    %7779 = vmatpush2.msra.mxu0 0.0
    %7780 = vmatprep.subr.mxu0 0.0
    %7781 = vmatpush2.msra.mxu0 0.0
    %7782 = vmatprep.subr.mxu0 0.0
    %7783 = vmatpush2.msra.mxu0 0.0
    %7784 = vmatprep.subr.mxu0 0.0
    %7785 = vmatpush2.msra.mxu0 0.0
    %7786 = vmatprep.subr.mxu0 0.0
    %7787 = vmatpush2.msra.mxu0 0.0
    %7788 = vmatprep.mubr.f32.mxu0 0.0
    %7789 = vmatmul.mubr.f32.gmra.mxu0 %v7720
    %v7790 = vpop.f32.mrf.mxu0
    %v7791 = vadd.f32 0.0, %v7790
    %v7792 = vpop.f32.mrf.mxu0
    %7793 = vmatprep.mubr.f32.mxu0 0.0
    %7794 = vmatmul.mubr.f32.gmra.mxu0 %v7721
    %v7795 = vpop.f32.mrf.mxu0
    %v7796 = vadd.f32 0.0, %v7795
    %v7797 = vpop.f32.mrf.mxu0
    %7798 = vmatprep.mubr.f32.mxu0 0.0
    %7799 = vmatmul.mubr.f32.gmra.mxu0 %v7722
    %v7800 = vpop.f32.mrf.mxu0
    %v7801 = vadd.f32 0.0, %v7800
    %v7802 = vpop.f32.mrf.mxu0
    %7803 = vmatprep.mubr.f32.mxu0 0.0
    %7804 = vmatmul.mubr.f32.gmra.mxu0 %v7723
    %v7805 = vpop.f32.mrf.mxu0
    %v7806 = vadd.f32 0.0, %v7805
    %v7807 = vpop.f32.mrf.mxu0
    %7808 = vdwg.mxu0
    %7809 = vmatprep.subr.mxu0 0.0
    %7810 = vmatpush1.msra.mxu0 %v7083
    %7811 = vmatprep.subr.mxu0 0.0
    %7812 = vmatpush1.msra.mxu0 %v7077
    %7813 = vmatprep.subr.mxu0 0.0
    %7814 = vmatpush1.msra.mxu0 %v7071
    %7815 = vmatprep.subr.mxu0 0.0
    %7816 = vmatpush1.msra.mxu0 %v7065
    %7817 = vmatprep.subr.mxu0 0.0
    %7818 = vmatpush1.msra.mxu0 %v7059
    %7819 = vmatprep.subr.mxu0 0.0
    %7820 = vmatpush1.msra.mxu0 %v7053
    %7821 = vmatprep.subr.mxu0 0.0
    %7822 = vmatpush1.msra.mxu0 %v7047
    %7823 = vmatprep.subr.mxu0 0.0
    %7824 = vmatpush1.msra.mxu0 %v7041
    %7825 = vmatprep.subr.mxu0 0.0
    %7826 = vmatpush1.msra.mxu0 %v7035
    %7827 = vmatprep.subr.mxu0 0.0
    %7828 = vmatpush1.msra.mxu0 %v7029
    %7829 = vmatprep.subr.mxu0 0.0
    %7830 = vmatpush1.msra.mxu0 %v7023
    %7831 = vmatprep.subr.mxu0 0.0
    %7832 = vmatpush1.msra.mxu0 %v7017
    %7833 = vmatprep.subr.mxu0 0.0
    %7834 = vmatpush1.msra.mxu0 %v7011
    %7835 = vmatprep.subr.mxu0 0.0
    %7836 = vmatpush1.msra.mxu0 %v7005
    %7837 = vmatprep.subr.mxu0 0.0
    %7838 = vmatpush1.msra.mxu0 %v6999
    %7839 = vmatprep.subr.mxu0 0.0
    %7840 = vmatpush1.msra.mxu0 %v6993
    %7841 = vmatprep.subr.mxu0 0.0
    %7842 = vmatpush2.msra.mxu0 0.0
    %7843 = vmatprep.subr.mxu0 0.0
    %7844 = vmatpush2.msra.mxu0 0.0
    %7845 = vmatprep.subr.mxu0 0.0
    %7846 = vmatpush2.msra.mxu0 0.0
    %7847 = vmatprep.subr.mxu0 0.0
    %7848 = vmatpush2.msra.mxu0 0.0
    %7849 = vmatprep.subr.mxu0 0.0
    %7850 = vmatpush2.msra.mxu0 0.0
    %7851 = vmatprep.subr.mxu0 0.0
    %7852 = vmatpush2.msra.mxu0 0.0
    %7853 = vmatprep.subr.mxu0 0.0
    %7854 = vmatpush2.msra.mxu0 0.0
    %7855 = vmatprep.subr.mxu0 0.0
    %7856 = vmatpush2.msra.mxu0 0.0
    %7857 = vmatprep.subr.mxu0 0.0
    %7858 = vmatpush2.msra.mxu0 0.0
    %7859 = vmatprep.subr.mxu0 0.0
    %7860 = vmatpush2.msra.mxu0 0.0
    %7861 = vmatprep.subr.mxu0 0.0
    %7862 = vmatpush2.msra.mxu0 0.0
    %7863 = vmatprep.subr.mxu0 0.0
    %7864 = vmatpush2.msra.mxu0 0.0
    %7865 = vmatprep.subr.mxu0 0.0
    %7866 = vmatpush2.msra.mxu0 0.0
    %7867 = vmatprep.subr.mxu0 0.0
    %7868 = vmatpush2.msra.mxu0 0.0
    %7869 = vmatprep.subr.mxu0 0.0
    %7870 = vmatpush2.msra.mxu0 0.0
    %7871 = vmatprep.subr.mxu0 0.0
    %7872 = vmatpush2.msra.mxu0 0.0
    %7873 = vmatprep.mubr.f32.mxu0 0.0
    %7874 = vmatmul.mubr.f32.gmra.mxu0 %v7715
    %v7875 = vpop.f32.mrf.mxu0
    %v7876 = vadd.f32 %v7791, %v7875
    %v7877 = vpop.f32.mrf.mxu0
    %7878 = vmatprep.mubr.f32.mxu0 0.0
    %7879 = vmatmul.mubr.f32.gmra.mxu0 %v7716
    %v7880 = vpop.f32.mrf.mxu0
    %v7881 = vadd.f32 %v7796, %v7880
    %v7882 = vpop.f32.mrf.mxu0
    %7883 = vmatprep.mubr.f32.mxu0 0.0
    %7884 = vmatmul.mubr.f32.gmra.mxu0 %v7717
    %v7885 = vpop.f32.mrf.mxu0
    %v7886 = vadd.f32 %v7801, %v7885
    %v7887 = vpop.f32.mrf.mxu0
    %7888 = vmatprep.mubr.f32.mxu0 0.0
    %7889 = vmatmul.mubr.f32.gmra.mxu0 %v7718
    %v7890 = vpop.f32.mrf.mxu0
    %v7891 = vadd.f32 %v7806, %v7890
    %v7892 = vpop.f32.mrf.mxu0
    %7893 = vdwg.mxu0
    %s7894 = scalar_lea.vmem %s10, 64
    %v7895 = vld [vmem:[%s7894] sm:$0xff]
    %v7896 = vld [vmem:[%s7894 + $0x8] sm:$0xff]
    %v7897 = vld [vmem:[%s7894 + $0x10] sm:$0xff]
    %v7898 = vld [vmem:[%s7894 + $0x18] sm:$0xff]
    %7899 = vmatprep.subr.mxu0 0.0
    %7900 = vmatpush1.msra.mxu0 %v7244
    %7901 = vmatprep.subr.mxu0 0.0
    %7902 = vmatpush1.msra.mxu0 %v7238
    %7903 = vmatprep.subr.mxu0 0.0
    %7904 = vmatpush1.msra.mxu0 %v7232
    %7905 = vmatprep.subr.mxu0 0.0
    %7906 = vmatpush1.msra.mxu0 %v7226
    %7907 = vmatprep.subr.mxu0 0.0
    %7908 = vmatpush1.msra.mxu0 %v7220
    %7909 = vmatprep.subr.mxu0 0.0
    %7910 = vmatpush1.msra.mxu0 %v7214
    %7911 = vmatprep.subr.mxu0 0.0
    %7912 = vmatpush1.msra.mxu0 %v7208
    %7913 = vmatprep.subr.mxu0 0.0
    %7914 = vmatpush1.msra.mxu0 %v7202
    %7915 = vmatprep.subr.mxu0 0.0
    %7916 = vmatpush1.msra.mxu0 %v7196
    %7917 = vmatprep.subr.mxu0 0.0
    %7918 = vmatpush1.msra.mxu0 %v7190
    %7919 = vmatprep.subr.mxu0 0.0
    %7920 = vmatpush1.msra.mxu0 %v7184
    %7921 = vmatprep.subr.mxu0 0.0
    %7922 = vmatpush1.msra.mxu0 %v7178
    %7923 = vmatprep.subr.mxu0 0.0
    %7924 = vmatpush1.msra.mxu0 %v7172
    %7925 = vmatprep.subr.mxu0 0.0
    %7926 = vmatpush1.msra.mxu0 %v7166
    %7927 = vmatprep.subr.mxu0 0.0
    %7928 = vmatpush1.msra.mxu0 %v7160
    %7929 = vmatprep.subr.mxu0 0.0
    %7930 = vmatpush1.msra.mxu0 %v7154
    %7931 = vmatprep.subr.mxu0 0.0
    %7932 = vmatpush2.msra.mxu0 0.0
    %7933 = vmatprep.subr.mxu0 0.0
    %7934 = vmatpush2.msra.mxu0 0.0
    %7935 = vmatprep.subr.mxu0 0.0
    %7936 = vmatpush2.msra.mxu0 0.0
    %7937 = vmatprep.subr.mxu0 0.0
    %7938 = vmatpush2.msra.mxu0 0.0
    %7939 = vmatprep.subr.mxu0 0.0
    %7940 = vmatpush2.msra.mxu0 0.0
    %7941 = vmatprep.subr.mxu0 0.0
    %7942 = vmatpush2.msra.mxu0 0.0
    %7943 = vmatprep.subr.mxu0 0.0
    %7944 = vmatpush2.msra.mxu0 0.0
    %7945 = vmatprep.subr.mxu0 0.0
    %7946 = vmatpush2.msra.mxu0 0.0
    %7947 = vmatprep.subr.mxu0 0.0
    %7948 = vmatpush2.msra.mxu0 0.0
    %7949 = vmatprep.subr.mxu0 0.0
    %7950 = vmatpush2.msra.mxu0 0.0
    %7951 = vmatprep.subr.mxu0 0.0
    %7952 = vmatpush2.msra.mxu0 0.0
    %7953 = vmatprep.subr.mxu0 0.0
    %7954 = vmatpush2.msra.mxu0 0.0
    %7955 = vmatprep.subr.mxu0 0.0
    %7956 = vmatpush2.msra.mxu0 0.0
    %7957 = vmatprep.subr.mxu0 0.0
    %7958 = vmatpush2.msra.mxu0 0.0
    %7959 = vmatprep.subr.mxu0 0.0
    %7960 = vmatpush2.msra.mxu0 0.0
    %7961 = vmatprep.subr.mxu0 0.0
    %7962 = vmatpush2.msra.mxu0 0.0
    %7963 = vmatprep.mubr.f32.mxu0 0.0
    %7964 = vmatmul.mubr.f32.gmra.mxu0 %v7895
    %v7965 = vpop.f32.mrf.mxu0
    %v7966 = vadd.f32 0.0, %v7965
    %v7967 = vpop.f32.mrf.mxu0
    %7968 = vmatprep.mubr.f32.mxu0 0.0
    %7969 = vmatmul.mubr.f32.gmra.mxu0 %v7896
    %v7970 = vpop.f32.mrf.mxu0
    %v7971 = vadd.f32 0.0, %v7970
    %v7972 = vpop.f32.mrf.mxu0
    %7973 = vmatprep.mubr.f32.mxu0 0.0
    %7974 = vmatmul.mubr.f32.gmra.mxu0 %v7897
    %v7975 = vpop.f32.mrf.mxu0
    %v7976 = vadd.f32 0.0, %v7975
    %v7977 = vpop.f32.mrf.mxu0
    %7978 = vmatprep.mubr.f32.mxu0 0.0
    %7979 = vmatmul.mubr.f32.gmra.mxu0 %v7898
    %v7980 = vpop.f32.mrf.mxu0
    %v7981 = vadd.f32 0.0, %v7980
    %v7982 = vpop.f32.mrf.mxu0
    %7983 = vdwg.mxu0
    %v7984 = vadd.f32 %v7876, %v7966
    %v7985 = vadd.f32 %v7881, %v7971
    %v7986 = vadd.f32 %v7886, %v7976
    %v7987 = vadd.f32 %v7891, %v7981
    %s7988 = scalar_lea.vmem %s10, 96
    %v7989 = vld [vmem:[%s7988] sm:$0xff]
    %v7990 = vld [vmem:[%s7988 + $0x8] sm:$0xff]
    %v7991 = vld [vmem:[%s7988 + $0x10] sm:$0xff]
    %v7992 = vld [vmem:[%s7988 + $0x18] sm:$0xff]
    %7993 = vmatprep.subr.mxu0 0.0
    %7994 = vmatpush1.msra.mxu0 %v7246
    %7995 = vmatprep.subr.mxu0 0.0
    %7996 = vmatpush1.msra.mxu0 %v7240
    %7997 = vmatprep.subr.mxu0 0.0
    %7998 = vmatpush1.msra.mxu0 %v7234
    %7999 = vmatprep.subr.mxu0 0.0
    %8000 = vmatpush1.msra.mxu0 %v7228
    %8001 = vmatprep.subr.mxu0 0.0
    %8002 = vmatpush1.msra.mxu0 %v7222
    %8003 = vmatprep.subr.mxu0 0.0
    %8004 = vmatpush1.msra.mxu0 %v7216
    %8005 = vmatprep.subr.mxu0 0.0
    %8006 = vmatpush1.msra.mxu0 %v7210
    %8007 = vmatprep.subr.mxu0 0.0
    %8008 = vmatpush1.msra.mxu0 %v7204
    %8009 = vmatprep.subr.mxu0 0.0
    %8010 = vmatpush1.msra.mxu0 %v7198
    %8011 = vmatprep.subr.mxu0 0.0
    %8012 = vmatpush1.msra.mxu0 %v7192
    %8013 = vmatprep.subr.mxu0 0.0
    %8014 = vmatpush1.msra.mxu0 %v7186
    %8015 = vmatprep.subr.mxu0 0.0
    %8016 = vmatpush1.msra.mxu0 %v7180
    %8017 = vmatprep.subr.mxu0 0.0
    %8018 = vmatpush1.msra.mxu0 %v7174
    %8019 = vmatprep.subr.mxu0 0.0
    %8020 = vmatpush1.msra.mxu0 %v7168
    %8021 = vmatprep.subr.mxu0 0.0
    %8022 = vmatpush1.msra.mxu0 %v7162
    %8023 = vmatprep.subr.mxu0 0.0
    %8024 = vmatpush1.msra.mxu0 %v7156
    %8025 = vmatprep.subr.mxu0 0.0
    %8026 = vmatpush2.msra.mxu0 0.0
    %8027 = vmatprep.subr.mxu0 0.0
    %8028 = vmatpush2.msra.mxu0 0.0
    %8029 = vmatprep.subr.mxu0 0.0
    %8030 = vmatpush2.msra.mxu0 0.0
    %8031 = vmatprep.subr.mxu0 0.0
    %8032 = vmatpush2.msra.mxu0 0.0
    %8033 = vmatprep.subr.mxu0 0.0
    %8034 = vmatpush2.msra.mxu0 0.0
    %8035 = vmatprep.subr.mxu0 0.0
    %8036 = vmatpush2.msra.mxu0 0.0
    %8037 = vmatprep.subr.mxu0 0.0
    %8038 = vmatpush2.msra.mxu0 0.0
    %8039 = vmatprep.subr.mxu0 0.0
    %8040 = vmatpush2.msra.mxu0 0.0
    %8041 = vmatprep.subr.mxu0 0.0
    %8042 = vmatpush2.msra.mxu0 0.0
    %8043 = vmatprep.subr.mxu0 0.0
    %8044 = vmatpush2.msra.mxu0 0.0
    %8045 = vmatprep.subr.mxu0 0.0
    %8046 = vmatpush2.msra.mxu0 0.0
    %8047 = vmatprep.subr.mxu0 0.0
    %8048 = vmatpush2.msra.mxu0 0.0
    %8049 = vmatprep.subr.mxu0 0.0
    %8050 = vmatpush2.msra.mxu0 0.0
    %8051 = vmatprep.subr.mxu0 0.0
    %8052 = vmatpush2.msra.mxu0 0.0
    %8053 = vmatprep.subr.mxu0 0.0
    %8054 = vmatpush2.msra.mxu0 0.0
    %8055 = vmatprep.subr.mxu0 0.0
    %8056 = vmatpush2.msra.mxu0 0.0
    %8057 = vmatprep.mubr.f32.mxu0 0.0
    %8058 = vmatmul.mubr.f32.gmra.mxu0 %v7989
    %v8059 = vpop.f32.mrf.mxu0
    %v8060 = vadd.f32 0.0, %v8059
    %v8061 = vpop.f32.mrf.mxu0
    %8062 = vmatprep.mubr.f32.mxu0 0.0
    %8063 = vmatmul.mubr.f32.gmra.mxu0 %v7990
    %v8064 = vpop.f32.mrf.mxu0
    %v8065 = vadd.f32 0.0, %v8064
    %v8066 = vpop.f32.mrf.mxu0
    %8067 = vmatprep.mubr.f32.mxu0 0.0
    %8068 = vmatmul.mubr.f32.gmra.mxu0 %v7991
    %v8069 = vpop.f32.mrf.mxu0
    %v8070 = vadd.f32 0.0, %v8069
    %v8071 = vpop.f32.mrf.mxu0
    %8072 = vmatprep.mubr.f32.mxu0 0.0
    %8073 = vmatmul.mubr.f32.gmra.mxu0 %v7992
    %v8074 = vpop.f32.mrf.mxu0
    %v8075 = vadd.f32 0.0, %v8074
    %v8076 = vpop.f32.mrf.mxu0
    %8077 = vdwg.mxu0
    %v8078 = vadd.f32 %v7984, %v8060
    %v8079 = vadd.f32 %v7985, %v8065
    %v8080 = vadd.f32 %v7986, %v8070
    %v8081 = vadd.f32 %v7987, %v8075
    %s8082 = scalar_lea.vmem %s10, 128
    %v8083 = vld [vmem:[%s8082] sm:$0xff]
    %v8084 = vld [vmem:[%s8082 + $0x8] sm:$0xff]
    %v8085 = vld [vmem:[%s8082 + $0x10] sm:$0xff]
    %v8086 = vld [vmem:[%s8082 + $0x18] sm:$0xff]
    %8087 = vmatprep.subr.mxu0 0.0
    %8088 = vmatpush1.msra.mxu0 %v7405
    %8089 = vmatprep.subr.mxu0 0.0
    %8090 = vmatpush1.msra.mxu0 %v7399
    %8091 = vmatprep.subr.mxu0 0.0
    %8092 = vmatpush1.msra.mxu0 %v7393
    %8093 = vmatprep.subr.mxu0 0.0
    %8094 = vmatpush1.msra.mxu0 %v7387
    %8095 = vmatprep.subr.mxu0 0.0
    %8096 = vmatpush1.msra.mxu0 %v7381
    %8097 = vmatprep.subr.mxu0 0.0
    %8098 = vmatpush1.msra.mxu0 %v7375
    %8099 = vmatprep.subr.mxu0 0.0
    %8100 = vmatpush1.msra.mxu0 %v7369
    %8101 = vmatprep.subr.mxu0 0.0
    %8102 = vmatpush1.msra.mxu0 %v7363
    %8103 = vmatprep.subr.mxu0 0.0
    %8104 = vmatpush1.msra.mxu0 %v7357
    %8105 = vmatprep.subr.mxu0 0.0
    %8106 = vmatpush1.msra.mxu0 %v7351
    %8107 = vmatprep.subr.mxu0 0.0
    %8108 = vmatpush1.msra.mxu0 %v7345
    %8109 = vmatprep.subr.mxu0 0.0
    %8110 = vmatpush1.msra.mxu0 %v7339
    %8111 = vmatprep.subr.mxu0 0.0
    %8112 = vmatpush1.msra.mxu0 %v7333
    %8113 = vmatprep.subr.mxu0 0.0
    %8114 = vmatpush1.msra.mxu0 %v7327
    %8115 = vmatprep.subr.mxu0 0.0
    %8116 = vmatpush1.msra.mxu0 %v7321
    %8117 = vmatprep.subr.mxu0 0.0
    %8118 = vmatpush1.msra.mxu0 %v7315
    %8119 = vmatprep.subr.mxu0 0.0
    %8120 = vmatpush2.msra.mxu0 0.0
    %8121 = vmatprep.subr.mxu0 0.0
    %8122 = vmatpush2.msra.mxu0 0.0
    %8123 = vmatprep.subr.mxu0 0.0
    %8124 = vmatpush2.msra.mxu0 0.0
    %8125 = vmatprep.subr.mxu0 0.0
    %8126 = vmatpush2.msra.mxu0 0.0
    %8127 = vmatprep.subr.mxu0 0.0
    %8128 = vmatpush2.msra.mxu0 0.0
    %8129 = vmatprep.subr.mxu0 0.0
    %8130 = vmatpush2.msra.mxu0 0.0
    %8131 = vmatprep.subr.mxu0 0.0
    %8132 = vmatpush2.msra.mxu0 0.0
    %8133 = vmatprep.subr.mxu0 0.0
    %8134 = vmatpush2.msra.mxu0 0.0
    %8135 = vmatprep.subr.mxu0 0.0
    %8136 = vmatpush2.msra.mxu0 0.0
    %8137 = vmatprep.subr.mxu0 0.0
    %8138 = vmatpush2.msra.mxu0 0.0
    %8139 = vmatprep.subr.mxu0 0.0
    %8140 = vmatpush2.msra.mxu0 0.0
    %8141 = vmatprep.subr.mxu0 0.0
    %8142 = vmatpush2.msra.mxu0 0.0
    %8143 = vmatprep.subr.mxu0 0.0
    %8144 = vmatpush2.msra.mxu0 0.0
    %8145 = vmatprep.subr.mxu0 0.0
    %8146 = vmatpush2.msra.mxu0 0.0
    %8147 = vmatprep.subr.mxu0 0.0
    %8148 = vmatpush2.msra.mxu0 0.0
    %8149 = vmatprep.subr.mxu0 0.0
    %8150 = vmatpush2.msra.mxu0 0.0
    %8151 = vmatprep.mubr.f32.mxu0 0.0
    %8152 = vmatmul.mubr.f32.gmra.mxu0 %v8083
    %v8153 = vpop.f32.mrf.mxu0
    %v8154 = vadd.f32 0.0, %v8153
    %v8155 = vpop.f32.mrf.mxu0
    %8156 = vmatprep.mubr.f32.mxu0 0.0
    %8157 = vmatmul.mubr.f32.gmra.mxu0 %v8084
    %v8158 = vpop.f32.mrf.mxu0
    %v8159 = vadd.f32 0.0, %v8158
    %v8160 = vpop.f32.mrf.mxu0
    %8161 = vmatprep.mubr.f32.mxu0 0.0
    %8162 = vmatmul.mubr.f32.gmra.mxu0 %v8085
    %v8163 = vpop.f32.mrf.mxu0
    %v8164 = vadd.f32 0.0, %v8163
    %v8165 = vpop.f32.mrf.mxu0
    %8166 = vmatprep.mubr.f32.mxu0 0.0
    %8167 = vmatmul.mubr.f32.gmra.mxu0 %v8086
    %v8168 = vpop.f32.mrf.mxu0
    %v8169 = vadd.f32 0.0, %v8168
    %v8170 = vpop.f32.mrf.mxu0
    %8171 = vdwg.mxu0
    %v8172 = vadd.f32 %v8078, %v8154
    %v8173 = vadd.f32 %v8079, %v8159
    %v8174 = vadd.f32 %v8080, %v8164
    %v8175 = vadd.f32 %v8081, %v8169
    %s8176 = scalar_lea.vmem %s10, 160
    %v8177 = vld [vmem:[%s8176] sm:$0xff]
    %v8178 = vld [vmem:[%s8176 + $0x8] sm:$0xff]
    %v8179 = vld [vmem:[%s8176 + $0x10] sm:$0xff]
    %v8180 = vld [vmem:[%s8176 + $0x18] sm:$0xff]
    %8181 = vmatprep.subr.mxu0 0.0
    %8182 = vmatpush1.msra.mxu0 %v7407
    %8183 = vmatprep.subr.mxu0 0.0
    %8184 = vmatpush1.msra.mxu0 %v7401
    %8185 = vmatprep.subr.mxu0 0.0
    %8186 = vmatpush1.msra.mxu0 %v7395
    %8187 = vmatprep.subr.mxu0 0.0
    %8188 = vmatpush1.msra.mxu0 %v7389
    %8189 = vmatprep.subr.mxu0 0.0
    %8190 = vmatpush1.msra.mxu0 %v7383
    %8191 = vmatprep.subr.mxu0 0.0
    %8192 = vmatpush1.msra.mxu0 %v7377
    %8193 = vmatprep.subr.mxu0 0.0
    %8194 = vmatpush1.msra.mxu0 %v7371
    %8195 = vmatprep.subr.mxu0 0.0
    %8196 = vmatpush1.msra.mxu0 %v7365
    %8197 = vmatprep.subr.mxu0 0.0
    %8198 = vmatpush1.msra.mxu0 %v7359
    %8199 = vmatprep.subr.mxu0 0.0
    %8200 = vmatpush1.msra.mxu0 %v7353
    %8201 = vmatprep.subr.mxu0 0.0
    %8202 = vmatpush1.msra.mxu0 %v7347
    %8203 = vmatprep.subr.mxu0 0.0
    %8204 = vmatpush1.msra.mxu0 %v7341
    %8205 = vmatprep.subr.mxu0 0.0
    %8206 = vmatpush1.msra.mxu0 %v7335
    %8207 = vmatprep.subr.mxu0 0.0
    %8208 = vmatpush1.msra.mxu0 %v7329
    %8209 = vmatprep.subr.mxu0 0.0
    %8210 = vmatpush1.msra.mxu0 %v7323
    %8211 = vmatprep.subr.mxu0 0.0
    %8212 = vmatpush1.msra.mxu0 %v7317
    %8213 = vmatprep.subr.mxu0 0.0
    %8214 = vmatpush2.msra.mxu0 0.0
    %8215 = vmatprep.subr.mxu0 0.0
    %8216 = vmatpush2.msra.mxu0 0.0
    %8217 = vmatprep.subr.mxu0 0.0
    %8218 = vmatpush2.msra.mxu0 0.0
    %8219 = vmatprep.subr.mxu0 0.0
    %8220 = vmatpush2.msra.mxu0 0.0
    %8221 = vmatprep.subr.mxu0 0.0
    %8222 = vmatpush2.msra.mxu0 0.0
    %8223 = vmatprep.subr.mxu0 0.0
    %8224 = vmatpush2.msra.mxu0 0.0
    %8225 = vmatprep.subr.mxu0 0.0
    %8226 = vmatpush2.msra.mxu0 0.0
    %8227 = vmatprep.subr.mxu0 0.0
    %8228 = vmatpush2.msra.mxu0 0.0
    %8229 = vmatprep.subr.mxu0 0.0
    %8230 = vmatpush2.msra.mxu0 0.0
    %8231 = vmatprep.subr.mxu0 0.0
    %8232 = vmatpush2.msra.mxu0 0.0
    %8233 = vmatprep.subr.mxu0 0.0
    %8234 = vmatpush2.msra.mxu0 0.0
    %8235 = vmatprep.subr.mxu0 0.0
    %8236 = vmatpush2.msra.mxu0 0.0
    %8237 = vmatprep.subr.mxu0 0.0
    %8238 = vmatpush2.msra.mxu0 0.0
    %8239 = vmatprep.subr.mxu0 0.0
    %8240 = vmatpush2.msra.mxu0 0.0
    %8241 = vmatprep.subr.mxu0 0.0
    %8242 = vmatpush2.msra.mxu0 0.0
    %8243 = vmatprep.subr.mxu0 0.0
    %8244 = vmatpush2.msra.mxu0 0.0
    %8245 = vmatprep.mubr.f32.mxu0 0.0
    %8246 = vmatmul.mubr.f32.gmra.mxu0 %v8177
    %v8247 = vpop.f32.mrf.mxu0
    %v8248 = vadd.f32 0.0, %v8247
    %v8249 = vpop.f32.mrf.mxu0
    %8250 = vmatprep.mubr.f32.mxu0 0.0
    %8251 = vmatmul.mubr.f32.gmra.mxu0 %v8178
    %v8252 = vpop.f32.mrf.mxu0
    %v8253 = vadd.f32 0.0, %v8252
    %v8254 = vpop.f32.mrf.mxu0
    %8255 = vmatprep.mubr.f32.mxu0 0.0
    %8256 = vmatmul.mubr.f32.gmra.mxu0 %v8179
    %v8257 = vpop.f32.mrf.mxu0
    %v8258 = vadd.f32 0.0, %v8257
    %v8259 = vpop.f32.mrf.mxu0
    %8260 = vmatprep.mubr.f32.mxu0 0.0
    %8261 = vmatmul.mubr.f32.gmra.mxu0 %v8180
    %v8262 = vpop.f32.mrf.mxu0
    %v8263 = vadd.f32 0.0, %v8262
    %v8264 = vpop.f32.mrf.mxu0
    %8265 = vdwg.mxu0
    %v8266 = vadd.f32 %v8172, %v8248
    %v8267 = vadd.f32 %v8173, %v8253
    %v8268 = vadd.f32 %v8174, %v8258
    %v8269 = vadd.f32 %v8175, %v8263
    %s8270 = scalar_lea.vmem %s10, 192
    %v8271 = vld [vmem:[%s8270] sm:$0xff]
    %v8272 = vld [vmem:[%s8270 + $0x8] sm:$0xff]
    %v8273 = vld [vmem:[%s8270 + $0x10] sm:$0xff]
    %v8274 = vld [vmem:[%s8270 + $0x18] sm:$0xff]
    %8275 = vmatprep.subr.mxu0 0.0
    %8276 = vmatpush1.msra.mxu0 %v7566
    %8277 = vmatprep.subr.mxu0 0.0
    %8278 = vmatpush1.msra.mxu0 %v7560
    %8279 = vmatprep.subr.mxu0 0.0
    %8280 = vmatpush1.msra.mxu0 %v7554
    %8281 = vmatprep.subr.mxu0 0.0
    %8282 = vmatpush1.msra.mxu0 %v7548
    %8283 = vmatprep.subr.mxu0 0.0
    %8284 = vmatpush1.msra.mxu0 %v7542
    %8285 = vmatprep.subr.mxu0 0.0
    %8286 = vmatpush1.msra.mxu0 %v7536
    %8287 = vmatprep.subr.mxu0 0.0
    %8288 = vmatpush1.msra.mxu0 %v7530
    %8289 = vmatprep.subr.mxu0 0.0
    %8290 = vmatpush1.msra.mxu0 %v7524
    %8291 = vmatprep.subr.mxu0 0.0
    %8292 = vmatpush1.msra.mxu0 %v7518
    %8293 = vmatprep.subr.mxu0 0.0
    %8294 = vmatpush1.msra.mxu0 %v7512
    %8295 = vmatprep.subr.mxu0 0.0
    %8296 = vmatpush1.msra.mxu0 %v7506
    %8297 = vmatprep.subr.mxu0 0.0
    %8298 = vmatpush1.msra.mxu0 %v7500
    %8299 = vmatprep.subr.mxu0 0.0
    %8300 = vmatpush1.msra.mxu0 %v7494
    %8301 = vmatprep.subr.mxu0 0.0
    %8302 = vmatpush1.msra.mxu0 %v7488
    %8303 = vmatprep.subr.mxu0 0.0
    %8304 = vmatpush1.msra.mxu0 %v7482
    %8305 = vmatprep.subr.mxu0 0.0
    %8306 = vmatpush1.msra.mxu0 %v7476
    %8307 = vmatprep.subr.mxu0 0.0
    %8308 = vmatpush2.msra.mxu0 0.0
    %8309 = vmatprep.subr.mxu0 0.0
    %8310 = vmatpush2.msra.mxu0 0.0
    %8311 = vmatprep.subr.mxu0 0.0
    %8312 = vmatpush2.msra.mxu0 0.0
    %8313 = vmatprep.subr.mxu0 0.0
    %8314 = vmatpush2.msra.mxu0 0.0
    %8315 = vmatprep.subr.mxu0 0.0
    %8316 = vmatpush2.msra.mxu0 0.0
    %8317 = vmatprep.subr.mxu0 0.0
    %8318 = vmatpush2.msra.mxu0 0.0
    %8319 = vmatprep.subr.mxu0 0.0
    %8320 = vmatpush2.msra.mxu0 0.0
    %8321 = vmatprep.subr.mxu0 0.0
    %8322 = vmatpush2.msra.mxu0 0.0
    %8323 = vmatprep.subr.mxu0 0.0
    %8324 = vmatpush2.msra.mxu0 0.0
    %8325 = vmatprep.subr.mxu0 0.0
    %8326 = vmatpush2.msra.mxu0 0.0
    %8327 = vmatprep.subr.mxu0 0.0
    %8328 = vmatpush2.msra.mxu0 0.0
    %8329 = vmatprep.subr.mxu0 0.0
    %8330 = vmatpush2.msra.mxu0 0.0
    %8331 = vmatprep.subr.mxu0 0.0
    %8332 = vmatpush2.msra.mxu0 0.0
    %8333 = vmatprep.subr.mxu0 0.0
    %8334 = vmatpush2.msra.mxu0 0.0
    %8335 = vmatprep.subr.mxu0 0.0
    %8336 = vmatpush2.msra.mxu0 0.0
    %8337 = vmatprep.subr.mxu0 0.0
    %8338 = vmatpush2.msra.mxu0 0.0
    %8339 = vmatprep.mubr.f32.mxu0 0.0
    %8340 = vmatmul.mubr.f32.gmra.mxu0 %v8271
    %v8341 = vpop.f32.mrf.mxu0
    %v8342 = vadd.f32 0.0, %v8341
    %v8343 = vpop.f32.mrf.mxu0
    %8344 = vmatprep.mubr.f32.mxu0 0.0
    %8345 = vmatmul.mubr.f32.gmra.mxu0 %v8272
    %v8346 = vpop.f32.mrf.mxu0
    %v8347 = vadd.f32 0.0, %v8346
    %v8348 = vpop.f32.mrf.mxu0
    %8349 = vmatprep.mubr.f32.mxu0 0.0
    %8350 = vmatmul.mubr.f32.gmra.mxu0 %v8273
    %v8351 = vpop.f32.mrf.mxu0
    %v8352 = vadd.f32 0.0, %v8351
    %v8353 = vpop.f32.mrf.mxu0
    %8354 = vmatprep.mubr.f32.mxu0 0.0
    %8355 = vmatmul.mubr.f32.gmra.mxu0 %v8274
    %v8356 = vpop.f32.mrf.mxu0
    %v8357 = vadd.f32 0.0, %v8356
    %v8358 = vpop.f32.mrf.mxu0
    %8359 = vdwg.mxu0
    %v8360 = vadd.f32 %v8266, %v8342
    %v8361 = vadd.f32 %v8267, %v8347
    %v8362 = vadd.f32 %v8268, %v8352
    %v8363 = vadd.f32 %v8269, %v8357
    %s8364 = scalar_lea.vmem %s10, 224
    %v8365 = vld [vmem:[%s8364] sm:$0xff]
    %v8366 = vld [vmem:[%s8364 + $0x8] sm:$0xff]
    %v8367 = vld [vmem:[%s8364 + $0x10] sm:$0xff]
    %v8368 = vld [vmem:[%s8364 + $0x18] sm:$0xff]
    %8369 = vmatprep.subr.mxu0 0.0
    %8370 = vmatpush1.msra.mxu0 %v7568
    %8371 = vmatprep.subr.mxu0 0.0
    %8372 = vmatpush1.msra.mxu0 %v7562
    %8373 = vmatprep.subr.mxu0 0.0
    %8374 = vmatpush1.msra.mxu0 %v7556
    %8375 = vmatprep.subr.mxu0 0.0
    %8376 = vmatpush1.msra.mxu0 %v7550
    %8377 = vmatprep.subr.mxu0 0.0
    %8378 = vmatpush1.msra.mxu0 %v7544
    %8379 = vmatprep.subr.mxu0 0.0
    %8380 = vmatpush1.msra.mxu0 %v7538
    %8381 = vmatprep.subr.mxu0 0.0
    %8382 = vmatpush1.msra.mxu0 %v7532
    %8383 = vmatprep.subr.mxu0 0.0
    %8384 = vmatpush1.msra.mxu0 %v7526
    %8385 = vmatprep.subr.mxu0 0.0
    %8386 = vmatpush1.msra.mxu0 %v7520
    %8387 = vmatprep.subr.mxu0 0.0
    %8388 = vmatpush1.msra.mxu0 %v7514
    %8389 = vmatprep.subr.mxu0 0.0
    %8390 = vmatpush1.msra.mxu0 %v7508
    %8391 = vmatprep.subr.mxu0 0.0
    %8392 = vmatpush1.msra.mxu0 %v7502
    %8393 = vmatprep.subr.mxu0 0.0
    %8394 = vmatpush1.msra.mxu0 %v7496
    %8395 = vmatprep.subr.mxu0 0.0
    %8396 = vmatpush1.msra.mxu0 %v7490
    %8397 = vmatprep.subr.mxu0 0.0
    %8398 = vmatpush1.msra.mxu0 %v7484
    %8399 = vmatprep.subr.mxu0 0.0
    %8400 = vmatpush1.msra.mxu0 %v7478
    %8401 = vmatprep.subr.mxu0 0.0
    %8402 = vmatpush2.msra.mxu0 0.0
    %8403 = vmatprep.subr.mxu0 0.0
    %8404 = vmatpush2.msra.mxu0 0.0
    %8405 = vmatprep.subr.mxu0 0.0
    %8406 = vmatpush2.msra.mxu0 0.0
    %8407 = vmatprep.subr.mxu0 0.0
    %8408 = vmatpush2.msra.mxu0 0.0
    %8409 = vmatprep.subr.mxu0 0.0
    %8410 = vmatpush2.msra.mxu0 0.0
    %8411 = vmatprep.subr.mxu0 0.0
    %8412 = vmatpush2.msra.mxu0 0.0
    %8413 = vmatprep.subr.mxu0 0.0
    %8414 = vmatpush2.msra.mxu0 0.0
    %8415 = vmatprep.subr.mxu0 0.0
    %8416 = vmatpush2.msra.mxu0 0.0
    %8417 = vmatprep.subr.mxu0 0.0
    %8418 = vmatpush2.msra.mxu0 0.0
    %8419 = vmatprep.subr.mxu0 0.0
    %8420 = vmatpush2.msra.mxu0 0.0
    %8421 = vmatprep.subr.mxu0 0.0
    %8422 = vmatpush2.msra.mxu0 0.0
    %8423 = vmatprep.subr.mxu0 0.0
    %8424 = vmatpush2.msra.mxu0 0.0
    %8425 = vmatprep.subr.mxu0 0.0
    %8426 = vmatpush2.msra.mxu0 0.0
    %8427 = vmatprep.subr.mxu0 0.0
    %8428 = vmatpush2.msra.mxu0 0.0
    %8429 = vmatprep.subr.mxu0 0.0
    %8430 = vmatpush2.msra.mxu0 0.0
    %8431 = vmatprep.subr.mxu0 0.0
    %8432 = vmatpush2.msra.mxu0 0.0
    %8433 = vmatprep.mubr.f32.mxu0 0.0
    %8434 = vmatmul.mubr.f32.gmra.mxu0 %v8365
    %v8435 = vpop.f32.mrf.mxu0
    %v8436 = vadd.f32 0.0, %v8435
    %v8437 = vpop.f32.mrf.mxu0
    %8438 = vmatprep.mubr.f32.mxu0 0.0
    %8439 = vmatmul.mubr.f32.gmra.mxu0 %v8366
    %v8440 = vpop.f32.mrf.mxu0
    %v8441 = vadd.f32 0.0, %v8440
    %v8442 = vpop.f32.mrf.mxu0
    %8443 = vmatprep.mubr.f32.mxu0 0.0
    %8444 = vmatmul.mubr.f32.gmra.mxu0 %v8367
    %v8445 = vpop.f32.mrf.mxu0
    %v8446 = vadd.f32 0.0, %v8445
    %v8447 = vpop.f32.mrf.mxu0
    %8448 = vmatprep.mubr.f32.mxu0 0.0
    %8449 = vmatmul.mubr.f32.gmra.mxu0 %v8368
    %v8450 = vpop.f32.mrf.mxu0
    %v8451 = vadd.f32 0.0, %v8450
    %v8452 = vpop.f32.mrf.mxu0
    %8453 = vdwg.mxu0
    %v8454 = vadd.f32 %v8360, %v8436
    %v8455 = vadd.f32 %v8361, %v8441
    %v8456 = vadd.f32 %v8362, %v8446
    %v8457 = vadd.f32 %v8363, %v8451
    %s8458 = scalar_lea.vmem %s10, 256
    %v8459 = vld [vmem:[%s8458] sm:$0xff]
    %v8460 = vld [vmem:[%s8458 + $0x8] sm:$0xff]
    %v8461 = vld [vmem:[%s8458 + $0x10] sm:$0xff]
    %v8462 = vld [vmem:[%s8458 + $0x18] sm:$0xff]
    %8463 = vmatprep.subr.mxu0 0.0
    %8464 = vmatpush1.msra.mxu0 %v7712
    %8465 = vmatprep.subr.mxu0 0.0
    %8466 = vmatpush1.msra.mxu0 %v7707
    %8467 = vmatprep.subr.mxu0 0.0
    %8468 = vmatpush1.msra.mxu0 %v7702
    %8469 = vmatprep.subr.mxu0 0.0
    %8470 = vmatpush1.msra.mxu0 %v7697
    %8471 = vmatprep.subr.mxu0 0.0
    %8472 = vmatpush1.msra.mxu0 %v7692
    %8473 = vmatprep.subr.mxu0 0.0
    %8474 = vmatpush1.msra.mxu0 %v7687
    %8475 = vmatprep.subr.mxu0 0.0
    %8476 = vmatpush1.msra.mxu0 %v7682
    %8477 = vmatprep.subr.mxu0 0.0
    %8478 = vmatpush1.msra.mxu0 %v7677
    %8479 = vmatprep.subr.mxu0 0.0
    %8480 = vmatpush1.msra.mxu0 %v7672
    %8481 = vmatprep.subr.mxu0 0.0
    %8482 = vmatpush1.msra.mxu0 %v7667
    %8483 = vmatprep.subr.mxu0 0.0
    %8484 = vmatpush1.msra.mxu0 %v7662
    %8485 = vmatprep.subr.mxu0 0.0
    %8486 = vmatpush1.msra.mxu0 %v7657
    %8487 = vmatprep.subr.mxu0 0.0
    %8488 = vmatpush1.msra.mxu0 %v7652
    %8489 = vmatprep.subr.mxu0 0.0
    %8490 = vmatpush1.msra.mxu0 %v7647
    %8491 = vmatprep.subr.mxu0 0.0
    %8492 = vmatpush1.msra.mxu0 %v7642
    %8493 = vmatprep.subr.mxu0 0.0
    %8494 = vmatpush1.msra.mxu0 %v7637
    %8495 = vmatprep.subr.mxu0 0.0
    %8496 = vmatpush2.msra.mxu0 0.0
    %8497 = vmatprep.subr.mxu0 0.0
    %8498 = vmatpush2.msra.mxu0 0.0
    %8499 = vmatprep.subr.mxu0 0.0
    %8500 = vmatpush2.msra.mxu0 0.0
    %8501 = vmatprep.subr.mxu0 0.0
    %8502 = vmatpush2.msra.mxu0 0.0
    %8503 = vmatprep.subr.mxu0 0.0
    %8504 = vmatpush2.msra.mxu0 0.0
    %8505 = vmatprep.subr.mxu0 0.0
    %8506 = vmatpush2.msra.mxu0 0.0
    %8507 = vmatprep.subr.mxu0 0.0
    %8508 = vmatpush2.msra.mxu0 0.0
    %8509 = vmatprep.subr.mxu0 0.0
    %8510 = vmatpush2.msra.mxu0 0.0
    %8511 = vmatprep.subr.mxu0 0.0
    %8512 = vmatpush2.msra.mxu0 0.0
    %8513 = vmatprep.subr.mxu0 0.0
    %8514 = vmatpush2.msra.mxu0 0.0
    %8515 = vmatprep.subr.mxu0 0.0
    %8516 = vmatpush2.msra.mxu0 0.0
    %8517 = vmatprep.subr.mxu0 0.0
    %8518 = vmatpush2.msra.mxu0 0.0
    %8519 = vmatprep.subr.mxu0 0.0
    %8520 = vmatpush2.msra.mxu0 0.0
    %8521 = vmatprep.subr.mxu0 0.0
    %8522 = vmatpush2.msra.mxu0 0.0
    %8523 = vmatprep.subr.mxu0 0.0
    %8524 = vmatpush2.msra.mxu0 0.0
    %8525 = vmatprep.subr.mxu0 0.0
    %8526 = vmatpush2.msra.mxu0 0.0
    %8527 = vmatprep.mubr.f32.mxu0 0.0
    %8528 = vmatmul.mubr.f32.gmra.mxu0 %v8459
    %v8529 = vpop.f32.mrf.mxu0
    %v8530 = vadd.f32 0.0, %v8529
    %v8531 = vpop.f32.mrf.mxu0
    %8532 = vmatprep.mubr.f32.mxu0 0.0
    %8533 = vmatmul.mubr.f32.gmra.mxu0 %v8460
    %v8534 = vpop.f32.mrf.mxu0
    %v8535 = vadd.f32 0.0, %v8534
    %v8536 = vpop.f32.mrf.mxu0
    %8537 = vmatprep.mubr.f32.mxu0 0.0
    %8538 = vmatmul.mubr.f32.gmra.mxu0 %v8461
    %v8539 = vpop.f32.mrf.mxu0
    %v8540 = vadd.f32 0.0, %v8539
    %v8541 = vpop.f32.mrf.mxu0
    %8542 = vmatprep.mubr.f32.mxu0 0.0
    %8543 = vmatmul.mubr.f32.gmra.mxu0 %v8462
    %v8544 = vpop.f32.mrf.mxu0
    %v8545 = vadd.f32 0.0, %v8544
    %v8546 = vpop.f32.mrf.mxu0
    %8547 = vdwg.mxu0
    %v8548 = vadd.f32 %v8454, %v8530
    %v8549 = vadd.f32 %v8455, %v8535
    %v8550 = vadd.f32 %v8456, %v8540
    %v8551 = vadd.f32 %v8457, %v8545
    %v8552 = vld [vmem:[%s12] sm:$0x1]
    %v8554 = vlaneseq
    %v8555 = vshrl.u32 %v8554, 7
    %v8556 = vsub.s32 0, %v8555
    %v8557 = vrot.slane %v8552, %v8556
    %v8559 = vadd.f32 %v8548, %v8557
    %v8560 = vadd.f32 %v8549, %v8557
    %v8561 = vadd.f32 %v8550, %v8557
    %v8562 = vadd.f32 %v8551, %v8557
    %v8563 = vmax.f32 %v8559, 0.0
    %v8564 = vmax.f32 %v8560, 0.0
    %v8565 = vmax.f32 %v8561, 0.0
    %v8566 = vmax.f32 %v8562, 0.0
    %v8567 = vadd.f32 %v8563, %v8564
    %v8568 = vadd.f32 %v8567, %v8565
    %v8569 = vadd.f32 %v8568, %v8566
    %v8570 = vrot.slane %v8569, 4
    %v8571 = vadd.f32 %v8569, %v8570
    %v8572 = vrot.slane %v8571, 2
    %v8573 = vadd.f32 %v8571, %v8572
    %v8574 = vrot.slane %v8573, 1
    %v8575 = vadd.f32 %v8573, %v8574
    %v8576 = vmul.f32 %v8575, 0.03125
    %v8577 = vmul.f32 %v8563, %v8563
    %v8578 = vmul.f32 %v8564, %v8564
    %v8579 = vmul.f32 %v8565, %v8565
    %v8580 = vmul.f32 %v8566, %v8566
    %v8581 = vadd.f32 %v8577, %v8578
    %v8582 = vadd.f32 %v8581, %v8579
    %v8583 = vadd.f32 %v8582, %v8580
    %v8584 = vrot.slane %v8583, 4
    %v8585 = vadd.f32 %v8583, %v8584
    %v8586 = vrot.slane %v8585, 2
    %v8587 = vadd.f32 %v8585, %v8586
    %v8588 = vrot.slane %v8587, 1
    %v8589 = vadd.f32 %v8587, %v8588
    %v8590 = vmul.f32 %v8589, 0.03125
    %v8591 = vmul.f32 %v8576, %v8576
    %v8592 = vsub.f32 %v8590, %v8591
    %v8593 = vld [vmem:[%s13] sm:$0x1]
    %v8594 = vadd.f32 %v8592, 1e-05
    %v8595 = vrsqrt.pop %v8594
    %v8596 = vmul.f32 %v8593, %v8595
    %v8597 = vld [vmem:[%s14] sm:$0x1]
    %v8598 = vmul.f32 %v8576, %v8596
    %v8599 = vsub.f32 %v8597, %v8598
    %v8601 = vlaneseq
    %v8602 = vshrl.u32 %v8601, 7
    %v8603 = vsub.s32 0, %v8602
    %v8604 = vrot.slane %v8596, %v8603
    %v8606 = vmul.f32 %v8563, %v8604
    %v8607 = vmul.f32 %v8564, %v8604
    %v8608 = vmul.f32 %v8565, %v8604
    %v8609 = vmul.f32 %v8566, %v8604
    %v8611 = vlaneseq
    %v8612 = vshrl.u32 %v8611, 7
    %v8613 = vsub.s32 0, %v8612
    %v8614 = vrot.slane %v8599, %v8613
    %v8616 = vadd.f32 %v8606, %v8614
    %v8617 = vadd.f32 %v8607, %v8614
    %v8618 = vadd.f32 %v8608, %v8614
    %v8619 = vadd.f32 %v8609, %v8614
    %v8620 = vld [vmem:[#allocation7] sm:$0xff]
    %v8621 = vld [vmem:[#allocation7 + $0x8] sm:$0xff]
    %v8622 = vld [vmem:[#allocation7 + $0x10] sm:$0xff]
    %v8623 = vld [vmem:[#allocation7 + $0x18] sm:$0xff]
    %v8624 = vld [vmem:[#allocation7 + $0x20] sm:$0xff]
    %v8625 = vld [vmem:[#allocation7 + $0x28] sm:$0xff]
    %v8626 = vld [vmem:[#allocation7 + $0x30] sm:$0xff]
    %v8627 = vld [vmem:[#allocation7 + $0x38] sm:$0xff]
    %v8628 = vld [vmem:[#allocation7 + $0x40] sm:$0xff]
    %v8629 = vld [vmem:[#allocation7 + $0x48] sm:$0xff]
    %v8630 = vld [vmem:[#allocation7 + $0x50] sm:$0xff]
    %v8631 = vld [vmem:[#allocation7 + $0x58] sm:$0xff]
    %v8632 = vld [vmem:[#allocation7 + $0x60] sm:$0xff]
    %v8633 = vld [vmem:[#allocation7 + $0x68] sm:$0xff]
    %v8634 = vld [vmem:[#allocation7 + $0x70] sm:$0xff]
    %v8635 = vld [vmem:[#allocation7 + $0x78] sm:$0xff]
    %v8636 = vld [vmem:[#allocation7 + $0x80] sm:$0xff]
    %v8637 = vld [vmem:[#allocation7 + $0x88] sm:$0xff]
    %v8638 = vld [vmem:[#allocation7 + $0x90] sm:$0xff]
    %v8639 = vld [vmem:[#allocation7 + $0x98] sm:$0xff]
    %v8640 = vld [vmem:[#allocation7 + $0xa0] sm:$0xff]
    %v8641 = vld [vmem:[#allocation7 + $0xa8] sm:$0xff]
    %v8642 = vld [vmem:[#allocation7 + $0xb0] sm:$0xff]
    %v8643 = vld [vmem:[#allocation7 + $0xb8] sm:$0xff]
    %v8644 = vld [vmem:[#allocation7 + $0xc0] sm:$0xff]
    %v8645 = vld [vmem:[#allocation7 + $0xc8] sm:$0xff]
    %v8646 = vld [vmem:[#allocation7 + $0xd0] sm:$0xff]
    %v8647 = vld [vmem:[#allocation7 + $0xd8] sm:$0xff]
    %v8648 = vld [vmem:[#allocation7 + $0xe0] sm:$0xff]
    %v8649 = vld [vmem:[#allocation7 + $0xe8] sm:$0xff]
    %v8650 = vld [vmem:[#allocation7 + $0xf0] sm:$0xff]
    %v8651 = vld [vmem:[#allocation7 + $0xf8] sm:$0xff]
    %v8652 = vld [vmem:[#allocation7 + $0x100] sm:$0xff]
    %v8653 = vld [vmem:[#allocation7 + $0x108] sm:$0xff]
    %v8654 = vld [vmem:[#allocation7 + $0x110] sm:$0xff]
    %v8655 = vld [vmem:[#allocation7 + $0x118] sm:$0xff]
    %v8656 = vld [vmem:[#allocation7 + $0x120] sm:$0xff]
    %v8657 = vld [vmem:[#allocation7 + $0x128] sm:$0xff]
    %v8658 = vld [vmem:[#allocation7 + $0x130] sm:$0xff]
    %v8659 = vld [vmem:[#allocation7 + $0x138] sm:$0xff]
    %v8660 = vld [vmem:[#allocation7 + $0x140] sm:$0xff]
    %v8661 = vld [vmem:[#allocation7 + $0x148] sm:$0xff]
    %v8662 = vld [vmem:[#allocation7 + $0x150] sm:$0xff]
    %v8663 = vld [vmem:[#allocation7 + $0x158] sm:$0xff]
    %v8664 = vld [vmem:[#allocation7 + $0x160] sm:$0xff]
    %v8665 = vld [vmem:[#allocation7 + $0x168] sm:$0xff]
    %v8666 = vld [vmem:[#allocation7 + $0x170] sm:$0xff]
    %v8667 = vld [vmem:[#allocation7 + $0x178] sm:$0xff]
    %v8668 = vld [vmem:[#allocation7 + $0x180] sm:$0xff]
    %v8669 = vld [vmem:[#allocation7 + $0x188] sm:$0xff]
    %v8670 = vld [vmem:[#allocation7 + $0x190] sm:$0xff]
    %v8671 = vld [vmem:[#allocation7 + $0x198] sm:$0xff]
    %v8672 = vld [vmem:[#allocation7 + $0x1a0] sm:$0xff]
    %v8673 = vld [vmem:[#allocation7 + $0x1a8] sm:$0xff]
    %v8674 = vld [vmem:[#allocation7 + $0x1b0] sm:$0xff]
    %v8675 = vld [vmem:[#allocation7 + $0x1b8] sm:$0xff]
    %v8676 = vld [vmem:[#allocation7 + $0x1c0] sm:$0xff]
    %v8677 = vld [vmem:[#allocation7 + $0x1c8] sm:$0xff]
    %v8678 = vld [vmem:[#allocation7 + $0x1d0] sm:$0xff]
    %v8679 = vld [vmem:[#allocation7 + $0x1d8] sm:$0xff]
    %v8680 = vld [vmem:[#allocation7 + $0x1e0] sm:$0xff]
    %v8681 = vld [vmem:[#allocation7 + $0x1e8] sm:$0xff]
    %v8682 = vld [vmem:[#allocation7 + $0x1f0] sm:$0xff]
    %v8683 = vld [vmem:[#allocation7 + $0x1f8] sm:$0xff]
    %v8684 = vld [vmem:[#allocation7 + $0x200] sm:$0xff]
    %v8685 = vld [vmem:[#allocation7 + $0x208] sm:$0xff]
    %v8686 = vld [vmem:[#allocation7 + $0x210] sm:$0xff]
    %v8687 = vld [vmem:[#allocation7 + $0x218] sm:$0xff]
    %v8688 = vld [vmem:[#allocation7 + $0x220] sm:$0xff]
    %v8689 = vld [vmem:[#allocation7 + $0x228] sm:$0xff]
    %v8690 = vld [vmem:[#allocation7 + $0x230] sm:$0xff]
    %v8691 = vld [vmem:[#allocation7 + $0x238] sm:$0xff]
    %v8692 = vld [vmem:[#allocation7 + $0x240] sm:$0xff]
    %v8693 = vld [vmem:[#allocation7 + $0x248] sm:$0xff]
    %v8694 = vld [vmem:[#allocation7 + $0x250] sm:$0xff]
    %v8695 = vld [vmem:[#allocation7 + $0x258] sm:$0xff]
    %v8696 = vld [vmem:[#allocation7 + $0x260] sm:$0xff]
    %v8697 = vld [vmem:[#allocation7 + $0x268] sm:$0xff]
    %v8698 = vld [vmem:[#allocation7 + $0x270] sm:$0xff]
    %v8699 = vld [vmem:[#allocation7 + $0x278] sm:$0xff]
    %v8700 = vld [vmem:[#allocation7 + $0x280] sm:$0xff]
    %v8701 = vld [vmem:[#allocation7 + $0x288] sm:$0xff]
    %v8702 = vld [vmem:[#allocation7 + $0x290] sm:$0xff]
    %v8703 = vld [vmem:[#allocation7 + $0x298] sm:$0xff]
    %v8704 = vld [vmem:[#allocation7 + $0x2a0] sm:$0xff]
    %v8705 = vld [vmem:[#allocation7 + $0x2a8] sm:$0xff]
    %v8706 = vld [vmem:[#allocation7 + $0x2b0] sm:$0xff]
    %v8707 = vld [vmem:[#allocation7 + $0x2b8] sm:$0xff]
    %v8708 = vld [vmem:[#allocation7 + $0x2c0] sm:$0xff]
    %v8709 = vld [vmem:[#allocation7 + $0x2c8] sm:$0xff]
    %v8710 = vld [vmem:[#allocation7 + $0x2d0] sm:$0xff]
    %v8711 = vld [vmem:[#allocation7 + $0x2d8] sm:$0xff]
    %v8712 = vld [vmem:[#allocation7 + $0x2e0] sm:$0xff]
    %v8713 = vld [vmem:[#allocation7 + $0x2e8] sm:$0xff]
    %v8714 = vld [vmem:[#allocation7 + $0x2f0] sm:$0xff]
    %v8715 = vld [vmem:[#allocation7 + $0x2f8] sm:$0xff]
    %v8716 = vld [vmem:[#allocation7 + $0x300] sm:$0xff]
    %v8717 = vld [vmem:[#allocation7 + $0x308] sm:$0xff]
    %v8718 = vld [vmem:[#allocation7 + $0x310] sm:$0xff]
    %v8719 = vld [vmem:[#allocation7 + $0x318] sm:$0xff]
    %v8720 = vld [vmem:[#allocation7 + $0x320] sm:$0xff]
    %v8721 = vld [vmem:[#allocation7 + $0x328] sm:$0xff]
    %v8722 = vld [vmem:[#allocation7 + $0x330] sm:$0xff]
    %v8723 = vld [vmem:[#allocation7 + $0x338] sm:$0xff]
    %v8724 = vld [vmem:[#allocation7 + $0x340] sm:$0xff]
    %v8725 = vld [vmem:[#allocation7 + $0x348] sm:$0xff]
    %v8726 = vld [vmem:[#allocation7 + $0x350] sm:$0xff]
    %v8727 = vld [vmem:[#allocation7 + $0x358] sm:$0xff]
    %v8728 = vld [vmem:[#allocation7 + $0x360] sm:$0xff]
    %v8729 = vld [vmem:[#allocation7 + $0x368] sm:$0xff]
    %v8730 = vld [vmem:[#allocation7 + $0x370] sm:$0xff]
    %v8731 = vld [vmem:[#allocation7 + $0x378] sm:$0xff]
    %v8732 = vld [vmem:[#allocation7 + $0x380] sm:$0xff]
    %v8733 = vld [vmem:[#allocation7 + $0x388] sm:$0xff]
    %v8734 = vld [vmem:[#allocation7 + $0x390] sm:$0xff]
    %v8735 = vld [vmem:[#allocation7 + $0x398] sm:$0xff]
    %v8736 = vld [vmem:[#allocation7 + $0x3a0] sm:$0xff]
    %v8737 = vld [vmem:[#allocation7 + $0x3a8] sm:$0xff]
    %v8738 = vld [vmem:[#allocation7 + $0x3b0] sm:$0xff]
    %v8739 = vld [vmem:[#allocation7 + $0x3b8] sm:$0xff]
    %v8740 = vld [vmem:[#allocation7 + $0x3c0] sm:$0xff]
    %v8741 = vld [vmem:[#allocation7 + $0x3c8] sm:$0xff]
    %v8742 = vld [vmem:[#allocation7 + $0x3d0] sm:$0xff]
    %v8743 = vld [vmem:[#allocation7 + $0x3d8] sm:$0xff]
    %v8744 = vld [vmem:[#allocation7 + $0x3e0] sm:$0xff]
    %v8745 = vld [vmem:[#allocation7 + $0x3e8] sm:$0xff]
    %v8746 = vld [vmem:[#allocation7 + $0x3f0] sm:$0xff]
    %v8747 = vld [vmem:[#allocation7 + $0x3f8] sm:$0xff]
    %v8748 = vld [vmem:[#allocation7 + $0x400] sm:$0xff]
    %v8749 = vld [vmem:[#allocation7 + $0x408] sm:$0xff]
    %v8750 = vld [vmem:[#allocation7 + $0x410] sm:$0xff]
    %v8751 = vld [vmem:[#allocation7 + $0x418] sm:$0xff]
    %v8752 = vld [vmem:[#allocation7 + $0x420] sm:$0xff]
    %v8753 = vld [vmem:[#allocation7 + $0x428] sm:$0xff]
    %v8754 = vld [vmem:[#allocation7 + $0x430] sm:$0xff]
    %v8755 = vld [vmem:[#allocation7 + $0x438] sm:$0xff]
    %v8756 = vld [vmem:[#allocation7 + $0x440] sm:$0xff]
    %v8757 = vld [vmem:[#allocation7 + $0x448] sm:$0xff]
    %v8758 = vld [vmem:[#allocation7 + $0x450] sm:$0xff]
    %v8759 = vld [vmem:[#allocation7 + $0x458] sm:$0xff]
    %v8760 = vld [vmem:[#allocation7 + $0x460] sm:$0xff]
    %v8761 = vld [vmem:[#allocation7 + $0x468] sm:$0xff]
    %v8762 = vld [vmem:[#allocation7 + $0x470] sm:$0xff]
    %v8763 = vld [vmem:[#allocation7 + $0x478] sm:$0xff]
    %8764 = vmatprep.subr.mxu0 %v8756
    %8765 = vmatpush1.msra.mxu0 %v8755
    %8766 = vmatprep.subr.mxu0 %v8747
    %8767 = vmatpush1.msra.mxu0 %v8746
    %8768 = vmatprep.subr.mxu0 %v8738
    %8769 = vmatpush1.msra.mxu0 %v8737
    %8770 = vmatprep.subr.mxu0 %v8729
    %8771 = vmatpush1.msra.mxu0 %v8728
    %8772 = vmatprep.subr.mxu0 %v8720
    %8773 = vmatpush1.msra.mxu0 %v8719
    %8774 = vmatprep.subr.mxu0 %v8711
    %8775 = vmatpush1.msra.mxu0 %v8710
    %8776 = vmatprep.subr.mxu0 %v8702
    %8777 = vmatpush1.msra.mxu0 %v8701
    %8778 = vmatprep.subr.mxu0 %v8693
    %8779 = vmatpush1.msra.mxu0 %v8692
    %8780 = vmatprep.subr.mxu0 %v8684
    %8781 = vmatpush1.msra.mxu0 %v8683
    %8782 = vmatprep.subr.mxu0 %v8675
    %8783 = vmatpush1.msra.mxu0 %v8674
    %8784 = vmatprep.subr.mxu0 %v8666
    %8785 = vmatpush1.msra.mxu0 %v8665
    %8786 = vmatprep.subr.mxu0 %v8657
    %8787 = vmatpush1.msra.mxu0 %v8656
    %8788 = vmatprep.subr.mxu0 %v8648
    %8789 = vmatpush1.msra.mxu0 %v8647
    %8790 = vmatprep.subr.mxu0 %v8639
    %8791 = vmatpush1.msra.mxu0 %v8638
    %8792 = vmatprep.subr.mxu0 %v8630
    %8793 = vmatpush1.msra.mxu0 %v8629
    %8794 = vmatprep.subr.mxu0 %v8621
    %8795 = vmatpush1.msra.mxu0 %v8620
    %8796 = vmatprep.subr.mxu0 0.0
    %8797 = vmatpush2.msra.mxu0 0.0
    %8798 = vmatprep.subr.mxu0 0.0
    %8799 = vmatpush2.msra.mxu0 0.0
    %8800 = vmatprep.subr.mxu0 0.0
    %8801 = vmatpush2.msra.mxu0 0.0
    %8802 = vmatprep.subr.mxu0 0.0
    %8803 = vmatpush2.msra.mxu0 0.0
    %8804 = vmatprep.subr.mxu0 0.0
    %8805 = vmatpush2.msra.mxu0 0.0
    %8806 = vmatprep.subr.mxu0 0.0
    %8807 = vmatpush2.msra.mxu0 0.0
    %8808 = vmatprep.subr.mxu0 0.0
    %8809 = vmatpush2.msra.mxu0 0.0
    %8810 = vmatprep.subr.mxu0 0.0
    %8811 = vmatpush2.msra.mxu0 0.0
    %8812 = vmatprep.subr.mxu0 0.0
    %8813 = vmatpush2.msra.mxu0 0.0
    %8814 = vmatprep.subr.mxu0 0.0
    %8815 = vmatpush2.msra.mxu0 0.0
    %8816 = vmatprep.subr.mxu0 0.0
    %8817 = vmatpush2.msra.mxu0 0.0
    %8818 = vmatprep.subr.mxu0 0.0
    %8819 = vmatpush2.msra.mxu0 0.0
    %8820 = vmatprep.subr.mxu0 0.0
    %8821 = vmatpush2.msra.mxu0 0.0
    %8822 = vmatprep.subr.mxu0 0.0
    %8823 = vmatpush2.msra.mxu0 0.0
    %8824 = vmatprep.subr.mxu0 0.0
    %8825 = vmatpush2.msra.mxu0 0.0
    %8826 = vmatprep.subr.mxu0 0.0
    %8827 = vmatpush2.msra.mxu0 0.0
    %8828 = vmatprep.mubr.f32.mxu0 0.0
    %8829 = vmatmul.mubr.f32.gmra.mxu0 %v8616
    %v8830 = vpop.f32.mrf.mxu0
    %v8831 = vadd.f32 0.0, %v8830
    %v8832 = vpop.f32.mrf.mxu0
    %v8833 = vadd.f32 0.0, %v8832
    %8834 = vmatprep.mubr.f32.mxu0 0.0
    %8835 = vmatmul.mubr.f32.gmra.mxu0 %v8617
    %v8836 = vpop.f32.mrf.mxu0
    %v8837 = vadd.f32 0.0, %v8836
    %v8838 = vpop.f32.mrf.mxu0
    %v8839 = vadd.f32 0.0, %v8838
    %8840 = vmatprep.mubr.f32.mxu0 0.0
    %8841 = vmatmul.mubr.f32.gmra.mxu0 %v8618
    %v8842 = vpop.f32.mrf.mxu0
    %v8843 = vadd.f32 0.0, %v8842
    %v8844 = vpop.f32.mrf.mxu0
    %v8845 = vadd.f32 0.0, %v8844
    %8846 = vmatprep.mubr.f32.mxu0 0.0
    %8847 = vmatmul.mubr.f32.gmra.mxu0 %v8619
    %v8848 = vpop.f32.mrf.mxu0
    %v8849 = vadd.f32 0.0, %v8848
    %v8850 = vpop.f32.mrf.mxu0
    %v8851 = vadd.f32 0.0, %v8850
    %8852 = vdwg.mxu0
    %8853 = vmatprep.subr.mxu0 %v8758
    %8854 = vmatpush1.msra.mxu0 %v8757
    %8855 = vmatprep.subr.mxu0 %v8749
    %8856 = vmatpush1.msra.mxu0 %v8748
    %8857 = vmatprep.subr.mxu0 %v8740
    %8858 = vmatpush1.msra.mxu0 %v8739
    %8859 = vmatprep.subr.mxu0 %v8731
    %8860 = vmatpush1.msra.mxu0 %v8730
    %8861 = vmatprep.subr.mxu0 %v8722
    %8862 = vmatpush1.msra.mxu0 %v8721
    %8863 = vmatprep.subr.mxu0 %v8713
    %8864 = vmatpush1.msra.mxu0 %v8712
    %8865 = vmatprep.subr.mxu0 %v8704
    %8866 = vmatpush1.msra.mxu0 %v8703
    %8867 = vmatprep.subr.mxu0 %v8695
    %8868 = vmatpush1.msra.mxu0 %v8694
    %8869 = vmatprep.subr.mxu0 %v8686
    %8870 = vmatpush1.msra.mxu0 %v8685
    %8871 = vmatprep.subr.mxu0 %v8677
    %8872 = vmatpush1.msra.mxu0 %v8676
    %8873 = vmatprep.subr.mxu0 %v8668
    %8874 = vmatpush1.msra.mxu0 %v8667
    %8875 = vmatprep.subr.mxu0 %v8659
    %8876 = vmatpush1.msra.mxu0 %v8658
    %8877 = vmatprep.subr.mxu0 %v8650
    %8878 = vmatpush1.msra.mxu0 %v8649
    %8879 = vmatprep.subr.mxu0 %v8641
    %8880 = vmatpush1.msra.mxu0 %v8640
    %8881 = vmatprep.subr.mxu0 %v8632
    %8882 = vmatpush1.msra.mxu0 %v8631
    %8883 = vmatprep.subr.mxu0 %v8623
    %8884 = vmatpush1.msra.mxu0 %v8622
    %8885 = vmatprep.subr.mxu0 0.0
    %8886 = vmatpush2.msra.mxu0 0.0
    %8887 = vmatprep.subr.mxu0 0.0
    %8888 = vmatpush2.msra.mxu0 0.0
    %8889 = vmatprep.subr.mxu0 0.0
    %8890 = vmatpush2.msra.mxu0 0.0
    %8891 = vmatprep.subr.mxu0 0.0
    %8892 = vmatpush2.msra.mxu0 0.0
    %8893 = vmatprep.subr.mxu0 0.0
    %8894 = vmatpush2.msra.mxu0 0.0
    %8895 = vmatprep.subr.mxu0 0.0
    %8896 = vmatpush2.msra.mxu0 0.0
    %8897 = vmatprep.subr.mxu0 0.0
    %8898 = vmatpush2.msra.mxu0 0.0
    %8899 = vmatprep.subr.mxu0 0.0
    %8900 = vmatpush2.msra.mxu0 0.0
    %8901 = vmatprep.subr.mxu0 0.0
    %8902 = vmatpush2.msra.mxu0 0.0
    %8903 = vmatprep.subr.mxu0 0.0
    %8904 = vmatpush2.msra.mxu0 0.0
    %8905 = vmatprep.subr.mxu0 0.0
    %8906 = vmatpush2.msra.mxu0 0.0
    %8907 = vmatprep.subr.mxu0 0.0
    %8908 = vmatpush2.msra.mxu0 0.0
    %8909 = vmatprep.subr.mxu0 0.0
    %8910 = vmatpush2.msra.mxu0 0.0
    %8911 = vmatprep.subr.mxu0 0.0
    %8912 = vmatpush2.msra.mxu0 0.0
    %8913 = vmatprep.subr.mxu0 0.0
    %8914 = vmatpush2.msra.mxu0 0.0
    %8915 = vmatprep.subr.mxu0 0.0
    %8916 = vmatpush2.msra.mxu0 0.0
    %8917 = vmatprep.mubr.f32.mxu0 0.0
    %8918 = vmatmul.mubr.f32.gmra.mxu0 %v8616
    %v8919 = vpop.f32.mrf.mxu0
    %v8920 = vadd.f32 0.0, %v8919
    %v8921 = vpop.f32.mrf.mxu0
    %v8922 = vadd.f32 0.0, %v8921
    %8923 = vmatprep.mubr.f32.mxu0 0.0
    %8924 = vmatmul.mubr.f32.gmra.mxu0 %v8617
    %v8925 = vpop.f32.mrf.mxu0
    %v8926 = vadd.f32 0.0, %v8925
    %v8927 = vpop.f32.mrf.mxu0
    %v8928 = vadd.f32 0.0, %v8927
    %8929 = vmatprep.mubr.f32.mxu0 0.0
    %8930 = vmatmul.mubr.f32.gmra.mxu0 %v8618
    %v8931 = vpop.f32.mrf.mxu0
    %v8932 = vadd.f32 0.0, %v8931
    %v8933 = vpop.f32.mrf.mxu0
    %v8934 = vadd.f32 0.0, %v8933
    %8935 = vmatprep.mubr.f32.mxu0 0.0
    %8936 = vmatmul.mubr.f32.gmra.mxu0 %v8619
    %v8937 = vpop.f32.mrf.mxu0
    %v8938 = vadd.f32 0.0, %v8937
    %v8939 = vpop.f32.mrf.mxu0
    %v8940 = vadd.f32 0.0, %v8939
    %8941 = vdwg.mxu0
    %8942 = vmatprep.subr.mxu0 %v8760
    %8943 = vmatpush1.msra.mxu0 %v8759
    %8944 = vmatprep.subr.mxu0 %v8751
    %8945 = vmatpush1.msra.mxu0 %v8750
    %8946 = vmatprep.subr.mxu0 %v8742
    %8947 = vmatpush1.msra.mxu0 %v8741
    %8948 = vmatprep.subr.mxu0 %v8733
    %8949 = vmatpush1.msra.mxu0 %v8732
    %8950 = vmatprep.subr.mxu0 %v8724
    %8951 = vmatpush1.msra.mxu0 %v8723
    %8952 = vmatprep.subr.mxu0 %v8715
    %8953 = vmatpush1.msra.mxu0 %v8714
    %8954 = vmatprep.subr.mxu0 %v8706
    %8955 = vmatpush1.msra.mxu0 %v8705
    %8956 = vmatprep.subr.mxu0 %v8697
    %8957 = vmatpush1.msra.mxu0 %v8696
    %8958 = vmatprep.subr.mxu0 %v8688
    %8959 = vmatpush1.msra.mxu0 %v8687
    %8960 = vmatprep.subr.mxu0 %v8679
    %8961 = vmatpush1.msra.mxu0 %v8678
    %8962 = vmatprep.subr.mxu0 %v8670
    %8963 = vmatpush1.msra.mxu0 %v8669
    %8964 = vmatprep.subr.mxu0 %v8661
    %8965 = vmatpush1.msra.mxu0 %v8660
    %8966 = vmatprep.subr.mxu0 %v8652
    %8967 = vmatpush1.msra.mxu0 %v8651
    %8968 = vmatprep.subr.mxu0 %v8643
    %8969 = vmatpush1.msra.mxu0 %v8642
    %8970 = vmatprep.subr.mxu0 %v8634
    %8971 = vmatpush1.msra.mxu0 %v8633
    %8972 = vmatprep.subr.mxu0 %v8625
    %8973 = vmatpush1.msra.mxu0 %v8624
    %8974 = vmatprep.subr.mxu0 0.0
    %8975 = vmatpush2.msra.mxu0 0.0
    %8976 = vmatprep.subr.mxu0 0.0
    %8977 = vmatpush2.msra.mxu0 0.0
    %8978 = vmatprep.subr.mxu0 0.0
    %8979 = vmatpush2.msra.mxu0 0.0
    %8980 = vmatprep.subr.mxu0 0.0
    %8981 = vmatpush2.msra.mxu0 0.0
    %8982 = vmatprep.subr.mxu0 0.0
    %8983 = vmatpush2.msra.mxu0 0.0
    %8984 = vmatprep.subr.mxu0 0.0
    %8985 = vmatpush2.msra.mxu0 0.0
    %8986 = vmatprep.subr.mxu0 0.0
    %8987 = vmatpush2.msra.mxu0 0.0
    %8988 = vmatprep.subr.mxu0 0.0
    %8989 = vmatpush2.msra.mxu0 0.0
    %8990 = vmatprep.subr.mxu0 0.0
    %8991 = vmatpush2.msra.mxu0 0.0
    %8992 = vmatprep.subr.mxu0 0.0
    %8993 = vmatpush2.msra.mxu0 0.0
    %8994 = vmatprep.subr.mxu0 0.0
    %8995 = vmatpush2.msra.mxu0 0.0
    %8996 = vmatprep.subr.mxu0 0.0
    %8997 = vmatpush2.msra.mxu0 0.0
    %8998 = vmatprep.subr.mxu0 0.0
    %8999 = vmatpush2.msra.mxu0 0.0
    %9000 = vmatprep.subr.mxu0 0.0
    %9001 = vmatpush2.msra.mxu0 0.0
    %9002 = vmatprep.subr.mxu0 0.0
    %9003 = vmatpush2.msra.mxu0 0.0
    %9004 = vmatprep.subr.mxu0 0.0
    %9005 = vmatpush2.msra.mxu0 0.0
    %9006 = vmatprep.mubr.f32.mxu0 0.0
    %9007 = vmatmul.mubr.f32.gmra.mxu0 %v8616
    %v9008 = vpop.f32.mrf.mxu0
    %v9009 = vadd.f32 0.0, %v9008
    %v9010 = vpop.f32.mrf.mxu0
    %v9011 = vadd.f32 0.0, %v9010
    %9012 = vmatprep.mubr.f32.mxu0 0.0
    %9013 = vmatmul.mubr.f32.gmra.mxu0 %v8617
    %v9014 = vpop.f32.mrf.mxu0
    %v9015 = vadd.f32 0.0, %v9014
    %v9016 = vpop.f32.mrf.mxu0
    %v9017 = vadd.f32 0.0, %v9016
    %9018 = vmatprep.mubr.f32.mxu0 0.0
    %9019 = vmatmul.mubr.f32.gmra.mxu0 %v8618
    %v9020 = vpop.f32.mrf.mxu0
    %v9021 = vadd.f32 0.0, %v9020
    %v9022 = vpop.f32.mrf.mxu0
    %v9023 = vadd.f32 0.0, %v9022
    %9024 = vmatprep.mubr.f32.mxu0 0.0
    %9025 = vmatmul.mubr.f32.gmra.mxu0 %v8619
    %v9026 = vpop.f32.mrf.mxu0
    %v9027 = vadd.f32 0.0, %v9026
    %v9028 = vpop.f32.mrf.mxu0
    %v9029 = vadd.f32 0.0, %v9028
    %9030 = vdwg.mxu0
    %9031 = vmatprep.subr.mxu0 %v8762
    %9032 = vmatpush1.msra.mxu0 %v8761
    %9033 = vmatprep.subr.mxu0 %v8753
    %9034 = vmatpush1.msra.mxu0 %v8752
    %9035 = vmatprep.subr.mxu0 %v8744
    %9036 = vmatpush1.msra.mxu0 %v8743
    %9037 = vmatprep.subr.mxu0 %v8735
    %9038 = vmatpush1.msra.mxu0 %v8734
    %9039 = vmatprep.subr.mxu0 %v8726
    %9040 = vmatpush1.msra.mxu0 %v8725
    %9041 = vmatprep.subr.mxu0 %v8717
    %9042 = vmatpush1.msra.mxu0 %v8716
    %9043 = vmatprep.subr.mxu0 %v8708
    %9044 = vmatpush1.msra.mxu0 %v8707
    %9045 = vmatprep.subr.mxu0 %v8699
    %9046 = vmatpush1.msra.mxu0 %v8698
    %9047 = vmatprep.subr.mxu0 %v8690
    %9048 = vmatpush1.msra.mxu0 %v8689
    %9049 = vmatprep.subr.mxu0 %v8681
    %9050 = vmatpush1.msra.mxu0 %v8680
    %9051 = vmatprep.subr.mxu0 %v8672
    %9052 = vmatpush1.msra.mxu0 %v8671
    %9053 = vmatprep.subr.mxu0 %v8663
    %9054 = vmatpush1.msra.mxu0 %v8662
    %9055 = vmatprep.subr.mxu0 %v8654
    %9056 = vmatpush1.msra.mxu0 %v8653
    %9057 = vmatprep.subr.mxu0 %v8645
    %9058 = vmatpush1.msra.mxu0 %v8644
    %9059 = vmatprep.subr.mxu0 %v8636
    %9060 = vmatpush1.msra.mxu0 %v8635
    %9061 = vmatprep.subr.mxu0 %v8627
    %9062 = vmatpush1.msra.mxu0 %v8626
    %9063 = vmatprep.subr.mxu0 0.0
    %9064 = vmatpush2.msra.mxu0 0.0
    %9065 = vmatprep.subr.mxu0 0.0
    %9066 = vmatpush2.msra.mxu0 0.0
    %9067 = vmatprep.subr.mxu0 0.0
    %9068 = vmatpush2.msra.mxu0 0.0
    %9069 = vmatprep.subr.mxu0 0.0
    %9070 = vmatpush2.msra.mxu0 0.0
    %9071 = vmatprep.subr.mxu0 0.0
    %9072 = vmatpush2.msra.mxu0 0.0
    %9073 = vmatprep.subr.mxu0 0.0
    %9074 = vmatpush2.msra.mxu0 0.0
    %9075 = vmatprep.subr.mxu0 0.0
    %9076 = vmatpush2.msra.mxu0 0.0
    %9077 = vmatprep.subr.mxu0 0.0
    %9078 = vmatpush2.msra.mxu0 0.0
    %9079 = vmatprep.subr.mxu0 0.0
    %9080 = vmatpush2.msra.mxu0 0.0
    %9081 = vmatprep.subr.mxu0 0.0
    %9082 = vmatpush2.msra.mxu0 0.0
    %9083 = vmatprep.subr.mxu0 0.0
    %9084 = vmatpush2.msra.mxu0 0.0
    %9085 = vmatprep.subr.mxu0 0.0
    %9086 = vmatpush2.msra.mxu0 0.0
    %9087 = vmatprep.subr.mxu0 0.0
    %9088 = vmatpush2.msra.mxu0 0.0
    %9089 = vmatprep.subr.mxu0 0.0
    %9090 = vmatpush2.msra.mxu0 0.0
    %9091 = vmatprep.subr.mxu0 0.0
    %9092 = vmatpush2.msra.mxu0 0.0
    %9093 = vmatprep.subr.mxu0 0.0
    %9094 = vmatpush2.msra.mxu0 0.0
    %9095 = vmatprep.mubr.f32.mxu0 0.0
    %9096 = vmatmul.mubr.f32.gmra.mxu0 %v8616
    %v9097 = vpop.f32.mrf.mxu0
    %v9098 = vadd.f32 0.0, %v9097
    %v9099 = vpop.f32.mrf.mxu0
    %v9100 = vadd.f32 0.0, %v9099
    %9101 = vmatprep.mubr.f32.mxu0 0.0
    %9102 = vmatmul.mubr.f32.gmra.mxu0 %v8617
    %v9103 = vpop.f32.mrf.mxu0
    %v9104 = vadd.f32 0.0, %v9103
    %v9105 = vpop.f32.mrf.mxu0
    %v9106 = vadd.f32 0.0, %v9105
    %9107 = vmatprep.mubr.f32.mxu0 0.0
    %9108 = vmatmul.mubr.f32.gmra.mxu0 %v8618
    %v9109 = vpop.f32.mrf.mxu0
    %v9110 = vadd.f32 0.0, %v9109
    %v9111 = vpop.f32.mrf.mxu0
    %v9112 = vadd.f32 0.0, %v9111
    %9113 = vmatprep.mubr.f32.mxu0 0.0
    %9114 = vmatmul.mubr.f32.gmra.mxu0 %v8619
    %v9115 = vpop.f32.mrf.mxu0
    %v9116 = vadd.f32 0.0, %v9115
    %v9117 = vpop.f32.mrf.mxu0
    %v9118 = vadd.f32 0.0, %v9117
    %9119 = vdwg.mxu0
    %9120 = vmatprep.subr.mxu0 0.0
    %9121 = vmatpush1.msra.mxu0 %v8763
    %9122 = vmatprep.subr.mxu0 0.0
    %9123 = vmatpush1.msra.mxu0 %v8754
    %9124 = vmatprep.subr.mxu0 0.0
    %9125 = vmatpush1.msra.mxu0 %v8745
    %9126 = vmatprep.subr.mxu0 0.0
    %9127 = vmatpush1.msra.mxu0 %v8736
    %9128 = vmatprep.subr.mxu0 0.0
    %9129 = vmatpush1.msra.mxu0 %v8727
    %9130 = vmatprep.subr.mxu0 0.0
    %9131 = vmatpush1.msra.mxu0 %v8718
    %9132 = vmatprep.subr.mxu0 0.0
    %9133 = vmatpush1.msra.mxu0 %v8709
    %9134 = vmatprep.subr.mxu0 0.0
    %9135 = vmatpush1.msra.mxu0 %v8700
    %9136 = vmatprep.subr.mxu0 0.0
    %9137 = vmatpush1.msra.mxu0 %v8691
    %9138 = vmatprep.subr.mxu0 0.0
    %9139 = vmatpush1.msra.mxu0 %v8682
    %9140 = vmatprep.subr.mxu0 0.0
    %9141 = vmatpush1.msra.mxu0 %v8673
    %9142 = vmatprep.subr.mxu0 0.0
    %9143 = vmatpush1.msra.mxu0 %v8664
    %9144 = vmatprep.subr.mxu0 0.0
    %9145 = vmatpush1.msra.mxu0 %v8655
    %9146 = vmatprep.subr.mxu0 0.0
    %9147 = vmatpush1.msra.mxu0 %v8646
    %9148 = vmatprep.subr.mxu0 0.0
    %9149 = vmatpush1.msra.mxu0 %v8637
    %9150 = vmatprep.subr.mxu0 0.0
    %9151 = vmatpush1.msra.mxu0 %v8628
    %9152 = vmatprep.subr.mxu0 0.0
    %9153 = vmatpush2.msra.mxu0 0.0
    %9154 = vmatprep.subr.mxu0 0.0
    %9155 = vmatpush2.msra.mxu0 0.0
    %9156 = vmatprep.subr.mxu0 0.0
    %9157 = vmatpush2.msra.mxu0 0.0
    %9158 = vmatprep.subr.mxu0 0.0
    %9159 = vmatpush2.msra.mxu0 0.0
    %9160 = vmatprep.subr.mxu0 0.0
    %9161 = vmatpush2.msra.mxu0 0.0
    %9162 = vmatprep.subr.mxu0 0.0
    %9163 = vmatpush2.msra.mxu0 0.0
    %9164 = vmatprep.subr.mxu0 0.0
    %9165 = vmatpush2.msra.mxu0 0.0
    %9166 = vmatprep.subr.mxu0 0.0
    %9167 = vmatpush2.msra.mxu0 0.0
    %9168 = vmatprep.subr.mxu0 0.0
    %9169 = vmatpush2.msra.mxu0 0.0
    %9170 = vmatprep.subr.mxu0 0.0
    %9171 = vmatpush2.msra.mxu0 0.0
    %9172 = vmatprep.subr.mxu0 0.0
    %9173 = vmatpush2.msra.mxu0 0.0
    %9174 = vmatprep.subr.mxu0 0.0
    %9175 = vmatpush2.msra.mxu0 0.0
    %9176 = vmatprep.subr.mxu0 0.0
    %9177 = vmatpush2.msra.mxu0 0.0
    %9178 = vmatprep.subr.mxu0 0.0
    %9179 = vmatpush2.msra.mxu0 0.0
    %9180 = vmatprep.subr.mxu0 0.0
    %9181 = vmatpush2.msra.mxu0 0.0
    %9182 = vmatprep.subr.mxu0 0.0
    %9183 = vmatpush2.msra.mxu0 0.0
    %9184 = vmatprep.mubr.f32.mxu0 0.0
    %9185 = vmatmul.mubr.f32.gmra.mxu0 %v8616
    %v9186 = vpop.f32.mrf.mxu0
    %v9187 = vadd.f32 0.0, %v9186
    %v9188 = vpop.f32.mrf.mxu0
    %9189 = vmatprep.mubr.f32.mxu0 0.0
    %9190 = vmatmul.mubr.f32.gmra.mxu0 %v8617
    %v9191 = vpop.f32.mrf.mxu0
    %v9192 = vadd.f32 0.0, %v9191
    %v9193 = vpop.f32.mrf.mxu0
    %9194 = vmatprep.mubr.f32.mxu0 0.0
    %9195 = vmatmul.mubr.f32.gmra.mxu0 %v8618
    %v9196 = vpop.f32.mrf.mxu0
    %v9197 = vadd.f32 0.0, %v9196
    %v9198 = vpop.f32.mrf.mxu0
    %9199 = vmatprep.mubr.f32.mxu0 0.0
    %9200 = vmatmul.mubr.f32.gmra.mxu0 %v8619
    %v9201 = vpop.f32.mrf.mxu0
    %v9202 = vadd.f32 0.0, %v9201
    %v9203 = vpop.f32.mrf.mxu0
    %9204 = vdwg.mxu0
    %v9205 = vld [vmem:[#allocation5] sm:$0xff]
    %s9206 = scalar_lea.vmem [#allocation5], 8
    %v9207 = vld [vmem:[%s9206] sm:$0xff]
    %vm9208 = vcmask 261120
    %v9210 = vsel %vm9208, %v9207, 0
    %9212 = vmatprep.subr.mxu0 0.0
    %9213 = vmatpush1.msra.mxu0 0.0
    %9214 = vmatprep.subr.mxu0 0.0
    %9215 = vmatpush1.msra.mxu0 0.0
    %9216 = vmatprep.subr.mxu0 0.0
    %9217 = vmatpush1.msra.mxu0 0.0
    %9218 = vmatprep.subr.mxu0 0.0
    %9219 = vmatpush1.msra.mxu0 0.0
    %9220 = vmatprep.subr.mxu0 0.0
    %9221 = vmatpush1.msra.mxu0 0.0
    %9222 = vmatprep.subr.mxu0 0.0
    %9223 = vmatpush1.msra.mxu0 0.0
    %9224 = vmatprep.subr.mxu0 0.0
    %9225 = vmatpush1.msra.mxu0 0.0
    %9226 = vmatprep.subr.mxu0 0.0
    %9227 = vmatpush1.msra.mxu0 0.0
    %9228 = vmatprep.subr.mxu0 0.0
    %9229 = vmatpush1.msra.mxu0 0.0
    %9230 = vmatprep.subr.mxu0 0.0
    %9231 = vmatpush1.msra.mxu0 0.0
    %9232 = vmatprep.subr.mxu0 0.0
    %9233 = vmatpush1.msra.mxu0 0.0
    %9234 = vmatprep.subr.mxu0 0.0
    %9235 = vmatpush1.msra.mxu0 0.0
    %9236 = vmatprep.subr.mxu0 0.0
    %9237 = vmatpush1.msra.mxu0 %v8851
    %9238 = vmatprep.subr.mxu0 0.0
    %9239 = vmatpush1.msra.mxu0 %v8845
    %9240 = vmatprep.subr.mxu0 0.0
    %9241 = vmatpush1.msra.mxu0 %v8839
    %9242 = vmatprep.subr.mxu0 0.0
    %9243 = vmatpush1.msra.mxu0 %v8833
    %9244 = vmatprep.subr.mxu0 0.0
    %9245 = vmatpush2.msra.mxu0 0.0
    %9246 = vmatprep.subr.mxu0 0.0
    %9247 = vmatpush2.msra.mxu0 0.0
    %9248 = vmatprep.subr.mxu0 0.0
    %9249 = vmatpush2.msra.mxu0 0.0
    %9250 = vmatprep.subr.mxu0 0.0
    %9251 = vmatpush2.msra.mxu0 0.0
    %9252 = vmatprep.subr.mxu0 0.0
    %9253 = vmatpush2.msra.mxu0 0.0
    %9254 = vmatprep.subr.mxu0 0.0
    %9255 = vmatpush2.msra.mxu0 0.0
    %9256 = vmatprep.subr.mxu0 0.0
    %9257 = vmatpush2.msra.mxu0 0.0
    %9258 = vmatprep.subr.mxu0 0.0
    %9259 = vmatpush2.msra.mxu0 0.0
    %9260 = vmatprep.subr.mxu0 0.0
    %9261 = vmatpush2.msra.mxu0 0.0
    %9262 = vmatprep.subr.mxu0 0.0
    %9263 = vmatpush2.msra.mxu0 0.0
    %9264 = vmatprep.subr.mxu0 0.0
    %9265 = vmatpush2.msra.mxu0 0.0
    %9266 = vmatprep.subr.mxu0 0.0
    %9267 = vmatpush2.msra.mxu0 0.0
    %9268 = vmatprep.subr.mxu0 0.0
    %9269 = vmatpush2.msra.mxu0 0.0
    %9270 = vmatprep.subr.mxu0 0.0
    %9271 = vmatpush2.msra.mxu0 0.0
    %9272 = vmatprep.subr.mxu0 0.0
    %9273 = vmatpush2.msra.mxu0 0.0
    %9274 = vmatprep.subr.mxu0 0.0
    %9275 = vmatpush2.msra.mxu0 0.0
    %9276 = vmatprep.mubr.f32.mxu0 0.0
    %9277 = vmatmul.mubr.f32.gmra.mxu0 %v9210
    %v9278 = vpop.f32.mrf.mxu0
    %v9279 = vadd.f32 0.0, %v9278
    %v9280 = vpop.f32.mrf.mxu0
    %9281 = vdwg.mxu0
    %v9283 = vsel %vm9208, %v9205, 0
    %9285 = vmatprep.subr.mxu0 0.0
    %9286 = vmatpush1.msra.mxu0 0.0
    %9287 = vmatprep.subr.mxu0 0.0
    %9288 = vmatpush1.msra.mxu0 0.0
    %9289 = vmatprep.subr.mxu0 0.0
    %9290 = vmatpush1.msra.mxu0 0.0
    %9291 = vmatprep.subr.mxu0 0.0
    %9292 = vmatpush1.msra.mxu0 0.0
    %9293 = vmatprep.subr.mxu0 0.0
    %9294 = vmatpush1.msra.mxu0 0.0
    %9295 = vmatprep.subr.mxu0 0.0
    %9296 = vmatpush1.msra.mxu0 0.0
    %9297 = vmatprep.subr.mxu0 0.0
    %9298 = vmatpush1.msra.mxu0 0.0
    %9299 = vmatprep.subr.mxu0 0.0
    %9300 = vmatpush1.msra.mxu0 0.0
    %9301 = vmatprep.subr.mxu0 0.0
    %9302 = vmatpush1.msra.mxu0 0.0
    %9303 = vmatprep.subr.mxu0 0.0
    %9304 = vmatpush1.msra.mxu0 0.0
    %9305 = vmatprep.subr.mxu0 0.0
    %9306 = vmatpush1.msra.mxu0 0.0
    %9307 = vmatprep.subr.mxu0 0.0
    %9308 = vmatpush1.msra.mxu0 0.0
    %9309 = vmatprep.subr.mxu0 0.0
    %9310 = vmatpush1.msra.mxu0 %v8849
    %9311 = vmatprep.subr.mxu0 0.0
    %9312 = vmatpush1.msra.mxu0 %v8843
    %9313 = vmatprep.subr.mxu0 0.0
    %9314 = vmatpush1.msra.mxu0 %v8837
    %9315 = vmatprep.subr.mxu0 0.0
    %9316 = vmatpush1.msra.mxu0 %v8831
    %9317 = vmatprep.subr.mxu0 0.0
    %9318 = vmatpush2.msra.mxu0 0.0
    %9319 = vmatprep.subr.mxu0 0.0
    %9320 = vmatpush2.msra.mxu0 0.0
    %9321 = vmatprep.subr.mxu0 0.0
    %9322 = vmatpush2.msra.mxu0 0.0
    %9323 = vmatprep.subr.mxu0 0.0
    %9324 = vmatpush2.msra.mxu0 0.0
    %9325 = vmatprep.subr.mxu0 0.0
    %9326 = vmatpush2.msra.mxu0 0.0
    %9327 = vmatprep.subr.mxu0 0.0
    %9328 = vmatpush2.msra.mxu0 0.0
    %9329 = vmatprep.subr.mxu0 0.0
    %9330 = vmatpush2.msra.mxu0 0.0
    %9331 = vmatprep.subr.mxu0 0.0
    %9332 = vmatpush2.msra.mxu0 0.0
    %9333 = vmatprep.subr.mxu0 0.0
    %9334 = vmatpush2.msra.mxu0 0.0
    %9335 = vmatprep.subr.mxu0 0.0
    %9336 = vmatpush2.msra.mxu0 0.0
    %9337 = vmatprep.subr.mxu0 0.0
    %9338 = vmatpush2.msra.mxu0 0.0
    %9339 = vmatprep.subr.mxu0 0.0
    %9340 = vmatpush2.msra.mxu0 0.0
    %9341 = vmatprep.subr.mxu0 0.0
    %9342 = vmatpush2.msra.mxu0 0.0
    %9343 = vmatprep.subr.mxu0 0.0
    %9344 = vmatpush2.msra.mxu0 0.0
    %9345 = vmatprep.subr.mxu0 0.0
    %9346 = vmatpush2.msra.mxu0 0.0
    %9347 = vmatprep.subr.mxu0 0.0
    %9348 = vmatpush2.msra.mxu0 0.0
    %9349 = vmatprep.mubr.f32.mxu0 0.0
    %9350 = vmatmul.mubr.f32.gmra.mxu0 %v9283
    %v9351 = vpop.f32.mrf.mxu0
    %v9352 = vadd.f32 %v9279, %v9351
    %v9353 = vpop.f32.mrf.mxu0
    %9354 = vdwg.mxu0
    %s9355 = scalar_lea.vmem [#allocation5], 16
    %v9356 = vld [vmem:[%s9355] sm:$0xff]
    %v9358 = vsel %vm9208, %v9356, 0
    %9360 = vmatprep.subr.mxu0 0.0
    %9361 = vmatpush1.msra.mxu0 0.0
    %9362 = vmatprep.subr.mxu0 0.0
    %9363 = vmatpush1.msra.mxu0 0.0
    %9364 = vmatprep.subr.mxu0 0.0
    %9365 = vmatpush1.msra.mxu0 0.0
    %9366 = vmatprep.subr.mxu0 0.0
    %9367 = vmatpush1.msra.mxu0 0.0
    %9368 = vmatprep.subr.mxu0 0.0
    %9369 = vmatpush1.msra.mxu0 0.0
    %9370 = vmatprep.subr.mxu0 0.0
    %9371 = vmatpush1.msra.mxu0 0.0
    %9372 = vmatprep.subr.mxu0 0.0
    %9373 = vmatpush1.msra.mxu0 0.0
    %9374 = vmatprep.subr.mxu0 0.0
    %9375 = vmatpush1.msra.mxu0 0.0
    %9376 = vmatprep.subr.mxu0 0.0
    %9377 = vmatpush1.msra.mxu0 0.0
    %9378 = vmatprep.subr.mxu0 0.0
    %9379 = vmatpush1.msra.mxu0 0.0
    %9380 = vmatprep.subr.mxu0 0.0
    %9381 = vmatpush1.msra.mxu0 0.0
    %9382 = vmatprep.subr.mxu0 0.0
    %9383 = vmatpush1.msra.mxu0 0.0
    %9384 = vmatprep.subr.mxu0 0.0
    %9385 = vmatpush1.msra.mxu0 %v8938
    %9386 = vmatprep.subr.mxu0 0.0
    %9387 = vmatpush1.msra.mxu0 %v8932
    %9388 = vmatprep.subr.mxu0 0.0
    %9389 = vmatpush1.msra.mxu0 %v8926
    %9390 = vmatprep.subr.mxu0 0.0
    %9391 = vmatpush1.msra.mxu0 %v8920
    %9392 = vmatprep.subr.mxu0 0.0
    %9393 = vmatpush2.msra.mxu0 0.0
    %9394 = vmatprep.subr.mxu0 0.0
    %9395 = vmatpush2.msra.mxu0 0.0
    %9396 = vmatprep.subr.mxu0 0.0
    %9397 = vmatpush2.msra.mxu0 0.0
    %9398 = vmatprep.subr.mxu0 0.0
    %9399 = vmatpush2.msra.mxu0 0.0
    %9400 = vmatprep.subr.mxu0 0.0
    %9401 = vmatpush2.msra.mxu0 0.0
    %9402 = vmatprep.subr.mxu0 0.0
    %9403 = vmatpush2.msra.mxu0 0.0
    %9404 = vmatprep.subr.mxu0 0.0
    %9405 = vmatpush2.msra.mxu0 0.0
    %9406 = vmatprep.subr.mxu0 0.0
    %9407 = vmatpush2.msra.mxu0 0.0
    %9408 = vmatprep.subr.mxu0 0.0
    %9409 = vmatpush2.msra.mxu0 0.0
    %9410 = vmatprep.subr.mxu0 0.0
    %9411 = vmatpush2.msra.mxu0 0.0
    %9412 = vmatprep.subr.mxu0 0.0
    %9413 = vmatpush2.msra.mxu0 0.0
    %9414 = vmatprep.subr.mxu0 0.0
    %9415 = vmatpush2.msra.mxu0 0.0
    %9416 = vmatprep.subr.mxu0 0.0
    %9417 = vmatpush2.msra.mxu0 0.0
    %9418 = vmatprep.subr.mxu0 0.0
    %9419 = vmatpush2.msra.mxu0 0.0
    %9420 = vmatprep.subr.mxu0 0.0
    %9421 = vmatpush2.msra.mxu0 0.0
    %9422 = vmatprep.subr.mxu0 0.0
    %9423 = vmatpush2.msra.mxu0 0.0
    %9424 = vmatprep.mubr.f32.mxu0 0.0
    %9425 = vmatmul.mubr.f32.gmra.mxu0 %v9358
    %v9426 = vpop.f32.mrf.mxu0
    %v9427 = vadd.f32 0.0, %v9426
    %v9428 = vpop.f32.mrf.mxu0
    %9429 = vdwg.mxu0
    %v9430 = vadd.f32 %v9352, %v9427
    %s9431 = scalar_lea.vmem [#allocation5], 24
    %v9432 = vld [vmem:[%s9431] sm:$0xff]
    %v9434 = vsel %vm9208, %v9432, 0
    %9436 = vmatprep.subr.mxu0 0.0
    %9437 = vmatpush1.msra.mxu0 0.0
    %9438 = vmatprep.subr.mxu0 0.0
    %9439 = vmatpush1.msra.mxu0 0.0
    %9440 = vmatprep.subr.mxu0 0.0
    %9441 = vmatpush1.msra.mxu0 0.0
    %9442 = vmatprep.subr.mxu0 0.0
    %9443 = vmatpush1.msra.mxu0 0.0
    %9444 = vmatprep.subr.mxu0 0.0
    %9445 = vmatpush1.msra.mxu0 0.0
    %9446 = vmatprep.subr.mxu0 0.0
    %9447 = vmatpush1.msra.mxu0 0.0
    %9448 = vmatprep.subr.mxu0 0.0
    %9449 = vmatpush1.msra.mxu0 0.0
    %9450 = vmatprep.subr.mxu0 0.0
    %9451 = vmatpush1.msra.mxu0 0.0
    %9452 = vmatprep.subr.mxu0 0.0
    %9453 = vmatpush1.msra.mxu0 0.0
    %9454 = vmatprep.subr.mxu0 0.0
    %9455 = vmatpush1.msra.mxu0 0.0
    %9456 = vmatprep.subr.mxu0 0.0
    %9457 = vmatpush1.msra.mxu0 0.0
    %9458 = vmatprep.subr.mxu0 0.0
    %9459 = vmatpush1.msra.mxu0 0.0
    %9460 = vmatprep.subr.mxu0 0.0
    %9461 = vmatpush1.msra.mxu0 %v8940
    %9462 = vmatprep.subr.mxu0 0.0
    %9463 = vmatpush1.msra.mxu0 %v8934
    %9464 = vmatprep.subr.mxu0 0.0
    %9465 = vmatpush1.msra.mxu0 %v8928
    %9466 = vmatprep.subr.mxu0 0.0
    %9467 = vmatpush1.msra.mxu0 %v8922
    %9468 = vmatprep.subr.mxu0 0.0
    %9469 = vmatpush2.msra.mxu0 0.0
    %9470 = vmatprep.subr.mxu0 0.0
    %9471 = vmatpush2.msra.mxu0 0.0
    %9472 = vmatprep.subr.mxu0 0.0
    %9473 = vmatpush2.msra.mxu0 0.0
    %9474 = vmatprep.subr.mxu0 0.0
    %9475 = vmatpush2.msra.mxu0 0.0
    %9476 = vmatprep.subr.mxu0 0.0
    %9477 = vmatpush2.msra.mxu0 0.0
    %9478 = vmatprep.subr.mxu0 0.0
    %9479 = vmatpush2.msra.mxu0 0.0
    %9480 = vmatprep.subr.mxu0 0.0
    %9481 = vmatpush2.msra.mxu0 0.0
    %9482 = vmatprep.subr.mxu0 0.0
    %9483 = vmatpush2.msra.mxu0 0.0
    %9484 = vmatprep.subr.mxu0 0.0
    %9485 = vmatpush2.msra.mxu0 0.0
    %9486 = vmatprep.subr.mxu0 0.0
    %9487 = vmatpush2.msra.mxu0 0.0
    %9488 = vmatprep.subr.mxu0 0.0
    %9489 = vmatpush2.msra.mxu0 0.0
    %9490 = vmatprep.subr.mxu0 0.0
    %9491 = vmatpush2.msra.mxu0 0.0
    %9492 = vmatprep.subr.mxu0 0.0
    %9493 = vmatpush2.msra.mxu0 0.0
    %9494 = vmatprep.subr.mxu0 0.0
    %9495 = vmatpush2.msra.mxu0 0.0
    %9496 = vmatprep.subr.mxu0 0.0
    %9497 = vmatpush2.msra.mxu0 0.0
    %9498 = vmatprep.subr.mxu0 0.0
    %9499 = vmatpush2.msra.mxu0 0.0
    %9500 = vmatprep.mubr.f32.mxu0 0.0
    %9501 = vmatmul.mubr.f32.gmra.mxu0 %v9434
    %v9502 = vpop.f32.mrf.mxu0
    %v9503 = vadd.f32 0.0, %v9502
    %v9504 = vpop.f32.mrf.mxu0
    %9505 = vdwg.mxu0
    %v9506 = vadd.f32 %v9430, %v9503
    %s9507 = scalar_lea.vmem [#allocation5], 32
    %v9508 = vld [vmem:[%s9507] sm:$0xff]
    %v9510 = vsel %vm9208, %v9508, 0
    %9512 = vmatprep.subr.mxu0 0.0
    %9513 = vmatpush1.msra.mxu0 0.0
    %9514 = vmatprep.subr.mxu0 0.0
    %9515 = vmatpush1.msra.mxu0 0.0
    %9516 = vmatprep.subr.mxu0 0.0
    %9517 = vmatpush1.msra.mxu0 0.0
    %9518 = vmatprep.subr.mxu0 0.0
    %9519 = vmatpush1.msra.mxu0 0.0
    %9520 = vmatprep.subr.mxu0 0.0
    %9521 = vmatpush1.msra.mxu0 0.0
    %9522 = vmatprep.subr.mxu0 0.0
    %9523 = vmatpush1.msra.mxu0 0.0
    %9524 = vmatprep.subr.mxu0 0.0
    %9525 = vmatpush1.msra.mxu0 0.0
    %9526 = vmatprep.subr.mxu0 0.0
    %9527 = vmatpush1.msra.mxu0 0.0
    %9528 = vmatprep.subr.mxu0 0.0
    %9529 = vmatpush1.msra.mxu0 0.0
    %9530 = vmatprep.subr.mxu0 0.0
    %9531 = vmatpush1.msra.mxu0 0.0
    %9532 = vmatprep.subr.mxu0 0.0
    %9533 = vmatpush1.msra.mxu0 0.0
    %9534 = vmatprep.subr.mxu0 0.0
    %9535 = vmatpush1.msra.mxu0 0.0
    %9536 = vmatprep.subr.mxu0 0.0
    %9537 = vmatpush1.msra.mxu0 %v9027
    %9538 = vmatprep.subr.mxu0 0.0
    %9539 = vmatpush1.msra.mxu0 %v9021
    %9540 = vmatprep.subr.mxu0 0.0
    %9541 = vmatpush1.msra.mxu0 %v9015
    %9542 = vmatprep.subr.mxu0 0.0
    %9543 = vmatpush1.msra.mxu0 %v9009
    %9544 = vmatprep.subr.mxu0 0.0
    %9545 = vmatpush2.msra.mxu0 0.0
    %9546 = vmatprep.subr.mxu0 0.0
    %9547 = vmatpush2.msra.mxu0 0.0
    %9548 = vmatprep.subr.mxu0 0.0
    %9549 = vmatpush2.msra.mxu0 0.0
    %9550 = vmatprep.subr.mxu0 0.0
    %9551 = vmatpush2.msra.mxu0 0.0
    %9552 = vmatprep.subr.mxu0 0.0
    %9553 = vmatpush2.msra.mxu0 0.0
    %9554 = vmatprep.subr.mxu0 0.0
    %9555 = vmatpush2.msra.mxu0 0.0
    %9556 = vmatprep.subr.mxu0 0.0
    %9557 = vmatpush2.msra.mxu0 0.0
    %9558 = vmatprep.subr.mxu0 0.0
    %9559 = vmatpush2.msra.mxu0 0.0
    %9560 = vmatprep.subr.mxu0 0.0
    %9561 = vmatpush2.msra.mxu0 0.0
    %9562 = vmatprep.subr.mxu0 0.0
    %9563 = vmatpush2.msra.mxu0 0.0
    %9564 = vmatprep.subr.mxu0 0.0
    %9565 = vmatpush2.msra.mxu0 0.0
    %9566 = vmatprep.subr.mxu0 0.0
    %9567 = vmatpush2.msra.mxu0 0.0
    %9568 = vmatprep.subr.mxu0 0.0
    %9569 = vmatpush2.msra.mxu0 0.0
    %9570 = vmatprep.subr.mxu0 0.0
    %9571 = vmatpush2.msra.mxu0 0.0
    %9572 = vmatprep.subr.mxu0 0.0
    %9573 = vmatpush2.msra.mxu0 0.0
    %9574 = vmatprep.subr.mxu0 0.0
    %9575 = vmatpush2.msra.mxu0 0.0
    %9576 = vmatprep.mubr.f32.mxu0 0.0
    %9577 = vmatmul.mubr.f32.gmra.mxu0 %v9510
    %v9578 = vpop.f32.mrf.mxu0
    %v9579 = vadd.f32 0.0, %v9578
    %v9580 = vpop.f32.mrf.mxu0
    %9581 = vdwg.mxu0
    %v9582 = vadd.f32 %v9506, %v9579
    %s9583 = scalar_lea.vmem [#allocation5], 40
    %v9584 = vld [vmem:[%s9583] sm:$0xff]
    %v9586 = vsel %vm9208, %v9584, 0
    %9588 = vmatprep.subr.mxu0 0.0
    %9589 = vmatpush1.msra.mxu0 0.0
    %9590 = vmatprep.subr.mxu0 0.0
    %9591 = vmatpush1.msra.mxu0 0.0
    %9592 = vmatprep.subr.mxu0 0.0
    %9593 = vmatpush1.msra.mxu0 0.0
    %9594 = vmatprep.subr.mxu0 0.0
    %9595 = vmatpush1.msra.mxu0 0.0
    %9596 = vmatprep.subr.mxu0 0.0
    %9597 = vmatpush1.msra.mxu0 0.0
    %9598 = vmatprep.subr.mxu0 0.0
    %9599 = vmatpush1.msra.mxu0 0.0
    %9600 = vmatprep.subr.mxu0 0.0
    %9601 = vmatpush1.msra.mxu0 0.0
    %9602 = vmatprep.subr.mxu0 0.0
    %9603 = vmatpush1.msra.mxu0 0.0
    %9604 = vmatprep.subr.mxu0 0.0
    %9605 = vmatpush1.msra.mxu0 0.0
    %9606 = vmatprep.subr.mxu0 0.0
    %9607 = vmatpush1.msra.mxu0 0.0
    %9608 = vmatprep.subr.mxu0 0.0
    %9609 = vmatpush1.msra.mxu0 0.0
    %9610 = vmatprep.subr.mxu0 0.0
    %9611 = vmatpush1.msra.mxu0 0.0
    %9612 = vmatprep.subr.mxu0 0.0
    %9613 = vmatpush1.msra.mxu0 %v9029
    %9614 = vmatprep.subr.mxu0 0.0
    %9615 = vmatpush1.msra.mxu0 %v9023
    %9616 = vmatprep.subr.mxu0 0.0
    %9617 = vmatpush1.msra.mxu0 %v9017
    %9618 = vmatprep.subr.mxu0 0.0
    %9619 = vmatpush1.msra.mxu0 %v9011
    %9620 = vmatprep.subr.mxu0 0.0
    %9621 = vmatpush2.msra.mxu0 0.0
    %9622 = vmatprep.subr.mxu0 0.0
    %9623 = vmatpush2.msra.mxu0 0.0
    %9624 = vmatprep.subr.mxu0 0.0
    %9625 = vmatpush2.msra.mxu0 0.0
    %9626 = vmatprep.subr.mxu0 0.0
    %9627 = vmatpush2.msra.mxu0 0.0
    %9628 = vmatprep.subr.mxu0 0.0
    %9629 = vmatpush2.msra.mxu0 0.0
    %9630 = vmatprep.subr.mxu0 0.0
    %9631 = vmatpush2.msra.mxu0 0.0
    %9632 = vmatprep.subr.mxu0 0.0
    %9633 = vmatpush2.msra.mxu0 0.0
    %9634 = vmatprep.subr.mxu0 0.0
    %9635 = vmatpush2.msra.mxu0 0.0
    %9636 = vmatprep.subr.mxu0 0.0
    %9637 = vmatpush2.msra.mxu0 0.0
    %9638 = vmatprep.subr.mxu0 0.0
    %9639 = vmatpush2.msra.mxu0 0.0
    %9640 = vmatprep.subr.mxu0 0.0
    %9641 = vmatpush2.msra.mxu0 0.0
    %9642 = vmatprep.subr.mxu0 0.0
    %9643 = vmatpush2.msra.mxu0 0.0
    %9644 = vmatprep.subr.mxu0 0.0
    %9645 = vmatpush2.msra.mxu0 0.0
    %9646 = vmatprep.subr.mxu0 0.0
    %9647 = vmatpush2.msra.mxu0 0.0
    %9648 = vmatprep.subr.mxu0 0.0
    %9649 = vmatpush2.msra.mxu0 0.0
    %9650 = vmatprep.subr.mxu0 0.0
    %9651 = vmatpush2.msra.mxu0 0.0
    %9652 = vmatprep.mubr.f32.mxu0 0.0
    %9653 = vmatmul.mubr.f32.gmra.mxu0 %v9586
    %v9654 = vpop.f32.mrf.mxu0
    %v9655 = vadd.f32 0.0, %v9654
    %v9656 = vpop.f32.mrf.mxu0
    %9657 = vdwg.mxu0
    %v9658 = vadd.f32 %v9582, %v9655
    %s9659 = scalar_lea.vmem [#allocation5], 48
    %v9660 = vld [vmem:[%s9659] sm:$0xff]
    %v9662 = vsel %vm9208, %v9660, 0
    %9664 = vmatprep.subr.mxu0 0.0
    %9665 = vmatpush1.msra.mxu0 0.0
    %9666 = vmatprep.subr.mxu0 0.0
    %9667 = vmatpush1.msra.mxu0 0.0
    %9668 = vmatprep.subr.mxu0 0.0
    %9669 = vmatpush1.msra.mxu0 0.0
    %9670 = vmatprep.subr.mxu0 0.0
    %9671 = vmatpush1.msra.mxu0 0.0
    %9672 = vmatprep.subr.mxu0 0.0
    %9673 = vmatpush1.msra.mxu0 0.0
    %9674 = vmatprep.subr.mxu0 0.0
    %9675 = vmatpush1.msra.mxu0 0.0
    %9676 = vmatprep.subr.mxu0 0.0
    %9677 = vmatpush1.msra.mxu0 0.0
    %9678 = vmatprep.subr.mxu0 0.0
    %9679 = vmatpush1.msra.mxu0 0.0
    %9680 = vmatprep.subr.mxu0 0.0
    %9681 = vmatpush1.msra.mxu0 0.0
    %9682 = vmatprep.subr.mxu0 0.0
    %9683 = vmatpush1.msra.mxu0 0.0
    %9684 = vmatprep.subr.mxu0 0.0
    %9685 = vmatpush1.msra.mxu0 0.0
    %9686 = vmatprep.subr.mxu0 0.0
    %9687 = vmatpush1.msra.mxu0 0.0
    %9688 = vmatprep.subr.mxu0 0.0
    %9689 = vmatpush1.msra.mxu0 %v9116
    %9690 = vmatprep.subr.mxu0 0.0
    %9691 = vmatpush1.msra.mxu0 %v9110
    %9692 = vmatprep.subr.mxu0 0.0
    %9693 = vmatpush1.msra.mxu0 %v9104
    %9694 = vmatprep.subr.mxu0 0.0
    %9695 = vmatpush1.msra.mxu0 %v9098
    %9696 = vmatprep.subr.mxu0 0.0
    %9697 = vmatpush2.msra.mxu0 0.0
    %9698 = vmatprep.subr.mxu0 0.0
    %9699 = vmatpush2.msra.mxu0 0.0
    %9700 = vmatprep.subr.mxu0 0.0
    %9701 = vmatpush2.msra.mxu0 0.0
    %9702 = vmatprep.subr.mxu0 0.0
    %9703 = vmatpush2.msra.mxu0 0.0
    %9704 = vmatprep.subr.mxu0 0.0
    %9705 = vmatpush2.msra.mxu0 0.0
    %9706 = vmatprep.subr.mxu0 0.0
    %9707 = vmatpush2.msra.mxu0 0.0
    %9708 = vmatprep.subr.mxu0 0.0
    %9709 = vmatpush2.msra.mxu0 0.0
    %9710 = vmatprep.subr.mxu0 0.0
    %9711 = vmatpush2.msra.mxu0 0.0
    %9712 = vmatprep.subr.mxu0 0.0
    %9713 = vmatpush2.msra.mxu0 0.0
    %9714 = vmatprep.subr.mxu0 0.0
    %9715 = vmatpush2.msra.mxu0 0.0
    %9716 = vmatprep.subr.mxu0 0.0
    %9717 = vmatpush2.msra.mxu0 0.0
    %9718 = vmatprep.subr.mxu0 0.0
    %9719 = vmatpush2.msra.mxu0 0.0
    %9720 = vmatprep.subr.mxu0 0.0
    %9721 = vmatpush2.msra.mxu0 0.0
    %9722 = vmatprep.subr.mxu0 0.0
    %9723 = vmatpush2.msra.mxu0 0.0
    %9724 = vmatprep.subr.mxu0 0.0
    %9725 = vmatpush2.msra.mxu0 0.0
    %9726 = vmatprep.subr.mxu0 0.0
    %9727 = vmatpush2.msra.mxu0 0.0
    %9728 = vmatprep.mubr.f32.mxu0 0.0
    %9729 = vmatmul.mubr.f32.gmra.mxu0 %v9662
    %v9730 = vpop.f32.mrf.mxu0
    %v9731 = vadd.f32 0.0, %v9730
    %v9732 = vpop.f32.mrf.mxu0
    %9733 = vdwg.mxu0
    %v9734 = vadd.f32 %v9658, %v9731
    %s9735 = scalar_lea.vmem [#allocation5], 56
    %v9736 = vld [vmem:[%s9735] sm:$0xff]
    %v9738 = vsel %vm9208, %v9736, 0
    %9740 = vmatprep.subr.mxu0 0.0
    %9741 = vmatpush1.msra.mxu0 0.0
    %9742 = vmatprep.subr.mxu0 0.0
    %9743 = vmatpush1.msra.mxu0 0.0
    %9744 = vmatprep.subr.mxu0 0.0
    %9745 = vmatpush1.msra.mxu0 0.0
    %9746 = vmatprep.subr.mxu0 0.0
    %9747 = vmatpush1.msra.mxu0 0.0
    %9748 = vmatprep.subr.mxu0 0.0
    %9749 = vmatpush1.msra.mxu0 0.0
    %9750 = vmatprep.subr.mxu0 0.0
    %9751 = vmatpush1.msra.mxu0 0.0
    %9752 = vmatprep.subr.mxu0 0.0
    %9753 = vmatpush1.msra.mxu0 0.0
    %9754 = vmatprep.subr.mxu0 0.0
    %9755 = vmatpush1.msra.mxu0 0.0
    %9756 = vmatprep.subr.mxu0 0.0
    %9757 = vmatpush1.msra.mxu0 0.0
    %9758 = vmatprep.subr.mxu0 0.0
    %9759 = vmatpush1.msra.mxu0 0.0
    %9760 = vmatprep.subr.mxu0 0.0
    %9761 = vmatpush1.msra.mxu0 0.0
    %9762 = vmatprep.subr.mxu0 0.0
    %9763 = vmatpush1.msra.mxu0 0.0
    %9764 = vmatprep.subr.mxu0 0.0
    %9765 = vmatpush1.msra.mxu0 %v9118
    %9766 = vmatprep.subr.mxu0 0.0
    %9767 = vmatpush1.msra.mxu0 %v9112
    %9768 = vmatprep.subr.mxu0 0.0
    %9769 = vmatpush1.msra.mxu0 %v9106
    %9770 = vmatprep.subr.mxu0 0.0
    %9771 = vmatpush1.msra.mxu0 %v9100
    %9772 = vmatprep.subr.mxu0 0.0
    %9773 = vmatpush2.msra.mxu0 0.0
    %9774 = vmatprep.subr.mxu0 0.0
    %9775 = vmatpush2.msra.mxu0 0.0
    %9776 = vmatprep.subr.mxu0 0.0
    %9777 = vmatpush2.msra.mxu0 0.0
    %9778 = vmatprep.subr.mxu0 0.0
    %9779 = vmatpush2.msra.mxu0 0.0
    %9780 = vmatprep.subr.mxu0 0.0
    %9781 = vmatpush2.msra.mxu0 0.0
    %9782 = vmatprep.subr.mxu0 0.0
    %9783 = vmatpush2.msra.mxu0 0.0
    %9784 = vmatprep.subr.mxu0 0.0
    %9785 = vmatpush2.msra.mxu0 0.0
    %9786 = vmatprep.subr.mxu0 0.0
    %9787 = vmatpush2.msra.mxu0 0.0
    %9788 = vmatprep.subr.mxu0 0.0
    %9789 = vmatpush2.msra.mxu0 0.0
    %9790 = vmatprep.subr.mxu0 0.0
    %9791 = vmatpush2.msra.mxu0 0.0
    %9792 = vmatprep.subr.mxu0 0.0
    %9793 = vmatpush2.msra.mxu0 0.0
    %9794 = vmatprep.subr.mxu0 0.0
    %9795 = vmatpush2.msra.mxu0 0.0
    %9796 = vmatprep.subr.mxu0 0.0
    %9797 = vmatpush2.msra.mxu0 0.0
    %9798 = vmatprep.subr.mxu0 0.0
    %9799 = vmatpush2.msra.mxu0 0.0
    %9800 = vmatprep.subr.mxu0 0.0
    %9801 = vmatpush2.msra.mxu0 0.0
    %9802 = vmatprep.subr.mxu0 0.0
    %9803 = vmatpush2.msra.mxu0 0.0
    %9804 = vmatprep.mubr.f32.mxu0 0.0
    %9805 = vmatmul.mubr.f32.gmra.mxu0 %v9738
    %v9806 = vpop.f32.mrf.mxu0
    %v9807 = vadd.f32 0.0, %v9806
    %v9808 = vpop.f32.mrf.mxu0
    %9809 = vdwg.mxu0
    %v9810 = vadd.f32 %v9734, %v9807
    %s9811 = scalar_lea.vmem [#allocation5], 64
    %v9812 = vld [vmem:[%s9811] sm:$0xff]
    %v9814 = vsel %vm9208, %v9812, 0
    %9816 = vmatprep.subr.mxu0 0.0
    %9817 = vmatpush1.msra.mxu0 0.0
    %9818 = vmatprep.subr.mxu0 0.0
    %9819 = vmatpush1.msra.mxu0 0.0
    %9820 = vmatprep.subr.mxu0 0.0
    %9821 = vmatpush1.msra.mxu0 0.0
    %9822 = vmatprep.subr.mxu0 0.0
    %9823 = vmatpush1.msra.mxu0 0.0
    %9824 = vmatprep.subr.mxu0 0.0
    %9825 = vmatpush1.msra.mxu0 0.0
    %9826 = vmatprep.subr.mxu0 0.0
    %9827 = vmatpush1.msra.mxu0 0.0
    %9828 = vmatprep.subr.mxu0 0.0
    %9829 = vmatpush1.msra.mxu0 0.0
    %9830 = vmatprep.subr.mxu0 0.0
    %9831 = vmatpush1.msra.mxu0 0.0
    %9832 = vmatprep.subr.mxu0 0.0
    %9833 = vmatpush1.msra.mxu0 0.0
    %9834 = vmatprep.subr.mxu0 0.0
    %9835 = vmatpush1.msra.mxu0 0.0
    %9836 = vmatprep.subr.mxu0 0.0
    %9837 = vmatpush1.msra.mxu0 0.0
    %9838 = vmatprep.subr.mxu0 0.0
    %9839 = vmatpush1.msra.mxu0 0.0
    %9840 = vmatprep.subr.mxu0 0.0
    %9841 = vmatpush1.msra.mxu0 %v9202
    %9842 = vmatprep.subr.mxu0 0.0
    %9843 = vmatpush1.msra.mxu0 %v9197
    %9844 = vmatprep.subr.mxu0 0.0
    %9845 = vmatpush1.msra.mxu0 %v9192
    %9846 = vmatprep.subr.mxu0 0.0
    %9847 = vmatpush1.msra.mxu0 %v9187
    %9848 = vmatprep.subr.mxu0 0.0
    %9849 = vmatpush2.msra.mxu0 0.0
    %9850 = vmatprep.subr.mxu0 0.0
    %9851 = vmatpush2.msra.mxu0 0.0
    %9852 = vmatprep.subr.mxu0 0.0
    %9853 = vmatpush2.msra.mxu0 0.0
    %9854 = vmatprep.subr.mxu0 0.0
    %9855 = vmatpush2.msra.mxu0 0.0
    %9856 = vmatprep.subr.mxu0 0.0
    %9857 = vmatpush2.msra.mxu0 0.0
    %9858 = vmatprep.subr.mxu0 0.0
    %9859 = vmatpush2.msra.mxu0 0.0
    %9860 = vmatprep.subr.mxu0 0.0
    %9861 = vmatpush2.msra.mxu0 0.0
    %9862 = vmatprep.subr.mxu0 0.0
    %9863 = vmatpush2.msra.mxu0 0.0
    %9864 = vmatprep.subr.mxu0 0.0
    %9865 = vmatpush2.msra.mxu0 0.0
    %9866 = vmatprep.subr.mxu0 0.0
    %9867 = vmatpush2.msra.mxu0 0.0
    %9868 = vmatprep.subr.mxu0 0.0
    %9869 = vmatpush2.msra.mxu0 0.0
    %9870 = vmatprep.subr.mxu0 0.0
    %9871 = vmatpush2.msra.mxu0 0.0
    %9872 = vmatprep.subr.mxu0 0.0
    %9873 = vmatpush2.msra.mxu0 0.0
    %9874 = vmatprep.subr.mxu0 0.0
    %9875 = vmatpush2.msra.mxu0 0.0
    %9876 = vmatprep.subr.mxu0 0.0
    %9877 = vmatpush2.msra.mxu0 0.0
    %9878 = vmatprep.subr.mxu0 0.0
    %9879 = vmatpush2.msra.mxu0 0.0
    %9880 = vmatprep.mubr.f32.mxu0 0.0
    %9881 = vmatmul.mubr.f32.gmra.mxu0 %v9814
    %v9882 = vpop.f32.mrf.mxu0
    %v9883 = vadd.f32 0.0, %v9882
    %v9884 = vpop.f32.mrf.mxu0
    %9885 = vdwg.mxu0
    %v9886 = vadd.f32 %v9810, %v9883
    %v9887 = vld [vmem:[%s17] sm:$0x1]
    %v9889 = vlaneseq
    %v9890 = vshrl.u32 %v9889, 7
    %v9891 = vsub.s32 0, %v9890
    %v9892 = vrot.slane %v9887, %v9891
    %v9894 = vadd.f32 %v9886, %v9892
    %v9895 = vmax.f32 %v9894, 0.0
    %v9896 = vrot.slane %v9895, 4
    %v9897 = vadd.f32 %v9895, %v9896
    %v9898 = vrot.slane %v9897, 2
    %v9899 = vadd.f32 %v9897, %v9898
    %v9900 = vrot.slane %v9899, 1
    %v9901 = vadd.f32 %v9899, %v9900
    %v9902 = vmul.f32 %v9901, 0.125
    %v9903 = vmul.f32 %v9895, %v9895
    %v9904 = vrot.slane %v9903, 4
    %v9905 = vadd.f32 %v9903, %v9904
    %v9906 = vrot.slane %v9905, 2
    %v9907 = vadd.f32 %v9905, %v9906
    %v9908 = vrot.slane %v9907, 1
    %v9909 = vadd.f32 %v9907, %v9908
    %v9910 = vmul.f32 %v9909, 0.125
    %v9911 = vmul.f32 %v9902, %v9902
    %v9912 = vsub.f32 %v9910, %v9911
    %v9913 = vld [vmem:[%s18] sm:$0x1]
    %v9914 = vadd.f32 %v9912, 1e-05
    %v9915 = vrsqrt.pop %v9914
    %v9916 = vmul.f32 %v9913, %v9915
    %v9917 = vld [vmem:[%s19] sm:$0x1]
    %v9918 = vmul.f32 %v9902, %v9916
    %v9919 = vsub.f32 %v9917, %v9918
    %v9921 = vlaneseq
    %v9922 = vshrl.u32 %v9921, 7
    %v9923 = vsub.s32 0, %v9922
    %v9924 = vrot.slane %v9916, %v9923
    %v9926 = vmul.f32 %v9895, %v9924
    %v9928 = vlaneseq
    %v9929 = vshrl.u32 %v9928, 7
    %v9930 = vsub.s32 0, %v9929
    %v9931 = vrot.slane %v9919, %v9930
    %v9933 = vadd.f32 %v9926, %v9931
    %v9934 = vld [vmem:[%s20] sm:$0xff]
    %v9935 = vld [vmem:[%s20 + $0x8] sm:$0xff]
    %v9936 = vld [vmem:[%s20 + $0x10] sm:$0xff]
    %v9937 = vld [vmem:[%s20 + $0x18] sm:$0xff]
    %v9938 = vld [vmem:[%s20 + $0x20] sm:$0xff]
    %v9939 = vld [vmem:[%s20 + $0x28] sm:$0xff]
    %v9940 = vld [vmem:[%s20 + $0x30] sm:$0xff]
    %v9941 = vld [vmem:[%s20 + $0x38] sm:$0xff]
    %v9942 = vld [vmem:[%s20 + $0x40] sm:$0xff]
    %v9943 = vld [vmem:[%s20 + $0x48] sm:$0xff]
    %v9944 = vld [vmem:[%s20 + $0x50] sm:$0xff]
    %v9945 = vld [vmem:[%s20 + $0x58] sm:$0xff]
    %v9946 = vld [vmem:[%s20 + $0x60] sm:$0xff]
    %v9947 = vld [vmem:[%s20 + $0x68] sm:$0xff]
    %v9948 = vld [vmem:[%s20 + $0x70] sm:$0xff]
    %v9949 = vld [vmem:[%s20 + $0x78] sm:$0xff]
    %9950 = vmatprep.subr.mxu0 0.0
    %9951 = vmatpush1.msra.mxu0 %v9949
    %9952 = vmatprep.subr.mxu0 0.0
    %9953 = vmatpush1.msra.mxu0 %v9948
    %9954 = vmatprep.subr.mxu0 0.0
    %9955 = vmatpush1.msra.mxu0 %v9947
    %9956 = vmatprep.subr.mxu0 0.0
    %9957 = vmatpush1.msra.mxu0 %v9946
    %9958 = vmatprep.subr.mxu0 0.0
    %9959 = vmatpush1.msra.mxu0 %v9945
    %9960 = vmatprep.subr.mxu0 0.0
    %9961 = vmatpush1.msra.mxu0 %v9944
    %9962 = vmatprep.subr.mxu0 0.0
    %9963 = vmatpush1.msra.mxu0 %v9943
    %9964 = vmatprep.subr.mxu0 0.0
    %9965 = vmatpush1.msra.mxu0 %v9942
    %9966 = vmatprep.subr.mxu0 0.0
    %9967 = vmatpush1.msra.mxu0 %v9941
    %9968 = vmatprep.subr.mxu0 0.0
    %9969 = vmatpush1.msra.mxu0 %v9940
    %9970 = vmatprep.subr.mxu0 0.0
    %9971 = vmatpush1.msra.mxu0 %v9939
    %9972 = vmatprep.subr.mxu0 0.0
    %9973 = vmatpush1.msra.mxu0 %v9938
    %9974 = vmatprep.subr.mxu0 0.0
    %9975 = vmatpush1.msra.mxu0 %v9937
    %9976 = vmatprep.subr.mxu0 0.0
    %9977 = vmatpush1.msra.mxu0 %v9936
    %9978 = vmatprep.subr.mxu0 0.0
    %9979 = vmatpush1.msra.mxu0 %v9935
    %9980 = vmatprep.subr.mxu0 0.0
    %9981 = vmatpush1.msra.mxu0 %v9934
    %9982 = vmatprep.subr.mxu0 0.0
    %9983 = vmatpush2.msra.mxu0 0.0
    %9984 = vmatprep.subr.mxu0 0.0
    %9985 = vmatpush2.msra.mxu0 0.0
    %9986 = vmatprep.subr.mxu0 0.0
    %9987 = vmatpush2.msra.mxu0 0.0
    %9988 = vmatprep.subr.mxu0 0.0
    %9989 = vmatpush2.msra.mxu0 0.0
    %9990 = vmatprep.subr.mxu0 0.0
    %9991 = vmatpush2.msra.mxu0 0.0
    %9992 = vmatprep.subr.mxu0 0.0
    %9993 = vmatpush2.msra.mxu0 0.0
    %9994 = vmatprep.subr.mxu0 0.0
    %9995 = vmatpush2.msra.mxu0 0.0
    %9996 = vmatprep.subr.mxu0 0.0
    %9997 = vmatpush2.msra.mxu0 0.0
    %9998 = vmatprep.subr.mxu0 0.0
    %9999 = vmatpush2.msra.mxu0 0.0
    %10000 = vmatprep.subr.mxu0 0.0
    %10001 = vmatpush2.msra.mxu0 0.0
    %10002 = vmatprep.subr.mxu0 0.0
    %10003 = vmatpush2.msra.mxu0 0.0
    %10004 = vmatprep.subr.mxu0 0.0
    %10005 = vmatpush2.msra.mxu0 0.0
    %10006 = vmatprep.subr.mxu0 0.0
    %10007 = vmatpush2.msra.mxu0 0.0
    %10008 = vmatprep.subr.mxu0 0.0
    %10009 = vmatpush2.msra.mxu0 0.0
    %10010 = vmatprep.subr.mxu0 0.0
    %10011 = vmatpush2.msra.mxu0 0.0
    %10012 = vmatprep.subr.mxu0 0.0
    %10013 = vmatpush2.msra.mxu0 0.0
    %10014 = vmatprep.mubr.f32.mxu0 0.0
    %10015 = vmatmul.mubr.f32.gmra.mxu0 %v9933
    %v10016 = vpop.f32.mrf.mxu0
    %v10017 = vadd.f32 0.0, %v10016
    %v10018 = vpop.f32.mrf.mxu0
    %10019 = vdwg.mxu0
    %10020 = vst [vmem:[#allocation8] sm:$0xff] %v10017
    // Predicated region
    $region98: #{stem_forward.1} parent=1 // pred_check
      _
    $region99: #{stem_forward.1} parent=1 // pred_check_branch
      %10022 = sbr.rel (0) target = $region101
    $region100: #{stem_forward.1} parent=1 // pred_region
      %s10024 = ssub.s32 128, 128
      %10025 = vsyncadd [#allocation4], %s10024
      %s10027 = sshll.u32 [#allocation8], 4
      %s10028 = int_to_ptr.vmem [resolvable:$true] %s10027
      %10030 = dma.vmem_to_hbm [thread:$0]  %s10028, 128, %s21, [#allocation4]
    $region101: #{stem_forward.1} parent=1 // pred_fallthru
      _
    // Predicated region
    $region102: #{stem_forward.1} parent=1 // pred_check
      _
    $region103: #{stem_forward.1} parent=1 // pred_check_branch
      %10032 = sbr.rel (0) target = $region105
    $region104: #{stem_forward.1} parent=1 // pred_region
      %10033 = dma.done [#allocation4], 128
    $region105: #{stem_forward.1} parent=1 // pred_fallthru
      _
    %10034 = vsyncpa [#allocation3], 1
    %10035 = vsyncpa [#allocation6], 1
    %10036 = vsyncpa [#allocation4], 1

</llo_original>
